<compile_context>
chip_gen: v6e
topology: v6e:2x2x1
jax: 0.10.0
libtpu: 0.0.40
codegen_flags: <defaults>
</compile_context>

<pallas_src>
import math

import numpy as np
import jax
import jax.numpy as jnp
from jax.experimental import pallas as pl
from jax.experimental.pallas import tpu as pltpu

NUM_CLASSES = 10
HEAD_PAD = 128    # pad head logits to a full 128-lane register -> unmasked store


# --------------------------------------------------------------------------
# Kernel
# --------------------------------------------------------------------------
def _encoder_level(a, s_ref, sel_ref, w_ref, b_ref):
    """Conv3x3(pad 1) + folded-BN bias + ReLU + MaxPool(2) for one level.

    a       : (HW, Cin)   f32   activations, pixels row-major on sublanes.
    s_ref   : (9, HW, HW) bf16  0/1 tap-shift matrices (zero rows = padding).
    sel_ref : (4, HW//4, HW) bf16  0/1 pool-phase selection matrices.
    w_ref   : (9, 1, Cout) f32  level-1 (Cin=1) weights (VPU outer product), or
              (9*Cin, Cout) bf16 tap-concatenated weights (BN scale folded in).
    b_ref   : (1, Cout)   f32   fused conv-bias / BN bias.
    returns : (HW//4, Cout) f32
    """
    a16 = a.astype(jnp.bfloat16)
    # Tap t = kh*3+kw selects input pixel (h+kh-1, w+kw-1) for output (h, w).
    taps = [jnp.dot(s_ref[t], a16, preferred_element_type=jnp.float32)
            for t in range(9)]
    if len(w_ref.shape) == 3:
        # Cin == 1: each tap contribution is an outer product -> VPU, f32.
        y = taps[0] * w_ref[0]
        for t in range(1, 9):
            y = y + taps[t] * w_ref[t]
    else:
        # Concatenate taps along K -> ONE MXU matmul with K = 9*Cin.
        lhs = jnp.concatenate(taps, axis=1).astype(jnp.bfloat16)
        y = jnp.dot(lhs, w_ref[...], preferred_element_type=jnp.float32)
    y = jnp.maximum(y + b_ref[...], 0.0).astype(jnp.bfloat16)     # bias + ReLU
    # 2x2 max-pool: max over 4 phases, each phase gathered by a 0/1 matmul.
    out = jnp.dot(sel_ref[0], y, preferred_element_type=jnp.float32)
    for p in range(1, 4):
        out = jnp.maximum(
            out, jnp.dot(sel_ref[p], y, preferred_element_type=jnp.float32))
    return out


def fused_cnn_kernel(x_ref, *refs):
    # refs = (s1, sel1, w1, b1, s2, sel2, w2, b2, s3, sel3, w3, b3, wh, bh, out)
    *level_refs, wh_ref, bh_ref, o_ref = refs
    n_levels = len(level_refs) // 4

    a = x_ref[0]                                        # (H*W, 1) f32
    for l in range(n_levels):
        s_ref, sel_ref, w_ref, b_ref = level_refs[4 * l: 4 * l + 4]
        a = _encoder_level(a, s_ref, sel_ref, w_ref, b_ref)
        # nn.Dropout(0.2): identity at inference time.

    # AdaptiveAvgPool2d((1,1)) + Flatten: mean over the remaining pixels.
    pooled = jnp.mean(a, axis=0, keepdims=True)         # (1, Cout) f32
    # Linear head in f32 (M=1; padded to 128 output lanes -> lane-dense store).
    logits = jnp.dot(pooled, wh_ref[...],
                     preferred_element_type=jnp.float32) + bh_ref[...]
    o_ref[...] = logits[None]                           # (1, 1, HEAD_PAD)


# --------------------------------------------------------------------------
# Host-side constant 0/1 matrices (built once; a few hundred KiB in bf16).
# --------------------------------------------------------------------------
def _shift_matrices(h, w):
    """(9, h*w, h*w): row p of tap (kh,kw) selects pixel (h+kh-1, w+kw-1) or 0."""
    hw = h * w
    s = np.zeros((9, hw, hw), np.float32)
    for kh in range(3):
        for kw in range(3):
            t = kh * 3 + kw
            for i in range(h):
                ii = i + kh - 1
                if not 0 <= ii < h:
                    continue
                for j in range(w):
                    jj = j + kw - 1
                    if 0 <= jj < w:
                        s[t, i * w + j, ii * w + jj] = 1.0
    return s


def _pool_select_matrices(h, w):
    """(4, (h//2)*(w//2), h*w): phase (ph,pw) selects pixel (2i+ph, 2j+pw)."""
    ho, wo = h // 2, w // 2
    sel = np.zeros((4, ho * wo, h * w), np.float32)
    for ph in range(2):
        for pw in range(2):
            p = ph * 2 + pw
            for i in range(ho):
                for j in range(wo):
                    sel[p, i * wo + j, (2 * i + ph) * w + (2 * j + pw)] = 1.0
    return sel


# --------------------------------------------------------------------------
# Parameters (levels=3, blocks=1, channels=32; BN eval running stats folded).
# --------------------------------------------------------------------------
def init_params(key, *, height=16, width=16, levels=3, channels=32, eps=1e-5):
    assert height % (2 ** levels) == 0 and width % (2 ** levels) == 0
    params = {"levels": [], "consts": []}
    h, w = height, width
    cin = 1
    for l in range(levels):
        cout = channels * 2 ** l
        key, kw_, kb, kg, kbe = jax.random.split(key, 5)
        wconv = jax.random.normal(kw_, (3, 3, cin, cout), jnp.float32) / math.sqrt(9 * cin)
        conv_b = 0.05 * jax.random.normal(kb, (cout,), jnp.float32)
        gamma = 1.0 + 0.1 * jax.random.normal(kg, (cout,), jnp.float32)
        beta = 0.1 * jax.random.normal(kbe, (cout,), jnp.float32)
        running_mean = jnp.zeros((cout,), jnp.float32)   # PyTorch BN eval defaults
        running_var = jnp.ones((cout,), jnp.float32)
        scale = gamma / jnp.sqrt(running_var + eps)       # BN scale -> folded into W
        bias_eff = (conv_b - running_mean) * scale + beta
        w_folded = wconv * scale                          # (3, 3, cin, cout)
        if cin == 1:
            w_arr = w_folded.reshape(9, 1, cout)                           # VPU, f32
        else:
            w_arr = w_folded.reshape(9 * cin, cout).astype(jnp.bfloat16)   # K-concat
        params["levels"].append((w_arr, bias_eff.reshape(1, cout)))
        params["consts"].append((
            jnp.asarray(_shift_matrices(h, w), jnp.bfloat16),
            jnp.asarray(_pool_select_matrices(h, w), jnp.bfloat16)))
        cin, h, w = cout, h // 2, w // 2

    key, khd, kbh = jax.random.split(key, 3)
    w_head = jax.random.normal(khd, (cin, NUM_CLASSES), jnp.float32) / math.sqrt(cin)
    b_head = 0.05 * jax.random.normal(kbh, (NUM_CLASSES,), jnp.float32)
    params["w_head"] = jnp.zeros((cin, HEAD_PAD), jnp.float32).at[:, :NUM_CLASSES].set(w_head)
    params["b_head"] = jnp.zeros((1, HEAD_PAD), jnp.float32).at[:, :NUM_CLASSES].set(b_head)
    return params


# --------------------------------------------------------------------------
# Forward pass: one fused pallas_call, gridded over batch.
# --------------------------------------------------------------------------
def forward(x_nchw, params):
    N, C, H, W = x_nchw.shape
    assert C == 1, "module is built for 1 input channel"
    x = x_nchw.reshape(N, H * W, 1).astype(jnp.float32)   # pixels row-major

    args = [x]
    in_specs = [pl.BlockSpec((1, H * W, 1), lambda n: (n, 0, 0))]

    def full_spec(arr):
        zeros = (0,) * arr.ndim
        return pl.BlockSpec(arr.shape, lambda n, _z=zeros: _z)

    for (s, sel), (wl, bl) in zip(params["consts"], params["levels"]):
        for arr in (s, sel, wl, bl):
            args.append(arr)
            in_specs.append(full_spec(arr))
    for arr in (params["w_head"], params["b_head"]):
        args.append(arr)
        in_specs.append(full_spec(arr))

    out = pl.pallas_call(
        fused_cnn_kernel,
        grid=(N,),
        in_specs=in_specs,
        out_specs=pl.BlockSpec((1, 1, HEAD_PAD), lambda n: (n, 0, 0)),
        out_shape=jax.ShapeDtypeStruct((N, 1, HEAD_PAD), jnp.float32),
        compiler_params=pltpu.CompilerParams(dimension_semantics=("parallel",)),
    )(*args)
    return out.reshape(N, HEAD_PAD)[:, :NUM_CLASSES]


if __name__ == "__main__":
    key = jax.random.PRNGKey(0)
    kx, kp = jax.random.split(key)
    # Same layout as the PyTorch module expects: (N, 1, H, W)
    x = jax.random.normal(kx, (2, 1, 16, 16), jnp.float32)
    params = init_params(kp, height=16, width=16)

    out = jax.block_until_ready(jax.jit(forward)(x, params))
    assert out.shape == (2, NUM_CLASSES) and out.dtype == jnp.float32
    assert bool(jnp.all(jnp.isfinite(out)))
    print("KERNEL_OK")
</pallas_src>

<mosaic_0001>
module attributes {stable_mosaic.version = 11 : i64} {
  func.func @fused_cnn_kernel(%arg0: i32, %arg1: memref<1x256x1xf32, #tpu.memory_space<vmem>>, %arg2: memref<9x256x256xbf16, #tpu.memory_space<vmem>>, %arg3: memref<4x64x256xbf16, #tpu.memory_space<vmem>>, %arg4: memref<9x1x32xf32, #tpu.memory_space<vmem>>, %arg5: memref<1x32xf32, #tpu.memory_space<vmem>>, %arg6: memref<9x64x64xbf16, #tpu.memory_space<vmem>>, %arg7: memref<4x16x64xbf16, #tpu.memory_space<vmem>>, %arg8: memref<288x64xbf16, #tpu.memory_space<vmem>>, %arg9: memref<1x64xf32, #tpu.memory_space<vmem>>, %arg10: memref<9x16x16xbf16, #tpu.memory_space<vmem>>, %arg11: memref<4x4x16xbf16, #tpu.memory_space<vmem>>, %arg12: memref<576x128xbf16, #tpu.memory_space<vmem>>, %arg13: memref<1x128xf32, #tpu.memory_space<vmem>>, %arg14: memref<128x128xf32, #tpu.memory_space<vmem>>, %arg15: memref<1x128xf32, #tpu.memory_space<vmem>>, %arg16: memref<1x1x128xf32, #tpu.memory_space<vmem>>) attributes {dimension_semantics = [#tpu.dimension_semantics<parallel>], iteration_bounds = array<i64: 2>, scalar_prefetch = 0 : i64, scratch_operands = 0 : i64, tpu.core_type = #tpu.core_type<tc>, window_params = [{transform_indices = @transform_0, window_bounds = array<i64: 1, 256, 1>}, {pipeline_mode = #tpu.pipeline_mode<synchronous>, transform_indices = @transform_1, window_bounds = array<i64: 9, 256, 256>}, {pipeline_mode = #tpu.pipeline_mode<synchronous>, transform_indices = @transform_2, window_bounds = array<i64: 4, 64, 256>}, {pipeline_mode = #tpu.pipeline_mode<synchronous>, transform_indices = @transform_3, window_bounds = array<i64: 9, 1, 32>}, {pipeline_mode = #tpu.pipeline_mode<synchronous>, transform_indices = @transform_4, window_bounds = array<i64: 1, 32>}, {pipeline_mode = #tpu.pipeline_mode<synchronous>, transform_indices = @transform_5, window_bounds = array<i64: 9, 64, 64>}, {pipeline_mode = #tpu.pipeline_mode<synchronous>, transform_indices = @transform_6, window_bounds = array<i64: 4, 16, 64>}, {pipeline_mode = #tpu.pipeline_mode<synchronous>, transform_indices = @transform_7, window_bounds = array<i64: 288, 64>}, {pipeline_mode = #tpu.pipeline_mode<synchronous>, transform_indices = @transform_8, window_bounds = array<i64: 1, 64>}, {pipeline_mode = #tpu.pipeline_mode<synchronous>, transform_indices = @transform_9, window_bounds = array<i64: 9, 16, 16>}, {pipeline_mode = #tpu.pipeline_mode<synchronous>, transform_indices = @transform_10, window_bounds = array<i64: 4, 4, 16>}, {pipeline_mode = #tpu.pipeline_mode<synchronous>, transform_indices = @transform_11, window_bounds = array<i64: 576, 128>}, {pipeline_mode = #tpu.pipeline_mode<synchronous>, transform_indices = @transform_12, window_bounds = array<i64: 1, 128>}, {pipeline_mode = #tpu.pipeline_mode<synchronous>, transform_indices = @transform_13, window_bounds = array<i64: 128, 128>}, {pipeline_mode = #tpu.pipeline_mode<synchronous>, transform_indices = @transform_14, window_bounds = array<i64: 1, 128>}, {transform_indices = @transform_15, window_bounds = array<i64: 1, 1, 128>}]} {
    %c0 = arith.constant 0 : index
    %c0_0 = arith.constant 0 : index
    %c0_1 = arith.constant 0 : index
    %0 = vector.load %arg1[%c0, %c0_0, %c0_1] : memref<1x256x1xf32, #tpu.memory_space<vmem>>, vector<1x256x1xf32>
    %1 = vector.shape_cast %0 : vector<1x256x1xf32> to vector<256x1xf32>
    %2 = arith.truncf %1 : vector<256x1xf32> to vector<256x1xbf16>
    %c0_2 = arith.constant 0 : index
    %c0_3 = arith.constant 0 : index
    %c0_4 = arith.constant 0 : index
    %3 = vector.load %arg2[%c0_2, %c0_3, %c0_4] : memref<9x256x256xbf16, #tpu.memory_space<vmem>>, vector<1x256x256xbf16>
    %4 = vector.shape_cast %3 : vector<1x256x256xbf16> to vector<256x256xbf16>
    %cst = arith.constant dense<0.000000e+00> : vector<256x1xf32>
    %5 = tpu.matmul %4, %2, %cst {dimension_numbers = #tpu.dot_dimension_numbers<[1], [0], [0], [1], [0, 0, 1, 1], [], []>} : vector<256x256xbf16>, vector<256x1xbf16>, vector<256x1xf32> -> vector<256x1xf32>
    %c1 = arith.constant 1 : index
    %c0_5 = arith.constant 0 : index
    %c0_6 = arith.constant 0 : index
    %6 = vector.load %arg2[%c1, %c0_5, %c0_6] : memref<9x256x256xbf16, #tpu.memory_space<vmem>>, vector<1x256x256xbf16>
    %7 = vector.shape_cast %6 : vector<1x256x256xbf16> to vector<256x256xbf16>
    %cst_7 = arith.constant dense<0.000000e+00> : vector<256x1xf32>
    %8 = tpu.matmul %7, %2, %cst_7 {dimension_numbers = #tpu.dot_dimension_numbers<[1], [0], [0], [1], [0, 0, 1, 1], [], []>} : vector<256x256xbf16>, vector<256x1xbf16>, vector<256x1xf32> -> vector<256x1xf32>
    %c2 = arith.constant 2 : index
    %c0_8 = arith.constant 0 : index
    %c0_9 = arith.constant 0 : index
    %9 = vector.load %arg2[%c2, %c0_8, %c0_9] : memref<9x256x256xbf16, #tpu.memory_space<vmem>>, vector<1x256x256xbf16>
    %10 = vector.shape_cast %9 : vector<1x256x256xbf16> to vector<256x256xbf16>
    %cst_10 = arith.constant dense<0.000000e+00> : vector<256x1xf32>
    %11 = tpu.matmul %10, %2, %cst_10 {dimension_numbers = #tpu.dot_dimension_numbers<[1], [0], [0], [1], [0, 0, 1, 1], [], []>} : vector<256x256xbf16>, vector<256x1xbf16>, vector<256x1xf32> -> vector<256x1xf32>
    %c3 = arith.constant 3 : index
    %c0_11 = arith.constant 0 : index
    %c0_12 = arith.constant 0 : index
    %12 = vector.load %arg2[%c3, %c0_11, %c0_12] : memref<9x256x256xbf16, #tpu.memory_space<vmem>>, vector<1x256x256xbf16>
    %13 = vector.shape_cast %12 : vector<1x256x256xbf16> to vector<256x256xbf16>
    %cst_13 = arith.constant dense<0.000000e+00> : vector<256x1xf32>
    %14 = tpu.matmul %13, %2, %cst_13 {dimension_numbers = #tpu.dot_dimension_numbers<[1], [0], [0], [1], [0, 0, 1, 1], [], []>} : vector<256x256xbf16>, vector<256x1xbf16>, vector<256x1xf32> -> vector<256x1xf32>
    %c4 = arith.constant 4 : index
    %c0_14 = arith.constant 0 : index
    %c0_15 = arith.constant 0 : index
    %15 = vector.load %arg2[%c4, %c0_14, %c0_15] : memref<9x256x256xbf16, #tpu.memory_space<vmem>>, vector<1x256x256xbf16>
    %16 = vector.shape_cast %15 : vector<1x256x256xbf16> to vector<256x256xbf16>
    %cst_16 = arith.constant dense<0.000000e+00> : vector<256x1xf32>
    %17 = tpu.matmul %16, %2, %cst_16 {dimension_numbers = #tpu.dot_dimension_numbers<[1], [0], [0], [1], [0, 0, 1, 1], [], []>} : vector<256x256xbf16>, vector<256x1xbf16>, vector<256x1xf32> -> vector<256x1xf32>
    %c5 = arith.constant 5 : index
    %c0_17 = arith.constant 0 : index
    %c0_18 = arith.constant 0 : index
    %18 = vector.load %arg2[%c5, %c0_17, %c0_18] : memref<9x256x256xbf16, #tpu.memory_space<vmem>>, vector<1x256x256xbf16>
    %19 = vector.shape_cast %18 : vector<1x256x256xbf16> to vector<256x256xbf16>
    %cst_19 = arith.constant dense<0.000000e+00> : vector<256x1xf32>
    %20 = tpu.matmul %19, %2, %cst_19 {dimension_numbers = #tpu.dot_dimension_numbers<[1], [0], [0], [1], [0, 0, 1, 1], [], []>} : vector<256x256xbf16>, vector<256x1xbf16>, vector<256x1xf32> -> vector<256x1xf32>
    %c6 = arith.constant 6 : index
    %c0_20 = arith.constant 0 : index
    %c0_21 = arith.constant 0 : index
    %21 = vector.load %arg2[%c6, %c0_20, %c0_21] : memref<9x256x256xbf16, #tpu.memory_space<vmem>>, vector<1x256x256xbf16>
    %22 = vector.shape_cast %21 : vector<1x256x256xbf16> to vector<256x256xbf16>
    %cst_22 = arith.constant dense<0.000000e+00> : vector<256x1xf32>
    %23 = tpu.matmul %22, %2, %cst_22 {dimension_numbers = #tpu.dot_dimension_numbers<[1], [0], [0], [1], [0, 0, 1, 1], [], []>} : vector<256x256xbf16>, vector<256x1xbf16>, vector<256x1xf32> -> vector<256x1xf32>
    %c7 = arith.constant 7 : index
    %c0_23 = arith.constant 0 : index
    %c0_24 = arith.constant 0 : index
    %24 = vector.load %arg2[%c7, %c0_23, %c0_24] : memref<9x256x256xbf16, #tpu.memory_space<vmem>>, vector<1x256x256xbf16>
    %25 = vector.shape_cast %24 : vector<1x256x256xbf16> to vector<256x256xbf16>
    %cst_25 = arith.constant dense<0.000000e+00> : vector<256x1xf32>
    %26 = tpu.matmul %25, %2, %cst_25 {dimension_numbers = #tpu.dot_dimension_numbers<[1], [0], [0], [1], [0, 0, 1, 1], [], []>} : vector<256x256xbf16>, vector<256x1xbf16>, vector<256x1xf32> -> vector<256x1xf32>
    %c8 = arith.constant 8 : index
    %c0_26 = arith.constant 0 : index
    %c0_27 = arith.constant 0 : index
    %27 = vector.load %arg2[%c8, %c0_26, %c0_27] : memref<9x256x256xbf16, #tpu.memory_space<vmem>>, vector<1x256x256xbf16>
    %28 = vector.shape_cast %27 : vector<1x256x256xbf16> to vector<256x256xbf16>
    %cst_28 = arith.constant dense<0.000000e+00> : vector<256x1xf32>
    %29 = tpu.matmul %28, %2, %cst_28 {dimension_numbers = #tpu.dot_dimension_numbers<[1], [0], [0], [1], [0, 0, 1, 1], [], []>} : vector<256x256xbf16>, vector<256x1xbf16>, vector<256x1xf32> -> vector<256x1xf32>
    %c0_29 = arith.constant 0 : index
    %c0_30 = arith.constant 0 : index
    %c0_31 = arith.constant 0 : index
    %30 = vector.load %arg4[%c0_29, %c0_30, %c0_31] : memref<9x1x32xf32, #tpu.memory_space<vmem>>, vector<1x1x32xf32>
    %31 = vector.shape_cast %30 : vector<1x1x32xf32> to vector<1x32xf32>
    %32 = vector.broadcast %5 : vector<256x1xf32> to vector<256x32xf32>
    %33 = vector.broadcast %31 : vector<1x32xf32> to vector<256x32xf32>
    %34 = arith.mulf %32, %33 : vector<256x32xf32>
    %c1_32 = arith.constant 1 : index
    %c0_33 = arith.constant 0 : index
    %c0_34 = arith.constant 0 : index
    %35 = vector.load %arg4[%c1_32, %c0_33, %c0_34] : memref<9x1x32xf32, #tpu.memory_space<vmem>>, vector<1x1x32xf32>
    %36 = vector.shape_cast %35 : vector<1x1x32xf32> to vector<1x32xf32>
    %37 = vector.broadcast %8 : vector<256x1xf32> to vector<256x32xf32>
    %38 = vector.broadcast %36 : vector<1x32xf32> to vector<256x32xf32>
    %39 = arith.mulf %37, %38 : vector<256x32xf32>
    %40 = arith.addf %34, %39 : vector<256x32xf32>
    %c2_35 = arith.constant 2 : index
    %c0_36 = arith.constant 0 : index
    %c0_37 = arith.constant 0 : index
    %41 = vector.load %arg4[%c2_35, %c0_36, %c0_37] : memref<9x1x32xf32, #tpu.memory_space<vmem>>, vector<1x1x32xf32>
    %42 = vector.shape_cast %41 : vector<1x1x32xf32> to vector<1x32xf32>
    %43 = vector.broadcast %11 : vector<256x1xf32> to vector<256x32xf32>
    %44 = vector.broadcast %42 : vector<1x32xf32> to vector<256x32xf32>
    %45 = arith.mulf %43, %44 : vector<256x32xf32>
    %46 = arith.addf %40, %45 : vector<256x32xf32>
    %c3_38 = arith.constant 3 : index
    %c0_39 = arith.constant 0 : index
    %c0_40 = arith.constant 0 : index
    %47 = vector.load %arg4[%c3_38, %c0_39, %c0_40] : memref<9x1x32xf32, #tpu.memory_space<vmem>>, vector<1x1x32xf32>
    %48 = vector.shape_cast %47 : vector<1x1x32xf32> to vector<1x32xf32>
    %49 = vector.broadcast %14 : vector<256x1xf32> to vector<256x32xf32>
    %50 = vector.broadcast %48 : vector<1x32xf32> to vector<256x32xf32>
    %51 = arith.mulf %49, %50 : vector<256x32xf32>
    %52 = arith.addf %46, %51 : vector<256x32xf32>
    %c4_41 = arith.constant 4 : index
    %c0_42 = arith.constant 0 : index
    %c0_43 = arith.constant 0 : index
    %53 = vector.load %arg4[%c4_41, %c0_42, %c0_43] : memref<9x1x32xf32, #tpu.memory_space<vmem>>, vector<1x1x32xf32>
    %54 = vector.shape_cast %53 : vector<1x1x32xf32> to vector<1x32xf32>
    %55 = vector.broadcast %17 : vector<256x1xf32> to vector<256x32xf32>
    %56 = vector.broadcast %54 : vector<1x32xf32> to vector<256x32xf32>
    %57 = arith.mulf %55, %56 : vector<256x32xf32>
    %58 = arith.addf %52, %57 : vector<256x32xf32>
    %c5_44 = arith.constant 5 : index
    %c0_45 = arith.constant 0 : index
    %c0_46 = arith.constant 0 : index
    %59 = vector.load %arg4[%c5_44, %c0_45, %c0_46] : memref<9x1x32xf32, #tpu.memory_space<vmem>>, vector<1x1x32xf32>
    %60 = vector.shape_cast %59 : vector<1x1x32xf32> to vector<1x32xf32>
    %61 = vector.broadcast %20 : vector<256x1xf32> to vector<256x32xf32>
    %62 = vector.broadcast %60 : vector<1x32xf32> to vector<256x32xf32>
    %63 = arith.mulf %61, %62 : vector<256x32xf32>
    %64 = arith.addf %58, %63 : vector<256x32xf32>
    %c6_47 = arith.constant 6 : index
    %c0_48 = arith.constant 0 : index
    %c0_49 = arith.constant 0 : index
    %65 = vector.load %arg4[%c6_47, %c0_48, %c0_49] : memref<9x1x32xf32, #tpu.memory_space<vmem>>, vector<1x1x32xf32>
    %66 = vector.shape_cast %65 : vector<1x1x32xf32> to vector<1x32xf32>
    %67 = vector.broadcast %23 : vector<256x1xf32> to vector<256x32xf32>
    %68 = vector.broadcast %66 : vector<1x32xf32> to vector<256x32xf32>
    %69 = arith.mulf %67, %68 : vector<256x32xf32>
    %70 = arith.addf %64, %69 : vector<256x32xf32>
    %c7_50 = arith.constant 7 : index
    %c0_51 = arith.constant 0 : index
    %c0_52 = arith.constant 0 : index
    %71 = vector.load %arg4[%c7_50, %c0_51, %c0_52] : memref<9x1x32xf32, #tpu.memory_space<vmem>>, vector<1x1x32xf32>
    %72 = vector.shape_cast %71 : vector<1x1x32xf32> to vector<1x32xf32>
    %73 = vector.broadcast %26 : vector<256x1xf32> to vector<256x32xf32>
    %74 = vector.broadcast %72 : vector<1x32xf32> to vector<256x32xf32>
    %75 = arith.mulf %73, %74 : vector<256x32xf32>
    %76 = arith.addf %70, %75 : vector<256x32xf32>
    %c8_53 = arith.constant 8 : index
    %c0_54 = arith.constant 0 : index
    %c0_55 = arith.constant 0 : index
    %77 = vector.load %arg4[%c8_53, %c0_54, %c0_55] : memref<9x1x32xf32, #tpu.memory_space<vmem>>, vector<1x1x32xf32>
    %78 = vector.shape_cast %77 : vector<1x1x32xf32> to vector<1x32xf32>
    %79 = vector.broadcast %29 : vector<256x1xf32> to vector<256x32xf32>
    %80 = vector.broadcast %78 : vector<1x32xf32> to vector<256x32xf32>
    %81 = arith.mulf %79, %80 : vector<256x32xf32>
    %82 = arith.addf %76, %81 : vector<256x32xf32>
    %c0_56 = arith.constant 0 : index
    %c0_57 = arith.constant 0 : index
    %83 = vector.load %arg5[%c0_56, %c0_57] : memref<1x32xf32, #tpu.memory_space<vmem>>, vector<1x32xf32>
    %84 = vector.broadcast %83 : vector<1x32xf32> to vector<256x32xf32>
    %85 = arith.addf %82, %84 : vector<256x32xf32>
    %cst_58 = arith.constant 0.000000e+00 : f32
    %86 = vector.broadcast %cst_58 : f32 to vector<256x32xf32>
    %87 = arith.maximumf %85, %86 : vector<256x32xf32>
    %88 = arith.truncf %87 : vector<256x32xf32> to vector<256x32xbf16>
    %c0_59 = arith.constant 0 : index
    %c0_60 = arith.constant 0 : index
    %c0_61 = arith.constant 0 : index
    %89 = vector.load %arg3[%c0_59, %c0_60, %c0_61] : memref<4x64x256xbf16, #tpu.memory_space<vmem>>, vector<1x64x256xbf16>
    %90 = vector.shape_cast %89 : vector<1x64x256xbf16> to vector<64x256xbf16>
    %cst_62 = arith.constant dense<0.000000e+00> : vector<64x32xf32>
    %91 = tpu.matmul %90, %88, %cst_62 {dimension_numbers = #tpu.dot_dimension_numbers<[1], [0], [0], [1], [0, 0, 1, 1], [], []>} : vector<64x256xbf16>, vector<256x32xbf16>, vector<64x32xf32> -> vector<64x32xf32>
    %c1_63 = arith.constant 1 : index
    %c0_64 = arith.constant 0 : index
    %c0_65 = arith.constant 0 : index
    %92 = vector.load %arg3[%c1_63, %c0_64, %c0_65] : memref<4x64x256xbf16, #tpu.memory_space<vmem>>, vector<1x64x256xbf16>
    %93 = vector.shape_cast %92 : vector<1x64x256xbf16> to vector<64x256xbf16>
    %cst_66 = arith.constant dense<0.000000e+00> : vector<64x32xf32>
    %94 = tpu.matmul %93, %88, %cst_66 {dimension_numbers = #tpu.dot_dimension_numbers<[1], [0], [0], [1], [0, 0, 1, 1], [], []>} : vector<64x256xbf16>, vector<256x32xbf16>, vector<64x32xf32> -> vector<64x32xf32>
    %95 = arith.maximumf %91, %94 : vector<64x32xf32>
    %c2_67 = arith.constant 2 : index
    %c0_68 = arith.constant 0 : index
    %c0_69 = arith.constant 0 : index
    %96 = vector.load %arg3[%c2_67, %c0_68, %c0_69] : memref<4x64x256xbf16, #tpu.memory_space<vmem>>, vector<1x64x256xbf16>
    %97 = vector.shape_cast %96 : vector<1x64x256xbf16> to vector<64x256xbf16>
    %cst_70 = arith.constant dense<0.000000e+00> : vector<64x32xf32>
    %98 = tpu.matmul %97, %88, %cst_70 {dimension_numbers = #tpu.dot_dimension_numbers<[1], [0], [0], [1], [0, 0, 1, 1], [], []>} : vector<64x256xbf16>, vector<256x32xbf16>, vector<64x32xf32> -> vector<64x32xf32>
    %99 = arith.maximumf %95, %98 : vector<64x32xf32>
    %c3_71 = arith.constant 3 : index
    %c0_72 = arith.constant 0 : index
    %c0_73 = arith.constant 0 : index
    %100 = vector.load %arg3[%c3_71, %c0_72, %c0_73] : memref<4x64x256xbf16, #tpu.memory_space<vmem>>, vector<1x64x256xbf16>
    %101 = vector.shape_cast %100 : vector<1x64x256xbf16> to vector<64x256xbf16>
    %cst_74 = arith.constant dense<0.000000e+00> : vector<64x32xf32>
    %102 = tpu.matmul %101, %88, %cst_74 {dimension_numbers = #tpu.dot_dimension_numbers<[1], [0], [0], [1], [0, 0, 1, 1], [], []>} : vector<64x256xbf16>, vector<256x32xbf16>, vector<64x32xf32> -> vector<64x32xf32>
    %103 = arith.maximumf %99, %102 : vector<64x32xf32>
    %104 = arith.truncf %103 : vector<64x32xf32> to vector<64x32xbf16>
    %c0_75 = arith.constant 0 : index
    %c0_76 = arith.constant 0 : index
    %c0_77 = arith.constant 0 : index
    %105 = vector.load %arg6[%c0_75, %c0_76, %c0_77] : memref<9x64x64xbf16, #tpu.memory_space<vmem>>, vector<1x64x64xbf16>
    %106 = vector.shape_cast %105 : vector<1x64x64xbf16> to vector<64x64xbf16>
    %cst_78 = arith.constant dense<0.000000e+00> : vector<64x32xf32>
    %107 = tpu.matmul %106, %104, %cst_78 {dimension_numbers = #tpu.dot_dimension_numbers<[1], [0], [0], [1], [0, 0, 1, 1], [], []>} : vector<64x64xbf16>, vector<64x32xbf16>, vector<64x32xf32> -> vector<64x32xf32>
    %c1_79 = arith.constant 1 : index
    %c0_80 = arith.constant 0 : index
    %c0_81 = arith.constant 0 : index
    %108 = vector.load %arg6[%c1_79, %c0_80, %c0_81] : memref<9x64x64xbf16, #tpu.memory_space<vmem>>, vector<1x64x64xbf16>
    %109 = vector.shape_cast %108 : vector<1x64x64xbf16> to vector<64x64xbf16>
    %cst_82 = arith.constant dense<0.000000e+00> : vector<64x32xf32>
    %110 = tpu.matmul %109, %104, %cst_82 {dimension_numbers = #tpu.dot_dimension_numbers<[1], [0], [0], [1], [0, 0, 1, 1], [], []>} : vector<64x64xbf16>, vector<64x32xbf16>, vector<64x32xf32> -> vector<64x32xf32>
    %c2_83 = arith.constant 2 : index
    %c0_84 = arith.constant 0 : index
    %c0_85 = arith.constant 0 : index
    %111 = vector.load %arg6[%c2_83, %c0_84, %c0_85] : memref<9x64x64xbf16, #tpu.memory_space<vmem>>, vector<1x64x64xbf16>
    %112 = vector.shape_cast %111 : vector<1x64x64xbf16> to vector<64x64xbf16>
    %cst_86 = arith.constant dense<0.000000e+00> : vector<64x32xf32>
    %113 = tpu.matmul %112, %104, %cst_86 {dimension_numbers = #tpu.dot_dimension_numbers<[1], [0], [0], [1], [0, 0, 1, 1], [], []>} : vector<64x64xbf16>, vector<64x32xbf16>, vector<64x32xf32> -> vector<64x32xf32>
    %c3_87 = arith.constant 3 : index
    %c0_88 = arith.constant 0 : index
    %c0_89 = arith.constant 0 : index
    %114 = vector.load %arg6[%c3_87, %c0_88, %c0_89] : memref<9x64x64xbf16, #tpu.memory_space<vmem>>, vector<1x64x64xbf16>
    %115 = vector.shape_cast %114 : vector<1x64x64xbf16> to vector<64x64xbf16>
    %cst_90 = arith.constant dense<0.000000e+00> : vector<64x32xf32>
    %116 = tpu.matmul %115, %104, %cst_90 {dimension_numbers = #tpu.dot_dimension_numbers<[1], [0], [0], [1], [0, 0, 1, 1], [], []>} : vector<64x64xbf16>, vector<64x32xbf16>, vector<64x32xf32> -> vector<64x32xf32>
    %c4_91 = arith.constant 4 : index
    %c0_92 = arith.constant 0 : index
    %c0_93 = arith.constant 0 : index
    %117 = vector.load %arg6[%c4_91, %c0_92, %c0_93] : memref<9x64x64xbf16, #tpu.memory_space<vmem>>, vector<1x64x64xbf16>
    %118 = vector.shape_cast %117 : vector<1x64x64xbf16> to vector<64x64xbf16>
    %cst_94 = arith.constant dense<0.000000e+00> : vector<64x32xf32>
    %119 = tpu.matmul %118, %104, %cst_94 {dimension_numbers = #tpu.dot_dimension_numbers<[1], [0], [0], [1], [0, 0, 1, 1], [], []>} : vector<64x64xbf16>, vector<64x32xbf16>, vector<64x32xf32> -> vector<64x32xf32>
    %c5_95 = arith.constant 5 : index
    %c0_96 = arith.constant 0 : index
    %c0_97 = arith.constant 0 : index
    %120 = vector.load %arg6[%c5_95, %c0_96, %c0_97] : memref<9x64x64xbf16, #tpu.memory_space<vmem>>, vector<1x64x64xbf16>
    %121 = vector.shape_cast %120 : vector<1x64x64xbf16> to vector<64x64xbf16>
    %cst_98 = arith.constant dense<0.000000e+00> : vector<64x32xf32>
    %122 = tpu.matmul %121, %104, %cst_98 {dimension_numbers = #tpu.dot_dimension_numbers<[1], [0], [0], [1], [0, 0, 1, 1], [], []>} : vector<64x64xbf16>, vector<64x32xbf16>, vector<64x32xf32> -> vector<64x32xf32>
    %c6_99 = arith.constant 6 : index
    %c0_100 = arith.constant 0 : index
    %c0_101 = arith.constant 0 : index
    %123 = vector.load %arg6[%c6_99, %c0_100, %c0_101] : memref<9x64x64xbf16, #tpu.memory_space<vmem>>, vector<1x64x64xbf16>
    %124 = vector.shape_cast %123 : vector<1x64x64xbf16> to vector<64x64xbf16>
    %cst_102 = arith.constant dense<0.000000e+00> : vector<64x32xf32>
    %125 = tpu.matmul %124, %104, %cst_102 {dimension_numbers = #tpu.dot_dimension_numbers<[1], [0], [0], [1], [0, 0, 1, 1], [], []>} : vector<64x64xbf16>, vector<64x32xbf16>, vector<64x32xf32> -> vector<64x32xf32>
    %c7_103 = arith.constant 7 : index
    %c0_104 = arith.constant 0 : index
    %c0_105 = arith.constant 0 : index
    %126 = vector.load %arg6[%c7_103, %c0_104, %c0_105] : memref<9x64x64xbf16, #tpu.memory_space<vmem>>, vector<1x64x64xbf16>
    %127 = vector.shape_cast %126 : vector<1x64x64xbf16> to vector<64x64xbf16>
    %cst_106 = arith.constant dense<0.000000e+00> : vector<64x32xf32>
    %128 = tpu.matmul %127, %104, %cst_106 {dimension_numbers = #tpu.dot_dimension_numbers<[1], [0], [0], [1], [0, 0, 1, 1], [], []>} : vector<64x64xbf16>, vector<64x32xbf16>, vector<64x32xf32> -> vector<64x32xf32>
    %c8_107 = arith.constant 8 : index
    %c0_108 = arith.constant 0 : index
    %c0_109 = arith.constant 0 : index
    %129 = vector.load %arg6[%c8_107, %c0_108, %c0_109] : memref<9x64x64xbf16, #tpu.memory_space<vmem>>, vector<1x64x64xbf16>
    %130 = vector.shape_cast %129 : vector<1x64x64xbf16> to vector<64x64xbf16>
    %cst_110 = arith.constant dense<0.000000e+00> : vector<64x32xf32>
    %131 = tpu.matmul %130, %104, %cst_110 {dimension_numbers = #tpu.dot_dimension_numbers<[1], [0], [0], [1], [0, 0, 1, 1], [], []>} : vector<64x64xbf16>, vector<64x32xbf16>, vector<64x32xf32> -> vector<64x32xf32>
    %132 = tpu.concatenate %107, %110, %113, %116, %119, %122, %125, %128, %131 in 1 : vector<64x32xf32>, vector<64x32xf32>, vector<64x32xf32>, vector<64x32xf32>, vector<64x32xf32>, vector<64x32xf32>, vector<64x32xf32>, vector<64x32xf32>, vector<64x32xf32> -> vector<64x288xf32>
    %133 = arith.truncf %132 : vector<64x288xf32> to vector<64x288xbf16>
    %c0_111 = arith.constant 0 : index
    %c0_112 = arith.constant 0 : index
    %134 = vector.load %arg8[%c0_111, %c0_112] : memref<288x64xbf16, #tpu.memory_space<vmem>>, vector<288x64xbf16>
    %cst_113 = arith.constant dense<0.000000e+00> : vector<64x64xf32>
    %135 = tpu.matmul %133, %134, %cst_113 {dimension_numbers = #tpu.dot_dimension_numbers<[1], [0], [0], [1], [0, 0, 1, 1], [], []>} : vector<64x288xbf16>, vector<288x64xbf16>, vector<64x64xf32> -> vector<64x64xf32>
    %c0_114 = arith.constant 0 : index
    %c0_115 = arith.constant 0 : index
    %136 = vector.load %arg9[%c0_114, %c0_115] : memref<1x64xf32, #tpu.memory_space<vmem>>, vector<1x64xf32>
    %137 = vector.broadcast %136 : vector<1x64xf32> to vector<64x64xf32>
    %138 = arith.addf %135, %137 : vector<64x64xf32>
    %cst_116 = arith.constant 0.000000e+00 : f32
    %139 = vector.broadcast %cst_116 : f32 to vector<64x64xf32>
    %140 = arith.maximumf %138, %139 : vector<64x64xf32>
    %141 = arith.truncf %140 : vector<64x64xf32> to vector<64x64xbf16>
    %c0_117 = arith.constant 0 : index
    %c0_118 = arith.constant 0 : index
    %c0_119 = arith.constant 0 : index
    %142 = vector.load %arg7[%c0_117, %c0_118, %c0_119] : memref<4x16x64xbf16, #tpu.memory_space<vmem>>, vector<1x16x64xbf16>
    %143 = vector.shape_cast %142 : vector<1x16x64xbf16> to vector<16x64xbf16>
    %cst_120 = arith.constant dense<0.000000e+00> : vector<16x64xf32>
    %144 = tpu.matmul %143, %141, %cst_120 {dimension_numbers = #tpu.dot_dimension_numbers<[1], [0], [0], [1], [0, 0, 1, 1], [], []>} : vector<16x64xbf16>, vector<64x64xbf16>, vector<16x64xf32> -> vector<16x64xf32>
    %c1_121 = arith.constant 1 : index
    %c0_122 = arith.constant 0 : index
    %c0_123 = arith.constant 0 : index
    %145 = vector.load %arg7[%c1_121, %c0_122, %c0_123] : memref<4x16x64xbf16, #tpu.memory_space<vmem>>, vector<1x16x64xbf16>
    %146 = vector.shape_cast %145 : vector<1x16x64xbf16> to vector<16x64xbf16>
    %cst_124 = arith.constant dense<0.000000e+00> : vector<16x64xf32>
    %147 = tpu.matmul %146, %141, %cst_124 {dimension_numbers = #tpu.dot_dimension_numbers<[1], [0], [0], [1], [0, 0, 1, 1], [], []>} : vector<16x64xbf16>, vector<64x64xbf16>, vector<16x64xf32> -> vector<16x64xf32>
    %148 = arith.maximumf %144, %147 : vector<16x64xf32>
    %c2_125 = arith.constant 2 : index
    %c0_126 = arith.constant 0 : index
    %c0_127 = arith.constant 0 : index
    %149 = vector.load %arg7[%c2_125, %c0_126, %c0_127] : memref<4x16x64xbf16, #tpu.memory_space<vmem>>, vector<1x16x64xbf16>
    %150 = vector.shape_cast %149 : vector<1x16x64xbf16> to vector<16x64xbf16>
    %cst_128 = arith.constant dense<0.000000e+00> : vector<16x64xf32>
    %151 = tpu.matmul %150, %141, %cst_128 {dimension_numbers = #tpu.dot_dimension_numbers<[1], [0], [0], [1], [0, 0, 1, 1], [], []>} : vector<16x64xbf16>, vector<64x64xbf16>, vector<16x64xf32> -> vector<16x64xf32>
    %152 = arith.maximumf %148, %151 : vector<16x64xf32>
    %c3_129 = arith.constant 3 : index
    %c0_130 = arith.constant 0 : index
    %c0_131 = arith.constant 0 : index
    %153 = vector.load %arg7[%c3_129, %c0_130, %c0_131] : memref<4x16x64xbf16, #tpu.memory_space<vmem>>, vector<1x16x64xbf16>
    %154 = vector.shape_cast %153 : vector<1x16x64xbf16> to vector<16x64xbf16>
    %cst_132 = arith.constant dense<0.000000e+00> : vector<16x64xf32>
    %155 = tpu.matmul %154, %141, %cst_132 {dimension_numbers = #tpu.dot_dimension_numbers<[1], [0], [0], [1], [0, 0, 1, 1], [], []>} : vector<16x64xbf16>, vector<64x64xbf16>, vector<16x64xf32> -> vector<16x64xf32>
    %156 = arith.maximumf %152, %155 : vector<16x64xf32>
    %157 = arith.truncf %156 : vector<16x64xf32> to vector<16x64xbf16>
    %c0_133 = arith.constant 0 : index
    %c0_134 = arith.constant 0 : index
    %c0_135 = arith.constant 0 : index
    %158 = vector.load %arg10[%c0_133, %c0_134, %c0_135] : memref<9x16x16xbf16, #tpu.memory_space<vmem>>, vector<1x16x16xbf16>
    %159 = vector.shape_cast %158 : vector<1x16x16xbf16> to vector<16x16xbf16>
    %cst_136 = arith.constant dense<0.000000e+00> : vector<16x64xf32>
    %160 = tpu.matmul %159, %157, %cst_136 {dimension_numbers = #tpu.dot_dimension_numbers<[1], [0], [0], [1], [0, 0, 1, 1], [], []>} : vector<16x16xbf16>, vector<16x64xbf16>, vector<16x64xf32> -> vector<16x64xf32>
    %c1_137 = arith.constant 1 : index
    %c0_138 = arith.constant 0 : index
    %c0_139 = arith.constant 0 : index
    %161 = vector.load %arg10[%c1_137, %c0_138, %c0_139] : memref<9x16x16xbf16, #tpu.memory_space<vmem>>, vector<1x16x16xbf16>
    %162 = vector.shape_cast %161 : vector<1x16x16xbf16> to vector<16x16xbf16>
    %cst_140 = arith.constant dense<0.000000e+00> : vector<16x64xf32>
    %163 = tpu.matmul %162, %157, %cst_140 {dimension_numbers = #tpu.dot_dimension_numbers<[1], [0], [0], [1], [0, 0, 1, 1], [], []>} : vector<16x16xbf16>, vector<16x64xbf16>, vector<16x64xf32> -> vector<16x64xf32>
    %c2_141 = arith.constant 2 : index
    %c0_142 = arith.constant 0 : index
    %c0_143 = arith.constant 0 : index
    %164 = vector.load %arg10[%c2_141, %c0_142, %c0_143] : memref<9x16x16xbf16, #tpu.memory_space<vmem>>, vector<1x16x16xbf16>
    %165 = vector.shape_cast %164 : vector<1x16x16xbf16> to vector<16x16xbf16>
    %cst_144 = arith.constant dense<0.000000e+00> : vector<16x64xf32>
    %166 = tpu.matmul %165, %157, %cst_144 {dimension_numbers = #tpu.dot_dimension_numbers<[1], [0], [0], [1], [0, 0, 1, 1], [], []>} : vector<16x16xbf16>, vector<16x64xbf16>, vector<16x64xf32> -> vector<16x64xf32>
    %c3_145 = arith.constant 3 : index
    %c0_146 = arith.constant 0 : index
    %c0_147 = arith.constant 0 : index
    %167 = vector.load %arg10[%c3_145, %c0_146, %c0_147] : memref<9x16x16xbf16, #tpu.memory_space<vmem>>, vector<1x16x16xbf16>
    %168 = vector.shape_cast %167 : vector<1x16x16xbf16> to vector<16x16xbf16>
    %cst_148 = arith.constant dense<0.000000e+00> : vector<16x64xf32>
    %169 = tpu.matmul %168, %157, %cst_148 {dimension_numbers = #tpu.dot_dimension_numbers<[1], [0], [0], [1], [0, 0, 1, 1], [], []>} : vector<16x16xbf16>, vector<16x64xbf16>, vector<16x64xf32> -> vector<16x64xf32>
    %c4_149 = arith.constant 4 : index
    %c0_150 = arith.constant 0 : index
    %c0_151 = arith.constant 0 : index
    %170 = vector.load %arg10[%c4_149, %c0_150, %c0_151] : memref<9x16x16xbf16, #tpu.memory_space<vmem>>, vector<1x16x16xbf16>
    %171 = vector.shape_cast %170 : vector<1x16x16xbf16> to vector<16x16xbf16>
    %cst_152 = arith.constant dense<0.000000e+00> : vector<16x64xf32>
    %172 = tpu.matmul %171, %157, %cst_152 {dimension_numbers = #tpu.dot_dimension_numbers<[1], [0], [0], [1], [0, 0, 1, 1], [], []>} : vector<16x16xbf16>, vector<16x64xbf16>, vector<16x64xf32> -> vector<16x64xf32>
    %c5_153 = arith.constant 5 : index
    %c0_154 = arith.constant 0 : index
    %c0_155 = arith.constant 0 : index
    %173 = vector.load %arg10[%c5_153, %c0_154, %c0_155] : memref<9x16x16xbf16, #tpu.memory_space<vmem>>, vector<1x16x16xbf16>
    %174 = vector.shape_cast %173 : vector<1x16x16xbf16> to vector<16x16xbf16>
    %cst_156 = arith.constant dense<0.000000e+00> : vector<16x64xf32>
    %175 = tpu.matmul %174, %157, %cst_156 {dimension_numbers = #tpu.dot_dimension_numbers<[1], [0], [0], [1], [0, 0, 1, 1], [], []>} : vector<16x16xbf16>, vector<16x64xbf16>, vector<16x64xf32> -> vector<16x64xf32>
    %c6_157 = arith.constant 6 : index
    %c0_158 = arith.constant 0 : index
    %c0_159 = arith.constant 0 : index
    %176 = vector.load %arg10[%c6_157, %c0_158, %c0_159] : memref<9x16x16xbf16, #tpu.memory_space<vmem>>, vector<1x16x16xbf16>
    %177 = vector.shape_cast %176 : vector<1x16x16xbf16> to vector<16x16xbf16>
    %cst_160 = arith.constant dense<0.000000e+00> : vector<16x64xf32>
    %178 = tpu.matmul %177, %157, %cst_160 {dimension_numbers = #tpu.dot_dimension_numbers<[1], [0], [0], [1], [0, 0, 1, 1], [], []>} : vector<16x16xbf16>, vector<16x64xbf16>, vector<16x64xf32> -> vector<16x64xf32>
    %c7_161 = arith.constant 7 : index
    %c0_162 = arith.constant 0 : index
    %c0_163 = arith.constant 0 : index
    %179 = vector.load %arg10[%c7_161, %c0_162, %c0_163] : memref<9x16x16xbf16, #tpu.memory_space<vmem>>, vector<1x16x16xbf16>
    %180 = vector.shape_cast %179 : vector<1x16x16xbf16> to vector<16x16xbf16>
    %cst_164 = arith.constant dense<0.000000e+00> : vector<16x64xf32>
    %181 = tpu.matmul %180, %157, %cst_164 {dimension_numbers = #tpu.dot_dimension_numbers<[1], [0], [0], [1], [0, 0, 1, 1], [], []>} : vector<16x16xbf16>, vector<16x64xbf16>, vector<16x64xf32> -> vector<16x64xf32>
    %c8_165 = arith.constant 8 : index
    %c0_166 = arith.constant 0 : index
    %c0_167 = arith.constant 0 : index
    %182 = vector.load %arg10[%c8_165, %c0_166, %c0_167] : memref<9x16x16xbf16, #tpu.memory_space<vmem>>, vector<1x16x16xbf16>
    %183 = vector.shape_cast %182 : vector<1x16x16xbf16> to vector<16x16xbf16>
    %cst_168 = arith.constant dense<0.000000e+00> : vector<16x64xf32>
    %184 = tpu.matmul %183, %157, %cst_168 {dimension_numbers = #tpu.dot_dimension_numbers<[1], [0], [0], [1], [0, 0, 1, 1], [], []>} : vector<16x16xbf16>, vector<16x64xbf16>, vector<16x64xf32> -> vector<16x64xf32>
    %185 = tpu.concatenate %160, %163, %166, %169, %172, %175, %178, %181, %184 in 1 : vector<16x64xf32>, vector<16x64xf32>, vector<16x64xf32>, vector<16x64xf32>, vector<16x64xf32>, vector<16x64xf32>, vector<16x64xf32>, vector<16x64xf32>, vector<16x64xf32> -> vector<16x576xf32>
    %186 = arith.truncf %185 : vector<16x576xf32> to vector<16x576xbf16>
    %c0_169 = arith.constant 0 : index
    %c0_170 = arith.constant 0 : index
    %187 = vector.load %arg12[%c0_169, %c0_170] : memref<576x128xbf16, #tpu.memory_space<vmem>>, vector<576x128xbf16>
    %cst_171 = arith.constant dense<0.000000e+00> : vector<16x128xf32>
    %188 = tpu.matmul %186, %187, %cst_171 {dimension_numbers = #tpu.dot_dimension_numbers<[1], [0], [0], [1], [0, 0, 1, 1], [], []>} : vector<16x576xbf16>, vector<576x128xbf16>, vector<16x128xf32> -> vector<16x128xf32>
    %c0_172 = arith.constant 0 : index
    %c0_173 = arith.constant 0 : index
    %189 = vector.load %arg13[%c0_172, %c0_173] : memref<1x128xf32, #tpu.memory_space<vmem>>, vector<1x128xf32>
    %190 = vector.broadcast %189 : vector<1x128xf32> to vector<16x128xf32>
    %191 = arith.addf %188, %190 : vector<16x128xf32>
    %cst_174 = arith.constant 0.000000e+00 : f32
    %192 = vector.broadcast %cst_174 : f32 to vector<16x128xf32>
    %193 = arith.maximumf %191, %192 : vector<16x128xf32>
    %194 = arith.truncf %193 : vector<16x128xf32> to vector<16x128xbf16>
    %c0_175 = arith.constant 0 : index
    %c0_176 = arith.constant 0 : index
    %c0_177 = arith.constant 0 : index
    %195 = vector.load %arg11[%c0_175, %c0_176, %c0_177] : memref<4x4x16xbf16, #tpu.memory_space<vmem>>, vector<1x4x16xbf16>
    %196 = vector.shape_cast %195 : vector<1x4x16xbf16> to vector<4x16xbf16>
    %cst_178 = arith.constant dense<0.000000e+00> : vector<4x128xf32>
    %197 = tpu.matmul %196, %194, %cst_178 {dimension_numbers = #tpu.dot_dimension_numbers<[1], [0], [0], [1], [0, 0, 1, 1], [], []>} : vector<4x16xbf16>, vector<16x128xbf16>, vector<4x128xf32> -> vector<4x128xf32>
    %c1_179 = arith.constant 1 : index
    %c0_180 = arith.constant 0 : index
    %c0_181 = arith.constant 0 : index
    %198 = vector.load %arg11[%c1_179, %c0_180, %c0_181] : memref<4x4x16xbf16, #tpu.memory_space<vmem>>, vector<1x4x16xbf16>
    %199 = vector.shape_cast %198 : vector<1x4x16xbf16> to vector<4x16xbf16>
    %cst_182 = arith.constant dense<0.000000e+00> : vector<4x128xf32>
    %200 = tpu.matmul %199, %194, %cst_182 {dimension_numbers = #tpu.dot_dimension_numbers<[1], [0], [0], [1], [0, 0, 1, 1], [], []>} : vector<4x16xbf16>, vector<16x128xbf16>, vector<4x128xf32> -> vector<4x128xf32>
    %201 = arith.maximumf %197, %200 : vector<4x128xf32>
    %c2_183 = arith.constant 2 : index
    %c0_184 = arith.constant 0 : index
    %c0_185 = arith.constant 0 : index
    %202 = vector.load %arg11[%c2_183, %c0_184, %c0_185] : memref<4x4x16xbf16, #tpu.memory_space<vmem>>, vector<1x4x16xbf16>
    %203 = vector.shape_cast %202 : vector<1x4x16xbf16> to vector<4x16xbf16>
    %cst_186 = arith.constant dense<0.000000e+00> : vector<4x128xf32>
    %204 = tpu.matmul %203, %194, %cst_186 {dimension_numbers = #tpu.dot_dimension_numbers<[1], [0], [0], [1], [0, 0, 1, 1], [], []>} : vector<4x16xbf16>, vector<16x128xbf16>, vector<4x128xf32> -> vector<4x128xf32>
    %205 = arith.maximumf %201, %204 : vector<4x128xf32>
    %c3_187 = arith.constant 3 : index
    %c0_188 = arith.constant 0 : index
    %c0_189 = arith.constant 0 : index
    %206 = vector.load %arg11[%c3_187, %c0_188, %c0_189] : memref<4x4x16xbf16, #tpu.memory_space<vmem>>, vector<1x4x16xbf16>
    %207 = vector.shape_cast %206 : vector<1x4x16xbf16> to vector<4x16xbf16>
    %cst_190 = arith.constant dense<0.000000e+00> : vector<4x128xf32>
    %208 = tpu.matmul %207, %194, %cst_190 {dimension_numbers = #tpu.dot_dimension_numbers<[1], [0], [0], [1], [0, 0, 1, 1], [], []>} : vector<4x16xbf16>, vector<16x128xbf16>, vector<4x128xf32> -> vector<4x128xf32>
    %209 = arith.maximumf %205, %208 : vector<4x128xf32>
    %cst_191 = arith.constant dense<0.000000e+00> : vector<128xf32>
    %210 = vector.multi_reduction <add>, %209, %cst_191 [0] : vector<4x128xf32> to vector<128xf32>
    %211 = vector.shape_cast %210 : vector<128xf32> to vector<1x128xf32>
    %cst_192 = arith.constant 4.000000e+00 : f32
    %212 = vector.broadcast %cst_192 : f32 to vector<1x128xf32>
    %213 = arith.divf %211, %212 : vector<1x128xf32>
    %c0_193 = arith.constant 0 : index
    %c0_194 = arith.constant 0 : index
    %214 = vector.load %arg14[%c0_193, %c0_194] : memref<128x128xf32, #tpu.memory_space<vmem>>, vector<128x128xf32>
    %cst_195 = arith.constant dense<0.000000e+00> : vector<1x128xf32>
    %215 = tpu.matmul %213, %214, %cst_195 {dimension_numbers = #tpu.dot_dimension_numbers<[1], [0], [0], [1], [0, 0, 1, 1], [], []>} : vector<1x128xf32>, vector<128x128xf32>, vector<1x128xf32> -> vector<1x128xf32>
    %c0_196 = arith.constant 0 : index
    %c0_197 = arith.constant 0 : index
    %216 = vector.load %arg15[%c0_196, %c0_197] : memref<1x128xf32, #tpu.memory_space<vmem>>, vector<1x128xf32>
    %217 = arith.addf %215, %216 : vector<1x128xf32>
    %218 = vector.shape_cast %217 : vector<1x128xf32> to vector<1x1x128xf32>
    %c0_198 = arith.constant 0 : index
    %c0_199 = arith.constant 0 : index
    %c0_200 = arith.constant 0 : index
    %219 = vector.load %arg16[%c0_198, %c0_199, %c0_200] : memref<1x1x128xf32, #tpu.memory_space<vmem>>, vector<1x1x128xf32>
    tpu.vector_store %arg16[%c0_198, %c0_199, %c0_200], %218 {strides = array<i32>} : memref<1x1x128xf32, #tpu.memory_space<vmem>>, vector<1x1x128xf32>,
    return
  }
  func.func @transform_0(%arg0: i32) -> (i32, i32, i32) {
    %c0_i32 = arith.constant 0 : i32
    %c0_i32_0 = arith.constant 0 : i32
    %c0_i32_1 = arith.constant 0 : i32
    return %arg0, %c0_i32, %c0_i32_0 : i32, i32, i32
  }
  func.func @transform_1(%arg0: i32) -> (i32, i32, i32) {
    %c0_i32 = arith.constant 0 : i32
    %c0_i32_0 = arith.constant 0 : i32
    %c0_i32_1 = arith.constant 0 : i32
    %c0_i32_2 = arith.constant 0 : i32
    return %c0_i32, %c0_i32_0, %c0_i32_1 : i32, i32, i32
  }
  func.func @transform_2(%arg0: i32) -> (i32, i32, i32) {
    %c0_i32 = arith.constant 0 : i32
    %c0_i32_0 = arith.constant 0 : i32
    %c0_i32_1 = arith.constant 0 : i32
    %c0_i32_2 = arith.constant 0 : i32
    return %c0_i32, %c0_i32_0, %c0_i32_1 : i32, i32, i32
  }
  func.func @transform_3(%arg0: i32) -> (i32, i32, i32) {
    %c0_i32 = arith.constant 0 : i32
    %c0_i32_0 = arith.constant 0 : i32
    %c0_i32_1 = arith.constant 0 : i32
    %c0_i32_2 = arith.constant 0 : i32
    return %c0_i32, %c0_i32_0, %c0_i32_1 : i32, i32, i32
  }
  func.func @transform_4(%arg0: i32) -> (i32, i32) {
    %c0_i32 = arith.constant 0 : i32
    %c0_i32_0 = arith.constant 0 : i32
    %c0_i32_1 = arith.constant 0 : i32
    return %c0_i32, %c0_i32_0 : i32, i32
  }
  func.func @transform_5(%arg0: i32) -> (i32, i32, i32) {
    %c0_i32 = arith.constant 0 : i32
    %c0_i32_0 = arith.constant 0 : i32
    %c0_i32_1 = arith.constant 0 : i32
    %c0_i32_2 = arith.constant 0 : i32
    return %c0_i32, %c0_i32_0, %c0_i32_1 : i32, i32, i32
  }
  func.func @transform_6(%arg0: i32) -> (i32, i32, i32) {
    %c0_i32 = arith.constant 0 : i32
    %c0_i32_0 = arith.constant 0 : i32
    %c0_i32_1 = arith.constant 0 : i32
    %c0_i32_2 = arith.constant 0 : i32
    return %c0_i32, %c0_i32_0, %c0_i32_1 : i32, i32, i32
  }
  func.func @transform_7(%arg0: i32) -> (i32, i32) {
    %c0_i32 = arith.constant 0 : i32
    %c0_i32_0 = arith.constant 0 : i32
    %c0_i32_1 = arith.constant 0 : i32
    return %c0_i32, %c0_i32_0 : i32, i32
  }
  func.func @transform_8(%arg0: i32) -> (i32, i32) {
    %c0_i32 = arith.constant 0 : i32
    %c0_i32_0 = arith.constant 0 : i32
    %c0_i32_1 = arith.constant 0 : i32
    return %c0_i32, %c0_i32_0 : i32, i32
  }
  func.func @transform_9(%arg0: i32) -> (i32, i32, i32) {
    %c0_i32 = arith.constant 0 : i32
    %c0_i32_0 = arith.constant 0 : i32
    %c0_i32_1 = arith.constant 0 : i32
    %c0_i32_2 = arith.constant 0 : i32
    return %c0_i32, %c0_i32_0, %c0_i32_1 : i32, i32, i32
  }
  func.func @transform_10(%arg0: i32) -> (i32, i32, i32) {
    %c0_i32 = arith.constant 0 : i32
    %c0_i32_0 = arith.constant 0 : i32
    %c0_i32_1 = arith.constant 0 : i32
    %c0_i32_2 = arith.constant 0 : i32
    return %c0_i32, %c0_i32_0, %c0_i32_1 : i32, i32, i32
  }
  func.func @transform_11(%arg0: i32) -> (i32, i32) {
    %c0_i32 = arith.constant 0 : i32
    %c0_i32_0 = arith.constant 0 : i32
    %c0_i32_1 = arith.constant 0 : i32
    return %c0_i32, %c0_i32_0 : i32, i32
  }
  func.func @transform_12(%arg0: i32) -> (i32, i32) {
    %c0_i32 = arith.constant 0 : i32
    %c0_i32_0 = arith.constant 0 : i32
    %c0_i32_1 = arith.constant 0 : i32
    return %c0_i32, %c0_i32_0 : i32, i32
  }
  func.func @transform_13(%arg0: i32) -> (i32, i32) {
    %c0_i32 = arith.constant 0 : i32
    %c0_i32_0 = arith.constant 0 : i32
    %c0_i32_1 = arith.constant 0 : i32
    return %c0_i32, %c0_i32_0 : i32, i32
  }
  func.func @transform_14(%arg0: i32) -> (i32, i32) {
    %c0_i32 = arith.constant 0 : i32
    %c0_i32_0 = arith.constant 0 : i32
    %c0_i32_1 = arith.constant 0 : i32
    return %c0_i32, %c0_i32_0 : i32, i32
  }
  func.func @transform_15(%arg0: i32) -> (i32, i32, i32) {
    %c0_i32 = arith.constant 0 : i32
    %c0_i32_0 = arith.constant 0 : i32
    %c0_i32_1 = arith.constant 0 : i32
    return %arg0, %c0_i32, %c0_i32_0 : i32, i32, i32
  }
}

</mosaic_0001>

<llo_original>
// kernel: forward.1
$region0: #{forward.1}
  #allocation0 [shape = 'u32[]', space=smem, size = 0x4, offset = 0x4, fixed_abs, tag = 'smem constant byte address 0x4 - core index']
  #allocation1 [shape = 'u32[144,128]{1,0:T(1,128)}', space=vmem, size = 0x12000, scoped, tag = 'internal scratch']
  %s0 = inlined_call_operand.vmem [shape: f32[2,256,1], index: 0, kind: input, shape index: {}]
  %s1 = inlined_call_operand.hbm [shape: bf16[9,256,256], index: 1, kind: input, shape index: {}]
  %s2 = inlined_call_operand.hbm [shape: bf16[4,64,256], index: 2, kind: input, shape index: {}]
  %s3 = inlined_call_operand.hbm [shape: f32[9,1,32], index: 3, kind: input, shape index: {}]
  %s4 = inlined_call_operand.hbm [shape: f32[1,32], index: 4, kind: input, shape index: {}]
  %s5 = inlined_call_operand.hbm [shape: bf16[9,64,64], index: 5, kind: input, shape index: {}]
  %s6 = inlined_call_operand.hbm [shape: bf16[4,16,64], index: 6, kind: input, shape index: {}]
  %s7 = inlined_call_operand.vmem [shape: bf16[288,64], index: 7, kind: input, shape index: {}]
  %s8 = inlined_call_operand.hbm [shape: f32[1,64], index: 8, kind: input, shape index: {}]
  %s9 = inlined_call_operand.hbm [shape: bf16[9,16,16], index: 9, kind: input, shape index: {}]
  %s10 = inlined_call_operand.hbm [shape: bf16[4,4,16], index: 10, kind: input, shape index: {}]
  %s11 = inlined_call_operand.hbm [shape: bf16[576,128], index: 11, kind: input, shape index: {}]
  %s12 = inlined_call_operand.hbm [shape: f32[1,128], index: 12, kind: input, shape index: {}]
  %s13 = inlined_call_operand.hbm [shape: f32[128,128], index: 13, kind: input, shape index: {}]
  %s14 = inlined_call_operand.hbm [shape: f32[1,128], index: 14, kind: input, shape index: {}]
  %s15 = inlined_call_operand.hbm [shape: f32[2,1,128], index: 15, kind: output, shape index: {}]
  %s16 = sld [smem:[#allocation0]]
  $region145: #{forward.1} parent=0
    _
  %s18 = ssub.s32 1, %s16
  %s19 = scalar_select 0, %s18, %s16
  $region1: #{forward.1} parent=0
    #allocation2 [shape = 'u8[1179648]{0}', space=vmem, size = 0x120000, scoped, tag = 'input window, operand 1, single buffered']
    #allocation3 [shape = 's32[2]{0}', space=sflag, size = 0x8, scoped, tag = 'scoped memory for forward.1']
    #allocation4 [shape = 's32[2]{0}', space=sflag, size = 0x8, scoped, tag = 'scoped memory for forward.1']
    #allocation5 [shape = 'u8[131072]{0}', space=vmem, size = 0x20000, scoped, tag = 'input window, operand 2, single buffered']
    #allocation6 [shape = 's32[1]{0}', space=sflag, size = 0x4, scoped, tag = 'scoped memory for forward.1']
    #allocation7 [shape = 'u8[4608]{0}', space=vmem, size = 0x1400, scoped, tag = 'input window, operand 3, single buffered']
    #allocation8 [shape = 'u8[512]{0}', space=vmem, size = 0x400, scoped, tag = 'input window, operand 4, single buffered']
    #allocation9 [shape = 's32[1]{0}', space=sflag, size = 0x4, scoped, tag = 'scoped memory for forward.1']
    #allocation10 [shape = 'u8[147456]{0}', space=vmem, size = 0x24000, scoped, tag = 'input window, operand 5, single buffered']
    #allocation11 [shape = 'u8[16384]{0}', space=vmem, size = 0x4000, scoped, tag = 'input window, operand 6, single buffered']
    #allocation12 [shape = 's32[1]{0}', space=sflag, size = 0x4, scoped, tag = 'scoped memory for forward.1']
    #allocation13 [shape = 'u8[512]{0}', space=vmem, size = 0x400, scoped, tag = 'input window, operand 8, single buffered']
    #allocation14 [shape = 'u8[36864]{0}', space=vmem, size = 0x9000, scoped, tag = 'input window, operand 9, single buffered']
    #allocation15 [shape = 's32[1]{0}', space=sflag, size = 0x4, scoped, tag = 'scoped memory for forward.1']
    #allocation16 [shape = 'u8[4096]{0}', space=vmem, size = 0x1000, scoped, tag = 'input window, operand 10, single buffered']
    #allocation17 [shape = 'u8[147456]{0}', space=vmem, size = 0x24000, scoped, tag = 'input window, operand 11, single buffered']
    #allocation18 [shape = 's32[1]{0}', space=sflag, size = 0x4, scoped, tag = 'scoped memory for forward.1']
    #allocation19 [shape = 'u8[512]{0}', space=vmem, size = 0x400, scoped, tag = 'input window, operand 12, single buffered']
    #allocation20 [shape = 'u8[65536]{0}', space=vmem, size = 0x10000, scoped, tag = 'input window, operand 13, single buffered']
    #allocation21 [shape = 's32[1]{0}', space=sflag, size = 0x4, scoped, tag = 'scoped memory for forward.1']
    #allocation22 [shape = 'u8[512]{0}', space=vmem, size = 0x400, scoped, tag = 'input window, operand 14, single buffered']
    #allocation23 [shape = 'u8[1024]{0}', space=vmem, size = 0x400, scoped, tag = 'output window, operand 0']
    %20 = vsyncpa [#allocation3], 0
    %21 = vsyncpa [#allocation6], 0
    %22 = vsyncpa [#allocation9], 0
    %23 = vsyncpa [#allocation12], 0
    %24 = vsyncpa [#allocation15], 0
    %25 = vsyncpa [#allocation18], 0
    %26 = vsyncpa [#allocation21], 0
    %27 = vsyncpa [#allocation4], 0
    %s28 = scalar_lea.sflag [#allocation4], 1
    %29 = vsyncpa %s28, 0
    loop: start=0, step=1, limit=4
    $region2: #{forward.1} parent=1 // loop_pre_header
      _
    $region3: #{forward.1} parent=1 // loop_header
      %s31 = sphi 0, %s35
      %p32 = scmp.ge.s32.totalorder %s31, 4
      %s41 = sphi 0, %s43
      %s44 = sphi 0, %s41
      %s45 = sphi 0, %s44
      %s61 = sphi 0, %s45
      %s65 = sphi 0, %s65
      %s67 = sphi 0, %s65
      %s68 = sphi 0, %s67
      %s82 = sphi 0, %s68
      %s86 = sphi 0, %s86
      %s88 = sphi 0, %s86
      %s89 = sphi 0, %s88
      %s103 = sphi 0, %s89
      %s107 = sphi 0, %s107
      %s109 = sphi 0, %s107
      %s110 = sphi 0, %s109
      %s124 = sphi 0, %s110
      %s128 = sphi 0, %s128
      %s130 = sphi 0, %s128
      %s131 = sphi 0, %s130
      %s145 = sphi 0, %s131
      %s149 = sphi 0, %s149
      %s151 = sphi 0, %s149
      %s152 = sphi 0, %s151
      %s166 = sphi 0, %s152
      %s170 = sphi 0, %s170
      %s172 = sphi 0, %s170
      %s173 = sphi 0, %s172
      %s187 = sphi 0, %s173
      %s191 = sphi 0, %s191
      %s193 = sphi 0, %s191
      %s194 = sphi 0, %s193
      %s208 = sphi 0, %s194
      %s212 = sphi 0, %s212
      %s214 = sphi 0, %s212
      %s215 = sphi 0, %s214
      %s229 = sphi 0, %s215
      %s233 = sphi 0, %s233
      %s235 = sphi 0, %s233
      %s236 = sphi 0, %s235
      %s250 = sphi 0, %s236
      %s254 = sphi 0, %s254
      %s256 = sphi 0, %s254
      %s257 = sphi 0, %s256
      %s271 = sphi 0, %s257
      %s275 = sphi 0, %s275
      %s277 = sphi 0, %s275
      %s278 = sphi 0, %s277
      %s292 = sphi 0, %s278
      %s296 = sphi 0, %s296
      %s298 = sphi 0, %s296
      %s299 = sphi 0, %s298
      %s313 = sphi 0, %s299
      %s317 = sphi 0, %s317
      %s319 = sphi 0, %s317
      %s320 = sphi 0, %s319
      %s334 = sphi 0, %s320
      %s338 = sphi 0, %s338
      %s340 = sphi 0, %s338
      %s341 = sphi 0, %s340
      %s355 = sphi 0, %s341
      %s361 = sphi 0, %s363
      %s364 = sphi 0, %s361
      %s365 = sphi 0, %s364
      %s381 = sphi 0, %s365
    $region4: #{forward.1} parent=1 // loop_header_branch
      %34 = sbr.rel (%p32) target = $region8
    $region5: #{forward.1} parent=1 // loop_body
      %s36 = ssub.s32 %s31, 1
      %s37 = ssub.s32 %s31, 2
      %s38 = sadd.s32 %s31, 1
      %s39 = ssub.s32 %s31, %s38
      %p40 = scmp.eq.s32.totalorder %s39, 0
      %s42 = sadd.s32 %s41, 1
      %s43 = scalar_select %p40, %s41, %s42
      %p46 = pneg %p40
      %p47 = scmp.eq.s32.totalorder %s31, 1
      %p48 = por %p46, %p47
      %p49 = scmp.ne.s32.totalorder %s41, %s44
      %p50 = scmp.eq.s32.totalorder %s31, 0
      %p51 = por %p49, %p50
      %p52 = scmp.ne.s32.totalorder %s41, %s44
      %p53 = scmp.eq.s32.totalorder %s36, 1
      %p54 = por %p52, %p53
      %p55 = scmp.ne.s32.totalorder %s44, %s45
      %p56 = scmp.eq.s32.totalorder %s36, 0
      %p57 = por %p55, %p56
      %p58 = scmp.ne.s32.totalorder %s44, %s45
      %p59 = scmp.eq.s32.totalorder %s37, 1
      %p60 = por %p58, %p59
      %p62 = scmp.ne.s32.totalorder %s45, %s61
      %p63 = scmp.eq.s32.totalorder %s37, 0
      %p64 = por %p62, %p63
      %s66 = sadd.s32 %s65, 1
      %p69 = scmp.eq.s32.totalorder %s31, 1
      %p70 = scmp.ne.s32.totalorder %s65, %s67
      %p71 = scmp.eq.s32.totalorder %s31, 0
      %p72 = por %p70, %p71
      %p73 = scmp.ne.s32.totalorder %s65, %s67
      %p74 = scmp.eq.s32.totalorder %s36, 1
      %p75 = por %p73, %p74
      %p76 = scmp.ne.s32.totalorder %s67, %s68
      %p77 = scmp.eq.s32.totalorder %s36, 0
      %p78 = por %p76, %p77
      %p79 = scmp.ne.s32.totalorder %s67, %s68
      %p80 = scmp.eq.s32.totalorder %s37, 1
      %p81 = por %p79, %p80
      %p83 = scmp.ne.s32.totalorder %s68, %s82
      %p84 = scmp.eq.s32.totalorder %s37, 0
      %p85 = por %p83, %p84
      %s87 = sadd.s32 %s86, 1
      %p90 = scmp.eq.s32.totalorder %s31, 1
      %p91 = scmp.ne.s32.totalorder %s86, %s88
      %p92 = scmp.eq.s32.totalorder %s31, 0
      %p93 = por %p91, %p92
      %p94 = scmp.ne.s32.totalorder %s86, %s88
      %p95 = scmp.eq.s32.totalorder %s36, 1
      %p96 = por %p94, %p95
      %p97 = scmp.ne.s32.totalorder %s88, %s89
      %p98 = scmp.eq.s32.totalorder %s36, 0
      %p99 = por %p97, %p98
      %p100 = scmp.ne.s32.totalorder %s88, %s89
      %p101 = scmp.eq.s32.totalorder %s37, 1
      %p102 = por %p100, %p101
      %p104 = scmp.ne.s32.totalorder %s89, %s103
      %p105 = scmp.eq.s32.totalorder %s37, 0
      %p106 = por %p104, %p105
      %s108 = sadd.s32 %s107, 1
      %p111 = scmp.eq.s32.totalorder %s31, 1
      %p112 = scmp.ne.s32.totalorder %s107, %s109
      %p113 = scmp.eq.s32.totalorder %s31, 0
      %p114 = por %p112, %p113
      %p115 = scmp.ne.s32.totalorder %s107, %s109
      %p116 = scmp.eq.s32.totalorder %s36, 1
      %p117 = por %p115, %p116
      %p118 = scmp.ne.s32.totalorder %s109, %s110
      %p119 = scmp.eq.s32.totalorder %s36, 0
      %p120 = por %p118, %p119
      %p121 = scmp.ne.s32.totalorder %s109, %s110
      %p122 = scmp.eq.s32.totalorder %s37, 1
      %p123 = por %p121, %p122
      %p125 = scmp.ne.s32.totalorder %s110, %s124
      %p126 = scmp.eq.s32.totalorder %s37, 0
      %p127 = por %p125, %p126
      %s129 = sadd.s32 %s128, 1
      %p132 = scmp.eq.s32.totalorder %s31, 1
      %p133 = scmp.ne.s32.totalorder %s128, %s130
      %p134 = scmp.eq.s32.totalorder %s31, 0
      %p135 = por %p133, %p134
      %p136 = scmp.ne.s32.totalorder %s128, %s130
      %p137 = scmp.eq.s32.totalorder %s36, 1
      %p138 = por %p136, %p137
      %p139 = scmp.ne.s32.totalorder %s130, %s131
      %p140 = scmp.eq.s32.totalorder %s36, 0
      %p141 = por %p139, %p140
      %p142 = scmp.ne.s32.totalorder %s130, %s131
      %p143 = scmp.eq.s32.totalorder %s37, 1
      %p144 = por %p142, %p143
      %p146 = scmp.ne.s32.totalorder %s131, %s145
      %p147 = scmp.eq.s32.totalorder %s37, 0
      %p148 = por %p146, %p147
      %s150 = sadd.s32 %s149, 1
      %p153 = scmp.eq.s32.totalorder %s31, 1
      %p154 = scmp.ne.s32.totalorder %s149, %s151
      %p155 = scmp.eq.s32.totalorder %s31, 0
      %p156 = por %p154, %p155
      %p157 = scmp.ne.s32.totalorder %s149, %s151
      %p158 = scmp.eq.s32.totalorder %s36, 1
      %p159 = por %p157, %p158
      %p160 = scmp.ne.s32.totalorder %s151, %s152
      %p161 = scmp.eq.s32.totalorder %s36, 0
      %p162 = por %p160, %p161
      %p163 = scmp.ne.s32.totalorder %s151, %s152
      %p164 = scmp.eq.s32.totalorder %s37, 1
      %p165 = por %p163, %p164
      %p167 = scmp.ne.s32.totalorder %s152, %s166
      %p168 = scmp.eq.s32.totalorder %s37, 0
      %p169 = por %p167, %p168
      %s171 = sadd.s32 %s170, 1
      %p174 = scmp.eq.s32.totalorder %s31, 1
      %p175 = scmp.ne.s32.totalorder %s170, %s172
      %p176 = scmp.eq.s32.totalorder %s31, 0
      %p177 = por %p175, %p176
      %p178 = scmp.ne.s32.totalorder %s170, %s172
      %p179 = scmp.eq.s32.totalorder %s36, 1
      %p180 = por %p178, %p179
      %p181 = scmp.ne.s32.totalorder %s172, %s173
      %p182 = scmp.eq.s32.totalorder %s36, 0
      %p183 = por %p181, %p182
      %p184 = scmp.ne.s32.totalorder %s172, %s173
      %p185 = scmp.eq.s32.totalorder %s37, 1
      %p186 = por %p184, %p185
      %p188 = scmp.ne.s32.totalorder %s173, %s187
      %p189 = scmp.eq.s32.totalorder %s37, 0
      %p190 = por %p188, %p189
      %s192 = sadd.s32 %s191, 1
      %p195 = scmp.eq.s32.totalorder %s31, 1
      %p196 = scmp.ne.s32.totalorder %s191, %s193
      %p197 = scmp.eq.s32.totalorder %s31, 0
      %p198 = por %p196, %p197
      %p199 = scmp.ne.s32.totalorder %s191, %s193
      %p200 = scmp.eq.s32.totalorder %s36, 1
      %p201 = por %p199, %p200
      %p202 = scmp.ne.s32.totalorder %s193, %s194
      %p203 = scmp.eq.s32.totalorder %s36, 0
      %p204 = por %p202, %p203
      %p205 = scmp.ne.s32.totalorder %s193, %s194
      %p206 = scmp.eq.s32.totalorder %s37, 1
      %p207 = por %p205, %p206
      %p209 = scmp.ne.s32.totalorder %s194, %s208
      %p210 = scmp.eq.s32.totalorder %s37, 0
      %p211 = por %p209, %p210
      %s213 = sadd.s32 %s212, 1
      %p216 = scmp.eq.s32.totalorder %s31, 1
      %p217 = scmp.ne.s32.totalorder %s212, %s214
      %p218 = scmp.eq.s32.totalorder %s31, 0
      %p219 = por %p217, %p218
      %p220 = scmp.ne.s32.totalorder %s212, %s214
      %p221 = scmp.eq.s32.totalorder %s36, 1
      %p222 = por %p220, %p221
      %p223 = scmp.ne.s32.totalorder %s214, %s215
      %p224 = scmp.eq.s32.totalorder %s36, 0
      %p225 = por %p223, %p224
      %p226 = scmp.ne.s32.totalorder %s214, %s215
      %p227 = scmp.eq.s32.totalorder %s37, 1
      %p228 = por %p226, %p227
      %p230 = scmp.ne.s32.totalorder %s215, %s229
      %p231 = scmp.eq.s32.totalorder %s37, 0
      %p232 = por %p230, %p231
      %s234 = sadd.s32 %s233, 1
      %p237 = scmp.eq.s32.totalorder %s31, 1
      %p238 = scmp.ne.s32.totalorder %s233, %s235
      %p239 = scmp.eq.s32.totalorder %s31, 0
      %p240 = por %p238, %p239
      %p241 = scmp.ne.s32.totalorder %s233, %s235
      %p242 = scmp.eq.s32.totalorder %s36, 1
      %p243 = por %p241, %p242
      %p244 = scmp.ne.s32.totalorder %s235, %s236
      %p245 = scmp.eq.s32.totalorder %s36, 0
      %p246 = por %p244, %p245
      %p247 = scmp.ne.s32.totalorder %s235, %s236
      %p248 = scmp.eq.s32.totalorder %s37, 1
      %p249 = por %p247, %p248
      %p251 = scmp.ne.s32.totalorder %s236, %s250
      %p252 = scmp.eq.s32.totalorder %s37, 0
      %p253 = por %p251, %p252
      %s255 = sadd.s32 %s254, 1
      %p258 = scmp.eq.s32.totalorder %s31, 1
      %p259 = scmp.ne.s32.totalorder %s254, %s256
      %p260 = scmp.eq.s32.totalorder %s31, 0
      %p261 = por %p259, %p260
      %p262 = scmp.ne.s32.totalorder %s254, %s256
      %p263 = scmp.eq.s32.totalorder %s36, 1
      %p264 = por %p262, %p263
      %p265 = scmp.ne.s32.totalorder %s256, %s257
      %p266 = scmp.eq.s32.totalorder %s36, 0
      %p267 = por %p265, %p266
      %p268 = scmp.ne.s32.totalorder %s256, %s257
      %p269 = scmp.eq.s32.totalorder %s37, 1
      %p270 = por %p268, %p269
      %p272 = scmp.ne.s32.totalorder %s257, %s271
      %p273 = scmp.eq.s32.totalorder %s37, 0
      %p274 = por %p272, %p273
      %s276 = sadd.s32 %s275, 1
      %p279 = scmp.eq.s32.totalorder %s31, 1
      %p280 = scmp.ne.s32.totalorder %s275, %s277
      %p281 = scmp.eq.s32.totalorder %s31, 0
      %p282 = por %p280, %p281
      %p283 = scmp.ne.s32.totalorder %s275, %s277
      %p284 = scmp.eq.s32.totalorder %s36, 1
      %p285 = por %p283, %p284
      %p286 = scmp.ne.s32.totalorder %s277, %s278
      %p287 = scmp.eq.s32.totalorder %s36, 0
      %p288 = por %p286, %p287
      %p289 = scmp.ne.s32.totalorder %s277, %s278
      %p290 = scmp.eq.s32.totalorder %s37, 1
      %p291 = por %p289, %p290
      %p293 = scmp.ne.s32.totalorder %s278, %s292
      %p294 = scmp.eq.s32.totalorder %s37, 0
      %p295 = por %p293, %p294
      %s297 = sadd.s32 %s296, 1
      %p300 = scmp.eq.s32.totalorder %s31, 1
      %p301 = scmp.ne.s32.totalorder %s296, %s298
      %p302 = scmp.eq.s32.totalorder %s31, 0
      %p303 = por %p301, %p302
      %p304 = scmp.ne.s32.totalorder %s296, %s298
      %p305 = scmp.eq.s32.totalorder %s36, 1
      %p306 = por %p304, %p305
      %p307 = scmp.ne.s32.totalorder %s298, %s299
      %p308 = scmp.eq.s32.totalorder %s36, 0
      %p309 = por %p307, %p308
      %p310 = scmp.ne.s32.totalorder %s298, %s299
      %p311 = scmp.eq.s32.totalorder %s37, 1
      %p312 = por %p310, %p311
      %p314 = scmp.ne.s32.totalorder %s299, %s313
      %p315 = scmp.eq.s32.totalorder %s37, 0
      %p316 = por %p314, %p315
      %s318 = sadd.s32 %s317, 1
      %p321 = scmp.eq.s32.totalorder %s31, 1
      %p322 = scmp.ne.s32.totalorder %s317, %s319
      %p323 = scmp.eq.s32.totalorder %s31, 0
      %p324 = por %p322, %p323
      %p325 = scmp.ne.s32.totalorder %s317, %s319
      %p326 = scmp.eq.s32.totalorder %s36, 1
      %p327 = por %p325, %p326
      %p328 = scmp.ne.s32.totalorder %s319, %s320
      %p329 = scmp.eq.s32.totalorder %s36, 0
      %p330 = por %p328, %p329
      %p331 = scmp.ne.s32.totalorder %s319, %s320
      %p332 = scmp.eq.s32.totalorder %s37, 1
      %p333 = por %p331, %p332
      %p335 = scmp.ne.s32.totalorder %s320, %s334
      %p336 = scmp.eq.s32.totalorder %s37, 0
      %p337 = por %p335, %p336
      %s339 = sadd.s32 %s338, 1
      %p342 = scmp.eq.s32.totalorder %s31, 1
      %p343 = scmp.ne.s32.totalorder %s338, %s340
      %p344 = scmp.eq.s32.totalorder %s31, 0
      %p345 = por %p343, %p344
      %p346 = scmp.ne.s32.totalorder %s338, %s340
      %p347 = scmp.eq.s32.totalorder %s36, 1
      %p348 = por %p346, %p347
      %p349 = scmp.ne.s32.totalorder %s340, %s341
      %p350 = scmp.eq.s32.totalorder %s36, 0
      %p351 = por %p349, %p350
      %p352 = scmp.ne.s32.totalorder %s340, %s341
      %p353 = scmp.eq.s32.totalorder %s37, 1
      %p354 = por %p352, %p353
      %p356 = scmp.ne.s32.totalorder %s341, %s355
      %p357 = scmp.eq.s32.totalorder %s37, 0
      %p358 = por %p356, %p357
      %s359 = ssub.s32 %s31, %s38
      %p360 = scmp.eq.s32.totalorder %s359, 0
      %s362 = sadd.s32 %s361, 1
      %s363 = scalar_select %p360, %s361, %s362
      %p366 = pneg %p360
      %p367 = scmp.eq.s32.totalorder %s31, 1
      %p368 = por %p366, %p367
      %p369 = scmp.ne.s32.totalorder %s361, %s364
      %p370 = scmp.eq.s32.totalorder %s31, 0
      %p371 = por %p369, %p370
      %p372 = scmp.ne.s32.totalorder %s361, %s364
      %p373 = scmp.eq.s32.totalorder %s36, 1
      %p374 = por %p372, %p373
      %p375 = scmp.ne.s32.totalorder %s364, %s365
      %p376 = scmp.eq.s32.totalorder %s36, 0
      %p377 = por %p375, %p376
      %p378 = scmp.ne.s32.totalorder %s364, %s365
      %p379 = scmp.eq.s32.totalorder %s37, 1
      %p380 = por %p378, %p379
      %p382 = scmp.ne.s32.totalorder %s365, %s381
      %p383 = scmp.eq.s32.totalorder %s37, 0
      %p384 = por %p382, %p383
      %p385 = scmp.le.s32.totalorder 1, %s31
      %p386 = scmp.lt.s32.totalorder %s31, 3
      %p387 = pnand %p385, %p386
      %p388 = pneg %p387
      // Predicated region
      $region9: #{forward.1} parent=5 // pred_check
        _
      $region10: #{forward.1} parent=5 // pred_check_branch
        %390 = sbr.rel (%p387) target = $region12
      $region11: #{forward.1} parent=5 // pred_region
        %s391 = ssub.s32 %s31, 1
        // Predicated region
        $region13: #{forward.1} parent=11 // pred_check
          %p392 = pneg %p78
        $region14: #{forward.1} parent=11 // pred_check_branch
          %394 = sbr.rel (%p392) target = $region16
        $region15: #{forward.1} parent=11 // pred_region
          %s396 = ssub.s32 36864, 36864
          %397 = vsyncadd [#allocation3], %s396
          %s398 = sshll.u32 [#allocation2], 4
          %s399 = int_to_ptr.vmem [resolvable:$true] %s398
          %404 = dma.hbm_to_vmem [thread:$0]  %s1, 36864, %s399, [#allocation3], 128, 128, 8
        $region16: #{forward.1} parent=11 // pred_fallthru
          _
        // Predicated region
        $region17: #{forward.1} parent=11 // pred_check
          %p405 = pneg %p99
        $region18: #{forward.1} parent=11 // pred_check_branch
          %407 = sbr.rel (%p405) target = $region20
        $region19: #{forward.1} parent=11 // pred_region
          %s409 = ssub.s32 4096, 4096
          %410 = vsyncadd [#allocation6], %s409
          %s411 = sshll.u32 [#allocation5], 4
          %s412 = int_to_ptr.vmem [resolvable:$true] %s411
          %417 = dma.hbm_to_vmem [thread:$0]  %s2, 4096, %s412, [#allocation6], 128, 128, 8
        $region20: #{forward.1} parent=11 // pred_fallthru
          _
        // Predicated region
        $region21: #{forward.1} parent=11 // pred_check
          %p418 = pneg %p120
        $region22: #{forward.1} parent=11 // pred_check_branch
          %420 = sbr.rel (%p418) target = $region24
        $region23: #{forward.1} parent=11 // pred_region
          %s422 = ssub.s32 144, 144
          %423 = vsyncadd [#allocation6], %s422
          %s424 = sshll.u32 [#allocation7], 4
          %s425 = int_to_ptr.vmem [resolvable:$true] %s424
          %430 = dma.hbm_to_vmem [thread:$0]  %s3, 144, %s425, [#allocation6], 16, 16, 1
        $region24: #{forward.1} parent=11 // pred_fallthru
          _
        // Predicated region
        $region25: #{forward.1} parent=11 // pred_check
          %p431 = pneg %p141
        $region26: #{forward.1} parent=11 // pred_check_branch
          %433 = sbr.rel (%p431) target = $region28
        $region27: #{forward.1} parent=11 // pred_region
          %s435 = ssub.s32 16, 16
          %436 = vsyncadd [#allocation9], %s435
          %s438 = sshll.u32 [#allocation8], 4
          %s439 = int_to_ptr.vmem [resolvable:$true] %s438
          %441 = dma.hbm_to_vmem [thread:$0]  %s4, 16, %s439, [#allocation9]
        $region28: #{forward.1} parent=11 // pred_fallthru
          _
        // Predicated region
        $region29: #{forward.1} parent=11 // pred_check
          %p442 = pneg %p162
        $region30: #{forward.1} parent=11 // pred_check_branch
          %444 = sbr.rel (%p442) target = $region32
        $region31: #{forward.1} parent=11 // pred_region
          %s446 = ssub.s32 4608, 4608
          %447 = vsyncadd [#allocation9], %s446
          %s448 = sshll.u32 [#allocation10], 4
          %s449 = int_to_ptr.vmem [resolvable:$true] %s448
          %454 = dma.hbm_to_vmem [thread:$0]  %s5, 4608, %s449, [#allocation9], 64, 64, 4
        $region32: #{forward.1} parent=11 // pred_fallthru
          _
        // Predicated region
        $region33: #{forward.1} parent=11 // pred_check
          %p455 = pneg %p183
        $region34: #{forward.1} parent=11 // pred_check_branch
          %457 = sbr.rel (%p455) target = $region36
        $region35: #{forward.1} parent=11 // pred_region
          %s459 = ssub.s32 512, 512
          %460 = vsyncadd [#allocation12], %s459
          %s461 = sshll.u32 [#allocation11], 4
          %s462 = int_to_ptr.vmem [resolvable:$true] %s461
          %467 = dma.hbm_to_vmem [thread:$0]  %s6, 512, %s462, [#allocation12], 64, 64, 4
        $region36: #{forward.1} parent=11 // pred_fallthru
          _
        // Predicated region
        $region37: #{forward.1} parent=11 // pred_check
          %p468 = pneg %p204
        $region38: #{forward.1} parent=11 // pred_check_branch
          %470 = sbr.rel (%p468) target = $region40
        $region39: #{forward.1} parent=11 // pred_region
          _
        $region40: #{forward.1} parent=11 // pred_fallthru
          _
        // Predicated region
        $region41: #{forward.1} parent=11 // pred_check
          %p471 = pneg %p225
        $region42: #{forward.1} parent=11 // pred_check_branch
          %473 = sbr.rel (%p471) target = $region44
        $region43: #{forward.1} parent=11 // pred_region
          %s475 = ssub.s32 16, 16
          %476 = vsyncadd [#allocation12], %s475
          %s478 = sshll.u32 [#allocation13], 4
          %s479 = int_to_ptr.vmem [resolvable:$true] %s478
          %481 = dma.hbm_to_vmem [thread:$0]  %s8, 16, %s479, [#allocation12]
        $region44: #{forward.1} parent=11 // pred_fallthru
          _
        // Predicated region
        $region45: #{forward.1} parent=11 // pred_check
          %p482 = pneg %p246
        $region46: #{forward.1} parent=11 // pred_check_branch
          %484 = sbr.rel (%p482) target = $region48
        $region47: #{forward.1} parent=11 // pred_region
          %s486 = ssub.s32 1152, 1152
          %487 = vsyncadd [#allocation15], %s486
          %s488 = sshll.u32 [#allocation14], 4
          %s489 = int_to_ptr.vmem [resolvable:$true] %s488
          %494 = dma.hbm_to_vmem [thread:$0]  %s9, 1152, %s489, [#allocation15], 64, 64, 4
        $region48: #{forward.1} parent=11 // pred_fallthru
          _
        // Predicated region
        $region49: #{forward.1} parent=11 // pred_check
          %p495 = pneg %p267
        $region50: #{forward.1} parent=11 // pred_check_branch
          %497 = sbr.rel (%p495) target = $region52
        $region51: #{forward.1} parent=11 // pred_region
          %s499 = ssub.s32 128, 128
          %500 = vsyncadd [#allocation15], %s499
          %s501 = sshll.u32 [#allocation16], 4
          %s502 = int_to_ptr.vmem [resolvable:$true] %s501
          %507 = dma.hbm_to_vmem [thread:$0]  %s10, 128, %s502, [#allocation15], 32, 32, 2
        $region52: #{forward.1} parent=11 // pred_fallthru
          _
        // Predicated region
        $region53: #{forward.1} parent=11 // pred_check
          %p508 = pneg %p288
        $region54: #{forward.1} parent=11 // pred_check_branch
          %510 = sbr.rel (%p508) target = $region56
        $region55: #{forward.1} parent=11 // pred_region
          %s512 = ssub.s32 4608, 4608
          %513 = vsyncadd [#allocation18], %s512
          %s514 = sshll.u32 [#allocation17], 4
          %s515 = int_to_ptr.vmem [resolvable:$true] %s514
          %520 = dma.hbm_to_vmem [thread:$0]  %s11, 4608, %s515, [#allocation18], 64, 64, 4
        $region56: #{forward.1} parent=11 // pred_fallthru
          _
        // Predicated region
        $region57: #{forward.1} parent=11 // pred_check
          %p521 = pneg %p309
        $region58: #{forward.1} parent=11 // pred_check_branch
          %523 = sbr.rel (%p521) target = $region60
        $region59: #{forward.1} parent=11 // pred_region
          %s525 = ssub.s32 16, 16
          %526 = vsyncadd [#allocation18], %s525
          %s528 = sshll.u32 [#allocation19], 4
          %s529 = int_to_ptr.vmem [resolvable:$true] %s528
          %531 = dma.hbm_to_vmem [thread:$0]  %s12, 16, %s529, [#allocation18]
        $region60: #{forward.1} parent=11 // pred_fallthru
          _
        // Predicated region
        $region61: #{forward.1} parent=11 // pred_check
          %p532 = pneg %p330
        $region62: #{forward.1} parent=11 // pred_check_branch
          %534 = sbr.rel (%p532) target = $region64
        $region63: #{forward.1} parent=11 // pred_region
          %s536 = ssub.s32 2048, 2048
          %537 = vsyncadd [#allocation21], %s536
          %s538 = sshll.u32 [#allocation20], 4
          %s539 = int_to_ptr.vmem [resolvable:$true] %s538
          %544 = dma.hbm_to_vmem [thread:$0]  %s13, 2048, %s539, [#allocation21], 128, 128, 8
        $region64: #{forward.1} parent=11 // pred_fallthru
          _
        // Predicated region
        $region65: #{forward.1} parent=11 // pred_check
          %p545 = pneg %p351
        $region66: #{forward.1} parent=11 // pred_check_branch
          %547 = sbr.rel (%p545) target = $region68
        $region67: #{forward.1} parent=11 // pred_region
          %s549 = ssub.s32 16, 16
          %550 = vsyncadd [#allocation21], %s549
          %s552 = sshll.u32 [#allocation22], 4
          %s553 = int_to_ptr.vmem [resolvable:$true] %s552
          %555 = dma.hbm_to_vmem [thread:$0]  %s14, 16, %s553, [#allocation21]
        $region68: #{forward.1} parent=11 // pred_fallthru
          _
      $region12: #{forward.1} parent=5 // pred_fallthru
        _
      %p556 = scmp.lt.s32.totalorder %s31, 2
      // Predicated region
      $region69: #{forward.1} parent=5 // pred_check
        %p557 = pneg %p556
      $region70: #{forward.1} parent=5 // pred_check_branch
        %559 = sbr.rel (%p557) target = $region72
      $region71: #{forward.1} parent=5 // pred_region
        // Predicated region
        $region73: #{forward.1} parent=71 // pred_check
          %p560 = pneg %p51
        $region74: #{forward.1} parent=71 // pred_check_branch
          %562 = sbr.rel (%p560) target = $region76
        $region75: #{forward.1} parent=71 // pred_region
          %p563 = scmp.lt.s32.totalorder %s31, 1
          %s564 = scalar_select %p563, %s31, 1
          %s565 = smul.addr %s564, 32
          %s566 = smul.addr %s565, 8
          %s567 = scalar_lea.vmem %s0, %s566
        $region76: #{forward.1} parent=71 // pred_fallthru
          _
      $region72: #{forward.1} parent=5 // pred_fallthru
        _
      %p568 = scmp.le.s32.totalorder 1, %s31
      %p569 = scmp.lt.s32.totalorder %s31, 3
      %p570 = pnand %p568, %p569
      %p571 = pneg %p570
      // Predicated region
      $region77: #{forward.1} parent=5 // pred_check
        _
      $region78: #{forward.1} parent=5 // pred_check_branch
        %573 = sbr.rel (%p570) target = $region80
      $region79: #{forward.1} parent=5 // pred_region
        %s574 = ssub.s32 %s31, 1
        // Predicated region
        $region81: #{forward.1} parent=79 // pred_check
          %p575 = pneg %p78
        $region82: #{forward.1} parent=79 // pred_check_branch
          %577 = sbr.rel (%p575) target = $region84
        $region83: #{forward.1} parent=79 // pred_region
          %578 = dma.done [#allocation3], 36864
        $region84: #{forward.1} parent=79 // pred_fallthru
          _
        // Predicated region
        $region85: #{forward.1} parent=79 // pred_check
          %p579 = pneg %p99
        $region86: #{forward.1} parent=79 // pred_check_branch
          %581 = sbr.rel (%p579) target = $region88
        $region87: #{forward.1} parent=79 // pred_region
          %582 = dma.done [#allocation6], 4096
        $region88: #{forward.1} parent=79 // pred_fallthru
          _
        // Predicated region
        $region89: #{forward.1} parent=79 // pred_check
          %p583 = pneg %p120
        $region90: #{forward.1} parent=79 // pred_check_branch
          %585 = sbr.rel (%p583) target = $region92
        $region91: #{forward.1} parent=79 // pred_region
          %586 = dma.done [#allocation6], 144
        $region92: #{forward.1} parent=79 // pred_fallthru
          _
        // Predicated region
        $region93: #{forward.1} parent=79 // pred_check
          %p587 = pneg %p141
        $region94: #{forward.1} parent=79 // pred_check_branch
          %589 = sbr.rel (%p587) target = $region96
        $region95: #{forward.1} parent=79 // pred_region
          %590 = dma.done [#allocation9], 16
        $region96: #{forward.1} parent=79 // pred_fallthru
          _
        // Predicated region
        $region97: #{forward.1} parent=79 // pred_check
          %p591 = pneg %p162
        $region98: #{forward.1} parent=79 // pred_check_branch
          %593 = sbr.rel (%p591) target = $region100
        $region99: #{forward.1} parent=79 // pred_region
          %594 = dma.done [#allocation9], 4608
        $region100: #{forward.1} parent=79 // pred_fallthru
          _
        // Predicated region
        $region101: #{forward.1} parent=79 // pred_check
          %p595 = pneg %p183
        $region102: #{forward.1} parent=79 // pred_check_branch
          %597 = sbr.rel (%p595) target = $region104
        $region103: #{forward.1} parent=79 // pred_region
          %598 = dma.done [#allocation12], 512
        $region104: #{forward.1} parent=79 // pred_fallthru
          _
        // Predicated region
        $region105: #{forward.1} parent=79 // pred_check
          %p599 = pneg %p225
        $region106: #{forward.1} parent=79 // pred_check_branch
          %601 = sbr.rel (%p599) target = $region108
        $region107: #{forward.1} parent=79 // pred_region
          %602 = dma.done [#allocation12], 16
        $region108: #{forward.1} parent=79 // pred_fallthru
          _
        // Predicated region
        $region109: #{forward.1} parent=79 // pred_check
          %p603 = pneg %p246
        $region110: #{forward.1} parent=79 // pred_check_branch
          %605 = sbr.rel (%p603) target = $region112
        $region111: #{forward.1} parent=79 // pred_region
          %606 = dma.done [#allocation15], 1152
        $region112: #{forward.1} parent=79 // pred_fallthru
          _
        // Predicated region
        $region113: #{forward.1} parent=79 // pred_check
          %p607 = pneg %p267
        $region114: #{forward.1} parent=79 // pred_check_branch
          %609 = sbr.rel (%p607) target = $region116
        $region115: #{forward.1} parent=79 // pred_region
          %610 = dma.done [#allocation15], 128
        $region116: #{forward.1} parent=79 // pred_fallthru
          _
        // Predicated region
        $region117: #{forward.1} parent=79 // pred_check
          %p611 = pneg %p288
        $region118: #{forward.1} parent=79 // pred_check_branch
          %613 = sbr.rel (%p611) target = $region120
        $region119: #{forward.1} parent=79 // pred_region
          %614 = dma.done [#allocation18], 4608
        $region120: #{forward.1} parent=79 // pred_fallthru
          _
        // Predicated region
        $region121: #{forward.1} parent=79 // pred_check
          %p615 = pneg %p309
        $region122: #{forward.1} parent=79 // pred_check_branch
          %617 = sbr.rel (%p615) target = $region124
        $region123: #{forward.1} parent=79 // pred_region
          %618 = dma.done [#allocation18], 16
        $region124: #{forward.1} parent=79 // pred_fallthru
          _
        // Predicated region
        $region125: #{forward.1} parent=79 // pred_check
          %p619 = pneg %p330
        $region126: #{forward.1} parent=79 // pred_check_branch
          %621 = sbr.rel (%p619) target = $region128
        $region127: #{forward.1} parent=79 // pred_region
          %622 = dma.done [#allocation21], 2048
        $region128: #{forward.1} parent=79 // pred_fallthru
          _
        // Predicated region
        $region129: #{forward.1} parent=79 // pred_check
          %p623 = pneg %p351
        $region130: #{forward.1} parent=79 // pred_check_branch
          %625 = sbr.rel (%p623) target = $region132
        $region131: #{forward.1} parent=79 // pred_region
          %626 = dma.done [#allocation21], 16
        $region132: #{forward.1} parent=79 // pred_fallthru
          _
        %p627 = scmp.lt.s32.totalorder %s36, 1
        %s628 = scalar_select %p627, %s36, 1
        %s629 = smul.addr %s628, 32
        %s630 = smul.addr %s629, 8
        %s631 = scalar_lea.vmem %s0, %s630
        %p632 = pneg %p57
        %p633 = pneg %p54
        %p634 = pneg %p78
        %p635 = pneg %p75
        %p636 = pneg %p99
        %p637 = pneg %p96
        %p638 = pneg %p120
        %p639 = pneg %p117
        %p640 = pneg %p141
        %p641 = pneg %p138
        %p642 = pneg %p162
        %p643 = pneg %p159
        %p644 = pneg %p183
        %p645 = pneg %p180
        %p646 = pneg %p204
        %p647 = pneg %p201
        %p648 = pneg %p225
        %p649 = pneg %p222
        %p650 = pneg %p246
        %p651 = pneg %p243
        %p652 = pneg %p267
        %p653 = pneg %p264
        %p654 = pneg %p288
        %p655 = pneg %p285
        %p656 = pneg %p309
        %p657 = pneg %p306
        %p658 = pneg %p330
        %p659 = pneg %p327
        %p660 = pneg %p351
        %p661 = pneg %p348
        %p662 = pneg %p377
        %p663 = pneg %p374
        %s664 = sand.u32 %s364, 1
        %s665 = scalar_lea.sflag [#allocation4], %s664
        %s666 = sand.u32 %s364, 1
        %s667 = scalar_lea.vmem [#allocation23], %s666
        %p668 = scmp.lt.s32.totalorder %s36, 1
        %s669 = scalar_select %p668, %s36, 1
        %s670 = smul.addr %s669, 32
        %s671 = smul.addr %s670, 8
        %s672 = scalar_lea.vmem %s0, %s671
        %v674 = vld [vmem:[%s672] sm:$0xff]
        %v675 = vld [vmem:[%s672 + $0x8] sm:$0xff]
        %v676 = vld [vmem:[%s672 + $0x10] sm:$0xff]
        %v677 = vld [vmem:[%s672 + $0x18] sm:$0xff]
        %v678 = vld [vmem:[%s672 + $0x20] sm:$0xff]
        %v679 = vld [vmem:[%s672 + $0x28] sm:$0xff]
        %v680 = vld [vmem:[%s672 + $0x30] sm:$0xff]
        %v681 = vld [vmem:[%s672 + $0x38] sm:$0xff]
        %v682 = vld [vmem:[%s672 + $0x40] sm:$0xff]
        %v683 = vld [vmem:[%s672 + $0x48] sm:$0xff]
        %v684 = vld [vmem:[%s672 + $0x50] sm:$0xff]
        %v685 = vld [vmem:[%s672 + $0x58] sm:$0xff]
        %v686 = vld [vmem:[%s672 + $0x60] sm:$0xff]
        %v687 = vld [vmem:[%s672 + $0x68] sm:$0xff]
        %v688 = vld [vmem:[%s672 + $0x70] sm:$0xff]
        %v689 = vld [vmem:[%s672 + $0x78] sm:$0xff]
        %v690 = vld [vmem:[%s672 + $0x80] sm:$0xff]
        %v691 = vld [vmem:[%s672 + $0x88] sm:$0xff]
        %v692 = vld [vmem:[%s672 + $0x90] sm:$0xff]
        %v693 = vld [vmem:[%s672 + $0x98] sm:$0xff]
        %v694 = vld [vmem:[%s672 + $0xa0] sm:$0xff]
        %v695 = vld [vmem:[%s672 + $0xa8] sm:$0xff]
        %v696 = vld [vmem:[%s672 + $0xb0] sm:$0xff]
        %v697 = vld [vmem:[%s672 + $0xb8] sm:$0xff]
        %v698 = vld [vmem:[%s672 + $0xc0] sm:$0xff]
        %v699 = vld [vmem:[%s672 + $0xc8] sm:$0xff]
        %v700 = vld [vmem:[%s672 + $0xd0] sm:$0xff]
        %v701 = vld [vmem:[%s672 + $0xd8] sm:$0xff]
        %v702 = vld [vmem:[%s672 + $0xe0] sm:$0xff]
        %v703 = vld [vmem:[%s672 + $0xe8] sm:$0xff]
        %v704 = vld [vmem:[%s672 + $0xf0] sm:$0xff]
        %v705 = vld [vmem:[%s672 + $0xf8] sm:$0xff]
        %v706 = vpack.c.bf16 %v675, %v674
        %v707 = vpack.c.bf16 %v677, %v676
        %v708 = vpack.c.bf16 %v679, %v678
        %v709 = vpack.c.bf16 %v681, %v680
        %v710 = vpack.c.bf16 %v683, %v682
        %v711 = vpack.c.bf16 %v685, %v684
        %v712 = vpack.c.bf16 %v687, %v686
        %v713 = vpack.c.bf16 %v689, %v688
        %v714 = vpack.c.bf16 %v691, %v690
        %v715 = vpack.c.bf16 %v693, %v692
        %v716 = vpack.c.bf16 %v695, %v694
        %v717 = vpack.c.bf16 %v697, %v696
        %v718 = vpack.c.bf16 %v699, %v698
        %v719 = vpack.c.bf16 %v701, %v700
        %v720 = vpack.c.bf16 %v703, %v702
        %v721 = vpack.c.bf16 %v705, %v704
        %v722 = vld [vmem:[#allocation2] sm:$0xff]
        %v723 = vld [vmem:[#allocation2 + $0x8] sm:$0xff]
        %v724 = vld [vmem:[#allocation2 + $0x10] sm:$0xff]
        %v725 = vld [vmem:[#allocation2 + $0x18] sm:$0xff]
        %v726 = vld [vmem:[#allocation2 + $0x20] sm:$0xff]
        %v727 = vld [vmem:[#allocation2 + $0x28] sm:$0xff]
        %v728 = vld [vmem:[#allocation2 + $0x30] sm:$0xff]
        %v729 = vld [vmem:[#allocation2 + $0x38] sm:$0xff]
        %v730 = vld [vmem:[#allocation2 + $0x40] sm:$0xff]
        %v731 = vld [vmem:[#allocation2 + $0x48] sm:$0xff]
        %v732 = vld [vmem:[#allocation2 + $0x50] sm:$0xff]
        %v733 = vld [vmem:[#allocation2 + $0x58] sm:$0xff]
        %v734 = vld [vmem:[#allocation2 + $0x60] sm:$0xff]
        %v735 = vld [vmem:[#allocation2 + $0x68] sm:$0xff]
        %v736 = vld [vmem:[#allocation2 + $0x70] sm:$0xff]
        %v737 = vld [vmem:[#allocation2 + $0x78] sm:$0xff]
        %v738 = vld [vmem:[#allocation2 + $0x80] sm:$0xff]
        %v739 = vld [vmem:[#allocation2 + $0x88] sm:$0xff]
        %v740 = vld [vmem:[#allocation2 + $0x90] sm:$0xff]
        %v741 = vld [vmem:[#allocation2 + $0x98] sm:$0xff]
        %v742 = vld [vmem:[#allocation2 + $0xa0] sm:$0xff]
        %v743 = vld [vmem:[#allocation2 + $0xa8] sm:$0xff]
        %v744 = vld [vmem:[#allocation2 + $0xb0] sm:$0xff]
        %v745 = vld [vmem:[#allocation2 + $0xb8] sm:$0xff]
        %v746 = vld [vmem:[#allocation2 + $0xc0] sm:$0xff]
        %v747 = vld [vmem:[#allocation2 + $0xc8] sm:$0xff]
        %v748 = vld [vmem:[#allocation2 + $0xd0] sm:$0xff]
        %v749 = vld [vmem:[#allocation2 + $0xd8] sm:$0xff]
        %v750 = vld [vmem:[#allocation2 + $0xe0] sm:$0xff]
        %v751 = vld [vmem:[#allocation2 + $0xe8] sm:$0xff]
        %v752 = vld [vmem:[#allocation2 + $0xf0] sm:$0xff]
        %v753 = vld [vmem:[#allocation2 + $0xf8] sm:$0xff]
        %v786 = vunpack.c.l.b16 %v722
        %v787 = vunpack.c.h.b16 %v722
        %v788 = vunpack.c.l.b16 %v723
        %v789 = vunpack.c.h.b16 %v723
        %v790 = vunpack.c.l.b16 %v724
        %v791 = vunpack.c.h.b16 %v724
        %v792 = vunpack.c.l.b16 %v725
        %v793 = vunpack.c.h.b16 %v725
        %v794 = vunpack.c.l.b16 %v726
        %v795 = vunpack.c.h.b16 %v726
        %v796 = vunpack.c.l.b16 %v727
        %v797 = vunpack.c.h.b16 %v727
        %v798 = vunpack.c.l.b16 %v728
        %v799 = vunpack.c.h.b16 %v728
        %v800 = vunpack.c.l.b16 %v729
        %v801 = vunpack.c.h.b16 %v729
        %v802 = vunpack.c.l.b16 %v730
        %v803 = vunpack.c.h.b16 %v730
        %v804 = vunpack.c.l.b16 %v731
        %v805 = vunpack.c.h.b16 %v731
        %v806 = vunpack.c.l.b16 %v732
        %v807 = vunpack.c.h.b16 %v732
        %v808 = vunpack.c.l.b16 %v733
        %v809 = vunpack.c.h.b16 %v733
        %v810 = vunpack.c.l.b16 %v734
        %v811 = vunpack.c.h.b16 %v734
        %v812 = vunpack.c.l.b16 %v735
        %v813 = vunpack.c.h.b16 %v735
        %v814 = vunpack.c.l.b16 %v736
        %v815 = vunpack.c.h.b16 %v736
        %v816 = vunpack.c.l.b16 %v737
        %v817 = vunpack.c.h.b16 %v737
        %v818 = vunpack.c.l.b16 %v738
        %v819 = vunpack.c.h.b16 %v738
        %v820 = vunpack.c.l.b16 %v739
        %v821 = vunpack.c.h.b16 %v739
        %v822 = vunpack.c.l.b16 %v740
        %v823 = vunpack.c.h.b16 %v740
        %v824 = vunpack.c.l.b16 %v741
        %v825 = vunpack.c.h.b16 %v741
        %v826 = vunpack.c.l.b16 %v742
        %v827 = vunpack.c.h.b16 %v742
        %v828 = vunpack.c.l.b16 %v743
        %v829 = vunpack.c.h.b16 %v743
        %v830 = vunpack.c.l.b16 %v744
        %v831 = vunpack.c.h.b16 %v744
        %v832 = vunpack.c.l.b16 %v745
        %v833 = vunpack.c.h.b16 %v745
        %v834 = vunpack.c.l.b16 %v746
        %v835 = vunpack.c.h.b16 %v746
        %v836 = vunpack.c.l.b16 %v747
        %v837 = vunpack.c.h.b16 %v747
        %v838 = vunpack.c.l.b16 %v748
        %v839 = vunpack.c.h.b16 %v748
        %v840 = vunpack.c.l.b16 %v749
        %v841 = vunpack.c.h.b16 %v749
        %v842 = vunpack.c.l.b16 %v750
        %v843 = vunpack.c.h.b16 %v750
        %v844 = vunpack.c.l.b16 %v751
        %v845 = vunpack.c.h.b16 %v751
        %v846 = vunpack.c.l.b16 %v752
        %v847 = vunpack.c.h.b16 %v752
        %v848 = vunpack.c.l.b16 %v753
        %v849 = vunpack.c.h.b16 %v753
        %v850 = vpack.c.b16 %v788, %v786
        %v851 = vpack.c.b16 %v789, %v787
        %v852 = vpack.c.b16 %v792, %v790
        %v853 = vpack.c.b16 %v793, %v791
        %v854 = vpack.c.b16 %v796, %v794
        %v855 = vpack.c.b16 %v797, %v795
        %v856 = vpack.c.b16 %v800, %v798
        %v857 = vpack.c.b16 %v801, %v799
        %v858 = vpack.c.b16 %v804, %v802
        %v859 = vpack.c.b16 %v805, %v803
        %v860 = vpack.c.b16 %v808, %v806
        %v861 = vpack.c.b16 %v809, %v807
        %v862 = vpack.c.b16 %v812, %v810
        %v863 = vpack.c.b16 %v813, %v811
        %v864 = vpack.c.b16 %v816, %v814
        %v865 = vpack.c.b16 %v817, %v815
        %v866 = vpack.c.b16 %v820, %v818
        %v867 = vpack.c.b16 %v821, %v819
        %v868 = vpack.c.b16 %v824, %v822
        %v869 = vpack.c.b16 %v825, %v823
        %v870 = vpack.c.b16 %v828, %v826
        %v871 = vpack.c.b16 %v829, %v827
        %v872 = vpack.c.b16 %v832, %v830
        %v873 = vpack.c.b16 %v833, %v831
        %v874 = vpack.c.b16 %v836, %v834
        %v875 = vpack.c.b16 %v837, %v835
        %v876 = vpack.c.b16 %v840, %v838
        %v877 = vpack.c.b16 %v841, %v839
        %v878 = vpack.c.b16 %v844, %v842
        %v879 = vpack.c.b16 %v845, %v843
        %v880 = vpack.c.b16 %v848, %v846
        %v881 = vpack.c.b16 %v849, %v847
        %914 = vmatprep.subr.bf16.mxu0 0
        %915 = vmatpush1.bf16.msra.mxu0 %v713
        %916 = vmatprep.subr.bf16.mxu0 0
        %917 = vmatpush1.bf16.msra.mxu0 %v712
        %918 = vmatprep.subr.bf16.mxu0 0
        %919 = vmatpush1.bf16.msra.mxu0 %v711
        %920 = vmatprep.subr.bf16.mxu0 0
        %921 = vmatpush1.bf16.msra.mxu0 %v710
        %922 = vmatprep.subr.bf16.mxu0 0
        %923 = vmatpush1.bf16.msra.mxu0 %v709
        %924 = vmatprep.subr.bf16.mxu0 0
        %925 = vmatpush1.bf16.msra.mxu0 %v708
        %926 = vmatprep.subr.bf16.mxu0 0
        %927 = vmatpush1.bf16.msra.mxu0 %v707
        %928 = vmatprep.subr.bf16.mxu0 0
        %929 = vmatpush1.bf16.msra.mxu0 %v706
        %930 = vmatprep.subr.bf16.mxu0 0
        %931 = vmatpush2.bf16.msra.mxu0 %v721
        %932 = vmatprep.subr.bf16.mxu0 0
        %933 = vmatpush2.bf16.msra.mxu0 %v720
        %934 = vmatprep.subr.bf16.mxu0 0
        %935 = vmatpush2.bf16.msra.mxu0 %v719
        %936 = vmatprep.subr.bf16.mxu0 0
        %937 = vmatpush2.bf16.msra.mxu0 %v718
        %938 = vmatprep.subr.bf16.mxu0 0
        %939 = vmatpush2.bf16.msra.mxu0 %v717
        %940 = vmatprep.subr.bf16.mxu0 0
        %941 = vmatpush2.bf16.msra.mxu0 %v716
        %942 = vmatprep.subr.bf16.mxu0 0
        %943 = vmatpush2.bf16.msra.mxu0 %v715
        %944 = vmatprep.subr.bf16.mxu0 0
        %945 = vmatpush2.bf16.msra.mxu0 %v714
        %946 = vmatprep.mubr.bf16.mxu0 %v851
        %947 = vmatmul.mubr.bf16.gmra.mxu0 %v850
        %v948 = vpop.f32.mrf.mxu0
        %v949 = vadd.f32 0.0, %v948
        %v950 = vpop.f32.mrf.mxu0
        %v951 = vpop.f32.mrf.mxu0
        %v952 = vadd.f32 0.0, %v951
        %v953 = vpop.f32.mrf.mxu0
        %954 = vmatprep.mubr.bf16.mxu0 %v853
        %955 = vmatmul.mubr.bf16.gmra.mxu0 %v852
        %v956 = vpop.f32.mrf.mxu0
        %v957 = vadd.f32 0.0, %v956
        %v958 = vpop.f32.mrf.mxu0
        %v959 = vpop.f32.mrf.mxu0
        %v960 = vadd.f32 0.0, %v959
        %v961 = vpop.f32.mrf.mxu0
        %962 = vmatprep.mubr.bf16.mxu0 %v855
        %963 = vmatmul.mubr.bf16.gmra.mxu0 %v854
        %v964 = vpop.f32.mrf.mxu0
        %v965 = vadd.f32 0.0, %v964
        %v966 = vpop.f32.mrf.mxu0
        %v967 = vpop.f32.mrf.mxu0
        %v968 = vadd.f32 0.0, %v967
        %v969 = vpop.f32.mrf.mxu0
        %970 = vmatprep.mubr.bf16.mxu0 %v857
        %971 = vmatmul.mubr.bf16.gmra.mxu0 %v856
        %v972 = vpop.f32.mrf.mxu0
        %v973 = vadd.f32 0.0, %v972
        %v974 = vpop.f32.mrf.mxu0
        %v975 = vpop.f32.mrf.mxu0
        %v976 = vadd.f32 0.0, %v975
        %v977 = vpop.f32.mrf.mxu0
        %978 = vmatprep.mubr.bf16.mxu0 %v859
        %979 = vmatmul.mubr.bf16.gmra.mxu0 %v858
        %v980 = vpop.f32.mrf.mxu0
        %v981 = vadd.f32 0.0, %v980
        %v982 = vpop.f32.mrf.mxu0
        %v983 = vpop.f32.mrf.mxu0
        %v984 = vadd.f32 0.0, %v983
        %v985 = vpop.f32.mrf.mxu0
        %986 = vmatprep.mubr.bf16.mxu0 %v861
        %987 = vmatmul.mubr.bf16.gmra.mxu0 %v860
        %v988 = vpop.f32.mrf.mxu0
        %v989 = vadd.f32 0.0, %v988
        %v990 = vpop.f32.mrf.mxu0
        %v991 = vpop.f32.mrf.mxu0
        %v992 = vadd.f32 0.0, %v991
        %v993 = vpop.f32.mrf.mxu0
        %994 = vmatprep.mubr.bf16.mxu0 %v863
        %995 = vmatmul.mubr.bf16.gmra.mxu0 %v862
        %v996 = vpop.f32.mrf.mxu0
        %v997 = vadd.f32 0.0, %v996
        %v998 = vpop.f32.mrf.mxu0
        %v999 = vpop.f32.mrf.mxu0
        %v1000 = vadd.f32 0.0, %v999
        %v1001 = vpop.f32.mrf.mxu0
        %1002 = vmatprep.mubr.bf16.mxu0 %v865
        %1003 = vmatmul.mubr.bf16.gmra.mxu0 %v864
        %v1004 = vpop.f32.mrf.mxu0
        %v1005 = vadd.f32 0.0, %v1004
        %v1006 = vpop.f32.mrf.mxu0
        %v1007 = vpop.f32.mrf.mxu0
        %v1008 = vadd.f32 0.0, %v1007
        %v1009 = vpop.f32.mrf.mxu0
        %1010 = vmatprep.mubr.bf16.mxu0 %v867
        %1011 = vmatmul.mubr.bf16.gmra.mxu0 %v866
        %v1012 = vpop.f32.mrf.mxu0
        %v1013 = vadd.f32 0.0, %v1012
        %v1014 = vpop.f32.mrf.mxu0
        %v1015 = vpop.f32.mrf.mxu0
        %v1016 = vadd.f32 0.0, %v1015
        %v1017 = vpop.f32.mrf.mxu0
        %1018 = vmatprep.mubr.bf16.mxu0 %v869
        %1019 = vmatmul.mubr.bf16.gmra.mxu0 %v868
        %v1020 = vpop.f32.mrf.mxu0
        %v1021 = vadd.f32 0.0, %v1020
        %v1022 = vpop.f32.mrf.mxu0
        %v1023 = vpop.f32.mrf.mxu0
        %v1024 = vadd.f32 0.0, %v1023
        %v1025 = vpop.f32.mrf.mxu0
        %1026 = vmatprep.mubr.bf16.mxu0 %v871
        %1027 = vmatmul.mubr.bf16.gmra.mxu0 %v870
        %v1028 = vpop.f32.mrf.mxu0
        %v1029 = vadd.f32 0.0, %v1028
        %v1030 = vpop.f32.mrf.mxu0
        %v1031 = vpop.f32.mrf.mxu0
        %v1032 = vadd.f32 0.0, %v1031
        %v1033 = vpop.f32.mrf.mxu0
        %1034 = vmatprep.mubr.bf16.mxu0 %v873
        %1035 = vmatmul.mubr.bf16.gmra.mxu0 %v872
        %v1036 = vpop.f32.mrf.mxu0
        %v1037 = vadd.f32 0.0, %v1036
        %v1038 = vpop.f32.mrf.mxu0
        %v1039 = vpop.f32.mrf.mxu0
        %v1040 = vadd.f32 0.0, %v1039
        %v1041 = vpop.f32.mrf.mxu0
        %1042 = vmatprep.mubr.bf16.mxu0 %v875
        %1043 = vmatmul.mubr.bf16.gmra.mxu0 %v874
        %v1044 = vpop.f32.mrf.mxu0
        %v1045 = vadd.f32 0.0, %v1044
        %v1046 = vpop.f32.mrf.mxu0
        %v1047 = vpop.f32.mrf.mxu0
        %v1048 = vadd.f32 0.0, %v1047
        %v1049 = vpop.f32.mrf.mxu0
        %1050 = vmatprep.mubr.bf16.mxu0 %v877
        %1051 = vmatmul.mubr.bf16.gmra.mxu0 %v876
        %v1052 = vpop.f32.mrf.mxu0
        %v1053 = vadd.f32 0.0, %v1052
        %v1054 = vpop.f32.mrf.mxu0
        %v1055 = vpop.f32.mrf.mxu0
        %v1056 = vadd.f32 0.0, %v1055
        %v1057 = vpop.f32.mrf.mxu0
        %1058 = vmatprep.mubr.bf16.mxu0 %v879
        %1059 = vmatmul.mubr.bf16.gmra.mxu0 %v878
        %v1060 = vpop.f32.mrf.mxu0
        %v1061 = vadd.f32 0.0, %v1060
        %v1062 = vpop.f32.mrf.mxu0
        %v1063 = vpop.f32.mrf.mxu0
        %v1064 = vadd.f32 0.0, %v1063
        %v1065 = vpop.f32.mrf.mxu0
        %1066 = vmatprep.mubr.bf16.mxu0 %v881
        %1067 = vmatmul.mubr.bf16.gmra.mxu0 %v880
        %v1068 = vpop.f32.mrf.mxu0
        %v1069 = vadd.f32 0.0, %v1068
        %v1070 = vpop.f32.mrf.mxu0
        %v1071 = vpop.f32.mrf.mxu0
        %v1072 = vadd.f32 0.0, %v1071
        %v1073 = vpop.f32.mrf.mxu0
        %1074 = vdwg.mxu0
        %s1075 = scalar_lea.vmem [#allocation2], 256
        %v1076 = vld [vmem:[%s1075] sm:$0xff]
        %v1077 = vld [vmem:[%s1075 + $0x8] sm:$0xff]
        %v1078 = vld [vmem:[%s1075 + $0x10] sm:$0xff]
        %v1079 = vld [vmem:[%s1075 + $0x18] sm:$0xff]
        %v1080 = vld [vmem:[%s1075 + $0x20] sm:$0xff]
        %v1081 = vld [vmem:[%s1075 + $0x28] sm:$0xff]
        %v1082 = vld [vmem:[%s1075 + $0x30] sm:$0xff]
        %v1083 = vld [vmem:[%s1075 + $0x38] sm:$0xff]
        %v1084 = vld [vmem:[%s1075 + $0x40] sm:$0xff]
        %v1085 = vld [vmem:[%s1075 + $0x48] sm:$0xff]
        %v1086 = vld [vmem:[%s1075 + $0x50] sm:$0xff]
        %v1087 = vld [vmem:[%s1075 + $0x58] sm:$0xff]
        %v1088 = vld [vmem:[%s1075 + $0x60] sm:$0xff]
        %v1089 = vld [vmem:[%s1075 + $0x68] sm:$0xff]
        %v1090 = vld [vmem:[%s1075 + $0x70] sm:$0xff]
        %v1091 = vld [vmem:[%s1075 + $0x78] sm:$0xff]
        %v1092 = vld [vmem:[%s1075 + $0x80] sm:$0xff]
        %v1093 = vld [vmem:[%s1075 + $0x88] sm:$0xff]
        %v1094 = vld [vmem:[%s1075 + $0x90] sm:$0xff]
        %v1095 = vld [vmem:[%s1075 + $0x98] sm:$0xff]
        %v1096 = vld [vmem:[%s1075 + $0xa0] sm:$0xff]
        %v1097 = vld [vmem:[%s1075 + $0xa8] sm:$0xff]
        %v1098 = vld [vmem:[%s1075 + $0xb0] sm:$0xff]
        %v1099 = vld [vmem:[%s1075 + $0xb8] sm:$0xff]
        %v1100 = vld [vmem:[%s1075 + $0xc0] sm:$0xff]
        %v1101 = vld [vmem:[%s1075 + $0xc8] sm:$0xff]
        %v1102 = vld [vmem:[%s1075 + $0xd0] sm:$0xff]
        %v1103 = vld [vmem:[%s1075 + $0xd8] sm:$0xff]
        %v1104 = vld [vmem:[%s1075 + $0xe0] sm:$0xff]
        %v1105 = vld [vmem:[%s1075 + $0xe8] sm:$0xff]
        %v1106 = vld [vmem:[%s1075 + $0xf0] sm:$0xff]
        %v1107 = vld [vmem:[%s1075 + $0xf8] sm:$0xff]
        %v1140 = vunpack.c.l.b16 %v1076
        %v1141 = vunpack.c.h.b16 %v1076
        %v1142 = vunpack.c.l.b16 %v1077
        %v1143 = vunpack.c.h.b16 %v1077
        %v1144 = vunpack.c.l.b16 %v1078
        %v1145 = vunpack.c.h.b16 %v1078
        %v1146 = vunpack.c.l.b16 %v1079
        %v1147 = vunpack.c.h.b16 %v1079
        %v1148 = vunpack.c.l.b16 %v1080
        %v1149 = vunpack.c.h.b16 %v1080
        %v1150 = vunpack.c.l.b16 %v1081
        %v1151 = vunpack.c.h.b16 %v1081
        %v1152 = vunpack.c.l.b16 %v1082
        %v1153 = vunpack.c.h.b16 %v1082
        %v1154 = vunpack.c.l.b16 %v1083
        %v1155 = vunpack.c.h.b16 %v1083
        %v1156 = vunpack.c.l.b16 %v1084
        %v1157 = vunpack.c.h.b16 %v1084
        %v1158 = vunpack.c.l.b16 %v1085
        %v1159 = vunpack.c.h.b16 %v1085
        %v1160 = vunpack.c.l.b16 %v1086
        %v1161 = vunpack.c.h.b16 %v1086
        %v1162 = vunpack.c.l.b16 %v1087
        %v1163 = vunpack.c.h.b16 %v1087
        %v1164 = vunpack.c.l.b16 %v1088
        %v1165 = vunpack.c.h.b16 %v1088
        %v1166 = vunpack.c.l.b16 %v1089
        %v1167 = vunpack.c.h.b16 %v1089
        %v1168 = vunpack.c.l.b16 %v1090
        %v1169 = vunpack.c.h.b16 %v1090
        %v1170 = vunpack.c.l.b16 %v1091
        %v1171 = vunpack.c.h.b16 %v1091
        %v1172 = vunpack.c.l.b16 %v1092
        %v1173 = vunpack.c.h.b16 %v1092
        %v1174 = vunpack.c.l.b16 %v1093
        %v1175 = vunpack.c.h.b16 %v1093
        %v1176 = vunpack.c.l.b16 %v1094
        %v1177 = vunpack.c.h.b16 %v1094
        %v1178 = vunpack.c.l.b16 %v1095
        %v1179 = vunpack.c.h.b16 %v1095
        %v1180 = vunpack.c.l.b16 %v1096
        %v1181 = vunpack.c.h.b16 %v1096
        %v1182 = vunpack.c.l.b16 %v1097
        %v1183 = vunpack.c.h.b16 %v1097
        %v1184 = vunpack.c.l.b16 %v1098
        %v1185 = vunpack.c.h.b16 %v1098
        %v1186 = vunpack.c.l.b16 %v1099
        %v1187 = vunpack.c.h.b16 %v1099
        %v1188 = vunpack.c.l.b16 %v1100
        %v1189 = vunpack.c.h.b16 %v1100
        %v1190 = vunpack.c.l.b16 %v1101
        %v1191 = vunpack.c.h.b16 %v1101
        %v1192 = vunpack.c.l.b16 %v1102
        %v1193 = vunpack.c.h.b16 %v1102
        %v1194 = vunpack.c.l.b16 %v1103
        %v1195 = vunpack.c.h.b16 %v1103
        %v1196 = vunpack.c.l.b16 %v1104
        %v1197 = vunpack.c.h.b16 %v1104
        %v1198 = vunpack.c.l.b16 %v1105
        %v1199 = vunpack.c.h.b16 %v1105
        %v1200 = vunpack.c.l.b16 %v1106
        %v1201 = vunpack.c.h.b16 %v1106
        %v1202 = vunpack.c.l.b16 %v1107
        %v1203 = vunpack.c.h.b16 %v1107
        %v1204 = vpack.c.b16 %v1142, %v1140
        %v1205 = vpack.c.b16 %v1143, %v1141
        %v1206 = vpack.c.b16 %v1146, %v1144
        %v1207 = vpack.c.b16 %v1147, %v1145
        %v1208 = vpack.c.b16 %v1150, %v1148
        %v1209 = vpack.c.b16 %v1151, %v1149
        %v1210 = vpack.c.b16 %v1154, %v1152
        %v1211 = vpack.c.b16 %v1155, %v1153
        %v1212 = vpack.c.b16 %v1158, %v1156
        %v1213 = vpack.c.b16 %v1159, %v1157
        %v1214 = vpack.c.b16 %v1162, %v1160
        %v1215 = vpack.c.b16 %v1163, %v1161
        %v1216 = vpack.c.b16 %v1166, %v1164
        %v1217 = vpack.c.b16 %v1167, %v1165
        %v1218 = vpack.c.b16 %v1170, %v1168
        %v1219 = vpack.c.b16 %v1171, %v1169
        %v1220 = vpack.c.b16 %v1174, %v1172
        %v1221 = vpack.c.b16 %v1175, %v1173
        %v1222 = vpack.c.b16 %v1178, %v1176
        %v1223 = vpack.c.b16 %v1179, %v1177
        %v1224 = vpack.c.b16 %v1182, %v1180
        %v1225 = vpack.c.b16 %v1183, %v1181
        %v1226 = vpack.c.b16 %v1186, %v1184
        %v1227 = vpack.c.b16 %v1187, %v1185
        %v1228 = vpack.c.b16 %v1190, %v1188
        %v1229 = vpack.c.b16 %v1191, %v1189
        %v1230 = vpack.c.b16 %v1194, %v1192
        %v1231 = vpack.c.b16 %v1195, %v1193
        %v1232 = vpack.c.b16 %v1198, %v1196
        %v1233 = vpack.c.b16 %v1199, %v1197
        %v1234 = vpack.c.b16 %v1202, %v1200
        %v1235 = vpack.c.b16 %v1203, %v1201
        %1268 = vmatprep.subr.bf16.mxu0 0
        %1269 = vmatpush1.bf16.msra.mxu0 %v713
        %1270 = vmatprep.subr.bf16.mxu0 0
        %1271 = vmatpush1.bf16.msra.mxu0 %v712
        %1272 = vmatprep.subr.bf16.mxu0 0
        %1273 = vmatpush1.bf16.msra.mxu0 %v711
        %1274 = vmatprep.subr.bf16.mxu0 0
        %1275 = vmatpush1.bf16.msra.mxu0 %v710
        %1276 = vmatprep.subr.bf16.mxu0 0
        %1277 = vmatpush1.bf16.msra.mxu0 %v709
        %1278 = vmatprep.subr.bf16.mxu0 0
        %1279 = vmatpush1.bf16.msra.mxu0 %v708
        %1280 = vmatprep.subr.bf16.mxu0 0
        %1281 = vmatpush1.bf16.msra.mxu0 %v707
        %1282 = vmatprep.subr.bf16.mxu0 0
        %1283 = vmatpush1.bf16.msra.mxu0 %v706
        %1284 = vmatprep.subr.bf16.mxu0 0
        %1285 = vmatpush2.bf16.msra.mxu0 %v721
        %1286 = vmatprep.subr.bf16.mxu0 0
        %1287 = vmatpush2.bf16.msra.mxu0 %v720
        %1288 = vmatprep.subr.bf16.mxu0 0
        %1289 = vmatpush2.bf16.msra.mxu0 %v719
        %1290 = vmatprep.subr.bf16.mxu0 0
        %1291 = vmatpush2.bf16.msra.mxu0 %v718
        %1292 = vmatprep.subr.bf16.mxu0 0
        %1293 = vmatpush2.bf16.msra.mxu0 %v717
        %1294 = vmatprep.subr.bf16.mxu0 0
        %1295 = vmatpush2.bf16.msra.mxu0 %v716
        %1296 = vmatprep.subr.bf16.mxu0 0
        %1297 = vmatpush2.bf16.msra.mxu0 %v715
        %1298 = vmatprep.subr.bf16.mxu0 0
        %1299 = vmatpush2.bf16.msra.mxu0 %v714
        %1300 = vmatprep.mubr.bf16.mxu0 %v1205
        %1301 = vmatmul.mubr.bf16.gmra.mxu0 %v1204
        %v1302 = vpop.f32.mrf.mxu0
        %v1303 = vadd.f32 0.0, %v1302
        %v1304 = vpop.f32.mrf.mxu0
        %v1305 = vpop.f32.mrf.mxu0
        %v1306 = vadd.f32 0.0, %v1305
        %v1307 = vpop.f32.mrf.mxu0
        %1308 = vmatprep.mubr.bf16.mxu0 %v1207
        %1309 = vmatmul.mubr.bf16.gmra.mxu0 %v1206
        %v1310 = vpop.f32.mrf.mxu0
        %v1311 = vadd.f32 0.0, %v1310
        %v1312 = vpop.f32.mrf.mxu0
        %v1313 = vpop.f32.mrf.mxu0
        %v1314 = vadd.f32 0.0, %v1313
        %v1315 = vpop.f32.mrf.mxu0
        %1316 = vmatprep.mubr.bf16.mxu0 %v1209
        %1317 = vmatmul.mubr.bf16.gmra.mxu0 %v1208
        %v1318 = vpop.f32.mrf.mxu0
        %v1319 = vadd.f32 0.0, %v1318
        %v1320 = vpop.f32.mrf.mxu0
        %v1321 = vpop.f32.mrf.mxu0
        %v1322 = vadd.f32 0.0, %v1321
        %v1323 = vpop.f32.mrf.mxu0
        %1324 = vmatprep.mubr.bf16.mxu0 %v1211
        %1325 = vmatmul.mubr.bf16.gmra.mxu0 %v1210
        %v1326 = vpop.f32.mrf.mxu0
        %v1327 = vadd.f32 0.0, %v1326
        %v1328 = vpop.f32.mrf.mxu0
        %v1329 = vpop.f32.mrf.mxu0
        %v1330 = vadd.f32 0.0, %v1329
        %v1331 = vpop.f32.mrf.mxu0
        %1332 = vmatprep.mubr.bf16.mxu0 %v1213
        %1333 = vmatmul.mubr.bf16.gmra.mxu0 %v1212
        %v1334 = vpop.f32.mrf.mxu0
        %v1335 = vadd.f32 0.0, %v1334
        %v1336 = vpop.f32.mrf.mxu0
        %v1337 = vpop.f32.mrf.mxu0
        %v1338 = vadd.f32 0.0, %v1337
        %v1339 = vpop.f32.mrf.mxu0
        %1340 = vmatprep.mubr.bf16.mxu0 %v1215
        %1341 = vmatmul.mubr.bf16.gmra.mxu0 %v1214
        %v1342 = vpop.f32.mrf.mxu0
        %v1343 = vadd.f32 0.0, %v1342
        %v1344 = vpop.f32.mrf.mxu0
        %v1345 = vpop.f32.mrf.mxu0
        %v1346 = vadd.f32 0.0, %v1345
        %v1347 = vpop.f32.mrf.mxu0
        %1348 = vmatprep.mubr.bf16.mxu0 %v1217
        %1349 = vmatmul.mubr.bf16.gmra.mxu0 %v1216
        %v1350 = vpop.f32.mrf.mxu0
        %v1351 = vadd.f32 0.0, %v1350
        %v1352 = vpop.f32.mrf.mxu0
        %v1353 = vpop.f32.mrf.mxu0
        %v1354 = vadd.f32 0.0, %v1353
        %v1355 = vpop.f32.mrf.mxu0
        %1356 = vmatprep.mubr.bf16.mxu0 %v1219
        %1357 = vmatmul.mubr.bf16.gmra.mxu0 %v1218
        %v1358 = vpop.f32.mrf.mxu0
        %v1359 = vadd.f32 0.0, %v1358
        %v1360 = vpop.f32.mrf.mxu0
        %v1361 = vpop.f32.mrf.mxu0
        %v1362 = vadd.f32 0.0, %v1361
        %v1363 = vpop.f32.mrf.mxu0
        %1364 = vmatprep.mubr.bf16.mxu0 %v1221
        %1365 = vmatmul.mubr.bf16.gmra.mxu0 %v1220
        %v1366 = vpop.f32.mrf.mxu0
        %v1367 = vadd.f32 0.0, %v1366
        %v1368 = vpop.f32.mrf.mxu0
        %v1369 = vpop.f32.mrf.mxu0
        %v1370 = vadd.f32 0.0, %v1369
        %v1371 = vpop.f32.mrf.mxu0
        %1372 = vmatprep.mubr.bf16.mxu0 %v1223
        %1373 = vmatmul.mubr.bf16.gmra.mxu0 %v1222
        %v1374 = vpop.f32.mrf.mxu0
        %v1375 = vadd.f32 0.0, %v1374
        %v1376 = vpop.f32.mrf.mxu0
        %v1377 = vpop.f32.mrf.mxu0
        %v1378 = vadd.f32 0.0, %v1377
        %v1379 = vpop.f32.mrf.mxu0
        %1380 = vmatprep.mubr.bf16.mxu0 %v1225
        %1381 = vmatmul.mubr.bf16.gmra.mxu0 %v1224
        %v1382 = vpop.f32.mrf.mxu0
        %v1383 = vadd.f32 0.0, %v1382
        %v1384 = vpop.f32.mrf.mxu0
        %v1385 = vpop.f32.mrf.mxu0
        %v1386 = vadd.f32 0.0, %v1385
        %v1387 = vpop.f32.mrf.mxu0
        %1388 = vmatprep.mubr.bf16.mxu0 %v1227
        %1389 = vmatmul.mubr.bf16.gmra.mxu0 %v1226
        %v1390 = vpop.f32.mrf.mxu0
        %v1391 = vadd.f32 0.0, %v1390
        %v1392 = vpop.f32.mrf.mxu0
        %v1393 = vpop.f32.mrf.mxu0
        %v1394 = vadd.f32 0.0, %v1393
        %v1395 = vpop.f32.mrf.mxu0
        %1396 = vmatprep.mubr.bf16.mxu0 %v1229
        %1397 = vmatmul.mubr.bf16.gmra.mxu0 %v1228
        %v1398 = vpop.f32.mrf.mxu0
        %v1399 = vadd.f32 0.0, %v1398
        %v1400 = vpop.f32.mrf.mxu0
        %v1401 = vpop.f32.mrf.mxu0
        %v1402 = vadd.f32 0.0, %v1401
        %v1403 = vpop.f32.mrf.mxu0
        %1404 = vmatprep.mubr.bf16.mxu0 %v1231
        %1405 = vmatmul.mubr.bf16.gmra.mxu0 %v1230
        %v1406 = vpop.f32.mrf.mxu0
        %v1407 = vadd.f32 0.0, %v1406
        %v1408 = vpop.f32.mrf.mxu0
        %v1409 = vpop.f32.mrf.mxu0
        %v1410 = vadd.f32 0.0, %v1409
        %v1411 = vpop.f32.mrf.mxu0
        %1412 = vmatprep.mubr.bf16.mxu0 %v1233
        %1413 = vmatmul.mubr.bf16.gmra.mxu0 %v1232
        %v1414 = vpop.f32.mrf.mxu0
        %v1415 = vadd.f32 0.0, %v1414
        %v1416 = vpop.f32.mrf.mxu0
        %v1417 = vpop.f32.mrf.mxu0
        %v1418 = vadd.f32 0.0, %v1417
        %v1419 = vpop.f32.mrf.mxu0
        %1420 = vmatprep.mubr.bf16.mxu0 %v1235
        %1421 = vmatmul.mubr.bf16.gmra.mxu0 %v1234
        %v1422 = vpop.f32.mrf.mxu0
        %v1423 = vadd.f32 0.0, %v1422
        %v1424 = vpop.f32.mrf.mxu0
        %v1425 = vpop.f32.mrf.mxu0
        %v1426 = vadd.f32 0.0, %v1425
        %v1427 = vpop.f32.mrf.mxu0
        %1428 = vdwg.mxu0
        %s1429 = scalar_lea.vmem [#allocation2], 512
        %v1430 = vld [vmem:[%s1429] sm:$0xff]
        %v1431 = vld [vmem:[%s1429 + $0x8] sm:$0xff]
        %v1432 = vld [vmem:[%s1429 + $0x10] sm:$0xff]
        %v1433 = vld [vmem:[%s1429 + $0x18] sm:$0xff]
        %v1434 = vld [vmem:[%s1429 + $0x20] sm:$0xff]
        %v1435 = vld [vmem:[%s1429 + $0x28] sm:$0xff]
        %v1436 = vld [vmem:[%s1429 + $0x30] sm:$0xff]
        %v1437 = vld [vmem:[%s1429 + $0x38] sm:$0xff]
        %v1438 = vld [vmem:[%s1429 + $0x40] sm:$0xff]
        %v1439 = vld [vmem:[%s1429 + $0x48] sm:$0xff]
        %v1440 = vld [vmem:[%s1429 + $0x50] sm:$0xff]
        %v1441 = vld [vmem:[%s1429 + $0x58] sm:$0xff]
        %v1442 = vld [vmem:[%s1429 + $0x60] sm:$0xff]
        %v1443 = vld [vmem:[%s1429 + $0x68] sm:$0xff]
        %v1444 = vld [vmem:[%s1429 + $0x70] sm:$0xff]
        %v1445 = vld [vmem:[%s1429 + $0x78] sm:$0xff]
        %v1446 = vld [vmem:[%s1429 + $0x80] sm:$0xff]
        %v1447 = vld [vmem:[%s1429 + $0x88] sm:$0xff]
        %v1448 = vld [vmem:[%s1429 + $0x90] sm:$0xff]
        %v1449 = vld [vmem:[%s1429 + $0x98] sm:$0xff]
        %v1450 = vld [vmem:[%s1429 + $0xa0] sm:$0xff]
        %v1451 = vld [vmem:[%s1429 + $0xa8] sm:$0xff]
        %v1452 = vld [vmem:[%s1429 + $0xb0] sm:$0xff]
        %v1453 = vld [vmem:[%s1429 + $0xb8] sm:$0xff]
        %v1454 = vld [vmem:[%s1429 + $0xc0] sm:$0xff]
        %v1455 = vld [vmem:[%s1429 + $0xc8] sm:$0xff]
        %v1456 = vld [vmem:[%s1429 + $0xd0] sm:$0xff]
        %v1457 = vld [vmem:[%s1429 + $0xd8] sm:$0xff]
        %v1458 = vld [vmem:[%s1429 + $0xe0] sm:$0xff]
        %v1459 = vld [vmem:[%s1429 + $0xe8] sm:$0xff]
        %v1460 = vld [vmem:[%s1429 + $0xf0] sm:$0xff]
        %v1461 = vld [vmem:[%s1429 + $0xf8] sm:$0xff]
        %v1494 = vunpack.c.l.b16 %v1430
        %v1495 = vunpack.c.h.b16 %v1430
        %v1496 = vunpack.c.l.b16 %v1431
        %v1497 = vunpack.c.h.b16 %v1431
        %v1498 = vunpack.c.l.b16 %v1432
        %v1499 = vunpack.c.h.b16 %v1432
        %v1500 = vunpack.c.l.b16 %v1433
        %v1501 = vunpack.c.h.b16 %v1433
        %v1502 = vunpack.c.l.b16 %v1434
        %v1503 = vunpack.c.h.b16 %v1434
        %v1504 = vunpack.c.l.b16 %v1435
        %v1505 = vunpack.c.h.b16 %v1435
        %v1506 = vunpack.c.l.b16 %v1436
        %v1507 = vunpack.c.h.b16 %v1436
        %v1508 = vunpack.c.l.b16 %v1437
        %v1509 = vunpack.c.h.b16 %v1437
        %v1510 = vunpack.c.l.b16 %v1438
        %v1511 = vunpack.c.h.b16 %v1438
        %v1512 = vunpack.c.l.b16 %v1439
        %v1513 = vunpack.c.h.b16 %v1439
        %v1514 = vunpack.c.l.b16 %v1440
        %v1515 = vunpack.c.h.b16 %v1440
        %v1516 = vunpack.c.l.b16 %v1441
        %v1517 = vunpack.c.h.b16 %v1441
        %v1518 = vunpack.c.l.b16 %v1442
        %v1519 = vunpack.c.h.b16 %v1442
        %v1520 = vunpack.c.l.b16 %v1443
        %v1521 = vunpack.c.h.b16 %v1443
        %v1522 = vunpack.c.l.b16 %v1444
        %v1523 = vunpack.c.h.b16 %v1444
        %v1524 = vunpack.c.l.b16 %v1445
        %v1525 = vunpack.c.h.b16 %v1445
        %v1526 = vunpack.c.l.b16 %v1446
        %v1527 = vunpack.c.h.b16 %v1446
        %v1528 = vunpack.c.l.b16 %v1447
        %v1529 = vunpack.c.h.b16 %v1447
        %v1530 = vunpack.c.l.b16 %v1448
        %v1531 = vunpack.c.h.b16 %v1448
        %v1532 = vunpack.c.l.b16 %v1449
        %v1533 = vunpack.c.h.b16 %v1449
        %v1534 = vunpack.c.l.b16 %v1450
        %v1535 = vunpack.c.h.b16 %v1450
        %v1536 = vunpack.c.l.b16 %v1451
        %v1537 = vunpack.c.h.b16 %v1451
        %v1538 = vunpack.c.l.b16 %v1452
        %v1539 = vunpack.c.h.b16 %v1452
        %v1540 = vunpack.c.l.b16 %v1453
        %v1541 = vunpack.c.h.b16 %v1453
        %v1542 = vunpack.c.l.b16 %v1454
        %v1543 = vunpack.c.h.b16 %v1454
        %v1544 = vunpack.c.l.b16 %v1455
        %v1545 = vunpack.c.h.b16 %v1455
        %v1546 = vunpack.c.l.b16 %v1456
        %v1547 = vunpack.c.h.b16 %v1456
        %v1548 = vunpack.c.l.b16 %v1457
        %v1549 = vunpack.c.h.b16 %v1457
        %v1550 = vunpack.c.l.b16 %v1458
        %v1551 = vunpack.c.h.b16 %v1458
        %v1552 = vunpack.c.l.b16 %v1459
        %v1553 = vunpack.c.h.b16 %v1459
        %v1554 = vunpack.c.l.b16 %v1460
        %v1555 = vunpack.c.h.b16 %v1460
        %v1556 = vunpack.c.l.b16 %v1461
        %v1557 = vunpack.c.h.b16 %v1461
        %v1558 = vpack.c.b16 %v1496, %v1494
        %v1559 = vpack.c.b16 %v1497, %v1495
        %v1560 = vpack.c.b16 %v1500, %v1498
        %v1561 = vpack.c.b16 %v1501, %v1499
        %v1562 = vpack.c.b16 %v1504, %v1502
        %v1563 = vpack.c.b16 %v1505, %v1503
        %v1564 = vpack.c.b16 %v1508, %v1506
        %v1565 = vpack.c.b16 %v1509, %v1507
        %v1566 = vpack.c.b16 %v1512, %v1510
        %v1567 = vpack.c.b16 %v1513, %v1511
        %v1568 = vpack.c.b16 %v1516, %v1514
        %v1569 = vpack.c.b16 %v1517, %v1515
        %v1570 = vpack.c.b16 %v1520, %v1518
        %v1571 = vpack.c.b16 %v1521, %v1519
        %v1572 = vpack.c.b16 %v1524, %v1522
        %v1573 = vpack.c.b16 %v1525, %v1523
        %v1574 = vpack.c.b16 %v1528, %v1526
        %v1575 = vpack.c.b16 %v1529, %v1527
        %v1576 = vpack.c.b16 %v1532, %v1530
        %v1577 = vpack.c.b16 %v1533, %v1531
        %v1578 = vpack.c.b16 %v1536, %v1534
        %v1579 = vpack.c.b16 %v1537, %v1535
        %v1580 = vpack.c.b16 %v1540, %v1538
        %v1581 = vpack.c.b16 %v1541, %v1539
        %v1582 = vpack.c.b16 %v1544, %v1542
        %v1583 = vpack.c.b16 %v1545, %v1543
        %v1584 = vpack.c.b16 %v1548, %v1546
        %v1585 = vpack.c.b16 %v1549, %v1547
        %v1586 = vpack.c.b16 %v1552, %v1550
        %v1587 = vpack.c.b16 %v1553, %v1551
        %v1588 = vpack.c.b16 %v1556, %v1554
        %v1589 = vpack.c.b16 %v1557, %v1555
        %1622 = vmatprep.subr.bf16.mxu0 0
        %1623 = vmatpush1.bf16.msra.mxu0 %v713
        %1624 = vmatprep.subr.bf16.mxu0 0
        %1625 = vmatpush1.bf16.msra.mxu0 %v712
        %1626 = vmatprep.subr.bf16.mxu0 0
        %1627 = vmatpush1.bf16.msra.mxu0 %v711
        %1628 = vmatprep.subr.bf16.mxu0 0
        %1629 = vmatpush1.bf16.msra.mxu0 %v710
        %1630 = vmatprep.subr.bf16.mxu0 0
        %1631 = vmatpush1.bf16.msra.mxu0 %v709
        %1632 = vmatprep.subr.bf16.mxu0 0
        %1633 = vmatpush1.bf16.msra.mxu0 %v708
        %1634 = vmatprep.subr.bf16.mxu0 0
        %1635 = vmatpush1.bf16.msra.mxu0 %v707
        %1636 = vmatprep.subr.bf16.mxu0 0
        %1637 = vmatpush1.bf16.msra.mxu0 %v706
        %1638 = vmatprep.subr.bf16.mxu0 0
        %1639 = vmatpush2.bf16.msra.mxu0 %v721
        %1640 = vmatprep.subr.bf16.mxu0 0
        %1641 = vmatpush2.bf16.msra.mxu0 %v720
        %1642 = vmatprep.subr.bf16.mxu0 0
        %1643 = vmatpush2.bf16.msra.mxu0 %v719
        %1644 = vmatprep.subr.bf16.mxu0 0
        %1645 = vmatpush2.bf16.msra.mxu0 %v718
        %1646 = vmatprep.subr.bf16.mxu0 0
        %1647 = vmatpush2.bf16.msra.mxu0 %v717
        %1648 = vmatprep.subr.bf16.mxu0 0
        %1649 = vmatpush2.bf16.msra.mxu0 %v716
        %1650 = vmatprep.subr.bf16.mxu0 0
        %1651 = vmatpush2.bf16.msra.mxu0 %v715
        %1652 = vmatprep.subr.bf16.mxu0 0
        %1653 = vmatpush2.bf16.msra.mxu0 %v714
        %1654 = vmatprep.mubr.bf16.mxu0 %v1559
        %1655 = vmatmul.mubr.bf16.gmra.mxu0 %v1558
        %v1656 = vpop.f32.mrf.mxu0
        %v1657 = vadd.f32 0.0, %v1656
        %v1658 = vpop.f32.mrf.mxu0
        %v1659 = vpop.f32.mrf.mxu0
        %v1660 = vadd.f32 0.0, %v1659
        %v1661 = vpop.f32.mrf.mxu0
        %1662 = vmatprep.mubr.bf16.mxu0 %v1561
        %1663 = vmatmul.mubr.bf16.gmra.mxu0 %v1560
        %v1664 = vpop.f32.mrf.mxu0
        %v1665 = vadd.f32 0.0, %v1664
        %v1666 = vpop.f32.mrf.mxu0
        %v1667 = vpop.f32.mrf.mxu0
        %v1668 = vadd.f32 0.0, %v1667
        %v1669 = vpop.f32.mrf.mxu0
        %1670 = vmatprep.mubr.bf16.mxu0 %v1563
        %1671 = vmatmul.mubr.bf16.gmra.mxu0 %v1562
        %v1672 = vpop.f32.mrf.mxu0
        %v1673 = vadd.f32 0.0, %v1672
        %v1674 = vpop.f32.mrf.mxu0
        %v1675 = vpop.f32.mrf.mxu0
        %v1676 = vadd.f32 0.0, %v1675
        %v1677 = vpop.f32.mrf.mxu0
        %1678 = vmatprep.mubr.bf16.mxu0 %v1565
        %1679 = vmatmul.mubr.bf16.gmra.mxu0 %v1564
        %v1680 = vpop.f32.mrf.mxu0
        %v1681 = vadd.f32 0.0, %v1680
        %v1682 = vpop.f32.mrf.mxu0
        %v1683 = vpop.f32.mrf.mxu0
        %v1684 = vadd.f32 0.0, %v1683
        %v1685 = vpop.f32.mrf.mxu0
        %1686 = vmatprep.mubr.bf16.mxu0 %v1567
        %1687 = vmatmul.mubr.bf16.gmra.mxu0 %v1566
        %v1688 = vpop.f32.mrf.mxu0
        %v1689 = vadd.f32 0.0, %v1688
        %v1690 = vpop.f32.mrf.mxu0
        %v1691 = vpop.f32.mrf.mxu0
        %v1692 = vadd.f32 0.0, %v1691
        %v1693 = vpop.f32.mrf.mxu0
        %1694 = vmatprep.mubr.bf16.mxu0 %v1569
        %1695 = vmatmul.mubr.bf16.gmra.mxu0 %v1568
        %v1696 = vpop.f32.mrf.mxu0
        %v1697 = vadd.f32 0.0, %v1696
        %v1698 = vpop.f32.mrf.mxu0
        %v1699 = vpop.f32.mrf.mxu0
        %v1700 = vadd.f32 0.0, %v1699
        %v1701 = vpop.f32.mrf.mxu0
        %1702 = vmatprep.mubr.bf16.mxu0 %v1571
        %1703 = vmatmul.mubr.bf16.gmra.mxu0 %v1570
        %v1704 = vpop.f32.mrf.mxu0
        %v1705 = vadd.f32 0.0, %v1704
        %v1706 = vpop.f32.mrf.mxu0
        %v1707 = vpop.f32.mrf.mxu0
        %v1708 = vadd.f32 0.0, %v1707
        %v1709 = vpop.f32.mrf.mxu0
        %1710 = vmatprep.mubr.bf16.mxu0 %v1573
        %1711 = vmatmul.mubr.bf16.gmra.mxu0 %v1572
        %v1712 = vpop.f32.mrf.mxu0
        %v1713 = vadd.f32 0.0, %v1712
        %v1714 = vpop.f32.mrf.mxu0
        %v1715 = vpop.f32.mrf.mxu0
        %v1716 = vadd.f32 0.0, %v1715
        %v1717 = vpop.f32.mrf.mxu0
        %1718 = vmatprep.mubr.bf16.mxu0 %v1575
        %1719 = vmatmul.mubr.bf16.gmra.mxu0 %v1574
        %v1720 = vpop.f32.mrf.mxu0
        %v1721 = vadd.f32 0.0, %v1720
        %v1722 = vpop.f32.mrf.mxu0
        %v1723 = vpop.f32.mrf.mxu0
        %v1724 = vadd.f32 0.0, %v1723
        %v1725 = vpop.f32.mrf.mxu0
        %1726 = vmatprep.mubr.bf16.mxu0 %v1577
        %1727 = vmatmul.mubr.bf16.gmra.mxu0 %v1576
        %v1728 = vpop.f32.mrf.mxu0
        %v1729 = vadd.f32 0.0, %v1728
        %v1730 = vpop.f32.mrf.mxu0
        %v1731 = vpop.f32.mrf.mxu0
        %v1732 = vadd.f32 0.0, %v1731
        %v1733 = vpop.f32.mrf.mxu0
        %1734 = vmatprep.mubr.bf16.mxu0 %v1579
        %1735 = vmatmul.mubr.bf16.gmra.mxu0 %v1578
        %v1736 = vpop.f32.mrf.mxu0
        %v1737 = vadd.f32 0.0, %v1736
        %v1738 = vpop.f32.mrf.mxu0
        %v1739 = vpop.f32.mrf.mxu0
        %v1740 = vadd.f32 0.0, %v1739
        %v1741 = vpop.f32.mrf.mxu0
        %1742 = vmatprep.mubr.bf16.mxu0 %v1581
        %1743 = vmatmul.mubr.bf16.gmra.mxu0 %v1580
        %v1744 = vpop.f32.mrf.mxu0
        %v1745 = vadd.f32 0.0, %v1744
        %v1746 = vpop.f32.mrf.mxu0
        %v1747 = vpop.f32.mrf.mxu0
        %v1748 = vadd.f32 0.0, %v1747
        %v1749 = vpop.f32.mrf.mxu0
        %1750 = vmatprep.mubr.bf16.mxu0 %v1583
        %1751 = vmatmul.mubr.bf16.gmra.mxu0 %v1582
        %v1752 = vpop.f32.mrf.mxu0
        %v1753 = vadd.f32 0.0, %v1752
        %v1754 = vpop.f32.mrf.mxu0
        %v1755 = vpop.f32.mrf.mxu0
        %v1756 = vadd.f32 0.0, %v1755
        %v1757 = vpop.f32.mrf.mxu0
        %1758 = vmatprep.mubr.bf16.mxu0 %v1585
        %1759 = vmatmul.mubr.bf16.gmra.mxu0 %v1584
        %v1760 = vpop.f32.mrf.mxu0
        %v1761 = vadd.f32 0.0, %v1760
        %v1762 = vpop.f32.mrf.mxu0
        %v1763 = vpop.f32.mrf.mxu0
        %v1764 = vadd.f32 0.0, %v1763
        %v1765 = vpop.f32.mrf.mxu0
        %1766 = vmatprep.mubr.bf16.mxu0 %v1587
        %1767 = vmatmul.mubr.bf16.gmra.mxu0 %v1586
        %v1768 = vpop.f32.mrf.mxu0
        %v1769 = vadd.f32 0.0, %v1768
        %v1770 = vpop.f32.mrf.mxu0
        %v1771 = vpop.f32.mrf.mxu0
        %v1772 = vadd.f32 0.0, %v1771
        %v1773 = vpop.f32.mrf.mxu0
        %1774 = vmatprep.mubr.bf16.mxu0 %v1589
        %1775 = vmatmul.mubr.bf16.gmra.mxu0 %v1588
        %v1776 = vpop.f32.mrf.mxu0
        %v1777 = vadd.f32 0.0, %v1776
        %v1778 = vpop.f32.mrf.mxu0
        %v1779 = vpop.f32.mrf.mxu0
        %v1780 = vadd.f32 0.0, %v1779
        %v1781 = vpop.f32.mrf.mxu0
        %1782 = vdwg.mxu0
        %s1783 = scalar_lea.vmem [#allocation2], 768
        %v1784 = vld [vmem:[%s1783] sm:$0xff]
        %v1785 = vld [vmem:[%s1783 + $0x8] sm:$0xff]
        %v1786 = vld [vmem:[%s1783 + $0x10] sm:$0xff]
        %v1787 = vld [vmem:[%s1783 + $0x18] sm:$0xff]
        %v1788 = vld [vmem:[%s1783 + $0x20] sm:$0xff]
        %v1789 = vld [vmem:[%s1783 + $0x28] sm:$0xff]
        %v1790 = vld [vmem:[%s1783 + $0x30] sm:$0xff]
        %v1791 = vld [vmem:[%s1783 + $0x38] sm:$0xff]
        %v1792 = vld [vmem:[%s1783 + $0x40] sm:$0xff]
        %v1793 = vld [vmem:[%s1783 + $0x48] sm:$0xff]
        %v1794 = vld [vmem:[%s1783 + $0x50] sm:$0xff]
        %v1795 = vld [vmem:[%s1783 + $0x58] sm:$0xff]
        %v1796 = vld [vmem:[%s1783 + $0x60] sm:$0xff]
        %v1797 = vld [vmem:[%s1783 + $0x68] sm:$0xff]
        %v1798 = vld [vmem:[%s1783 + $0x70] sm:$0xff]
        %v1799 = vld [vmem:[%s1783 + $0x78] sm:$0xff]
        %v1800 = vld [vmem:[%s1783 + $0x80] sm:$0xff]
        %v1801 = vld [vmem:[%s1783 + $0x88] sm:$0xff]
        %v1802 = vld [vmem:[%s1783 + $0x90] sm:$0xff]
        %v1803 = vld [vmem:[%s1783 + $0x98] sm:$0xff]
        %v1804 = vld [vmem:[%s1783 + $0xa0] sm:$0xff]
        %v1805 = vld [vmem:[%s1783 + $0xa8] sm:$0xff]
        %v1806 = vld [vmem:[%s1783 + $0xb0] sm:$0xff]
        %v1807 = vld [vmem:[%s1783 + $0xb8] sm:$0xff]
        %v1808 = vld [vmem:[%s1783 + $0xc0] sm:$0xff]
        %v1809 = vld [vmem:[%s1783 + $0xc8] sm:$0xff]
        %v1810 = vld [vmem:[%s1783 + $0xd0] sm:$0xff]
        %v1811 = vld [vmem:[%s1783 + $0xd8] sm:$0xff]
        %v1812 = vld [vmem:[%s1783 + $0xe0] sm:$0xff]
        %v1813 = vld [vmem:[%s1783 + $0xe8] sm:$0xff]
        %v1814 = vld [vmem:[%s1783 + $0xf0] sm:$0xff]
        %v1815 = vld [vmem:[%s1783 + $0xf8] sm:$0xff]
        %v1848 = vunpack.c.l.b16 %v1784
        %v1849 = vunpack.c.h.b16 %v1784
        %v1850 = vunpack.c.l.b16 %v1785
        %v1851 = vunpack.c.h.b16 %v1785
        %v1852 = vunpack.c.l.b16 %v1786
        %v1853 = vunpack.c.h.b16 %v1786
        %v1854 = vunpack.c.l.b16 %v1787
        %v1855 = vunpack.c.h.b16 %v1787
        %v1856 = vunpack.c.l.b16 %v1788
        %v1857 = vunpack.c.h.b16 %v1788
        %v1858 = vunpack.c.l.b16 %v1789
        %v1859 = vunpack.c.h.b16 %v1789
        %v1860 = vunpack.c.l.b16 %v1790
        %v1861 = vunpack.c.h.b16 %v1790
        %v1862 = vunpack.c.l.b16 %v1791
        %v1863 = vunpack.c.h.b16 %v1791
        %v1864 = vunpack.c.l.b16 %v1792
        %v1865 = vunpack.c.h.b16 %v1792
        %v1866 = vunpack.c.l.b16 %v1793
        %v1867 = vunpack.c.h.b16 %v1793
        %v1868 = vunpack.c.l.b16 %v1794
        %v1869 = vunpack.c.h.b16 %v1794
        %v1870 = vunpack.c.l.b16 %v1795
        %v1871 = vunpack.c.h.b16 %v1795
        %v1872 = vunpack.c.l.b16 %v1796
        %v1873 = vunpack.c.h.b16 %v1796
        %v1874 = vunpack.c.l.b16 %v1797
        %v1875 = vunpack.c.h.b16 %v1797
        %v1876 = vunpack.c.l.b16 %v1798
        %v1877 = vunpack.c.h.b16 %v1798
        %v1878 = vunpack.c.l.b16 %v1799
        %v1879 = vunpack.c.h.b16 %v1799
        %v1880 = vunpack.c.l.b16 %v1800
        %v1881 = vunpack.c.h.b16 %v1800
        %v1882 = vunpack.c.l.b16 %v1801
        %v1883 = vunpack.c.h.b16 %v1801
        %v1884 = vunpack.c.l.b16 %v1802
        %v1885 = vunpack.c.h.b16 %v1802
        %v1886 = vunpack.c.l.b16 %v1803
        %v1887 = vunpack.c.h.b16 %v1803
        %v1888 = vunpack.c.l.b16 %v1804
        %v1889 = vunpack.c.h.b16 %v1804
        %v1890 = vunpack.c.l.b16 %v1805
        %v1891 = vunpack.c.h.b16 %v1805
        %v1892 = vunpack.c.l.b16 %v1806
        %v1893 = vunpack.c.h.b16 %v1806
        %v1894 = vunpack.c.l.b16 %v1807
        %v1895 = vunpack.c.h.b16 %v1807
        %v1896 = vunpack.c.l.b16 %v1808
        %v1897 = vunpack.c.h.b16 %v1808
        %v1898 = vunpack.c.l.b16 %v1809
        %v1899 = vunpack.c.h.b16 %v1809
        %v1900 = vunpack.c.l.b16 %v1810
        %v1901 = vunpack.c.h.b16 %v1810
        %v1902 = vunpack.c.l.b16 %v1811
        %v1903 = vunpack.c.h.b16 %v1811
        %v1904 = vunpack.c.l.b16 %v1812
        %v1905 = vunpack.c.h.b16 %v1812
        %v1906 = vunpack.c.l.b16 %v1813
        %v1907 = vunpack.c.h.b16 %v1813
        %v1908 = vunpack.c.l.b16 %v1814
        %v1909 = vunpack.c.h.b16 %v1814
        %v1910 = vunpack.c.l.b16 %v1815
        %v1911 = vunpack.c.h.b16 %v1815
        %v1912 = vpack.c.b16 %v1850, %v1848
        %v1913 = vpack.c.b16 %v1851, %v1849
        %v1914 = vpack.c.b16 %v1854, %v1852
        %v1915 = vpack.c.b16 %v1855, %v1853
        %v1916 = vpack.c.b16 %v1858, %v1856
        %v1917 = vpack.c.b16 %v1859, %v1857
        %v1918 = vpack.c.b16 %v1862, %v1860
        %v1919 = vpack.c.b16 %v1863, %v1861
        %v1920 = vpack.c.b16 %v1866, %v1864
        %v1921 = vpack.c.b16 %v1867, %v1865
        %v1922 = vpack.c.b16 %v1870, %v1868
        %v1923 = vpack.c.b16 %v1871, %v1869
        %v1924 = vpack.c.b16 %v1874, %v1872
        %v1925 = vpack.c.b16 %v1875, %v1873
        %v1926 = vpack.c.b16 %v1878, %v1876
        %v1927 = vpack.c.b16 %v1879, %v1877
        %v1928 = vpack.c.b16 %v1882, %v1880
        %v1929 = vpack.c.b16 %v1883, %v1881
        %v1930 = vpack.c.b16 %v1886, %v1884
        %v1931 = vpack.c.b16 %v1887, %v1885
        %v1932 = vpack.c.b16 %v1890, %v1888
        %v1933 = vpack.c.b16 %v1891, %v1889
        %v1934 = vpack.c.b16 %v1894, %v1892
        %v1935 = vpack.c.b16 %v1895, %v1893
        %v1936 = vpack.c.b16 %v1898, %v1896
        %v1937 = vpack.c.b16 %v1899, %v1897
        %v1938 = vpack.c.b16 %v1902, %v1900
        %v1939 = vpack.c.b16 %v1903, %v1901
        %v1940 = vpack.c.b16 %v1906, %v1904
        %v1941 = vpack.c.b16 %v1907, %v1905
        %v1942 = vpack.c.b16 %v1910, %v1908
        %v1943 = vpack.c.b16 %v1911, %v1909
        %1976 = vmatprep.subr.bf16.mxu0 0
        %1977 = vmatpush1.bf16.msra.mxu0 %v713
        %1978 = vmatprep.subr.bf16.mxu0 0
        %1979 = vmatpush1.bf16.msra.mxu0 %v712
        %1980 = vmatprep.subr.bf16.mxu0 0
        %1981 = vmatpush1.bf16.msra.mxu0 %v711
        %1982 = vmatprep.subr.bf16.mxu0 0
        %1983 = vmatpush1.bf16.msra.mxu0 %v710
        %1984 = vmatprep.subr.bf16.mxu0 0
        %1985 = vmatpush1.bf16.msra.mxu0 %v709
        %1986 = vmatprep.subr.bf16.mxu0 0
        %1987 = vmatpush1.bf16.msra.mxu0 %v708
        %1988 = vmatprep.subr.bf16.mxu0 0
        %1989 = vmatpush1.bf16.msra.mxu0 %v707
        %1990 = vmatprep.subr.bf16.mxu0 0
        %1991 = vmatpush1.bf16.msra.mxu0 %v706
        %1992 = vmatprep.subr.bf16.mxu0 0
        %1993 = vmatpush2.bf16.msra.mxu0 %v721
        %1994 = vmatprep.subr.bf16.mxu0 0
        %1995 = vmatpush2.bf16.msra.mxu0 %v720
        %1996 = vmatprep.subr.bf16.mxu0 0
        %1997 = vmatpush2.bf16.msra.mxu0 %v719
        %1998 = vmatprep.subr.bf16.mxu0 0
        %1999 = vmatpush2.bf16.msra.mxu0 %v718
        %2000 = vmatprep.subr.bf16.mxu0 0
        %2001 = vmatpush2.bf16.msra.mxu0 %v717
        %2002 = vmatprep.subr.bf16.mxu0 0
        %2003 = vmatpush2.bf16.msra.mxu0 %v716
        %2004 = vmatprep.subr.bf16.mxu0 0
        %2005 = vmatpush2.bf16.msra.mxu0 %v715
        %2006 = vmatprep.subr.bf16.mxu0 0
        %2007 = vmatpush2.bf16.msra.mxu0 %v714
        %2008 = vmatprep.mubr.bf16.mxu0 %v1913
        %2009 = vmatmul.mubr.bf16.gmra.mxu0 %v1912
        %v2010 = vpop.f32.mrf.mxu0
        %v2011 = vadd.f32 0.0, %v2010
        %v2012 = vpop.f32.mrf.mxu0
        %v2013 = vpop.f32.mrf.mxu0
        %v2014 = vadd.f32 0.0, %v2013
        %v2015 = vpop.f32.mrf.mxu0
        %2016 = vmatprep.mubr.bf16.mxu0 %v1915
        %2017 = vmatmul.mubr.bf16.gmra.mxu0 %v1914
        %v2018 = vpop.f32.mrf.mxu0
        %v2019 = vadd.f32 0.0, %v2018
        %v2020 = vpop.f32.mrf.mxu0
        %v2021 = vpop.f32.mrf.mxu0
        %v2022 = vadd.f32 0.0, %v2021
        %v2023 = vpop.f32.mrf.mxu0
        %2024 = vmatprep.mubr.bf16.mxu0 %v1917
        %2025 = vmatmul.mubr.bf16.gmra.mxu0 %v1916
        %v2026 = vpop.f32.mrf.mxu0
        %v2027 = vadd.f32 0.0, %v2026
        %v2028 = vpop.f32.mrf.mxu0
        %v2029 = vpop.f32.mrf.mxu0
        %v2030 = vadd.f32 0.0, %v2029
        %v2031 = vpop.f32.mrf.mxu0
        %2032 = vmatprep.mubr.bf16.mxu0 %v1919
        %2033 = vmatmul.mubr.bf16.gmra.mxu0 %v1918
        %v2034 = vpop.f32.mrf.mxu0
        %v2035 = vadd.f32 0.0, %v2034
        %v2036 = vpop.f32.mrf.mxu0
        %v2037 = vpop.f32.mrf.mxu0
        %v2038 = vadd.f32 0.0, %v2037
        %v2039 = vpop.f32.mrf.mxu0
        %2040 = vmatprep.mubr.bf16.mxu0 %v1921
        %2041 = vmatmul.mubr.bf16.gmra.mxu0 %v1920
        %v2042 = vpop.f32.mrf.mxu0
        %v2043 = vadd.f32 0.0, %v2042
        %v2044 = vpop.f32.mrf.mxu0
        %v2045 = vpop.f32.mrf.mxu0
        %v2046 = vadd.f32 0.0, %v2045
        %v2047 = vpop.f32.mrf.mxu0
        %2048 = vmatprep.mubr.bf16.mxu0 %v1923
        %2049 = vmatmul.mubr.bf16.gmra.mxu0 %v1922
        %v2050 = vpop.f32.mrf.mxu0
        %v2051 = vadd.f32 0.0, %v2050
        %v2052 = vpop.f32.mrf.mxu0
        %v2053 = vpop.f32.mrf.mxu0
        %v2054 = vadd.f32 0.0, %v2053
        %v2055 = vpop.f32.mrf.mxu0
        %2056 = vmatprep.mubr.bf16.mxu0 %v1925
        %2057 = vmatmul.mubr.bf16.gmra.mxu0 %v1924
        %v2058 = vpop.f32.mrf.mxu0
        %v2059 = vadd.f32 0.0, %v2058
        %v2060 = vpop.f32.mrf.mxu0
        %v2061 = vpop.f32.mrf.mxu0
        %v2062 = vadd.f32 0.0, %v2061
        %v2063 = vpop.f32.mrf.mxu0
        %2064 = vmatprep.mubr.bf16.mxu0 %v1927
        %2065 = vmatmul.mubr.bf16.gmra.mxu0 %v1926
        %v2066 = vpop.f32.mrf.mxu0
        %v2067 = vadd.f32 0.0, %v2066
        %v2068 = vpop.f32.mrf.mxu0
        %v2069 = vpop.f32.mrf.mxu0
        %v2070 = vadd.f32 0.0, %v2069
        %v2071 = vpop.f32.mrf.mxu0
        %2072 = vmatprep.mubr.bf16.mxu0 %v1929
        %2073 = vmatmul.mubr.bf16.gmra.mxu0 %v1928
        %v2074 = vpop.f32.mrf.mxu0
        %v2075 = vadd.f32 0.0, %v2074
        %v2076 = vpop.f32.mrf.mxu0
        %v2077 = vpop.f32.mrf.mxu0
        %v2078 = vadd.f32 0.0, %v2077
        %v2079 = vpop.f32.mrf.mxu0
        %2080 = vmatprep.mubr.bf16.mxu0 %v1931
        %2081 = vmatmul.mubr.bf16.gmra.mxu0 %v1930
        %v2082 = vpop.f32.mrf.mxu0
        %v2083 = vadd.f32 0.0, %v2082
        %v2084 = vpop.f32.mrf.mxu0
        %v2085 = vpop.f32.mrf.mxu0
        %v2086 = vadd.f32 0.0, %v2085
        %v2087 = vpop.f32.mrf.mxu0
        %2088 = vmatprep.mubr.bf16.mxu0 %v1933
        %2089 = vmatmul.mubr.bf16.gmra.mxu0 %v1932
        %v2090 = vpop.f32.mrf.mxu0
        %v2091 = vadd.f32 0.0, %v2090
        %v2092 = vpop.f32.mrf.mxu0
        %v2093 = vpop.f32.mrf.mxu0
        %v2094 = vadd.f32 0.0, %v2093
        %v2095 = vpop.f32.mrf.mxu0
        %2096 = vmatprep.mubr.bf16.mxu0 %v1935
        %2097 = vmatmul.mubr.bf16.gmra.mxu0 %v1934
        %v2098 = vpop.f32.mrf.mxu0
        %v2099 = vadd.f32 0.0, %v2098
        %v2100 = vpop.f32.mrf.mxu0
        %v2101 = vpop.f32.mrf.mxu0
        %v2102 = vadd.f32 0.0, %v2101
        %v2103 = vpop.f32.mrf.mxu0
        %2104 = vmatprep.mubr.bf16.mxu0 %v1937
        %2105 = vmatmul.mubr.bf16.gmra.mxu0 %v1936
        %v2106 = vpop.f32.mrf.mxu0
        %v2107 = vadd.f32 0.0, %v2106
        %v2108 = vpop.f32.mrf.mxu0
        %v2109 = vpop.f32.mrf.mxu0
        %v2110 = vadd.f32 0.0, %v2109
        %v2111 = vpop.f32.mrf.mxu0
        %2112 = vmatprep.mubr.bf16.mxu0 %v1939
        %2113 = vmatmul.mubr.bf16.gmra.mxu0 %v1938
        %v2114 = vpop.f32.mrf.mxu0
        %v2115 = vadd.f32 0.0, %v2114
        %v2116 = vpop.f32.mrf.mxu0
        %v2117 = vpop.f32.mrf.mxu0
        %v2118 = vadd.f32 0.0, %v2117
        %v2119 = vpop.f32.mrf.mxu0
        %2120 = vmatprep.mubr.bf16.mxu0 %v1941
        %2121 = vmatmul.mubr.bf16.gmra.mxu0 %v1940
        %v2122 = vpop.f32.mrf.mxu0
        %v2123 = vadd.f32 0.0, %v2122
        %v2124 = vpop.f32.mrf.mxu0
        %v2125 = vpop.f32.mrf.mxu0
        %v2126 = vadd.f32 0.0, %v2125
        %v2127 = vpop.f32.mrf.mxu0
        %2128 = vmatprep.mubr.bf16.mxu0 %v1943
        %2129 = vmatmul.mubr.bf16.gmra.mxu0 %v1942
        %v2130 = vpop.f32.mrf.mxu0
        %v2131 = vadd.f32 0.0, %v2130
        %v2132 = vpop.f32.mrf.mxu0
        %v2133 = vpop.f32.mrf.mxu0
        %v2134 = vadd.f32 0.0, %v2133
        %v2135 = vpop.f32.mrf.mxu0
        %2136 = vdwg.mxu0
        %s2137 = scalar_lea.vmem [#allocation2], 1024
        %v2138 = vld [vmem:[%s2137] sm:$0xff]
        %v2139 = vld [vmem:[%s2137 + $0x8] sm:$0xff]
        %v2140 = vld [vmem:[%s2137 + $0x10] sm:$0xff]
        %v2141 = vld [vmem:[%s2137 + $0x18] sm:$0xff]
        %v2142 = vld [vmem:[%s2137 + $0x20] sm:$0xff]
        %v2143 = vld [vmem:[%s2137 + $0x28] sm:$0xff]
        %v2144 = vld [vmem:[%s2137 + $0x30] sm:$0xff]
        %v2145 = vld [vmem:[%s2137 + $0x38] sm:$0xff]
        %v2146 = vld [vmem:[%s2137 + $0x40] sm:$0xff]
        %v2147 = vld [vmem:[%s2137 + $0x48] sm:$0xff]
        %v2148 = vld [vmem:[%s2137 + $0x50] sm:$0xff]
        %v2149 = vld [vmem:[%s2137 + $0x58] sm:$0xff]
        %v2150 = vld [vmem:[%s2137 + $0x60] sm:$0xff]
        %v2151 = vld [vmem:[%s2137 + $0x68] sm:$0xff]
        %v2152 = vld [vmem:[%s2137 + $0x70] sm:$0xff]
        %v2153 = vld [vmem:[%s2137 + $0x78] sm:$0xff]
        %v2154 = vld [vmem:[%s2137 + $0x80] sm:$0xff]
        %v2155 = vld [vmem:[%s2137 + $0x88] sm:$0xff]
        %v2156 = vld [vmem:[%s2137 + $0x90] sm:$0xff]
        %v2157 = vld [vmem:[%s2137 + $0x98] sm:$0xff]
        %v2158 = vld [vmem:[%s2137 + $0xa0] sm:$0xff]
        %v2159 = vld [vmem:[%s2137 + $0xa8] sm:$0xff]
        %v2160 = vld [vmem:[%s2137 + $0xb0] sm:$0xff]
        %v2161 = vld [vmem:[%s2137 + $0xb8] sm:$0xff]
        %v2162 = vld [vmem:[%s2137 + $0xc0] sm:$0xff]
        %v2163 = vld [vmem:[%s2137 + $0xc8] sm:$0xff]
        %v2164 = vld [vmem:[%s2137 + $0xd0] sm:$0xff]
        %v2165 = vld [vmem:[%s2137 + $0xd8] sm:$0xff]
        %v2166 = vld [vmem:[%s2137 + $0xe0] sm:$0xff]
        %v2167 = vld [vmem:[%s2137 + $0xe8] sm:$0xff]
        %v2168 = vld [vmem:[%s2137 + $0xf0] sm:$0xff]
        %v2169 = vld [vmem:[%s2137 + $0xf8] sm:$0xff]
        %v2202 = vunpack.c.l.b16 %v2138
        %v2203 = vunpack.c.h.b16 %v2138
        %v2204 = vunpack.c.l.b16 %v2139
        %v2205 = vunpack.c.h.b16 %v2139
        %v2206 = vunpack.c.l.b16 %v2140
        %v2207 = vunpack.c.h.b16 %v2140
        %v2208 = vunpack.c.l.b16 %v2141
        %v2209 = vunpack.c.h.b16 %v2141
        %v2210 = vunpack.c.l.b16 %v2142
        %v2211 = vunpack.c.h.b16 %v2142
        %v2212 = vunpack.c.l.b16 %v2143
        %v2213 = vunpack.c.h.b16 %v2143
        %v2214 = vunpack.c.l.b16 %v2144
        %v2215 = vunpack.c.h.b16 %v2144
        %v2216 = vunpack.c.l.b16 %v2145
        %v2217 = vunpack.c.h.b16 %v2145
        %v2218 = vunpack.c.l.b16 %v2146
        %v2219 = vunpack.c.h.b16 %v2146
        %v2220 = vunpack.c.l.b16 %v2147
        %v2221 = vunpack.c.h.b16 %v2147
        %v2222 = vunpack.c.l.b16 %v2148
        %v2223 = vunpack.c.h.b16 %v2148
        %v2224 = vunpack.c.l.b16 %v2149
        %v2225 = vunpack.c.h.b16 %v2149
        %v2226 = vunpack.c.l.b16 %v2150
        %v2227 = vunpack.c.h.b16 %v2150
        %v2228 = vunpack.c.l.b16 %v2151
        %v2229 = vunpack.c.h.b16 %v2151
        %v2230 = vunpack.c.l.b16 %v2152
        %v2231 = vunpack.c.h.b16 %v2152
        %v2232 = vunpack.c.l.b16 %v2153
        %v2233 = vunpack.c.h.b16 %v2153
        %v2234 = vunpack.c.l.b16 %v2154
        %v2235 = vunpack.c.h.b16 %v2154
        %v2236 = vunpack.c.l.b16 %v2155
        %v2237 = vunpack.c.h.b16 %v2155
        %v2238 = vunpack.c.l.b16 %v2156
        %v2239 = vunpack.c.h.b16 %v2156
        %v2240 = vunpack.c.l.b16 %v2157
        %v2241 = vunpack.c.h.b16 %v2157
        %v2242 = vunpack.c.l.b16 %v2158
        %v2243 = vunpack.c.h.b16 %v2158
        %v2244 = vunpack.c.l.b16 %v2159
        %v2245 = vunpack.c.h.b16 %v2159
        %v2246 = vunpack.c.l.b16 %v2160
        %v2247 = vunpack.c.h.b16 %v2160
        %v2248 = vunpack.c.l.b16 %v2161
        %v2249 = vunpack.c.h.b16 %v2161
        %v2250 = vunpack.c.l.b16 %v2162
        %v2251 = vunpack.c.h.b16 %v2162
        %v2252 = vunpack.c.l.b16 %v2163
        %v2253 = vunpack.c.h.b16 %v2163
        %v2254 = vunpack.c.l.b16 %v2164
        %v2255 = vunpack.c.h.b16 %v2164
        %v2256 = vunpack.c.l.b16 %v2165
        %v2257 = vunpack.c.h.b16 %v2165
        %v2258 = vunpack.c.l.b16 %v2166
        %v2259 = vunpack.c.h.b16 %v2166
        %v2260 = vunpack.c.l.b16 %v2167
        %v2261 = vunpack.c.h.b16 %v2167
        %v2262 = vunpack.c.l.b16 %v2168
        %v2263 = vunpack.c.h.b16 %v2168
        %v2264 = vunpack.c.l.b16 %v2169
        %v2265 = vunpack.c.h.b16 %v2169
        %v2266 = vpack.c.b16 %v2204, %v2202
        %v2267 = vpack.c.b16 %v2205, %v2203
        %v2268 = vpack.c.b16 %v2208, %v2206
        %v2269 = vpack.c.b16 %v2209, %v2207
        %v2270 = vpack.c.b16 %v2212, %v2210
        %v2271 = vpack.c.b16 %v2213, %v2211
        %v2272 = vpack.c.b16 %v2216, %v2214
        %v2273 = vpack.c.b16 %v2217, %v2215
        %v2274 = vpack.c.b16 %v2220, %v2218
        %v2275 = vpack.c.b16 %v2221, %v2219
        %v2276 = vpack.c.b16 %v2224, %v2222
        %v2277 = vpack.c.b16 %v2225, %v2223
        %v2278 = vpack.c.b16 %v2228, %v2226
        %v2279 = vpack.c.b16 %v2229, %v2227
        %v2280 = vpack.c.b16 %v2232, %v2230
        %v2281 = vpack.c.b16 %v2233, %v2231
        %v2282 = vpack.c.b16 %v2236, %v2234
        %v2283 = vpack.c.b16 %v2237, %v2235
        %v2284 = vpack.c.b16 %v2240, %v2238
        %v2285 = vpack.c.b16 %v2241, %v2239
        %v2286 = vpack.c.b16 %v2244, %v2242
        %v2287 = vpack.c.b16 %v2245, %v2243
        %v2288 = vpack.c.b16 %v2248, %v2246
        %v2289 = vpack.c.b16 %v2249, %v2247
        %v2290 = vpack.c.b16 %v2252, %v2250
        %v2291 = vpack.c.b16 %v2253, %v2251
        %v2292 = vpack.c.b16 %v2256, %v2254
        %v2293 = vpack.c.b16 %v2257, %v2255
        %v2294 = vpack.c.b16 %v2260, %v2258
        %v2295 = vpack.c.b16 %v2261, %v2259
        %v2296 = vpack.c.b16 %v2264, %v2262
        %v2297 = vpack.c.b16 %v2265, %v2263
        %2330 = vmatprep.subr.bf16.mxu0 0
        %2331 = vmatpush1.bf16.msra.mxu0 %v713
        %2332 = vmatprep.subr.bf16.mxu0 0
        %2333 = vmatpush1.bf16.msra.mxu0 %v712
        %2334 = vmatprep.subr.bf16.mxu0 0
        %2335 = vmatpush1.bf16.msra.mxu0 %v711
        %2336 = vmatprep.subr.bf16.mxu0 0
        %2337 = vmatpush1.bf16.msra.mxu0 %v710
        %2338 = vmatprep.subr.bf16.mxu0 0
        %2339 = vmatpush1.bf16.msra.mxu0 %v709
        %2340 = vmatprep.subr.bf16.mxu0 0
        %2341 = vmatpush1.bf16.msra.mxu0 %v708
        %2342 = vmatprep.subr.bf16.mxu0 0
        %2343 = vmatpush1.bf16.msra.mxu0 %v707
        %2344 = vmatprep.subr.bf16.mxu0 0
        %2345 = vmatpush1.bf16.msra.mxu0 %v706
        %2346 = vmatprep.subr.bf16.mxu0 0
        %2347 = vmatpush2.bf16.msra.mxu0 %v721
        %2348 = vmatprep.subr.bf16.mxu0 0
        %2349 = vmatpush2.bf16.msra.mxu0 %v720
        %2350 = vmatprep.subr.bf16.mxu0 0
        %2351 = vmatpush2.bf16.msra.mxu0 %v719
        %2352 = vmatprep.subr.bf16.mxu0 0
        %2353 = vmatpush2.bf16.msra.mxu0 %v718
        %2354 = vmatprep.subr.bf16.mxu0 0
        %2355 = vmatpush2.bf16.msra.mxu0 %v717
        %2356 = vmatprep.subr.bf16.mxu0 0
        %2357 = vmatpush2.bf16.msra.mxu0 %v716
        %2358 = vmatprep.subr.bf16.mxu0 0
        %2359 = vmatpush2.bf16.msra.mxu0 %v715
        %2360 = vmatprep.subr.bf16.mxu0 0
        %2361 = vmatpush2.bf16.msra.mxu0 %v714
        %2362 = vmatprep.mubr.bf16.mxu0 %v2267
        %2363 = vmatmul.mubr.bf16.gmra.mxu0 %v2266
        %v2364 = vpop.f32.mrf.mxu0
        %v2365 = vadd.f32 0.0, %v2364
        %v2366 = vpop.f32.mrf.mxu0
        %v2367 = vpop.f32.mrf.mxu0
        %v2368 = vadd.f32 0.0, %v2367
        %v2369 = vpop.f32.mrf.mxu0
        %2370 = vmatprep.mubr.bf16.mxu0 %v2269
        %2371 = vmatmul.mubr.bf16.gmra.mxu0 %v2268
        %v2372 = vpop.f32.mrf.mxu0
        %v2373 = vadd.f32 0.0, %v2372
        %v2374 = vpop.f32.mrf.mxu0
        %v2375 = vpop.f32.mrf.mxu0
        %v2376 = vadd.f32 0.0, %v2375
        %v2377 = vpop.f32.mrf.mxu0
        %2378 = vmatprep.mubr.bf16.mxu0 %v2271
        %2379 = vmatmul.mubr.bf16.gmra.mxu0 %v2270
        %v2380 = vpop.f32.mrf.mxu0
        %v2381 = vadd.f32 0.0, %v2380
        %v2382 = vpop.f32.mrf.mxu0
        %v2383 = vpop.f32.mrf.mxu0
        %v2384 = vadd.f32 0.0, %v2383
        %v2385 = vpop.f32.mrf.mxu0
        %2386 = vmatprep.mubr.bf16.mxu0 %v2273
        %2387 = vmatmul.mubr.bf16.gmra.mxu0 %v2272
        %v2388 = vpop.f32.mrf.mxu0
        %v2389 = vadd.f32 0.0, %v2388
        %v2390 = vpop.f32.mrf.mxu0
        %v2391 = vpop.f32.mrf.mxu0
        %v2392 = vadd.f32 0.0, %v2391
        %v2393 = vpop.f32.mrf.mxu0
        %2394 = vmatprep.mubr.bf16.mxu0 %v2275
        %2395 = vmatmul.mubr.bf16.gmra.mxu0 %v2274
        %v2396 = vpop.f32.mrf.mxu0
        %v2397 = vadd.f32 0.0, %v2396
        %v2398 = vpop.f32.mrf.mxu0
        %v2399 = vpop.f32.mrf.mxu0
        %v2400 = vadd.f32 0.0, %v2399
        %v2401 = vpop.f32.mrf.mxu0
        %2402 = vmatprep.mubr.bf16.mxu0 %v2277
        %2403 = vmatmul.mubr.bf16.gmra.mxu0 %v2276
        %v2404 = vpop.f32.mrf.mxu0
        %v2405 = vadd.f32 0.0, %v2404
        %v2406 = vpop.f32.mrf.mxu0
        %v2407 = vpop.f32.mrf.mxu0
        %v2408 = vadd.f32 0.0, %v2407
        %v2409 = vpop.f32.mrf.mxu0
        %2410 = vmatprep.mubr.bf16.mxu0 %v2279
        %2411 = vmatmul.mubr.bf16.gmra.mxu0 %v2278
        %v2412 = vpop.f32.mrf.mxu0
        %v2413 = vadd.f32 0.0, %v2412
        %v2414 = vpop.f32.mrf.mxu0
        %v2415 = vpop.f32.mrf.mxu0
        %v2416 = vadd.f32 0.0, %v2415
        %v2417 = vpop.f32.mrf.mxu0
        %2418 = vmatprep.mubr.bf16.mxu0 %v2281
        %2419 = vmatmul.mubr.bf16.gmra.mxu0 %v2280
        %v2420 = vpop.f32.mrf.mxu0
        %v2421 = vadd.f32 0.0, %v2420
        %v2422 = vpop.f32.mrf.mxu0
        %v2423 = vpop.f32.mrf.mxu0
        %v2424 = vadd.f32 0.0, %v2423
        %v2425 = vpop.f32.mrf.mxu0
        %2426 = vmatprep.mubr.bf16.mxu0 %v2283
        %2427 = vmatmul.mubr.bf16.gmra.mxu0 %v2282
        %v2428 = vpop.f32.mrf.mxu0
        %v2429 = vadd.f32 0.0, %v2428
        %v2430 = vpop.f32.mrf.mxu0
        %v2431 = vpop.f32.mrf.mxu0
        %v2432 = vadd.f32 0.0, %v2431
        %v2433 = vpop.f32.mrf.mxu0
        %2434 = vmatprep.mubr.bf16.mxu0 %v2285
        %2435 = vmatmul.mubr.bf16.gmra.mxu0 %v2284
        %v2436 = vpop.f32.mrf.mxu0
        %v2437 = vadd.f32 0.0, %v2436
        %v2438 = vpop.f32.mrf.mxu0
        %v2439 = vpop.f32.mrf.mxu0
        %v2440 = vadd.f32 0.0, %v2439
        %v2441 = vpop.f32.mrf.mxu0
        %2442 = vmatprep.mubr.bf16.mxu0 %v2287
        %2443 = vmatmul.mubr.bf16.gmra.mxu0 %v2286
        %v2444 = vpop.f32.mrf.mxu0
        %v2445 = vadd.f32 0.0, %v2444
        %v2446 = vpop.f32.mrf.mxu0
        %v2447 = vpop.f32.mrf.mxu0
        %v2448 = vadd.f32 0.0, %v2447
        %v2449 = vpop.f32.mrf.mxu0
        %2450 = vmatprep.mubr.bf16.mxu0 %v2289
        %2451 = vmatmul.mubr.bf16.gmra.mxu0 %v2288
        %v2452 = vpop.f32.mrf.mxu0
        %v2453 = vadd.f32 0.0, %v2452
        %v2454 = vpop.f32.mrf.mxu0
        %v2455 = vpop.f32.mrf.mxu0
        %v2456 = vadd.f32 0.0, %v2455
        %v2457 = vpop.f32.mrf.mxu0
        %2458 = vmatprep.mubr.bf16.mxu0 %v2291
        %2459 = vmatmul.mubr.bf16.gmra.mxu0 %v2290
        %v2460 = vpop.f32.mrf.mxu0
        %v2461 = vadd.f32 0.0, %v2460
        %v2462 = vpop.f32.mrf.mxu0
        %v2463 = vpop.f32.mrf.mxu0
        %v2464 = vadd.f32 0.0, %v2463
        %v2465 = vpop.f32.mrf.mxu0
        %2466 = vmatprep.mubr.bf16.mxu0 %v2293
        %2467 = vmatmul.mubr.bf16.gmra.mxu0 %v2292
        %v2468 = vpop.f32.mrf.mxu0
        %v2469 = vadd.f32 0.0, %v2468
        %v2470 = vpop.f32.mrf.mxu0
        %v2471 = vpop.f32.mrf.mxu0
        %v2472 = vadd.f32 0.0, %v2471
        %v2473 = vpop.f32.mrf.mxu0
        %2474 = vmatprep.mubr.bf16.mxu0 %v2295
        %2475 = vmatmul.mubr.bf16.gmra.mxu0 %v2294
        %v2476 = vpop.f32.mrf.mxu0
        %v2477 = vadd.f32 0.0, %v2476
        %v2478 = vpop.f32.mrf.mxu0
        %v2479 = vpop.f32.mrf.mxu0
        %v2480 = vadd.f32 0.0, %v2479
        %v2481 = vpop.f32.mrf.mxu0
        %2482 = vmatprep.mubr.bf16.mxu0 %v2297
        %2483 = vmatmul.mubr.bf16.gmra.mxu0 %v2296
        %v2484 = vpop.f32.mrf.mxu0
        %v2485 = vadd.f32 0.0, %v2484
        %v2486 = vpop.f32.mrf.mxu0
        %v2487 = vpop.f32.mrf.mxu0
        %v2488 = vadd.f32 0.0, %v2487
        %v2489 = vpop.f32.mrf.mxu0
        %2490 = vdwg.mxu0
        %s2491 = scalar_lea.vmem [#allocation2], 1280
        %v2492 = vld [vmem:[%s2491] sm:$0xff]
        %v2493 = vld [vmem:[%s2491 + $0x8] sm:$0xff]
        %v2494 = vld [vmem:[%s2491 + $0x10] sm:$0xff]
        %v2495 = vld [vmem:[%s2491 + $0x18] sm:$0xff]
        %v2496 = vld [vmem:[%s2491 + $0x20] sm:$0xff]
        %v2497 = vld [vmem:[%s2491 + $0x28] sm:$0xff]
        %v2498 = vld [vmem:[%s2491 + $0x30] sm:$0xff]
        %v2499 = vld [vmem:[%s2491 + $0x38] sm:$0xff]
        %v2500 = vld [vmem:[%s2491 + $0x40] sm:$0xff]
        %v2501 = vld [vmem:[%s2491 + $0x48] sm:$0xff]
        %v2502 = vld [vmem:[%s2491 + $0x50] sm:$0xff]
        %v2503 = vld [vmem:[%s2491 + $0x58] sm:$0xff]
        %v2504 = vld [vmem:[%s2491 + $0x60] sm:$0xff]
        %v2505 = vld [vmem:[%s2491 + $0x68] sm:$0xff]
        %v2506 = vld [vmem:[%s2491 + $0x70] sm:$0xff]
        %v2507 = vld [vmem:[%s2491 + $0x78] sm:$0xff]
        %v2508 = vld [vmem:[%s2491 + $0x80] sm:$0xff]
        %v2509 = vld [vmem:[%s2491 + $0x88] sm:$0xff]
        %v2510 = vld [vmem:[%s2491 + $0x90] sm:$0xff]
        %v2511 = vld [vmem:[%s2491 + $0x98] sm:$0xff]
        %v2512 = vld [vmem:[%s2491 + $0xa0] sm:$0xff]
        %v2513 = vld [vmem:[%s2491 + $0xa8] sm:$0xff]
        %v2514 = vld [vmem:[%s2491 + $0xb0] sm:$0xff]
        %v2515 = vld [vmem:[%s2491 + $0xb8] sm:$0xff]
        %v2516 = vld [vmem:[%s2491 + $0xc0] sm:$0xff]
        %v2517 = vld [vmem:[%s2491 + $0xc8] sm:$0xff]
        %v2518 = vld [vmem:[%s2491 + $0xd0] sm:$0xff]
        %v2519 = vld [vmem:[%s2491 + $0xd8] sm:$0xff]
        %v2520 = vld [vmem:[%s2491 + $0xe0] sm:$0xff]
        %v2521 = vld [vmem:[%s2491 + $0xe8] sm:$0xff]
        %v2522 = vld [vmem:[%s2491 + $0xf0] sm:$0xff]
        %v2523 = vld [vmem:[%s2491 + $0xf8] sm:$0xff]
        %v2556 = vunpack.c.l.b16 %v2492
        %v2557 = vunpack.c.h.b16 %v2492
        %v2558 = vunpack.c.l.b16 %v2493
        %v2559 = vunpack.c.h.b16 %v2493
        %v2560 = vunpack.c.l.b16 %v2494
        %v2561 = vunpack.c.h.b16 %v2494
        %v2562 = vunpack.c.l.b16 %v2495
        %v2563 = vunpack.c.h.b16 %v2495
        %v2564 = vunpack.c.l.b16 %v2496
        %v2565 = vunpack.c.h.b16 %v2496
        %v2566 = vunpack.c.l.b16 %v2497
        %v2567 = vunpack.c.h.b16 %v2497
        %v2568 = vunpack.c.l.b16 %v2498
        %v2569 = vunpack.c.h.b16 %v2498
        %v2570 = vunpack.c.l.b16 %v2499
        %v2571 = vunpack.c.h.b16 %v2499
        %v2572 = vunpack.c.l.b16 %v2500
        %v2573 = vunpack.c.h.b16 %v2500
        %v2574 = vunpack.c.l.b16 %v2501
        %v2575 = vunpack.c.h.b16 %v2501
        %v2576 = vunpack.c.l.b16 %v2502
        %v2577 = vunpack.c.h.b16 %v2502
        %v2578 = vunpack.c.l.b16 %v2503
        %v2579 = vunpack.c.h.b16 %v2503
        %v2580 = vunpack.c.l.b16 %v2504
        %v2581 = vunpack.c.h.b16 %v2504
        %v2582 = vunpack.c.l.b16 %v2505
        %v2583 = vunpack.c.h.b16 %v2505
        %v2584 = vunpack.c.l.b16 %v2506
        %v2585 = vunpack.c.h.b16 %v2506
        %v2586 = vunpack.c.l.b16 %v2507
        %v2587 = vunpack.c.h.b16 %v2507
        %v2588 = vunpack.c.l.b16 %v2508
        %v2589 = vunpack.c.h.b16 %v2508
        %v2590 = vunpack.c.l.b16 %v2509
        %v2591 = vunpack.c.h.b16 %v2509
        %v2592 = vunpack.c.l.b16 %v2510
        %v2593 = vunpack.c.h.b16 %v2510
        %v2594 = vunpack.c.l.b16 %v2511
        %v2595 = vunpack.c.h.b16 %v2511
        %v2596 = vunpack.c.l.b16 %v2512
        %v2597 = vunpack.c.h.b16 %v2512
        %v2598 = vunpack.c.l.b16 %v2513
        %v2599 = vunpack.c.h.b16 %v2513
        %v2600 = vunpack.c.l.b16 %v2514
        %v2601 = vunpack.c.h.b16 %v2514
        %v2602 = vunpack.c.l.b16 %v2515
        %v2603 = vunpack.c.h.b16 %v2515
        %v2604 = vunpack.c.l.b16 %v2516
        %v2605 = vunpack.c.h.b16 %v2516
        %v2606 = vunpack.c.l.b16 %v2517
        %v2607 = vunpack.c.h.b16 %v2517
        %v2608 = vunpack.c.l.b16 %v2518
        %v2609 = vunpack.c.h.b16 %v2518
        %v2610 = vunpack.c.l.b16 %v2519
        %v2611 = vunpack.c.h.b16 %v2519
        %v2612 = vunpack.c.l.b16 %v2520
        %v2613 = vunpack.c.h.b16 %v2520
        %v2614 = vunpack.c.l.b16 %v2521
        %v2615 = vunpack.c.h.b16 %v2521
        %v2616 = vunpack.c.l.b16 %v2522
        %v2617 = vunpack.c.h.b16 %v2522
        %v2618 = vunpack.c.l.b16 %v2523
        %v2619 = vunpack.c.h.b16 %v2523
        %v2620 = vpack.c.b16 %v2558, %v2556
        %v2621 = vpack.c.b16 %v2559, %v2557
        %v2622 = vpack.c.b16 %v2562, %v2560
        %v2623 = vpack.c.b16 %v2563, %v2561
        %v2624 = vpack.c.b16 %v2566, %v2564
        %v2625 = vpack.c.b16 %v2567, %v2565
        %v2626 = vpack.c.b16 %v2570, %v2568
        %v2627 = vpack.c.b16 %v2571, %v2569
        %v2628 = vpack.c.b16 %v2574, %v2572
        %v2629 = vpack.c.b16 %v2575, %v2573
        %v2630 = vpack.c.b16 %v2578, %v2576
        %v2631 = vpack.c.b16 %v2579, %v2577
        %v2632 = vpack.c.b16 %v2582, %v2580
        %v2633 = vpack.c.b16 %v2583, %v2581
        %v2634 = vpack.c.b16 %v2586, %v2584
        %v2635 = vpack.c.b16 %v2587, %v2585
        %v2636 = vpack.c.b16 %v2590, %v2588
        %v2637 = vpack.c.b16 %v2591, %v2589
        %v2638 = vpack.c.b16 %v2594, %v2592
        %v2639 = vpack.c.b16 %v2595, %v2593
        %v2640 = vpack.c.b16 %v2598, %v2596
        %v2641 = vpack.c.b16 %v2599, %v2597
        %v2642 = vpack.c.b16 %v2602, %v2600
        %v2643 = vpack.c.b16 %v2603, %v2601
        %v2644 = vpack.c.b16 %v2606, %v2604
        %v2645 = vpack.c.b16 %v2607, %v2605
        %v2646 = vpack.c.b16 %v2610, %v2608
        %v2647 = vpack.c.b16 %v2611, %v2609
        %v2648 = vpack.c.b16 %v2614, %v2612
        %v2649 = vpack.c.b16 %v2615, %v2613
        %v2650 = vpack.c.b16 %v2618, %v2616
        %v2651 = vpack.c.b16 %v2619, %v2617
        %2684 = vmatprep.subr.bf16.mxu0 0
        %2685 = vmatpush1.bf16.msra.mxu0 %v713
        %2686 = vmatprep.subr.bf16.mxu0 0
        %2687 = vmatpush1.bf16.msra.mxu0 %v712
        %2688 = vmatprep.subr.bf16.mxu0 0
        %2689 = vmatpush1.bf16.msra.mxu0 %v711
        %2690 = vmatprep.subr.bf16.mxu0 0
        %2691 = vmatpush1.bf16.msra.mxu0 %v710
        %2692 = vmatprep.subr.bf16.mxu0 0
        %2693 = vmatpush1.bf16.msra.mxu0 %v709
        %2694 = vmatprep.subr.bf16.mxu0 0
        %2695 = vmatpush1.bf16.msra.mxu0 %v708
        %2696 = vmatprep.subr.bf16.mxu0 0
        %2697 = vmatpush1.bf16.msra.mxu0 %v707
        %2698 = vmatprep.subr.bf16.mxu0 0
        %2699 = vmatpush1.bf16.msra.mxu0 %v706
        %2700 = vmatprep.subr.bf16.mxu0 0
        %2701 = vmatpush2.bf16.msra.mxu0 %v721
        %2702 = vmatprep.subr.bf16.mxu0 0
        %2703 = vmatpush2.bf16.msra.mxu0 %v720
        %2704 = vmatprep.subr.bf16.mxu0 0
        %2705 = vmatpush2.bf16.msra.mxu0 %v719
        %2706 = vmatprep.subr.bf16.mxu0 0
        %2707 = vmatpush2.bf16.msra.mxu0 %v718
        %2708 = vmatprep.subr.bf16.mxu0 0
        %2709 = vmatpush2.bf16.msra.mxu0 %v717
        %2710 = vmatprep.subr.bf16.mxu0 0
        %2711 = vmatpush2.bf16.msra.mxu0 %v716
        %2712 = vmatprep.subr.bf16.mxu0 0
        %2713 = vmatpush2.bf16.msra.mxu0 %v715
        %2714 = vmatprep.subr.bf16.mxu0 0
        %2715 = vmatpush2.bf16.msra.mxu0 %v714
        %2716 = vmatprep.mubr.bf16.mxu0 %v2621
        %2717 = vmatmul.mubr.bf16.gmra.mxu0 %v2620
        %v2718 = vpop.f32.mrf.mxu0
        %v2719 = vadd.f32 0.0, %v2718
        %v2720 = vpop.f32.mrf.mxu0
        %v2721 = vpop.f32.mrf.mxu0
        %v2722 = vadd.f32 0.0, %v2721
        %v2723 = vpop.f32.mrf.mxu0
        %2724 = vmatprep.mubr.bf16.mxu0 %v2623
        %2725 = vmatmul.mubr.bf16.gmra.mxu0 %v2622
        %v2726 = vpop.f32.mrf.mxu0
        %v2727 = vadd.f32 0.0, %v2726
        %v2728 = vpop.f32.mrf.mxu0
        %v2729 = vpop.f32.mrf.mxu0
        %v2730 = vadd.f32 0.0, %v2729
        %v2731 = vpop.f32.mrf.mxu0
        %2732 = vmatprep.mubr.bf16.mxu0 %v2625
        %2733 = vmatmul.mubr.bf16.gmra.mxu0 %v2624
        %v2734 = vpop.f32.mrf.mxu0
        %v2735 = vadd.f32 0.0, %v2734
        %v2736 = vpop.f32.mrf.mxu0
        %v2737 = vpop.f32.mrf.mxu0
        %v2738 = vadd.f32 0.0, %v2737
        %v2739 = vpop.f32.mrf.mxu0
        %2740 = vmatprep.mubr.bf16.mxu0 %v2627
        %2741 = vmatmul.mubr.bf16.gmra.mxu0 %v2626
        %v2742 = vpop.f32.mrf.mxu0
        %v2743 = vadd.f32 0.0, %v2742
        %v2744 = vpop.f32.mrf.mxu0
        %v2745 = vpop.f32.mrf.mxu0
        %v2746 = vadd.f32 0.0, %v2745
        %v2747 = vpop.f32.mrf.mxu0
        %2748 = vmatprep.mubr.bf16.mxu0 %v2629
        %2749 = vmatmul.mubr.bf16.gmra.mxu0 %v2628
        %v2750 = vpop.f32.mrf.mxu0
        %v2751 = vadd.f32 0.0, %v2750
        %v2752 = vpop.f32.mrf.mxu0
        %v2753 = vpop.f32.mrf.mxu0
        %v2754 = vadd.f32 0.0, %v2753
        %v2755 = vpop.f32.mrf.mxu0
        %2756 = vmatprep.mubr.bf16.mxu0 %v2631
        %2757 = vmatmul.mubr.bf16.gmra.mxu0 %v2630
        %v2758 = vpop.f32.mrf.mxu0
        %v2759 = vadd.f32 0.0, %v2758
        %v2760 = vpop.f32.mrf.mxu0
        %v2761 = vpop.f32.mrf.mxu0
        %v2762 = vadd.f32 0.0, %v2761
        %v2763 = vpop.f32.mrf.mxu0
        %2764 = vmatprep.mubr.bf16.mxu0 %v2633
        %2765 = vmatmul.mubr.bf16.gmra.mxu0 %v2632
        %v2766 = vpop.f32.mrf.mxu0
        %v2767 = vadd.f32 0.0, %v2766
        %v2768 = vpop.f32.mrf.mxu0
        %v2769 = vpop.f32.mrf.mxu0
        %v2770 = vadd.f32 0.0, %v2769
        %v2771 = vpop.f32.mrf.mxu0
        %2772 = vmatprep.mubr.bf16.mxu0 %v2635
        %2773 = vmatmul.mubr.bf16.gmra.mxu0 %v2634
        %v2774 = vpop.f32.mrf.mxu0
        %v2775 = vadd.f32 0.0, %v2774
        %v2776 = vpop.f32.mrf.mxu0
        %v2777 = vpop.f32.mrf.mxu0
        %v2778 = vadd.f32 0.0, %v2777
        %v2779 = vpop.f32.mrf.mxu0
        %2780 = vmatprep.mubr.bf16.mxu0 %v2637
        %2781 = vmatmul.mubr.bf16.gmra.mxu0 %v2636
        %v2782 = vpop.f32.mrf.mxu0
        %v2783 = vadd.f32 0.0, %v2782
        %v2784 = vpop.f32.mrf.mxu0
        %v2785 = vpop.f32.mrf.mxu0
        %v2786 = vadd.f32 0.0, %v2785
        %v2787 = vpop.f32.mrf.mxu0
        %2788 = vmatprep.mubr.bf16.mxu0 %v2639
        %2789 = vmatmul.mubr.bf16.gmra.mxu0 %v2638
        %v2790 = vpop.f32.mrf.mxu0
        %v2791 = vadd.f32 0.0, %v2790
        %v2792 = vpop.f32.mrf.mxu0
        %v2793 = vpop.f32.mrf.mxu0
        %v2794 = vadd.f32 0.0, %v2793
        %v2795 = vpop.f32.mrf.mxu0
        %2796 = vmatprep.mubr.bf16.mxu0 %v2641
        %2797 = vmatmul.mubr.bf16.gmra.mxu0 %v2640
        %v2798 = vpop.f32.mrf.mxu0
        %v2799 = vadd.f32 0.0, %v2798
        %v2800 = vpop.f32.mrf.mxu0
        %v2801 = vpop.f32.mrf.mxu0
        %v2802 = vadd.f32 0.0, %v2801
        %v2803 = vpop.f32.mrf.mxu0
        %2804 = vmatprep.mubr.bf16.mxu0 %v2643
        %2805 = vmatmul.mubr.bf16.gmra.mxu0 %v2642
        %v2806 = vpop.f32.mrf.mxu0
        %v2807 = vadd.f32 0.0, %v2806
        %v2808 = vpop.f32.mrf.mxu0
        %v2809 = vpop.f32.mrf.mxu0
        %v2810 = vadd.f32 0.0, %v2809
        %v2811 = vpop.f32.mrf.mxu0
        %2812 = vmatprep.mubr.bf16.mxu0 %v2645
        %2813 = vmatmul.mubr.bf16.gmra.mxu0 %v2644
        %v2814 = vpop.f32.mrf.mxu0
        %v2815 = vadd.f32 0.0, %v2814
        %v2816 = vpop.f32.mrf.mxu0
        %v2817 = vpop.f32.mrf.mxu0
        %v2818 = vadd.f32 0.0, %v2817
        %v2819 = vpop.f32.mrf.mxu0
        %2820 = vmatprep.mubr.bf16.mxu0 %v2647
        %2821 = vmatmul.mubr.bf16.gmra.mxu0 %v2646
        %v2822 = vpop.f32.mrf.mxu0
        %v2823 = vadd.f32 0.0, %v2822
        %v2824 = vpop.f32.mrf.mxu0
        %v2825 = vpop.f32.mrf.mxu0
        %v2826 = vadd.f32 0.0, %v2825
        %v2827 = vpop.f32.mrf.mxu0
        %2828 = vmatprep.mubr.bf16.mxu0 %v2649
        %2829 = vmatmul.mubr.bf16.gmra.mxu0 %v2648
        %v2830 = vpop.f32.mrf.mxu0
        %v2831 = vadd.f32 0.0, %v2830
        %v2832 = vpop.f32.mrf.mxu0
        %v2833 = vpop.f32.mrf.mxu0
        %v2834 = vadd.f32 0.0, %v2833
        %v2835 = vpop.f32.mrf.mxu0
        %2836 = vmatprep.mubr.bf16.mxu0 %v2651
        %2837 = vmatmul.mubr.bf16.gmra.mxu0 %v2650
        %v2838 = vpop.f32.mrf.mxu0
        %v2839 = vadd.f32 0.0, %v2838
        %v2840 = vpop.f32.mrf.mxu0
        %v2841 = vpop.f32.mrf.mxu0
        %v2842 = vadd.f32 0.0, %v2841
        %v2843 = vpop.f32.mrf.mxu0
        %2844 = vdwg.mxu0
        %s2845 = scalar_lea.vmem [#allocation2], 1536
        %v2846 = vld [vmem:[%s2845] sm:$0xff]
        %v2847 = vld [vmem:[%s2845 + $0x8] sm:$0xff]
        %v2848 = vld [vmem:[%s2845 + $0x10] sm:$0xff]
        %v2849 = vld [vmem:[%s2845 + $0x18] sm:$0xff]
        %v2850 = vld [vmem:[%s2845 + $0x20] sm:$0xff]
        %v2851 = vld [vmem:[%s2845 + $0x28] sm:$0xff]
        %v2852 = vld [vmem:[%s2845 + $0x30] sm:$0xff]
        %v2853 = vld [vmem:[%s2845 + $0x38] sm:$0xff]
        %v2854 = vld [vmem:[%s2845 + $0x40] sm:$0xff]
        %v2855 = vld [vmem:[%s2845 + $0x48] sm:$0xff]
        %v2856 = vld [vmem:[%s2845 + $0x50] sm:$0xff]
        %v2857 = vld [vmem:[%s2845 + $0x58] sm:$0xff]
        %v2858 = vld [vmem:[%s2845 + $0x60] sm:$0xff]
        %v2859 = vld [vmem:[%s2845 + $0x68] sm:$0xff]
        %v2860 = vld [vmem:[%s2845 + $0x70] sm:$0xff]
        %v2861 = vld [vmem:[%s2845 + $0x78] sm:$0xff]
        %v2862 = vld [vmem:[%s2845 + $0x80] sm:$0xff]
        %v2863 = vld [vmem:[%s2845 + $0x88] sm:$0xff]
        %v2864 = vld [vmem:[%s2845 + $0x90] sm:$0xff]
        %v2865 = vld [vmem:[%s2845 + $0x98] sm:$0xff]
        %v2866 = vld [vmem:[%s2845 + $0xa0] sm:$0xff]
        %v2867 = vld [vmem:[%s2845 + $0xa8] sm:$0xff]
        %v2868 = vld [vmem:[%s2845 + $0xb0] sm:$0xff]
        %v2869 = vld [vmem:[%s2845 + $0xb8] sm:$0xff]
        %v2870 = vld [vmem:[%s2845 + $0xc0] sm:$0xff]
        %v2871 = vld [vmem:[%s2845 + $0xc8] sm:$0xff]
        %v2872 = vld [vmem:[%s2845 + $0xd0] sm:$0xff]
        %v2873 = vld [vmem:[%s2845 + $0xd8] sm:$0xff]
        %v2874 = vld [vmem:[%s2845 + $0xe0] sm:$0xff]
        %v2875 = vld [vmem:[%s2845 + $0xe8] sm:$0xff]
        %v2876 = vld [vmem:[%s2845 + $0xf0] sm:$0xff]
        %v2877 = vld [vmem:[%s2845 + $0xf8] sm:$0xff]
        %v2910 = vunpack.c.l.b16 %v2846
        %v2911 = vunpack.c.h.b16 %v2846
        %v2912 = vunpack.c.l.b16 %v2847
        %v2913 = vunpack.c.h.b16 %v2847
        %v2914 = vunpack.c.l.b16 %v2848
        %v2915 = vunpack.c.h.b16 %v2848
        %v2916 = vunpack.c.l.b16 %v2849
        %v2917 = vunpack.c.h.b16 %v2849
        %v2918 = vunpack.c.l.b16 %v2850
        %v2919 = vunpack.c.h.b16 %v2850
        %v2920 = vunpack.c.l.b16 %v2851
        %v2921 = vunpack.c.h.b16 %v2851
        %v2922 = vunpack.c.l.b16 %v2852
        %v2923 = vunpack.c.h.b16 %v2852
        %v2924 = vunpack.c.l.b16 %v2853
        %v2925 = vunpack.c.h.b16 %v2853
        %v2926 = vunpack.c.l.b16 %v2854
        %v2927 = vunpack.c.h.b16 %v2854
        %v2928 = vunpack.c.l.b16 %v2855
        %v2929 = vunpack.c.h.b16 %v2855
        %v2930 = vunpack.c.l.b16 %v2856
        %v2931 = vunpack.c.h.b16 %v2856
        %v2932 = vunpack.c.l.b16 %v2857
        %v2933 = vunpack.c.h.b16 %v2857
        %v2934 = vunpack.c.l.b16 %v2858
        %v2935 = vunpack.c.h.b16 %v2858
        %v2936 = vunpack.c.l.b16 %v2859
        %v2937 = vunpack.c.h.b16 %v2859
        %v2938 = vunpack.c.l.b16 %v2860
        %v2939 = vunpack.c.h.b16 %v2860
        %v2940 = vunpack.c.l.b16 %v2861
        %v2941 = vunpack.c.h.b16 %v2861
        %v2942 = vunpack.c.l.b16 %v2862
        %v2943 = vunpack.c.h.b16 %v2862
        %v2944 = vunpack.c.l.b16 %v2863
        %v2945 = vunpack.c.h.b16 %v2863
        %v2946 = vunpack.c.l.b16 %v2864
        %v2947 = vunpack.c.h.b16 %v2864
        %v2948 = vunpack.c.l.b16 %v2865
        %v2949 = vunpack.c.h.b16 %v2865
        %v2950 = vunpack.c.l.b16 %v2866
        %v2951 = vunpack.c.h.b16 %v2866
        %v2952 = vunpack.c.l.b16 %v2867
        %v2953 = vunpack.c.h.b16 %v2867
        %v2954 = vunpack.c.l.b16 %v2868
        %v2955 = vunpack.c.h.b16 %v2868
        %v2956 = vunpack.c.l.b16 %v2869
        %v2957 = vunpack.c.h.b16 %v2869
        %v2958 = vunpack.c.l.b16 %v2870
        %v2959 = vunpack.c.h.b16 %v2870
        %v2960 = vunpack.c.l.b16 %v2871
        %v2961 = vunpack.c.h.b16 %v2871
        %v2962 = vunpack.c.l.b16 %v2872
        %v2963 = vunpack.c.h.b16 %v2872
        %v2964 = vunpack.c.l.b16 %v2873
        %v2965 = vunpack.c.h.b16 %v2873
        %v2966 = vunpack.c.l.b16 %v2874
        %v2967 = vunpack.c.h.b16 %v2874
        %v2968 = vunpack.c.l.b16 %v2875
        %v2969 = vunpack.c.h.b16 %v2875
        %v2970 = vunpack.c.l.b16 %v2876
        %v2971 = vunpack.c.h.b16 %v2876
        %v2972 = vunpack.c.l.b16 %v2877
        %v2973 = vunpack.c.h.b16 %v2877
        %v2974 = vpack.c.b16 %v2912, %v2910
        %v2975 = vpack.c.b16 %v2913, %v2911
        %v2976 = vpack.c.b16 %v2916, %v2914
        %v2977 = vpack.c.b16 %v2917, %v2915
        %v2978 = vpack.c.b16 %v2920, %v2918
        %v2979 = vpack.c.b16 %v2921, %v2919
        %v2980 = vpack.c.b16 %v2924, %v2922
        %v2981 = vpack.c.b16 %v2925, %v2923
        %v2982 = vpack.c.b16 %v2928, %v2926
        %v2983 = vpack.c.b16 %v2929, %v2927
        %v2984 = vpack.c.b16 %v2932, %v2930
        %v2985 = vpack.c.b16 %v2933, %v2931
        %v2986 = vpack.c.b16 %v2936, %v2934
        %v2987 = vpack.c.b16 %v2937, %v2935
        %v2988 = vpack.c.b16 %v2940, %v2938
        %v2989 = vpack.c.b16 %v2941, %v2939
        %v2990 = vpack.c.b16 %v2944, %v2942
        %v2991 = vpack.c.b16 %v2945, %v2943
        %v2992 = vpack.c.b16 %v2948, %v2946
        %v2993 = vpack.c.b16 %v2949, %v2947
        %v2994 = vpack.c.b16 %v2952, %v2950
        %v2995 = vpack.c.b16 %v2953, %v2951
        %v2996 = vpack.c.b16 %v2956, %v2954
        %v2997 = vpack.c.b16 %v2957, %v2955
        %v2998 = vpack.c.b16 %v2960, %v2958
        %v2999 = vpack.c.b16 %v2961, %v2959
        %v3000 = vpack.c.b16 %v2964, %v2962
        %v3001 = vpack.c.b16 %v2965, %v2963
        %v3002 = vpack.c.b16 %v2968, %v2966
        %v3003 = vpack.c.b16 %v2969, %v2967
        %v3004 = vpack.c.b16 %v2972, %v2970
        %v3005 = vpack.c.b16 %v2973, %v2971
        %3038 = vmatprep.subr.bf16.mxu0 0
        %3039 = vmatpush1.bf16.msra.mxu0 %v713
        %3040 = vmatprep.subr.bf16.mxu0 0
        %3041 = vmatpush1.bf16.msra.mxu0 %v712
        %3042 = vmatprep.subr.bf16.mxu0 0
        %3043 = vmatpush1.bf16.msra.mxu0 %v711
        %3044 = vmatprep.subr.bf16.mxu0 0
        %3045 = vmatpush1.bf16.msra.mxu0 %v710
        %3046 = vmatprep.subr.bf16.mxu0 0
        %3047 = vmatpush1.bf16.msra.mxu0 %v709
        %3048 = vmatprep.subr.bf16.mxu0 0
        %3049 = vmatpush1.bf16.msra.mxu0 %v708
        %3050 = vmatprep.subr.bf16.mxu0 0
        %3051 = vmatpush1.bf16.msra.mxu0 %v707
        %3052 = vmatprep.subr.bf16.mxu0 0
        %3053 = vmatpush1.bf16.msra.mxu0 %v706
        %3054 = vmatprep.subr.bf16.mxu0 0
        %3055 = vmatpush2.bf16.msra.mxu0 %v721
        %3056 = vmatprep.subr.bf16.mxu0 0
        %3057 = vmatpush2.bf16.msra.mxu0 %v720
        %3058 = vmatprep.subr.bf16.mxu0 0
        %3059 = vmatpush2.bf16.msra.mxu0 %v719
        %3060 = vmatprep.subr.bf16.mxu0 0
        %3061 = vmatpush2.bf16.msra.mxu0 %v718
        %3062 = vmatprep.subr.bf16.mxu0 0
        %3063 = vmatpush2.bf16.msra.mxu0 %v717
        %3064 = vmatprep.subr.bf16.mxu0 0
        %3065 = vmatpush2.bf16.msra.mxu0 %v716
        %3066 = vmatprep.subr.bf16.mxu0 0
        %3067 = vmatpush2.bf16.msra.mxu0 %v715
        %3068 = vmatprep.subr.bf16.mxu0 0
        %3069 = vmatpush2.bf16.msra.mxu0 %v714
        %3070 = vmatprep.mubr.bf16.mxu0 %v2975
        %3071 = vmatmul.mubr.bf16.gmra.mxu0 %v2974
        %v3072 = vpop.f32.mrf.mxu0
        %v3073 = vadd.f32 0.0, %v3072
        %v3074 = vpop.f32.mrf.mxu0
        %v3075 = vpop.f32.mrf.mxu0
        %v3076 = vadd.f32 0.0, %v3075
        %v3077 = vpop.f32.mrf.mxu0
        %3078 = vmatprep.mubr.bf16.mxu0 %v2977
        %3079 = vmatmul.mubr.bf16.gmra.mxu0 %v2976
        %v3080 = vpop.f32.mrf.mxu0
        %v3081 = vadd.f32 0.0, %v3080
        %v3082 = vpop.f32.mrf.mxu0
        %v3083 = vpop.f32.mrf.mxu0
        %v3084 = vadd.f32 0.0, %v3083
        %v3085 = vpop.f32.mrf.mxu0
        %3086 = vmatprep.mubr.bf16.mxu0 %v2979
        %3087 = vmatmul.mubr.bf16.gmra.mxu0 %v2978
        %v3088 = vpop.f32.mrf.mxu0
        %v3089 = vadd.f32 0.0, %v3088
        %v3090 = vpop.f32.mrf.mxu0
        %v3091 = vpop.f32.mrf.mxu0
        %v3092 = vadd.f32 0.0, %v3091
        %v3093 = vpop.f32.mrf.mxu0
        %3094 = vmatprep.mubr.bf16.mxu0 %v2981
        %3095 = vmatmul.mubr.bf16.gmra.mxu0 %v2980
        %v3096 = vpop.f32.mrf.mxu0
        %v3097 = vadd.f32 0.0, %v3096
        %v3098 = vpop.f32.mrf.mxu0
        %v3099 = vpop.f32.mrf.mxu0
        %v3100 = vadd.f32 0.0, %v3099
        %v3101 = vpop.f32.mrf.mxu0
        %3102 = vmatprep.mubr.bf16.mxu0 %v2983
        %3103 = vmatmul.mubr.bf16.gmra.mxu0 %v2982
        %v3104 = vpop.f32.mrf.mxu0
        %v3105 = vadd.f32 0.0, %v3104
        %v3106 = vpop.f32.mrf.mxu0
        %v3107 = vpop.f32.mrf.mxu0
        %v3108 = vadd.f32 0.0, %v3107
        %v3109 = vpop.f32.mrf.mxu0
        %3110 = vmatprep.mubr.bf16.mxu0 %v2985
        %3111 = vmatmul.mubr.bf16.gmra.mxu0 %v2984
        %v3112 = vpop.f32.mrf.mxu0
        %v3113 = vadd.f32 0.0, %v3112
        %v3114 = vpop.f32.mrf.mxu0
        %v3115 = vpop.f32.mrf.mxu0
        %v3116 = vadd.f32 0.0, %v3115
        %v3117 = vpop.f32.mrf.mxu0
        %3118 = vmatprep.mubr.bf16.mxu0 %v2987
        %3119 = vmatmul.mubr.bf16.gmra.mxu0 %v2986
        %v3120 = vpop.f32.mrf.mxu0
        %v3121 = vadd.f32 0.0, %v3120
        %v3122 = vpop.f32.mrf.mxu0
        %v3123 = vpop.f32.mrf.mxu0
        %v3124 = vadd.f32 0.0, %v3123
        %v3125 = vpop.f32.mrf.mxu0
        %3126 = vmatprep.mubr.bf16.mxu0 %v2989
        %3127 = vmatmul.mubr.bf16.gmra.mxu0 %v2988
        %v3128 = vpop.f32.mrf.mxu0
        %v3129 = vadd.f32 0.0, %v3128
        %v3130 = vpop.f32.mrf.mxu0
        %v3131 = vpop.f32.mrf.mxu0
        %v3132 = vadd.f32 0.0, %v3131
        %v3133 = vpop.f32.mrf.mxu0
        %3134 = vmatprep.mubr.bf16.mxu0 %v2991
        %3135 = vmatmul.mubr.bf16.gmra.mxu0 %v2990
        %v3136 = vpop.f32.mrf.mxu0
        %v3137 = vadd.f32 0.0, %v3136
        %v3138 = vpop.f32.mrf.mxu0
        %v3139 = vpop.f32.mrf.mxu0
        %v3140 = vadd.f32 0.0, %v3139
        %v3141 = vpop.f32.mrf.mxu0
        %3142 = vmatprep.mubr.bf16.mxu0 %v2993
        %3143 = vmatmul.mubr.bf16.gmra.mxu0 %v2992
        %v3144 = vpop.f32.mrf.mxu0
        %v3145 = vadd.f32 0.0, %v3144
        %v3146 = vpop.f32.mrf.mxu0
        %v3147 = vpop.f32.mrf.mxu0
        %v3148 = vadd.f32 0.0, %v3147
        %v3149 = vpop.f32.mrf.mxu0
        %3150 = vmatprep.mubr.bf16.mxu0 %v2995
        %3151 = vmatmul.mubr.bf16.gmra.mxu0 %v2994
        %v3152 = vpop.f32.mrf.mxu0
        %v3153 = vadd.f32 0.0, %v3152
        %v3154 = vpop.f32.mrf.mxu0
        %v3155 = vpop.f32.mrf.mxu0
        %v3156 = vadd.f32 0.0, %v3155
        %v3157 = vpop.f32.mrf.mxu0
        %3158 = vmatprep.mubr.bf16.mxu0 %v2997
        %3159 = vmatmul.mubr.bf16.gmra.mxu0 %v2996
        %v3160 = vpop.f32.mrf.mxu0
        %v3161 = vadd.f32 0.0, %v3160
        %v3162 = vpop.f32.mrf.mxu0
        %v3163 = vpop.f32.mrf.mxu0
        %v3164 = vadd.f32 0.0, %v3163
        %v3165 = vpop.f32.mrf.mxu0
        %3166 = vmatprep.mubr.bf16.mxu0 %v2999
        %3167 = vmatmul.mubr.bf16.gmra.mxu0 %v2998
        %v3168 = vpop.f32.mrf.mxu0
        %v3169 = vadd.f32 0.0, %v3168
        %v3170 = vpop.f32.mrf.mxu0
        %v3171 = vpop.f32.mrf.mxu0
        %v3172 = vadd.f32 0.0, %v3171
        %v3173 = vpop.f32.mrf.mxu0
        %3174 = vmatprep.mubr.bf16.mxu0 %v3001
        %3175 = vmatmul.mubr.bf16.gmra.mxu0 %v3000
        %v3176 = vpop.f32.mrf.mxu0
        %v3177 = vadd.f32 0.0, %v3176
        %v3178 = vpop.f32.mrf.mxu0
        %v3179 = vpop.f32.mrf.mxu0
        %v3180 = vadd.f32 0.0, %v3179
        %v3181 = vpop.f32.mrf.mxu0
        %3182 = vmatprep.mubr.bf16.mxu0 %v3003
        %3183 = vmatmul.mubr.bf16.gmra.mxu0 %v3002
        %v3184 = vpop.f32.mrf.mxu0
        %v3185 = vadd.f32 0.0, %v3184
        %v3186 = vpop.f32.mrf.mxu0
        %v3187 = vpop.f32.mrf.mxu0
        %v3188 = vadd.f32 0.0, %v3187
        %v3189 = vpop.f32.mrf.mxu0
        %3190 = vmatprep.mubr.bf16.mxu0 %v3005
        %3191 = vmatmul.mubr.bf16.gmra.mxu0 %v3004
        %v3192 = vpop.f32.mrf.mxu0
        %v3193 = vadd.f32 0.0, %v3192
        %v3194 = vpop.f32.mrf.mxu0
        %v3195 = vpop.f32.mrf.mxu0
        %v3196 = vadd.f32 0.0, %v3195
        %v3197 = vpop.f32.mrf.mxu0
        %3198 = vdwg.mxu0
        %s3199 = scalar_lea.vmem [#allocation2], 1792
        %v3200 = vld [vmem:[%s3199] sm:$0xff]
        %v3201 = vld [vmem:[%s3199 + $0x8] sm:$0xff]
        %v3202 = vld [vmem:[%s3199 + $0x10] sm:$0xff]
        %v3203 = vld [vmem:[%s3199 + $0x18] sm:$0xff]
        %v3204 = vld [vmem:[%s3199 + $0x20] sm:$0xff]
        %v3205 = vld [vmem:[%s3199 + $0x28] sm:$0xff]
        %v3206 = vld [vmem:[%s3199 + $0x30] sm:$0xff]
        %v3207 = vld [vmem:[%s3199 + $0x38] sm:$0xff]
        %v3208 = vld [vmem:[%s3199 + $0x40] sm:$0xff]
        %v3209 = vld [vmem:[%s3199 + $0x48] sm:$0xff]
        %v3210 = vld [vmem:[%s3199 + $0x50] sm:$0xff]
        %v3211 = vld [vmem:[%s3199 + $0x58] sm:$0xff]
        %v3212 = vld [vmem:[%s3199 + $0x60] sm:$0xff]
        %v3213 = vld [vmem:[%s3199 + $0x68] sm:$0xff]
        %v3214 = vld [vmem:[%s3199 + $0x70] sm:$0xff]
        %v3215 = vld [vmem:[%s3199 + $0x78] sm:$0xff]
        %v3216 = vld [vmem:[%s3199 + $0x80] sm:$0xff]
        %v3217 = vld [vmem:[%s3199 + $0x88] sm:$0xff]
        %v3218 = vld [vmem:[%s3199 + $0x90] sm:$0xff]
        %v3219 = vld [vmem:[%s3199 + $0x98] sm:$0xff]
        %v3220 = vld [vmem:[%s3199 + $0xa0] sm:$0xff]
        %v3221 = vld [vmem:[%s3199 + $0xa8] sm:$0xff]
        %v3222 = vld [vmem:[%s3199 + $0xb0] sm:$0xff]
        %v3223 = vld [vmem:[%s3199 + $0xb8] sm:$0xff]
        %v3224 = vld [vmem:[%s3199 + $0xc0] sm:$0xff]
        %v3225 = vld [vmem:[%s3199 + $0xc8] sm:$0xff]
        %v3226 = vld [vmem:[%s3199 + $0xd0] sm:$0xff]
        %v3227 = vld [vmem:[%s3199 + $0xd8] sm:$0xff]
        %v3228 = vld [vmem:[%s3199 + $0xe0] sm:$0xff]
        %v3229 = vld [vmem:[%s3199 + $0xe8] sm:$0xff]
        %v3230 = vld [vmem:[%s3199 + $0xf0] sm:$0xff]
        %v3231 = vld [vmem:[%s3199 + $0xf8] sm:$0xff]
        %v3264 = vunpack.c.l.b16 %v3200
        %v3265 = vunpack.c.h.b16 %v3200
        %v3266 = vunpack.c.l.b16 %v3201
        %v3267 = vunpack.c.h.b16 %v3201
        %v3268 = vunpack.c.l.b16 %v3202
        %v3269 = vunpack.c.h.b16 %v3202
        %v3270 = vunpack.c.l.b16 %v3203
        %v3271 = vunpack.c.h.b16 %v3203
        %v3272 = vunpack.c.l.b16 %v3204
        %v3273 = vunpack.c.h.b16 %v3204
        %v3274 = vunpack.c.l.b16 %v3205
        %v3275 = vunpack.c.h.b16 %v3205
        %v3276 = vunpack.c.l.b16 %v3206
        %v3277 = vunpack.c.h.b16 %v3206
        %v3278 = vunpack.c.l.b16 %v3207
        %v3279 = vunpack.c.h.b16 %v3207
        %v3280 = vunpack.c.l.b16 %v3208
        %v3281 = vunpack.c.h.b16 %v3208
        %v3282 = vunpack.c.l.b16 %v3209
        %v3283 = vunpack.c.h.b16 %v3209
        %v3284 = vunpack.c.l.b16 %v3210
        %v3285 = vunpack.c.h.b16 %v3210
        %v3286 = vunpack.c.l.b16 %v3211
        %v3287 = vunpack.c.h.b16 %v3211
        %v3288 = vunpack.c.l.b16 %v3212
        %v3289 = vunpack.c.h.b16 %v3212
        %v3290 = vunpack.c.l.b16 %v3213
        %v3291 = vunpack.c.h.b16 %v3213
        %v3292 = vunpack.c.l.b16 %v3214
        %v3293 = vunpack.c.h.b16 %v3214
        %v3294 = vunpack.c.l.b16 %v3215
        %v3295 = vunpack.c.h.b16 %v3215
        %v3296 = vunpack.c.l.b16 %v3216
        %v3297 = vunpack.c.h.b16 %v3216
        %v3298 = vunpack.c.l.b16 %v3217
        %v3299 = vunpack.c.h.b16 %v3217
        %v3300 = vunpack.c.l.b16 %v3218
        %v3301 = vunpack.c.h.b16 %v3218
        %v3302 = vunpack.c.l.b16 %v3219
        %v3303 = vunpack.c.h.b16 %v3219
        %v3304 = vunpack.c.l.b16 %v3220
        %v3305 = vunpack.c.h.b16 %v3220
        %v3306 = vunpack.c.l.b16 %v3221
        %v3307 = vunpack.c.h.b16 %v3221
        %v3308 = vunpack.c.l.b16 %v3222
        %v3309 = vunpack.c.h.b16 %v3222
        %v3310 = vunpack.c.l.b16 %v3223
        %v3311 = vunpack.c.h.b16 %v3223
        %v3312 = vunpack.c.l.b16 %v3224
        %v3313 = vunpack.c.h.b16 %v3224
        %v3314 = vunpack.c.l.b16 %v3225
        %v3315 = vunpack.c.h.b16 %v3225
        %v3316 = vunpack.c.l.b16 %v3226
        %v3317 = vunpack.c.h.b16 %v3226
        %v3318 = vunpack.c.l.b16 %v3227
        %v3319 = vunpack.c.h.b16 %v3227
        %v3320 = vunpack.c.l.b16 %v3228
        %v3321 = vunpack.c.h.b16 %v3228
        %v3322 = vunpack.c.l.b16 %v3229
        %v3323 = vunpack.c.h.b16 %v3229
        %v3324 = vunpack.c.l.b16 %v3230
        %v3325 = vunpack.c.h.b16 %v3230
        %v3326 = vunpack.c.l.b16 %v3231
        %v3327 = vunpack.c.h.b16 %v3231
        %v3328 = vpack.c.b16 %v3266, %v3264
        %v3329 = vpack.c.b16 %v3267, %v3265
        %v3330 = vpack.c.b16 %v3270, %v3268
        %v3331 = vpack.c.b16 %v3271, %v3269
        %v3332 = vpack.c.b16 %v3274, %v3272
        %v3333 = vpack.c.b16 %v3275, %v3273
        %v3334 = vpack.c.b16 %v3278, %v3276
        %v3335 = vpack.c.b16 %v3279, %v3277
        %v3336 = vpack.c.b16 %v3282, %v3280
        %v3337 = vpack.c.b16 %v3283, %v3281
        %v3338 = vpack.c.b16 %v3286, %v3284
        %v3339 = vpack.c.b16 %v3287, %v3285
        %v3340 = vpack.c.b16 %v3290, %v3288
        %v3341 = vpack.c.b16 %v3291, %v3289
        %v3342 = vpack.c.b16 %v3294, %v3292
        %v3343 = vpack.c.b16 %v3295, %v3293
        %v3344 = vpack.c.b16 %v3298, %v3296
        %v3345 = vpack.c.b16 %v3299, %v3297
        %v3346 = vpack.c.b16 %v3302, %v3300
        %v3347 = vpack.c.b16 %v3303, %v3301
        %v3348 = vpack.c.b16 %v3306, %v3304
        %v3349 = vpack.c.b16 %v3307, %v3305
        %v3350 = vpack.c.b16 %v3310, %v3308
        %v3351 = vpack.c.b16 %v3311, %v3309
        %v3352 = vpack.c.b16 %v3314, %v3312
        %v3353 = vpack.c.b16 %v3315, %v3313
        %v3354 = vpack.c.b16 %v3318, %v3316
        %v3355 = vpack.c.b16 %v3319, %v3317
        %v3356 = vpack.c.b16 %v3322, %v3320
        %v3357 = vpack.c.b16 %v3323, %v3321
        %v3358 = vpack.c.b16 %v3326, %v3324
        %v3359 = vpack.c.b16 %v3327, %v3325
        %3392 = vmatprep.subr.bf16.mxu0 0
        %3393 = vmatpush1.bf16.msra.mxu0 %v713
        %3394 = vmatprep.subr.bf16.mxu0 0
        %3395 = vmatpush1.bf16.msra.mxu0 %v712
        %3396 = vmatprep.subr.bf16.mxu0 0
        %3397 = vmatpush1.bf16.msra.mxu0 %v711
        %3398 = vmatprep.subr.bf16.mxu0 0
        %3399 = vmatpush1.bf16.msra.mxu0 %v710
        %3400 = vmatprep.subr.bf16.mxu0 0
        %3401 = vmatpush1.bf16.msra.mxu0 %v709
        %3402 = vmatprep.subr.bf16.mxu0 0
        %3403 = vmatpush1.bf16.msra.mxu0 %v708
        %3404 = vmatprep.subr.bf16.mxu0 0
        %3405 = vmatpush1.bf16.msra.mxu0 %v707
        %3406 = vmatprep.subr.bf16.mxu0 0
        %3407 = vmatpush1.bf16.msra.mxu0 %v706
        %3408 = vmatprep.subr.bf16.mxu0 0
        %3409 = vmatpush2.bf16.msra.mxu0 %v721
        %3410 = vmatprep.subr.bf16.mxu0 0
        %3411 = vmatpush2.bf16.msra.mxu0 %v720
        %3412 = vmatprep.subr.bf16.mxu0 0
        %3413 = vmatpush2.bf16.msra.mxu0 %v719
        %3414 = vmatprep.subr.bf16.mxu0 0
        %3415 = vmatpush2.bf16.msra.mxu0 %v718
        %3416 = vmatprep.subr.bf16.mxu0 0
        %3417 = vmatpush2.bf16.msra.mxu0 %v717
        %3418 = vmatprep.subr.bf16.mxu0 0
        %3419 = vmatpush2.bf16.msra.mxu0 %v716
        %3420 = vmatprep.subr.bf16.mxu0 0
        %3421 = vmatpush2.bf16.msra.mxu0 %v715
        %3422 = vmatprep.subr.bf16.mxu0 0
        %3423 = vmatpush2.bf16.msra.mxu0 %v714
        %3424 = vmatprep.mubr.bf16.mxu0 %v3329
        %3425 = vmatmul.mubr.bf16.gmra.mxu0 %v3328
        %v3426 = vpop.f32.mrf.mxu0
        %v3427 = vadd.f32 0.0, %v3426
        %v3428 = vpop.f32.mrf.mxu0
        %v3429 = vpop.f32.mrf.mxu0
        %v3430 = vadd.f32 0.0, %v3429
        %v3431 = vpop.f32.mrf.mxu0
        %3432 = vmatprep.mubr.bf16.mxu0 %v3331
        %3433 = vmatmul.mubr.bf16.gmra.mxu0 %v3330
        %v3434 = vpop.f32.mrf.mxu0
        %v3435 = vadd.f32 0.0, %v3434
        %v3436 = vpop.f32.mrf.mxu0
        %v3437 = vpop.f32.mrf.mxu0
        %v3438 = vadd.f32 0.0, %v3437
        %v3439 = vpop.f32.mrf.mxu0
        %3440 = vmatprep.mubr.bf16.mxu0 %v3333
        %3441 = vmatmul.mubr.bf16.gmra.mxu0 %v3332
        %v3442 = vpop.f32.mrf.mxu0
        %v3443 = vadd.f32 0.0, %v3442
        %v3444 = vpop.f32.mrf.mxu0
        %v3445 = vpop.f32.mrf.mxu0
        %v3446 = vadd.f32 0.0, %v3445
        %v3447 = vpop.f32.mrf.mxu0
        %3448 = vmatprep.mubr.bf16.mxu0 %v3335
        %3449 = vmatmul.mubr.bf16.gmra.mxu0 %v3334
        %v3450 = vpop.f32.mrf.mxu0
        %v3451 = vadd.f32 0.0, %v3450
        %v3452 = vpop.f32.mrf.mxu0
        %v3453 = vpop.f32.mrf.mxu0
        %v3454 = vadd.f32 0.0, %v3453
        %v3455 = vpop.f32.mrf.mxu0
        %3456 = vmatprep.mubr.bf16.mxu0 %v3337
        %3457 = vmatmul.mubr.bf16.gmra.mxu0 %v3336
        %v3458 = vpop.f32.mrf.mxu0
        %v3459 = vadd.f32 0.0, %v3458
        %v3460 = vpop.f32.mrf.mxu0
        %v3461 = vpop.f32.mrf.mxu0
        %v3462 = vadd.f32 0.0, %v3461
        %v3463 = vpop.f32.mrf.mxu0
        %3464 = vmatprep.mubr.bf16.mxu0 %v3339
        %3465 = vmatmul.mubr.bf16.gmra.mxu0 %v3338
        %v3466 = vpop.f32.mrf.mxu0
        %v3467 = vadd.f32 0.0, %v3466
        %v3468 = vpop.f32.mrf.mxu0
        %v3469 = vpop.f32.mrf.mxu0
        %v3470 = vadd.f32 0.0, %v3469
        %v3471 = vpop.f32.mrf.mxu0
        %3472 = vmatprep.mubr.bf16.mxu0 %v3341
        %3473 = vmatmul.mubr.bf16.gmra.mxu0 %v3340
        %v3474 = vpop.f32.mrf.mxu0
        %v3475 = vadd.f32 0.0, %v3474
        %v3476 = vpop.f32.mrf.mxu0
        %v3477 = vpop.f32.mrf.mxu0
        %v3478 = vadd.f32 0.0, %v3477
        %v3479 = vpop.f32.mrf.mxu0
        %3480 = vmatprep.mubr.bf16.mxu0 %v3343
        %3481 = vmatmul.mubr.bf16.gmra.mxu0 %v3342
        %v3482 = vpop.f32.mrf.mxu0
        %v3483 = vadd.f32 0.0, %v3482
        %v3484 = vpop.f32.mrf.mxu0
        %v3485 = vpop.f32.mrf.mxu0
        %v3486 = vadd.f32 0.0, %v3485
        %v3487 = vpop.f32.mrf.mxu0
        %3488 = vmatprep.mubr.bf16.mxu0 %v3345
        %3489 = vmatmul.mubr.bf16.gmra.mxu0 %v3344
        %v3490 = vpop.f32.mrf.mxu0
        %v3491 = vadd.f32 0.0, %v3490
        %v3492 = vpop.f32.mrf.mxu0
        %v3493 = vpop.f32.mrf.mxu0
        %v3494 = vadd.f32 0.0, %v3493
        %v3495 = vpop.f32.mrf.mxu0
        %3496 = vmatprep.mubr.bf16.mxu0 %v3347
        %3497 = vmatmul.mubr.bf16.gmra.mxu0 %v3346
        %v3498 = vpop.f32.mrf.mxu0
        %v3499 = vadd.f32 0.0, %v3498
        %v3500 = vpop.f32.mrf.mxu0
        %v3501 = vpop.f32.mrf.mxu0
        %v3502 = vadd.f32 0.0, %v3501
        %v3503 = vpop.f32.mrf.mxu0
        %3504 = vmatprep.mubr.bf16.mxu0 %v3349
        %3505 = vmatmul.mubr.bf16.gmra.mxu0 %v3348
        %v3506 = vpop.f32.mrf.mxu0
        %v3507 = vadd.f32 0.0, %v3506
        %v3508 = vpop.f32.mrf.mxu0
        %v3509 = vpop.f32.mrf.mxu0
        %v3510 = vadd.f32 0.0, %v3509
        %v3511 = vpop.f32.mrf.mxu0
        %3512 = vmatprep.mubr.bf16.mxu0 %v3351
        %3513 = vmatmul.mubr.bf16.gmra.mxu0 %v3350
        %v3514 = vpop.f32.mrf.mxu0
        %v3515 = vadd.f32 0.0, %v3514
        %v3516 = vpop.f32.mrf.mxu0
        %v3517 = vpop.f32.mrf.mxu0
        %v3518 = vadd.f32 0.0, %v3517
        %v3519 = vpop.f32.mrf.mxu0
        %3520 = vmatprep.mubr.bf16.mxu0 %v3353
        %3521 = vmatmul.mubr.bf16.gmra.mxu0 %v3352
        %v3522 = vpop.f32.mrf.mxu0
        %v3523 = vadd.f32 0.0, %v3522
        %v3524 = vpop.f32.mrf.mxu0
        %v3525 = vpop.f32.mrf.mxu0
        %v3526 = vadd.f32 0.0, %v3525
        %v3527 = vpop.f32.mrf.mxu0
        %3528 = vmatprep.mubr.bf16.mxu0 %v3355
        %3529 = vmatmul.mubr.bf16.gmra.mxu0 %v3354
        %v3530 = vpop.f32.mrf.mxu0
        %v3531 = vadd.f32 0.0, %v3530
        %v3532 = vpop.f32.mrf.mxu0
        %v3533 = vpop.f32.mrf.mxu0
        %v3534 = vadd.f32 0.0, %v3533
        %v3535 = vpop.f32.mrf.mxu0
        %3536 = vmatprep.mubr.bf16.mxu0 %v3357
        %3537 = vmatmul.mubr.bf16.gmra.mxu0 %v3356
        %v3538 = vpop.f32.mrf.mxu0
        %v3539 = vadd.f32 0.0, %v3538
        %v3540 = vpop.f32.mrf.mxu0
        %v3541 = vpop.f32.mrf.mxu0
        %v3542 = vadd.f32 0.0, %v3541
        %v3543 = vpop.f32.mrf.mxu0
        %3544 = vmatprep.mubr.bf16.mxu0 %v3359
        %3545 = vmatmul.mubr.bf16.gmra.mxu0 %v3358
        %v3546 = vpop.f32.mrf.mxu0
        %v3547 = vadd.f32 0.0, %v3546
        %v3548 = vpop.f32.mrf.mxu0
        %v3549 = vpop.f32.mrf.mxu0
        %v3550 = vadd.f32 0.0, %v3549
        %v3551 = vpop.f32.mrf.mxu0
        %3552 = vdwg.mxu0
        %s3553 = scalar_lea.vmem [#allocation2], 2048
        %v3554 = vld [vmem:[%s3553] sm:$0xff]
        %v3555 = vld [vmem:[%s3553 + $0x8] sm:$0xff]
        %v3556 = vld [vmem:[%s3553 + $0x10] sm:$0xff]
        %v3557 = vld [vmem:[%s3553 + $0x18] sm:$0xff]
        %v3558 = vld [vmem:[%s3553 + $0x20] sm:$0xff]
        %v3559 = vld [vmem:[%s3553 + $0x28] sm:$0xff]
        %v3560 = vld [vmem:[%s3553 + $0x30] sm:$0xff]
        %v3561 = vld [vmem:[%s3553 + $0x38] sm:$0xff]
        %v3562 = vld [vmem:[%s3553 + $0x40] sm:$0xff]
        %v3563 = vld [vmem:[%s3553 + $0x48] sm:$0xff]
        %v3564 = vld [vmem:[%s3553 + $0x50] sm:$0xff]
        %v3565 = vld [vmem:[%s3553 + $0x58] sm:$0xff]
        %v3566 = vld [vmem:[%s3553 + $0x60] sm:$0xff]
        %v3567 = vld [vmem:[%s3553 + $0x68] sm:$0xff]
        %v3568 = vld [vmem:[%s3553 + $0x70] sm:$0xff]
        %v3569 = vld [vmem:[%s3553 + $0x78] sm:$0xff]
        %v3570 = vld [vmem:[%s3553 + $0x80] sm:$0xff]
        %v3571 = vld [vmem:[%s3553 + $0x88] sm:$0xff]
        %v3572 = vld [vmem:[%s3553 + $0x90] sm:$0xff]
        %v3573 = vld [vmem:[%s3553 + $0x98] sm:$0xff]
        %v3574 = vld [vmem:[%s3553 + $0xa0] sm:$0xff]
        %v3575 = vld [vmem:[%s3553 + $0xa8] sm:$0xff]
        %v3576 = vld [vmem:[%s3553 + $0xb0] sm:$0xff]
        %v3577 = vld [vmem:[%s3553 + $0xb8] sm:$0xff]
        %v3578 = vld [vmem:[%s3553 + $0xc0] sm:$0xff]
        %v3579 = vld [vmem:[%s3553 + $0xc8] sm:$0xff]
        %v3580 = vld [vmem:[%s3553 + $0xd0] sm:$0xff]
        %v3581 = vld [vmem:[%s3553 + $0xd8] sm:$0xff]
        %v3582 = vld [vmem:[%s3553 + $0xe0] sm:$0xff]
        %v3583 = vld [vmem:[%s3553 + $0xe8] sm:$0xff]
        %v3584 = vld [vmem:[%s3553 + $0xf0] sm:$0xff]
        %v3585 = vld [vmem:[%s3553 + $0xf8] sm:$0xff]
        %v3618 = vunpack.c.l.b16 %v3554
        %v3619 = vunpack.c.h.b16 %v3554
        %v3620 = vunpack.c.l.b16 %v3555
        %v3621 = vunpack.c.h.b16 %v3555
        %v3622 = vunpack.c.l.b16 %v3556
        %v3623 = vunpack.c.h.b16 %v3556
        %v3624 = vunpack.c.l.b16 %v3557
        %v3625 = vunpack.c.h.b16 %v3557
        %v3626 = vunpack.c.l.b16 %v3558
        %v3627 = vunpack.c.h.b16 %v3558
        %v3628 = vunpack.c.l.b16 %v3559
        %v3629 = vunpack.c.h.b16 %v3559
        %v3630 = vunpack.c.l.b16 %v3560
        %v3631 = vunpack.c.h.b16 %v3560
        %v3632 = vunpack.c.l.b16 %v3561
        %v3633 = vunpack.c.h.b16 %v3561
        %v3634 = vunpack.c.l.b16 %v3562
        %v3635 = vunpack.c.h.b16 %v3562
        %v3636 = vunpack.c.l.b16 %v3563
        %v3637 = vunpack.c.h.b16 %v3563
        %v3638 = vunpack.c.l.b16 %v3564
        %v3639 = vunpack.c.h.b16 %v3564
        %v3640 = vunpack.c.l.b16 %v3565
        %v3641 = vunpack.c.h.b16 %v3565
        %v3642 = vunpack.c.l.b16 %v3566
        %v3643 = vunpack.c.h.b16 %v3566
        %v3644 = vunpack.c.l.b16 %v3567
        %v3645 = vunpack.c.h.b16 %v3567
        %v3646 = vunpack.c.l.b16 %v3568
        %v3647 = vunpack.c.h.b16 %v3568
        %v3648 = vunpack.c.l.b16 %v3569
        %v3649 = vunpack.c.h.b16 %v3569
        %v3650 = vunpack.c.l.b16 %v3570
        %v3651 = vunpack.c.h.b16 %v3570
        %v3652 = vunpack.c.l.b16 %v3571
        %v3653 = vunpack.c.h.b16 %v3571
        %v3654 = vunpack.c.l.b16 %v3572
        %v3655 = vunpack.c.h.b16 %v3572
        %v3656 = vunpack.c.l.b16 %v3573
        %v3657 = vunpack.c.h.b16 %v3573
        %v3658 = vunpack.c.l.b16 %v3574
        %v3659 = vunpack.c.h.b16 %v3574
        %v3660 = vunpack.c.l.b16 %v3575
        %v3661 = vunpack.c.h.b16 %v3575
        %v3662 = vunpack.c.l.b16 %v3576
        %v3663 = vunpack.c.h.b16 %v3576
        %v3664 = vunpack.c.l.b16 %v3577
        %v3665 = vunpack.c.h.b16 %v3577
        %v3666 = vunpack.c.l.b16 %v3578
        %v3667 = vunpack.c.h.b16 %v3578
        %v3668 = vunpack.c.l.b16 %v3579
        %v3669 = vunpack.c.h.b16 %v3579
        %v3670 = vunpack.c.l.b16 %v3580
        %v3671 = vunpack.c.h.b16 %v3580
        %v3672 = vunpack.c.l.b16 %v3581
        %v3673 = vunpack.c.h.b16 %v3581
        %v3674 = vunpack.c.l.b16 %v3582
        %v3675 = vunpack.c.h.b16 %v3582
        %v3676 = vunpack.c.l.b16 %v3583
        %v3677 = vunpack.c.h.b16 %v3583
        %v3678 = vunpack.c.l.b16 %v3584
        %v3679 = vunpack.c.h.b16 %v3584
        %v3680 = vunpack.c.l.b16 %v3585
        %v3681 = vunpack.c.h.b16 %v3585
        %v3682 = vpack.c.b16 %v3620, %v3618
        %v3683 = vpack.c.b16 %v3621, %v3619
        %v3684 = vpack.c.b16 %v3624, %v3622
        %v3685 = vpack.c.b16 %v3625, %v3623
        %v3686 = vpack.c.b16 %v3628, %v3626
        %v3687 = vpack.c.b16 %v3629, %v3627
        %v3688 = vpack.c.b16 %v3632, %v3630
        %v3689 = vpack.c.b16 %v3633, %v3631
        %v3690 = vpack.c.b16 %v3636, %v3634
        %v3691 = vpack.c.b16 %v3637, %v3635
        %v3692 = vpack.c.b16 %v3640, %v3638
        %v3693 = vpack.c.b16 %v3641, %v3639
        %v3694 = vpack.c.b16 %v3644, %v3642
        %v3695 = vpack.c.b16 %v3645, %v3643
        %v3696 = vpack.c.b16 %v3648, %v3646
        %v3697 = vpack.c.b16 %v3649, %v3647
        %v3698 = vpack.c.b16 %v3652, %v3650
        %v3699 = vpack.c.b16 %v3653, %v3651
        %v3700 = vpack.c.b16 %v3656, %v3654
        %v3701 = vpack.c.b16 %v3657, %v3655
        %v3702 = vpack.c.b16 %v3660, %v3658
        %v3703 = vpack.c.b16 %v3661, %v3659
        %v3704 = vpack.c.b16 %v3664, %v3662
        %v3705 = vpack.c.b16 %v3665, %v3663
        %v3706 = vpack.c.b16 %v3668, %v3666
        %v3707 = vpack.c.b16 %v3669, %v3667
        %v3708 = vpack.c.b16 %v3672, %v3670
        %v3709 = vpack.c.b16 %v3673, %v3671
        %v3710 = vpack.c.b16 %v3676, %v3674
        %v3711 = vpack.c.b16 %v3677, %v3675
        %v3712 = vpack.c.b16 %v3680, %v3678
        %v3713 = vpack.c.b16 %v3681, %v3679
        %3746 = vmatprep.subr.bf16.mxu0 0
        %3747 = vmatpush1.bf16.msra.mxu0 %v713
        %3748 = vmatprep.subr.bf16.mxu0 0
        %3749 = vmatpush1.bf16.msra.mxu0 %v712
        %3750 = vmatprep.subr.bf16.mxu0 0
        %3751 = vmatpush1.bf16.msra.mxu0 %v711
        %3752 = vmatprep.subr.bf16.mxu0 0
        %3753 = vmatpush1.bf16.msra.mxu0 %v710
        %3754 = vmatprep.subr.bf16.mxu0 0
        %3755 = vmatpush1.bf16.msra.mxu0 %v709
        %3756 = vmatprep.subr.bf16.mxu0 0
        %3757 = vmatpush1.bf16.msra.mxu0 %v708
        %3758 = vmatprep.subr.bf16.mxu0 0
        %3759 = vmatpush1.bf16.msra.mxu0 %v707
        %3760 = vmatprep.subr.bf16.mxu0 0
        %3761 = vmatpush1.bf16.msra.mxu0 %v706
        %3762 = vmatprep.subr.bf16.mxu0 0
        %3763 = vmatpush2.bf16.msra.mxu0 %v721
        %3764 = vmatprep.subr.bf16.mxu0 0
        %3765 = vmatpush2.bf16.msra.mxu0 %v720
        %3766 = vmatprep.subr.bf16.mxu0 0
        %3767 = vmatpush2.bf16.msra.mxu0 %v719
        %3768 = vmatprep.subr.bf16.mxu0 0
        %3769 = vmatpush2.bf16.msra.mxu0 %v718
        %3770 = vmatprep.subr.bf16.mxu0 0
        %3771 = vmatpush2.bf16.msra.mxu0 %v717
        %3772 = vmatprep.subr.bf16.mxu0 0
        %3773 = vmatpush2.bf16.msra.mxu0 %v716
        %3774 = vmatprep.subr.bf16.mxu0 0
        %3775 = vmatpush2.bf16.msra.mxu0 %v715
        %3776 = vmatprep.subr.bf16.mxu0 0
        %3777 = vmatpush2.bf16.msra.mxu0 %v714
        %3778 = vmatprep.mubr.bf16.mxu0 %v3683
        %3779 = vmatmul.mubr.bf16.gmra.mxu0 %v3682
        %v3780 = vpop.f32.mrf.mxu0
        %v3781 = vadd.f32 0.0, %v3780
        %v3782 = vpop.f32.mrf.mxu0
        %v3783 = vpop.f32.mrf.mxu0
        %v3784 = vadd.f32 0.0, %v3783
        %v3785 = vpop.f32.mrf.mxu0
        %3786 = vmatprep.mubr.bf16.mxu0 %v3685
        %3787 = vmatmul.mubr.bf16.gmra.mxu0 %v3684
        %v3788 = vpop.f32.mrf.mxu0
        %v3789 = vadd.f32 0.0, %v3788
        %v3790 = vpop.f32.mrf.mxu0
        %v3791 = vpop.f32.mrf.mxu0
        %v3792 = vadd.f32 0.0, %v3791
        %v3793 = vpop.f32.mrf.mxu0
        %3794 = vmatprep.mubr.bf16.mxu0 %v3687
        %3795 = vmatmul.mubr.bf16.gmra.mxu0 %v3686
        %v3796 = vpop.f32.mrf.mxu0
        %v3797 = vadd.f32 0.0, %v3796
        %v3798 = vpop.f32.mrf.mxu0
        %v3799 = vpop.f32.mrf.mxu0
        %v3800 = vadd.f32 0.0, %v3799
        %v3801 = vpop.f32.mrf.mxu0
        %3802 = vmatprep.mubr.bf16.mxu0 %v3689
        %3803 = vmatmul.mubr.bf16.gmra.mxu0 %v3688
        %v3804 = vpop.f32.mrf.mxu0
        %v3805 = vadd.f32 0.0, %v3804
        %v3806 = vpop.f32.mrf.mxu0
        %v3807 = vpop.f32.mrf.mxu0
        %v3808 = vadd.f32 0.0, %v3807
        %v3809 = vpop.f32.mrf.mxu0
        %3810 = vmatprep.mubr.bf16.mxu0 %v3691
        %3811 = vmatmul.mubr.bf16.gmra.mxu0 %v3690
        %v3812 = vpop.f32.mrf.mxu0
        %v3813 = vadd.f32 0.0, %v3812
        %v3814 = vpop.f32.mrf.mxu0
        %v3815 = vpop.f32.mrf.mxu0
        %v3816 = vadd.f32 0.0, %v3815
        %v3817 = vpop.f32.mrf.mxu0
        %3818 = vmatprep.mubr.bf16.mxu0 %v3693
        %3819 = vmatmul.mubr.bf16.gmra.mxu0 %v3692
        %v3820 = vpop.f32.mrf.mxu0
        %v3821 = vadd.f32 0.0, %v3820
        %v3822 = vpop.f32.mrf.mxu0
        %v3823 = vpop.f32.mrf.mxu0
        %v3824 = vadd.f32 0.0, %v3823
        %v3825 = vpop.f32.mrf.mxu0
        %3826 = vmatprep.mubr.bf16.mxu0 %v3695
        %3827 = vmatmul.mubr.bf16.gmra.mxu0 %v3694
        %v3828 = vpop.f32.mrf.mxu0
        %v3829 = vadd.f32 0.0, %v3828
        %v3830 = vpop.f32.mrf.mxu0
        %v3831 = vpop.f32.mrf.mxu0
        %v3832 = vadd.f32 0.0, %v3831
        %v3833 = vpop.f32.mrf.mxu0
        %3834 = vmatprep.mubr.bf16.mxu0 %v3697
        %3835 = vmatmul.mubr.bf16.gmra.mxu0 %v3696
        %v3836 = vpop.f32.mrf.mxu0
        %v3837 = vadd.f32 0.0, %v3836
        %v3838 = vpop.f32.mrf.mxu0
        %v3839 = vpop.f32.mrf.mxu0
        %v3840 = vadd.f32 0.0, %v3839
        %v3841 = vpop.f32.mrf.mxu0
        %3842 = vmatprep.mubr.bf16.mxu0 %v3699
        %3843 = vmatmul.mubr.bf16.gmra.mxu0 %v3698
        %v3844 = vpop.f32.mrf.mxu0
        %v3845 = vadd.f32 0.0, %v3844
        %v3846 = vpop.f32.mrf.mxu0
        %v3847 = vpop.f32.mrf.mxu0
        %v3848 = vadd.f32 0.0, %v3847
        %v3849 = vpop.f32.mrf.mxu0
        %3850 = vmatprep.mubr.bf16.mxu0 %v3701
        %3851 = vmatmul.mubr.bf16.gmra.mxu0 %v3700
        %v3852 = vpop.f32.mrf.mxu0
        %v3853 = vadd.f32 0.0, %v3852
        %v3854 = vpop.f32.mrf.mxu0
        %v3855 = vpop.f32.mrf.mxu0
        %v3856 = vadd.f32 0.0, %v3855
        %v3857 = vpop.f32.mrf.mxu0
        %3858 = vmatprep.mubr.bf16.mxu0 %v3703
        %3859 = vmatmul.mubr.bf16.gmra.mxu0 %v3702
        %v3860 = vpop.f32.mrf.mxu0
        %v3861 = vadd.f32 0.0, %v3860
        %v3862 = vpop.f32.mrf.mxu0
        %v3863 = vpop.f32.mrf.mxu0
        %v3864 = vadd.f32 0.0, %v3863
        %v3865 = vpop.f32.mrf.mxu0
        %3866 = vmatprep.mubr.bf16.mxu0 %v3705
        %3867 = vmatmul.mubr.bf16.gmra.mxu0 %v3704
        %v3868 = vpop.f32.mrf.mxu0
        %v3869 = vadd.f32 0.0, %v3868
        %v3870 = vpop.f32.mrf.mxu0
        %v3871 = vpop.f32.mrf.mxu0
        %v3872 = vadd.f32 0.0, %v3871
        %v3873 = vpop.f32.mrf.mxu0
        %3874 = vmatprep.mubr.bf16.mxu0 %v3707
        %3875 = vmatmul.mubr.bf16.gmra.mxu0 %v3706
        %v3876 = vpop.f32.mrf.mxu0
        %v3877 = vadd.f32 0.0, %v3876
        %v3878 = vpop.f32.mrf.mxu0
        %v3879 = vpop.f32.mrf.mxu0
        %v3880 = vadd.f32 0.0, %v3879
        %v3881 = vpop.f32.mrf.mxu0
        %3882 = vmatprep.mubr.bf16.mxu0 %v3709
        %3883 = vmatmul.mubr.bf16.gmra.mxu0 %v3708
        %v3884 = vpop.f32.mrf.mxu0
        %v3885 = vadd.f32 0.0, %v3884
        %v3886 = vpop.f32.mrf.mxu0
        %v3887 = vpop.f32.mrf.mxu0
        %v3888 = vadd.f32 0.0, %v3887
        %v3889 = vpop.f32.mrf.mxu0
        %3890 = vmatprep.mubr.bf16.mxu0 %v3711
        %3891 = vmatmul.mubr.bf16.gmra.mxu0 %v3710
        %v3892 = vpop.f32.mrf.mxu0
        %v3893 = vadd.f32 0.0, %v3892
        %v3894 = vpop.f32.mrf.mxu0
        %v3895 = vpop.f32.mrf.mxu0
        %v3896 = vadd.f32 0.0, %v3895
        %v3897 = vpop.f32.mrf.mxu0
        %3898 = vmatprep.mubr.bf16.mxu0 %v3713
        %3899 = vmatmul.mubr.bf16.gmra.mxu0 %v3712
        %v3900 = vpop.f32.mrf.mxu0
        %v3901 = vadd.f32 0.0, %v3900
        %v3902 = vpop.f32.mrf.mxu0
        %v3903 = vpop.f32.mrf.mxu0
        %v3904 = vadd.f32 0.0, %v3903
        %v3905 = vpop.f32.mrf.mxu0
        %3906 = vdwg.mxu0
        %v3907 = vld [vmem:[#allocation7] sm:$0x1]
        %3909 = vset.pattern.permute.xlu0 0
        %3910 = vperm.xlu0 %3909, %v949
        %v3911 = vpop.permute.xlu0 %3910
        %3914 = vset.pattern.permute.xlu0 0
        %3915 = vperm.xlu0 %3914, %v952
        %v3916 = vpop.permute.xlu0 %3915
        %3919 = vset.pattern.permute.xlu0 0
        %3920 = vperm.xlu0 %3919, %v957
        %v3921 = vpop.permute.xlu0 %3920
        %3924 = vset.pattern.permute.xlu0 0
        %3925 = vperm.xlu0 %3924, %v960
        %v3926 = vpop.permute.xlu0 %3925
        %3929 = vset.pattern.permute.xlu0 0
        %3930 = vperm.xlu0 %3929, %v965
        %v3931 = vpop.permute.xlu0 %3930
        %3934 = vset.pattern.permute.xlu0 0
        %3935 = vperm.xlu0 %3934, %v968
        %v3936 = vpop.permute.xlu0 %3935
        %3939 = vset.pattern.permute.xlu0 0
        %3940 = vperm.xlu0 %3939, %v973
        %v3941 = vpop.permute.xlu0 %3940
        %3944 = vset.pattern.permute.xlu0 0
        %3945 = vperm.xlu0 %3944, %v976
        %v3946 = vpop.permute.xlu0 %3945
        %3949 = vset.pattern.permute.xlu0 0
        %3950 = vperm.xlu0 %3949, %v981
        %v3951 = vpop.permute.xlu0 %3950
        %3954 = vset.pattern.permute.xlu0 0
        %3955 = vperm.xlu0 %3954, %v984
        %v3956 = vpop.permute.xlu0 %3955
        %3959 = vset.pattern.permute.xlu0 0
        %3960 = vperm.xlu0 %3959, %v989
        %v3961 = vpop.permute.xlu0 %3960
        %3964 = vset.pattern.permute.xlu0 0
        %3965 = vperm.xlu0 %3964, %v992
        %v3966 = vpop.permute.xlu0 %3965
        %3969 = vset.pattern.permute.xlu0 0
        %3970 = vperm.xlu0 %3969, %v997
        %v3971 = vpop.permute.xlu0 %3970
        %3974 = vset.pattern.permute.xlu0 0
        %3975 = vperm.xlu0 %3974, %v1000
        %v3976 = vpop.permute.xlu0 %3975
        %3979 = vset.pattern.permute.xlu0 0
        %3980 = vperm.xlu0 %3979, %v1005
        %v3981 = vpop.permute.xlu0 %3980
        %3984 = vset.pattern.permute.xlu0 0
        %3985 = vperm.xlu0 %3984, %v1008
        %v3986 = vpop.permute.xlu0 %3985
        %3989 = vset.pattern.permute.xlu0 0
        %3990 = vperm.xlu0 %3989, %v1013
        %v3991 = vpop.permute.xlu0 %3990
        %3994 = vset.pattern.permute.xlu0 0
        %3995 = vperm.xlu0 %3994, %v1016
        %v3996 = vpop.permute.xlu0 %3995
        %3999 = vset.pattern.permute.xlu0 0
        %4000 = vperm.xlu0 %3999, %v1021
        %v4001 = vpop.permute.xlu0 %4000
        %4004 = vset.pattern.permute.xlu0 0
        %4005 = vperm.xlu0 %4004, %v1024
        %v4006 = vpop.permute.xlu0 %4005
        %4009 = vset.pattern.permute.xlu0 0
        %4010 = vperm.xlu0 %4009, %v1029
        %v4011 = vpop.permute.xlu0 %4010
        %4014 = vset.pattern.permute.xlu0 0
        %4015 = vperm.xlu0 %4014, %v1032
        %v4016 = vpop.permute.xlu0 %4015
        %4019 = vset.pattern.permute.xlu0 0
        %4020 = vperm.xlu0 %4019, %v1037
        %v4021 = vpop.permute.xlu0 %4020
        %4024 = vset.pattern.permute.xlu0 0
        %4025 = vperm.xlu0 %4024, %v1040
        %v4026 = vpop.permute.xlu0 %4025
        %4029 = vset.pattern.permute.xlu0 0
        %4030 = vperm.xlu0 %4029, %v1045
        %v4031 = vpop.permute.xlu0 %4030
        %4034 = vset.pattern.permute.xlu0 0
        %4035 = vperm.xlu0 %4034, %v1048
        %v4036 = vpop.permute.xlu0 %4035
        %4039 = vset.pattern.permute.xlu0 0
        %4040 = vperm.xlu0 %4039, %v1053
        %v4041 = vpop.permute.xlu0 %4040
        %4044 = vset.pattern.permute.xlu0 0
        %4045 = vperm.xlu0 %4044, %v1056
        %v4046 = vpop.permute.xlu0 %4045
        %4049 = vset.pattern.permute.xlu0 0
        %4050 = vperm.xlu0 %4049, %v1061
        %v4051 = vpop.permute.xlu0 %4050
        %4054 = vset.pattern.permute.xlu0 0
        %4055 = vperm.xlu0 %4054, %v1064
        %v4056 = vpop.permute.xlu0 %4055
        %4059 = vset.pattern.permute.xlu0 0
        %4060 = vperm.xlu0 %4059, %v1069
        %v4061 = vpop.permute.xlu0 %4060
        %4064 = vset.pattern.permute.xlu0 0
        %4065 = vperm.xlu0 %4064, %v1072
        %v4066 = vpop.permute.xlu0 %4065
        %v4069 = vlaneseq
        %v4070 = vshrl.u32 %v4069, 7
        %v4071 = vsub.s32 0, %v4070
        %v4072 = vrot.slane %v3907, %v4071
        %v4074 = vmul.f32 %v3911, %v4072
        %v4075 = vmul.f32 %v3916, %v4072
        %v4076 = vmul.f32 %v3921, %v4072
        %v4077 = vmul.f32 %v3926, %v4072
        %v4078 = vmul.f32 %v3931, %v4072
        %v4079 = vmul.f32 %v3936, %v4072
        %v4080 = vmul.f32 %v3941, %v4072
        %v4081 = vmul.f32 %v3946, %v4072
        %v4082 = vmul.f32 %v3951, %v4072
        %v4083 = vmul.f32 %v3956, %v4072
        %v4084 = vmul.f32 %v3961, %v4072
        %v4085 = vmul.f32 %v3966, %v4072
        %v4086 = vmul.f32 %v3971, %v4072
        %v4087 = vmul.f32 %v3976, %v4072
        %v4088 = vmul.f32 %v3981, %v4072
        %v4089 = vmul.f32 %v3986, %v4072
        %v4090 = vmul.f32 %v3991, %v4072
        %v4091 = vmul.f32 %v3996, %v4072
        %v4092 = vmul.f32 %v4001, %v4072
        %v4093 = vmul.f32 %v4006, %v4072
        %v4094 = vmul.f32 %v4011, %v4072
        %v4095 = vmul.f32 %v4016, %v4072
        %v4096 = vmul.f32 %v4021, %v4072
        %v4097 = vmul.f32 %v4026, %v4072
        %v4098 = vmul.f32 %v4031, %v4072
        %v4099 = vmul.f32 %v4036, %v4072
        %v4100 = vmul.f32 %v4041, %v4072
        %v4101 = vmul.f32 %v4046, %v4072
        %v4102 = vmul.f32 %v4051, %v4072
        %v4103 = vmul.f32 %v4056, %v4072
        %v4104 = vmul.f32 %v4061, %v4072
        %v4105 = vmul.f32 %v4066, %v4072
        %s4106 = scalar_lea.vmem [#allocation7], 1
        %v4107 = vld [vmem:[%s4106] sm:$0x1]
        %4109 = vset.pattern.permute.xlu0 0
        %4110 = vperm.xlu0 %4109, %v1303
        %v4111 = vpop.permute.xlu0 %4110
        %4114 = vset.pattern.permute.xlu0 0
        %4115 = vperm.xlu0 %4114, %v1306
        %v4116 = vpop.permute.xlu0 %4115
        %4119 = vset.pattern.permute.xlu0 0
        %4120 = vperm.xlu0 %4119, %v1311
        %v4121 = vpop.permute.xlu0 %4120
        %4124 = vset.pattern.permute.xlu0 0
        %4125 = vperm.xlu0 %4124, %v1314
        %v4126 = vpop.permute.xlu0 %4125
        %4129 = vset.pattern.permute.xlu0 0
        %4130 = vperm.xlu0 %4129, %v1319
        %v4131 = vpop.permute.xlu0 %4130
        %4134 = vset.pattern.permute.xlu0 0
        %4135 = vperm.xlu0 %4134, %v1322
        %v4136 = vpop.permute.xlu0 %4135
        %4139 = vset.pattern.permute.xlu0 0
        %4140 = vperm.xlu0 %4139, %v1327
        %v4141 = vpop.permute.xlu0 %4140
        %4144 = vset.pattern.permute.xlu0 0
        %4145 = vperm.xlu0 %4144, %v1330
        %v4146 = vpop.permute.xlu0 %4145
        %4149 = vset.pattern.permute.xlu0 0
        %4150 = vperm.xlu0 %4149, %v1335
        %v4151 = vpop.permute.xlu0 %4150
        %4154 = vset.pattern.permute.xlu0 0
        %4155 = vperm.xlu0 %4154, %v1338
        %v4156 = vpop.permute.xlu0 %4155
        %4159 = vset.pattern.permute.xlu0 0
        %4160 = vperm.xlu0 %4159, %v1343
        %v4161 = vpop.permute.xlu0 %4160
        %4164 = vset.pattern.permute.xlu0 0
        %4165 = vperm.xlu0 %4164, %v1346
        %v4166 = vpop.permute.xlu0 %4165
        %4169 = vset.pattern.permute.xlu0 0
        %4170 = vperm.xlu0 %4169, %v1351
        %v4171 = vpop.permute.xlu0 %4170
        %4174 = vset.pattern.permute.xlu0 0
        %4175 = vperm.xlu0 %4174, %v1354
        %v4176 = vpop.permute.xlu0 %4175
        %4179 = vset.pattern.permute.xlu0 0
        %4180 = vperm.xlu0 %4179, %v1359
        %v4181 = vpop.permute.xlu0 %4180
        %4184 = vset.pattern.permute.xlu0 0
        %4185 = vperm.xlu0 %4184, %v1362
        %v4186 = vpop.permute.xlu0 %4185
        %4189 = vset.pattern.permute.xlu0 0
        %4190 = vperm.xlu0 %4189, %v1367
        %v4191 = vpop.permute.xlu0 %4190
        %4194 = vset.pattern.permute.xlu0 0
        %4195 = vperm.xlu0 %4194, %v1370
        %v4196 = vpop.permute.xlu0 %4195
        %4199 = vset.pattern.permute.xlu0 0
        %4200 = vperm.xlu0 %4199, %v1375
        %v4201 = vpop.permute.xlu0 %4200
        %4204 = vset.pattern.permute.xlu0 0
        %4205 = vperm.xlu0 %4204, %v1378
        %v4206 = vpop.permute.xlu0 %4205
        %4209 = vset.pattern.permute.xlu0 0
        %4210 = vperm.xlu0 %4209, %v1383
        %v4211 = vpop.permute.xlu0 %4210
        %4214 = vset.pattern.permute.xlu0 0
        %4215 = vperm.xlu0 %4214, %v1386
        %v4216 = vpop.permute.xlu0 %4215
        %4219 = vset.pattern.permute.xlu0 0
        %4220 = vperm.xlu0 %4219, %v1391
        %v4221 = vpop.permute.xlu0 %4220
        %4224 = vset.pattern.permute.xlu0 0
        %4225 = vperm.xlu0 %4224, %v1394
        %v4226 = vpop.permute.xlu0 %4225
        %4229 = vset.pattern.permute.xlu0 0
        %4230 = vperm.xlu0 %4229, %v1399
        %v4231 = vpop.permute.xlu0 %4230
        %4234 = vset.pattern.permute.xlu0 0
        %4235 = vperm.xlu0 %4234, %v1402
        %v4236 = vpop.permute.xlu0 %4235
        %4239 = vset.pattern.permute.xlu0 0
        %4240 = vperm.xlu0 %4239, %v1407
        %v4241 = vpop.permute.xlu0 %4240
        %4244 = vset.pattern.permute.xlu0 0
        %4245 = vperm.xlu0 %4244, %v1410
        %v4246 = vpop.permute.xlu0 %4245
        %4249 = vset.pattern.permute.xlu0 0
        %4250 = vperm.xlu0 %4249, %v1415
        %v4251 = vpop.permute.xlu0 %4250
        %4254 = vset.pattern.permute.xlu0 0
        %4255 = vperm.xlu0 %4254, %v1418
        %v4256 = vpop.permute.xlu0 %4255
        %4259 = vset.pattern.permute.xlu0 0
        %4260 = vperm.xlu0 %4259, %v1423
        %v4261 = vpop.permute.xlu0 %4260
        %4264 = vset.pattern.permute.xlu0 0
        %4265 = vperm.xlu0 %4264, %v1426
        %v4266 = vpop.permute.xlu0 %4265
        %v4269 = vlaneseq
        %v4270 = vshrl.u32 %v4269, 7
        %v4271 = vsub.s32 0, %v4270
        %v4272 = vrot.slane %v4107, %v4271
        %v4274 = vmul.f32 %v4111, %v4272
        %v4275 = vmul.f32 %v4116, %v4272
        %v4276 = vmul.f32 %v4121, %v4272
        %v4277 = vmul.f32 %v4126, %v4272
        %v4278 = vmul.f32 %v4131, %v4272
        %v4279 = vmul.f32 %v4136, %v4272
        %v4280 = vmul.f32 %v4141, %v4272
        %v4281 = vmul.f32 %v4146, %v4272
        %v4282 = vmul.f32 %v4151, %v4272
        %v4283 = vmul.f32 %v4156, %v4272
        %v4284 = vmul.f32 %v4161, %v4272
        %v4285 = vmul.f32 %v4166, %v4272
        %v4286 = vmul.f32 %v4171, %v4272
        %v4287 = vmul.f32 %v4176, %v4272
        %v4288 = vmul.f32 %v4181, %v4272
        %v4289 = vmul.f32 %v4186, %v4272
        %v4290 = vmul.f32 %v4191, %v4272
        %v4291 = vmul.f32 %v4196, %v4272
        %v4292 = vmul.f32 %v4201, %v4272
        %v4293 = vmul.f32 %v4206, %v4272
        %v4294 = vmul.f32 %v4211, %v4272
        %v4295 = vmul.f32 %v4216, %v4272
        %v4296 = vmul.f32 %v4221, %v4272
        %v4297 = vmul.f32 %v4226, %v4272
        %v4298 = vmul.f32 %v4231, %v4272
        %v4299 = vmul.f32 %v4236, %v4272
        %v4300 = vmul.f32 %v4241, %v4272
        %v4301 = vmul.f32 %v4246, %v4272
        %v4302 = vmul.f32 %v4251, %v4272
        %v4303 = vmul.f32 %v4256, %v4272
        %v4304 = vmul.f32 %v4261, %v4272
        %v4305 = vmul.f32 %v4266, %v4272
        %v4306 = vadd.f32 %v4074, %v4274
        %v4307 = vadd.f32 %v4075, %v4275
        %v4308 = vadd.f32 %v4076, %v4276
        %v4309 = vadd.f32 %v4077, %v4277
        %v4310 = vadd.f32 %v4078, %v4278
        %v4311 = vadd.f32 %v4079, %v4279
        %v4312 = vadd.f32 %v4080, %v4280
        %v4313 = vadd.f32 %v4081, %v4281
        %v4314 = vadd.f32 %v4082, %v4282
        %v4315 = vadd.f32 %v4083, %v4283
        %v4316 = vadd.f32 %v4084, %v4284
        %v4317 = vadd.f32 %v4085, %v4285
        %v4318 = vadd.f32 %v4086, %v4286
        %v4319 = vadd.f32 %v4087, %v4287
        %v4320 = vadd.f32 %v4088, %v4288
        %v4321 = vadd.f32 %v4089, %v4289
        %v4322 = vadd.f32 %v4090, %v4290
        %v4323 = vadd.f32 %v4091, %v4291
        %v4324 = vadd.f32 %v4092, %v4292
        %v4325 = vadd.f32 %v4093, %v4293
        %v4326 = vadd.f32 %v4094, %v4294
        %v4327 = vadd.f32 %v4095, %v4295
        %v4328 = vadd.f32 %v4096, %v4296
        %v4329 = vadd.f32 %v4097, %v4297
        %v4330 = vadd.f32 %v4098, %v4298
        %v4331 = vadd.f32 %v4099, %v4299
        %v4332 = vadd.f32 %v4100, %v4300
        %v4333 = vadd.f32 %v4101, %v4301
        %v4334 = vadd.f32 %v4102, %v4302
        %v4335 = vadd.f32 %v4103, %v4303
        %v4336 = vadd.f32 %v4104, %v4304
        %v4337 = vadd.f32 %v4105, %v4305
        %s4338 = scalar_lea.vmem [#allocation7], 2
        %v4339 = vld [vmem:[%s4338] sm:$0x1]
        %4341 = vset.pattern.permute.xlu0 0
        %4342 = vperm.xlu0 %4341, %v1657
        %v4343 = vpop.permute.xlu0 %4342
        %4346 = vset.pattern.permute.xlu0 0
        %4347 = vperm.xlu0 %4346, %v1660
        %v4348 = vpop.permute.xlu0 %4347
        %4351 = vset.pattern.permute.xlu0 0
        %4352 = vperm.xlu0 %4351, %v1665
        %v4353 = vpop.permute.xlu0 %4352
        %4356 = vset.pattern.permute.xlu0 0
        %4357 = vperm.xlu0 %4356, %v1668
        %v4358 = vpop.permute.xlu0 %4357
        %4361 = vset.pattern.permute.xlu0 0
        %4362 = vperm.xlu0 %4361, %v1673
        %v4363 = vpop.permute.xlu0 %4362
        %4366 = vset.pattern.permute.xlu0 0
        %4367 = vperm.xlu0 %4366, %v1676
        %v4368 = vpop.permute.xlu0 %4367
        %4371 = vset.pattern.permute.xlu0 0
        %4372 = vperm.xlu0 %4371, %v1681
        %v4373 = vpop.permute.xlu0 %4372
        %4376 = vset.pattern.permute.xlu0 0
        %4377 = vperm.xlu0 %4376, %v1684
        %v4378 = vpop.permute.xlu0 %4377
        %4381 = vset.pattern.permute.xlu0 0
        %4382 = vperm.xlu0 %4381, %v1689
        %v4383 = vpop.permute.xlu0 %4382
        %4386 = vset.pattern.permute.xlu0 0
        %4387 = vperm.xlu0 %4386, %v1692
        %v4388 = vpop.permute.xlu0 %4387
        %4391 = vset.pattern.permute.xlu0 0
        %4392 = vperm.xlu0 %4391, %v1697
        %v4393 = vpop.permute.xlu0 %4392
        %4396 = vset.pattern.permute.xlu0 0
        %4397 = vperm.xlu0 %4396, %v1700
        %v4398 = vpop.permute.xlu0 %4397
        %4401 = vset.pattern.permute.xlu0 0
        %4402 = vperm.xlu0 %4401, %v1705
        %v4403 = vpop.permute.xlu0 %4402
        %4406 = vset.pattern.permute.xlu0 0
        %4407 = vperm.xlu0 %4406, %v1708
        %v4408 = vpop.permute.xlu0 %4407
        %4411 = vset.pattern.permute.xlu0 0
        %4412 = vperm.xlu0 %4411, %v1713
        %v4413 = vpop.permute.xlu0 %4412
        %4416 = vset.pattern.permute.xlu0 0
        %4417 = vperm.xlu0 %4416, %v1716
        %v4418 = vpop.permute.xlu0 %4417
        %4421 = vset.pattern.permute.xlu0 0
        %4422 = vperm.xlu0 %4421, %v1721
        %v4423 = vpop.permute.xlu0 %4422
        %4426 = vset.pattern.permute.xlu0 0
        %4427 = vperm.xlu0 %4426, %v1724
        %v4428 = vpop.permute.xlu0 %4427
        %4431 = vset.pattern.permute.xlu0 0
        %4432 = vperm.xlu0 %4431, %v1729
        %v4433 = vpop.permute.xlu0 %4432
        %4436 = vset.pattern.permute.xlu0 0
        %4437 = vperm.xlu0 %4436, %v1732
        %v4438 = vpop.permute.xlu0 %4437
        %4441 = vset.pattern.permute.xlu0 0
        %4442 = vperm.xlu0 %4441, %v1737
        %v4443 = vpop.permute.xlu0 %4442
        %4446 = vset.pattern.permute.xlu0 0
        %4447 = vperm.xlu0 %4446, %v1740
        %v4448 = vpop.permute.xlu0 %4447
        %4451 = vset.pattern.permute.xlu0 0
        %4452 = vperm.xlu0 %4451, %v1745
        %v4453 = vpop.permute.xlu0 %4452
        %4456 = vset.pattern.permute.xlu0 0
        %4457 = vperm.xlu0 %4456, %v1748
        %v4458 = vpop.permute.xlu0 %4457
        %4461 = vset.pattern.permute.xlu0 0
        %4462 = vperm.xlu0 %4461, %v1753
        %v4463 = vpop.permute.xlu0 %4462
        %4466 = vset.pattern.permute.xlu0 0
        %4467 = vperm.xlu0 %4466, %v1756
        %v4468 = vpop.permute.xlu0 %4467
        %4471 = vset.pattern.permute.xlu0 0
        %4472 = vperm.xlu0 %4471, %v1761
        %v4473 = vpop.permute.xlu0 %4472
        %4476 = vset.pattern.permute.xlu0 0
        %4477 = vperm.xlu0 %4476, %v1764
        %v4478 = vpop.permute.xlu0 %4477
        %4481 = vset.pattern.permute.xlu0 0
        %4482 = vperm.xlu0 %4481, %v1769
        %v4483 = vpop.permute.xlu0 %4482
        %4486 = vset.pattern.permute.xlu0 0
        %4487 = vperm.xlu0 %4486, %v1772
        %v4488 = vpop.permute.xlu0 %4487
        %4491 = vset.pattern.permute.xlu0 0
        %4492 = vperm.xlu0 %4491, %v1777
        %v4493 = vpop.permute.xlu0 %4492
        %4496 = vset.pattern.permute.xlu0 0
        %4497 = vperm.xlu0 %4496, %v1780
        %v4498 = vpop.permute.xlu0 %4497
        %v4501 = vlaneseq
        %v4502 = vshrl.u32 %v4501, 7
        %v4503 = vsub.s32 0, %v4502
        %v4504 = vrot.slane %v4339, %v4503
        %v4506 = vmul.f32 %v4343, %v4504
        %v4507 = vmul.f32 %v4348, %v4504
        %v4508 = vmul.f32 %v4353, %v4504
        %v4509 = vmul.f32 %v4358, %v4504
        %v4510 = vmul.f32 %v4363, %v4504
        %v4511 = vmul.f32 %v4368, %v4504
        %v4512 = vmul.f32 %v4373, %v4504
        %v4513 = vmul.f32 %v4378, %v4504
        %v4514 = vmul.f32 %v4383, %v4504
        %v4515 = vmul.f32 %v4388, %v4504
        %v4516 = vmul.f32 %v4393, %v4504
        %v4517 = vmul.f32 %v4398, %v4504
        %v4518 = vmul.f32 %v4403, %v4504
        %v4519 = vmul.f32 %v4408, %v4504
        %v4520 = vmul.f32 %v4413, %v4504
        %v4521 = vmul.f32 %v4418, %v4504
        %v4522 = vmul.f32 %v4423, %v4504
        %v4523 = vmul.f32 %v4428, %v4504
        %v4524 = vmul.f32 %v4433, %v4504
        %v4525 = vmul.f32 %v4438, %v4504
        %v4526 = vmul.f32 %v4443, %v4504
        %v4527 = vmul.f32 %v4448, %v4504
        %v4528 = vmul.f32 %v4453, %v4504
        %v4529 = vmul.f32 %v4458, %v4504
        %v4530 = vmul.f32 %v4463, %v4504
        %v4531 = vmul.f32 %v4468, %v4504
        %v4532 = vmul.f32 %v4473, %v4504
        %v4533 = vmul.f32 %v4478, %v4504
        %v4534 = vmul.f32 %v4483, %v4504
        %v4535 = vmul.f32 %v4488, %v4504
        %v4536 = vmul.f32 %v4493, %v4504
        %v4537 = vmul.f32 %v4498, %v4504
        %v4538 = vadd.f32 %v4306, %v4506
        %v4539 = vadd.f32 %v4307, %v4507
        %v4540 = vadd.f32 %v4308, %v4508
        %v4541 = vadd.f32 %v4309, %v4509
        %v4542 = vadd.f32 %v4310, %v4510
        %v4543 = vadd.f32 %v4311, %v4511
        %v4544 = vadd.f32 %v4312, %v4512
        %v4545 = vadd.f32 %v4313, %v4513
        %v4546 = vadd.f32 %v4314, %v4514
        %v4547 = vadd.f32 %v4315, %v4515
        %v4548 = vadd.f32 %v4316, %v4516
        %v4549 = vadd.f32 %v4317, %v4517
        %v4550 = vadd.f32 %v4318, %v4518
        %v4551 = vadd.f32 %v4319, %v4519
        %v4552 = vadd.f32 %v4320, %v4520
        %v4553 = vadd.f32 %v4321, %v4521
        %v4554 = vadd.f32 %v4322, %v4522
        %v4555 = vadd.f32 %v4323, %v4523
        %v4556 = vadd.f32 %v4324, %v4524
        %v4557 = vadd.f32 %v4325, %v4525
        %v4558 = vadd.f32 %v4326, %v4526
        %v4559 = vadd.f32 %v4327, %v4527
        %v4560 = vadd.f32 %v4328, %v4528
        %v4561 = vadd.f32 %v4329, %v4529
        %v4562 = vadd.f32 %v4330, %v4530
        %v4563 = vadd.f32 %v4331, %v4531
        %v4564 = vadd.f32 %v4332, %v4532
        %v4565 = vadd.f32 %v4333, %v4533
        %v4566 = vadd.f32 %v4334, %v4534
        %v4567 = vadd.f32 %v4335, %v4535
        %v4568 = vadd.f32 %v4336, %v4536
        %v4569 = vadd.f32 %v4337, %v4537
        %s4570 = scalar_lea.vmem [#allocation7], 3
        %v4571 = vld [vmem:[%s4570] sm:$0x1]
        %4573 = vset.pattern.permute.xlu0 0
        %4574 = vperm.xlu0 %4573, %v2011
        %v4575 = vpop.permute.xlu0 %4574
        %4578 = vset.pattern.permute.xlu0 0
        %4579 = vperm.xlu0 %4578, %v2014
        %v4580 = vpop.permute.xlu0 %4579
        %4583 = vset.pattern.permute.xlu0 0
        %4584 = vperm.xlu0 %4583, %v2019
        %v4585 = vpop.permute.xlu0 %4584
        %4588 = vset.pattern.permute.xlu0 0
        %4589 = vperm.xlu0 %4588, %v2022
        %v4590 = vpop.permute.xlu0 %4589
        %4593 = vset.pattern.permute.xlu0 0
        %4594 = vperm.xlu0 %4593, %v2027
        %v4595 = vpop.permute.xlu0 %4594
        %4598 = vset.pattern.permute.xlu0 0
        %4599 = vperm.xlu0 %4598, %v2030
        %v4600 = vpop.permute.xlu0 %4599
        %4603 = vset.pattern.permute.xlu0 0
        %4604 = vperm.xlu0 %4603, %v2035
        %v4605 = vpop.permute.xlu0 %4604
        %4608 = vset.pattern.permute.xlu0 0
        %4609 = vperm.xlu0 %4608, %v2038
        %v4610 = vpop.permute.xlu0 %4609
        %4613 = vset.pattern.permute.xlu0 0
        %4614 = vperm.xlu0 %4613, %v2043
        %v4615 = vpop.permute.xlu0 %4614
        %4618 = vset.pattern.permute.xlu0 0
        %4619 = vperm.xlu0 %4618, %v2046
        %v4620 = vpop.permute.xlu0 %4619
        %4623 = vset.pattern.permute.xlu0 0
        %4624 = vperm.xlu0 %4623, %v2051
        %v4625 = vpop.permute.xlu0 %4624
        %4628 = vset.pattern.permute.xlu0 0
        %4629 = vperm.xlu0 %4628, %v2054
        %v4630 = vpop.permute.xlu0 %4629
        %4633 = vset.pattern.permute.xlu0 0
        %4634 = vperm.xlu0 %4633, %v2059
        %v4635 = vpop.permute.xlu0 %4634
        %4638 = vset.pattern.permute.xlu0 0
        %4639 = vperm.xlu0 %4638, %v2062
        %v4640 = vpop.permute.xlu0 %4639
        %4643 = vset.pattern.permute.xlu0 0
        %4644 = vperm.xlu0 %4643, %v2067
        %v4645 = vpop.permute.xlu0 %4644
        %4648 = vset.pattern.permute.xlu0 0
        %4649 = vperm.xlu0 %4648, %v2070
        %v4650 = vpop.permute.xlu0 %4649
        %4653 = vset.pattern.permute.xlu0 0
        %4654 = vperm.xlu0 %4653, %v2075
        %v4655 = vpop.permute.xlu0 %4654
        %4658 = vset.pattern.permute.xlu0 0
        %4659 = vperm.xlu0 %4658, %v2078
        %v4660 = vpop.permute.xlu0 %4659
        %4663 = vset.pattern.permute.xlu0 0
        %4664 = vperm.xlu0 %4663, %v2083
        %v4665 = vpop.permute.xlu0 %4664
        %4668 = vset.pattern.permute.xlu0 0
        %4669 = vperm.xlu0 %4668, %v2086
        %v4670 = vpop.permute.xlu0 %4669
        %4673 = vset.pattern.permute.xlu0 0
        %4674 = vperm.xlu0 %4673, %v2091
        %v4675 = vpop.permute.xlu0 %4674
        %4678 = vset.pattern.permute.xlu0 0
        %4679 = vperm.xlu0 %4678, %v2094
        %v4680 = vpop.permute.xlu0 %4679
        %4683 = vset.pattern.permute.xlu0 0
        %4684 = vperm.xlu0 %4683, %v2099
        %v4685 = vpop.permute.xlu0 %4684
        %4688 = vset.pattern.permute.xlu0 0
        %4689 = vperm.xlu0 %4688, %v2102
        %v4690 = vpop.permute.xlu0 %4689
        %4693 = vset.pattern.permute.xlu0 0
        %4694 = vperm.xlu0 %4693, %v2107
        %v4695 = vpop.permute.xlu0 %4694
        %4698 = vset.pattern.permute.xlu0 0
        %4699 = vperm.xlu0 %4698, %v2110
        %v4700 = vpop.permute.xlu0 %4699
        %4703 = vset.pattern.permute.xlu0 0
        %4704 = vperm.xlu0 %4703, %v2115
        %v4705 = vpop.permute.xlu0 %4704
        %4708 = vset.pattern.permute.xlu0 0
        %4709 = vperm.xlu0 %4708, %v2118
        %v4710 = vpop.permute.xlu0 %4709
        %4713 = vset.pattern.permute.xlu0 0
        %4714 = vperm.xlu0 %4713, %v2123
        %v4715 = vpop.permute.xlu0 %4714
        %4718 = vset.pattern.permute.xlu0 0
        %4719 = vperm.xlu0 %4718, %v2126
        %v4720 = vpop.permute.xlu0 %4719
        %4723 = vset.pattern.permute.xlu0 0
        %4724 = vperm.xlu0 %4723, %v2131
        %v4725 = vpop.permute.xlu0 %4724
        %4728 = vset.pattern.permute.xlu0 0
        %4729 = vperm.xlu0 %4728, %v2134
        %v4730 = vpop.permute.xlu0 %4729
        %v4733 = vlaneseq
        %v4734 = vshrl.u32 %v4733, 7
        %v4735 = vsub.s32 0, %v4734
        %v4736 = vrot.slane %v4571, %v4735
        %v4738 = vmul.f32 %v4575, %v4736
        %v4739 = vmul.f32 %v4580, %v4736
        %v4740 = vmul.f32 %v4585, %v4736
        %v4741 = vmul.f32 %v4590, %v4736
        %v4742 = vmul.f32 %v4595, %v4736
        %v4743 = vmul.f32 %v4600, %v4736
        %v4744 = vmul.f32 %v4605, %v4736
        %v4745 = vmul.f32 %v4610, %v4736
        %v4746 = vmul.f32 %v4615, %v4736
        %v4747 = vmul.f32 %v4620, %v4736
        %v4748 = vmul.f32 %v4625, %v4736
        %v4749 = vmul.f32 %v4630, %v4736
        %v4750 = vmul.f32 %v4635, %v4736
        %v4751 = vmul.f32 %v4640, %v4736
        %v4752 = vmul.f32 %v4645, %v4736
        %v4753 = vmul.f32 %v4650, %v4736
        %v4754 = vmul.f32 %v4655, %v4736
        %v4755 = vmul.f32 %v4660, %v4736
        %v4756 = vmul.f32 %v4665, %v4736
        %v4757 = vmul.f32 %v4670, %v4736
        %v4758 = vmul.f32 %v4675, %v4736
        %v4759 = vmul.f32 %v4680, %v4736
        %v4760 = vmul.f32 %v4685, %v4736
        %v4761 = vmul.f32 %v4690, %v4736
        %v4762 = vmul.f32 %v4695, %v4736
        %v4763 = vmul.f32 %v4700, %v4736
        %v4764 = vmul.f32 %v4705, %v4736
        %v4765 = vmul.f32 %v4710, %v4736
        %v4766 = vmul.f32 %v4715, %v4736
        %v4767 = vmul.f32 %v4720, %v4736
        %v4768 = vmul.f32 %v4725, %v4736
        %v4769 = vmul.f32 %v4730, %v4736
        %v4770 = vadd.f32 %v4538, %v4738
        %v4771 = vadd.f32 %v4539, %v4739
        %v4772 = vadd.f32 %v4540, %v4740
        %v4773 = vadd.f32 %v4541, %v4741
        %v4774 = vadd.f32 %v4542, %v4742
        %v4775 = vadd.f32 %v4543, %v4743
        %v4776 = vadd.f32 %v4544, %v4744
        %v4777 = vadd.f32 %v4545, %v4745
        %v4778 = vadd.f32 %v4546, %v4746
        %v4779 = vadd.f32 %v4547, %v4747
        %v4780 = vadd.f32 %v4548, %v4748
        %v4781 = vadd.f32 %v4549, %v4749
        %v4782 = vadd.f32 %v4550, %v4750
        %v4783 = vadd.f32 %v4551, %v4751
        %v4784 = vadd.f32 %v4552, %v4752
        %v4785 = vadd.f32 %v4553, %v4753
        %v4786 = vadd.f32 %v4554, %v4754
        %v4787 = vadd.f32 %v4555, %v4755
        %v4788 = vadd.f32 %v4556, %v4756
        %v4789 = vadd.f32 %v4557, %v4757
        %v4790 = vadd.f32 %v4558, %v4758
        %v4791 = vadd.f32 %v4559, %v4759
        %v4792 = vadd.f32 %v4560, %v4760
        %v4793 = vadd.f32 %v4561, %v4761
        %v4794 = vadd.f32 %v4562, %v4762
        %v4795 = vadd.f32 %v4563, %v4763
        %v4796 = vadd.f32 %v4564, %v4764
        %v4797 = vadd.f32 %v4565, %v4765
        %v4798 = vadd.f32 %v4566, %v4766
        %v4799 = vadd.f32 %v4567, %v4767
        %v4800 = vadd.f32 %v4568, %v4768
        %v4801 = vadd.f32 %v4569, %v4769
        %s4802 = scalar_lea.vmem [#allocation7], 4
        %v4803 = vld [vmem:[%s4802] sm:$0x1]
        %4805 = vset.pattern.permute.xlu0 0
        %4806 = vperm.xlu0 %4805, %v2365
        %v4807 = vpop.permute.xlu0 %4806
        %4810 = vset.pattern.permute.xlu0 0
        %4811 = vperm.xlu0 %4810, %v2368
        %v4812 = vpop.permute.xlu0 %4811
        %4815 = vset.pattern.permute.xlu0 0
        %4816 = vperm.xlu0 %4815, %v2373
        %v4817 = vpop.permute.xlu0 %4816
        %4820 = vset.pattern.permute.xlu0 0
        %4821 = vperm.xlu0 %4820, %v2376
        %v4822 = vpop.permute.xlu0 %4821
        %4825 = vset.pattern.permute.xlu0 0
        %4826 = vperm.xlu0 %4825, %v2381
        %v4827 = vpop.permute.xlu0 %4826
        %4830 = vset.pattern.permute.xlu0 0
        %4831 = vperm.xlu0 %4830, %v2384
        %v4832 = vpop.permute.xlu0 %4831
        %4835 = vset.pattern.permute.xlu0 0
        %4836 = vperm.xlu0 %4835, %v2389
        %v4837 = vpop.permute.xlu0 %4836
        %4840 = vset.pattern.permute.xlu0 0
        %4841 = vperm.xlu0 %4840, %v2392
        %v4842 = vpop.permute.xlu0 %4841
        %4845 = vset.pattern.permute.xlu0 0
        %4846 = vperm.xlu0 %4845, %v2397
        %v4847 = vpop.permute.xlu0 %4846
        %4850 = vset.pattern.permute.xlu0 0
        %4851 = vperm.xlu0 %4850, %v2400
        %v4852 = vpop.permute.xlu0 %4851
        %4855 = vset.pattern.permute.xlu0 0
        %4856 = vperm.xlu0 %4855, %v2405
        %v4857 = vpop.permute.xlu0 %4856
        %4860 = vset.pattern.permute.xlu0 0
        %4861 = vperm.xlu0 %4860, %v2408
        %v4862 = vpop.permute.xlu0 %4861
        %4865 = vset.pattern.permute.xlu0 0
        %4866 = vperm.xlu0 %4865, %v2413
        %v4867 = vpop.permute.xlu0 %4866
        %4870 = vset.pattern.permute.xlu0 0
        %4871 = vperm.xlu0 %4870, %v2416
        %v4872 = vpop.permute.xlu0 %4871
        %4875 = vset.pattern.permute.xlu0 0
        %4876 = vperm.xlu0 %4875, %v2421
        %v4877 = vpop.permute.xlu0 %4876
        %4880 = vset.pattern.permute.xlu0 0
        %4881 = vperm.xlu0 %4880, %v2424
        %v4882 = vpop.permute.xlu0 %4881
        %4885 = vset.pattern.permute.xlu0 0
        %4886 = vperm.xlu0 %4885, %v2429
        %v4887 = vpop.permute.xlu0 %4886
        %4890 = vset.pattern.permute.xlu0 0
        %4891 = vperm.xlu0 %4890, %v2432
        %v4892 = vpop.permute.xlu0 %4891
        %4895 = vset.pattern.permute.xlu0 0
        %4896 = vperm.xlu0 %4895, %v2437
        %v4897 = vpop.permute.xlu0 %4896
        %4900 = vset.pattern.permute.xlu0 0
        %4901 = vperm.xlu0 %4900, %v2440
        %v4902 = vpop.permute.xlu0 %4901
        %4905 = vset.pattern.permute.xlu0 0
        %4906 = vperm.xlu0 %4905, %v2445
        %v4907 = vpop.permute.xlu0 %4906
        %4910 = vset.pattern.permute.xlu0 0
        %4911 = vperm.xlu0 %4910, %v2448
        %v4912 = vpop.permute.xlu0 %4911
        %4915 = vset.pattern.permute.xlu0 0
        %4916 = vperm.xlu0 %4915, %v2453
        %v4917 = vpop.permute.xlu0 %4916
        %4920 = vset.pattern.permute.xlu0 0
        %4921 = vperm.xlu0 %4920, %v2456
        %v4922 = vpop.permute.xlu0 %4921
        %4925 = vset.pattern.permute.xlu0 0
        %4926 = vperm.xlu0 %4925, %v2461
        %v4927 = vpop.permute.xlu0 %4926
        %4930 = vset.pattern.permute.xlu0 0
        %4931 = vperm.xlu0 %4930, %v2464
        %v4932 = vpop.permute.xlu0 %4931
        %4935 = vset.pattern.permute.xlu0 0
        %4936 = vperm.xlu0 %4935, %v2469
        %v4937 = vpop.permute.xlu0 %4936
        %4940 = vset.pattern.permute.xlu0 0
        %4941 = vperm.xlu0 %4940, %v2472
        %v4942 = vpop.permute.xlu0 %4941
        %4945 = vset.pattern.permute.xlu0 0
        %4946 = vperm.xlu0 %4945, %v2477
        %v4947 = vpop.permute.xlu0 %4946
        %4950 = vset.pattern.permute.xlu0 0
        %4951 = vperm.xlu0 %4950, %v2480
        %v4952 = vpop.permute.xlu0 %4951
        %4955 = vset.pattern.permute.xlu0 0
        %4956 = vperm.xlu0 %4955, %v2485
        %v4957 = vpop.permute.xlu0 %4956
        %4960 = vset.pattern.permute.xlu0 0
        %4961 = vperm.xlu0 %4960, %v2488
        %v4962 = vpop.permute.xlu0 %4961
        %v4965 = vlaneseq
        %v4966 = vshrl.u32 %v4965, 7
        %v4967 = vsub.s32 0, %v4966
        %v4968 = vrot.slane %v4803, %v4967
        %v4970 = vmul.f32 %v4807, %v4968
        %v4971 = vmul.f32 %v4812, %v4968
        %v4972 = vmul.f32 %v4817, %v4968
        %v4973 = vmul.f32 %v4822, %v4968
        %v4974 = vmul.f32 %v4827, %v4968
        %v4975 = vmul.f32 %v4832, %v4968
        %v4976 = vmul.f32 %v4837, %v4968
        %v4977 = vmul.f32 %v4842, %v4968
        %v4978 = vmul.f32 %v4847, %v4968
        %v4979 = vmul.f32 %v4852, %v4968
        %v4980 = vmul.f32 %v4857, %v4968
        %v4981 = vmul.f32 %v4862, %v4968
        %v4982 = vmul.f32 %v4867, %v4968
        %v4983 = vmul.f32 %v4872, %v4968
        %v4984 = vmul.f32 %v4877, %v4968
        %v4985 = vmul.f32 %v4882, %v4968
        %v4986 = vmul.f32 %v4887, %v4968
        %v4987 = vmul.f32 %v4892, %v4968
        %v4988 = vmul.f32 %v4897, %v4968
        %v4989 = vmul.f32 %v4902, %v4968
        %v4990 = vmul.f32 %v4907, %v4968
        %v4991 = vmul.f32 %v4912, %v4968
        %v4992 = vmul.f32 %v4917, %v4968
        %v4993 = vmul.f32 %v4922, %v4968
        %v4994 = vmul.f32 %v4927, %v4968
        %v4995 = vmul.f32 %v4932, %v4968
        %v4996 = vmul.f32 %v4937, %v4968
        %v4997 = vmul.f32 %v4942, %v4968
        %v4998 = vmul.f32 %v4947, %v4968
        %v4999 = vmul.f32 %v4952, %v4968
        %v5000 = vmul.f32 %v4957, %v4968
        %v5001 = vmul.f32 %v4962, %v4968
        %v5002 = vadd.f32 %v4770, %v4970
        %v5003 = vadd.f32 %v4771, %v4971
        %v5004 = vadd.f32 %v4772, %v4972
        %v5005 = vadd.f32 %v4773, %v4973
        %v5006 = vadd.f32 %v4774, %v4974
        %v5007 = vadd.f32 %v4775, %v4975
        %v5008 = vadd.f32 %v4776, %v4976
        %v5009 = vadd.f32 %v4777, %v4977
        %v5010 = vadd.f32 %v4778, %v4978
        %v5011 = vadd.f32 %v4779, %v4979
        %v5012 = vadd.f32 %v4780, %v4980
        %v5013 = vadd.f32 %v4781, %v4981
        %v5014 = vadd.f32 %v4782, %v4982
        %v5015 = vadd.f32 %v4783, %v4983
        %v5016 = vadd.f32 %v4784, %v4984
        %v5017 = vadd.f32 %v4785, %v4985
        %v5018 = vadd.f32 %v4786, %v4986
        %v5019 = vadd.f32 %v4787, %v4987
        %v5020 = vadd.f32 %v4788, %v4988
        %v5021 = vadd.f32 %v4789, %v4989
        %v5022 = vadd.f32 %v4790, %v4990
        %v5023 = vadd.f32 %v4791, %v4991
        %v5024 = vadd.f32 %v4792, %v4992
        %v5025 = vadd.f32 %v4793, %v4993
        %v5026 = vadd.f32 %v4794, %v4994
        %v5027 = vadd.f32 %v4795, %v4995
        %v5028 = vadd.f32 %v4796, %v4996
        %v5029 = vadd.f32 %v4797, %v4997
        %v5030 = vadd.f32 %v4798, %v4998
        %v5031 = vadd.f32 %v4799, %v4999
        %v5032 = vadd.f32 %v4800, %v5000
        %v5033 = vadd.f32 %v4801, %v5001
        %s5034 = scalar_lea.vmem [#allocation7], 5
        %v5035 = vld [vmem:[%s5034] sm:$0x1]
        %5037 = vset.pattern.permute.xlu0 0
        %5038 = vperm.xlu0 %5037, %v2719
        %v5039 = vpop.permute.xlu0 %5038
        %5042 = vset.pattern.permute.xlu0 0
        %5043 = vperm.xlu0 %5042, %v2722
        %v5044 = vpop.permute.xlu0 %5043
        %5047 = vset.pattern.permute.xlu0 0
        %5048 = vperm.xlu0 %5047, %v2727
        %v5049 = vpop.permute.xlu0 %5048
        %5052 = vset.pattern.permute.xlu0 0
        %5053 = vperm.xlu0 %5052, %v2730
        %v5054 = vpop.permute.xlu0 %5053
        %5057 = vset.pattern.permute.xlu0 0
        %5058 = vperm.xlu0 %5057, %v2735
        %v5059 = vpop.permute.xlu0 %5058
        %5062 = vset.pattern.permute.xlu0 0
        %5063 = vperm.xlu0 %5062, %v2738
        %v5064 = vpop.permute.xlu0 %5063
        %5067 = vset.pattern.permute.xlu0 0
        %5068 = vperm.xlu0 %5067, %v2743
        %v5069 = vpop.permute.xlu0 %5068
        %5072 = vset.pattern.permute.xlu0 0
        %5073 = vperm.xlu0 %5072, %v2746
        %v5074 = vpop.permute.xlu0 %5073
        %5077 = vset.pattern.permute.xlu0 0
        %5078 = vperm.xlu0 %5077, %v2751
        %v5079 = vpop.permute.xlu0 %5078
        %5082 = vset.pattern.permute.xlu0 0
        %5083 = vperm.xlu0 %5082, %v2754
        %v5084 = vpop.permute.xlu0 %5083
        %5087 = vset.pattern.permute.xlu0 0
        %5088 = vperm.xlu0 %5087, %v2759
        %v5089 = vpop.permute.xlu0 %5088
        %5092 = vset.pattern.permute.xlu0 0
        %5093 = vperm.xlu0 %5092, %v2762
        %v5094 = vpop.permute.xlu0 %5093
        %5097 = vset.pattern.permute.xlu0 0
        %5098 = vperm.xlu0 %5097, %v2767
        %v5099 = vpop.permute.xlu0 %5098
        %5102 = vset.pattern.permute.xlu0 0
        %5103 = vperm.xlu0 %5102, %v2770
        %v5104 = vpop.permute.xlu0 %5103
        %5107 = vset.pattern.permute.xlu0 0
        %5108 = vperm.xlu0 %5107, %v2775
        %v5109 = vpop.permute.xlu0 %5108
        %5112 = vset.pattern.permute.xlu0 0
        %5113 = vperm.xlu0 %5112, %v2778
        %v5114 = vpop.permute.xlu0 %5113
        %5117 = vset.pattern.permute.xlu0 0
        %5118 = vperm.xlu0 %5117, %v2783
        %v5119 = vpop.permute.xlu0 %5118
        %5122 = vset.pattern.permute.xlu0 0
        %5123 = vperm.xlu0 %5122, %v2786
        %v5124 = vpop.permute.xlu0 %5123
        %5127 = vset.pattern.permute.xlu0 0
        %5128 = vperm.xlu0 %5127, %v2791
        %v5129 = vpop.permute.xlu0 %5128
        %5132 = vset.pattern.permute.xlu0 0
        %5133 = vperm.xlu0 %5132, %v2794
        %v5134 = vpop.permute.xlu0 %5133
        %5137 = vset.pattern.permute.xlu0 0
        %5138 = vperm.xlu0 %5137, %v2799
        %v5139 = vpop.permute.xlu0 %5138
        %5142 = vset.pattern.permute.xlu0 0
        %5143 = vperm.xlu0 %5142, %v2802
        %v5144 = vpop.permute.xlu0 %5143
        %5147 = vset.pattern.permute.xlu0 0
        %5148 = vperm.xlu0 %5147, %v2807
        %v5149 = vpop.permute.xlu0 %5148
        %5152 = vset.pattern.permute.xlu0 0
        %5153 = vperm.xlu0 %5152, %v2810
        %v5154 = vpop.permute.xlu0 %5153
        %5157 = vset.pattern.permute.xlu0 0
        %5158 = vperm.xlu0 %5157, %v2815
        %v5159 = vpop.permute.xlu0 %5158
        %5162 = vset.pattern.permute.xlu0 0
        %5163 = vperm.xlu0 %5162, %v2818
        %v5164 = vpop.permute.xlu0 %5163
        %5167 = vset.pattern.permute.xlu0 0
        %5168 = vperm.xlu0 %5167, %v2823
        %v5169 = vpop.permute.xlu0 %5168
        %5172 = vset.pattern.permute.xlu0 0
        %5173 = vperm.xlu0 %5172, %v2826
        %v5174 = vpop.permute.xlu0 %5173
        %5177 = vset.pattern.permute.xlu0 0
        %5178 = vperm.xlu0 %5177, %v2831
        %v5179 = vpop.permute.xlu0 %5178
        %5182 = vset.pattern.permute.xlu0 0
        %5183 = vperm.xlu0 %5182, %v2834
        %v5184 = vpop.permute.xlu0 %5183
        %5187 = vset.pattern.permute.xlu0 0
        %5188 = vperm.xlu0 %5187, %v2839
        %v5189 = vpop.permute.xlu0 %5188
        %5192 = vset.pattern.permute.xlu0 0
        %5193 = vperm.xlu0 %5192, %v2842
        %v5194 = vpop.permute.xlu0 %5193
        %v5197 = vlaneseq
        %v5198 = vshrl.u32 %v5197, 7
        %v5199 = vsub.s32 0, %v5198
        %v5200 = vrot.slane %v5035, %v5199
        %v5202 = vmul.f32 %v5039, %v5200
        %v5203 = vmul.f32 %v5044, %v5200
        %v5204 = vmul.f32 %v5049, %v5200
        %v5205 = vmul.f32 %v5054, %v5200
        %v5206 = vmul.f32 %v5059, %v5200
        %v5207 = vmul.f32 %v5064, %v5200
        %v5208 = vmul.f32 %v5069, %v5200
        %v5209 = vmul.f32 %v5074, %v5200
        %v5210 = vmul.f32 %v5079, %v5200
        %v5211 = vmul.f32 %v5084, %v5200
        %v5212 = vmul.f32 %v5089, %v5200
        %v5213 = vmul.f32 %v5094, %v5200
        %v5214 = vmul.f32 %v5099, %v5200
        %v5215 = vmul.f32 %v5104, %v5200
        %v5216 = vmul.f32 %v5109, %v5200
        %v5217 = vmul.f32 %v5114, %v5200
        %v5218 = vmul.f32 %v5119, %v5200
        %v5219 = vmul.f32 %v5124, %v5200
        %v5220 = vmul.f32 %v5129, %v5200
        %v5221 = vmul.f32 %v5134, %v5200
        %v5222 = vmul.f32 %v5139, %v5200
        %v5223 = vmul.f32 %v5144, %v5200
        %v5224 = vmul.f32 %v5149, %v5200
        %v5225 = vmul.f32 %v5154, %v5200
        %v5226 = vmul.f32 %v5159, %v5200
        %v5227 = vmul.f32 %v5164, %v5200
        %v5228 = vmul.f32 %v5169, %v5200
        %v5229 = vmul.f32 %v5174, %v5200
        %v5230 = vmul.f32 %v5179, %v5200
        %v5231 = vmul.f32 %v5184, %v5200
        %v5232 = vmul.f32 %v5189, %v5200
        %v5233 = vmul.f32 %v5194, %v5200
        %v5234 = vadd.f32 %v5002, %v5202
        %v5235 = vadd.f32 %v5003, %v5203
        %v5236 = vadd.f32 %v5004, %v5204
        %v5237 = vadd.f32 %v5005, %v5205
        %v5238 = vadd.f32 %v5006, %v5206
        %v5239 = vadd.f32 %v5007, %v5207
        %v5240 = vadd.f32 %v5008, %v5208
        %v5241 = vadd.f32 %v5009, %v5209
        %v5242 = vadd.f32 %v5010, %v5210
        %v5243 = vadd.f32 %v5011, %v5211
        %v5244 = vadd.f32 %v5012, %v5212
        %v5245 = vadd.f32 %v5013, %v5213
        %v5246 = vadd.f32 %v5014, %v5214
        %v5247 = vadd.f32 %v5015, %v5215
        %v5248 = vadd.f32 %v5016, %v5216
        %v5249 = vadd.f32 %v5017, %v5217
        %v5250 = vadd.f32 %v5018, %v5218
        %v5251 = vadd.f32 %v5019, %v5219
        %v5252 = vadd.f32 %v5020, %v5220
        %v5253 = vadd.f32 %v5021, %v5221
        %v5254 = vadd.f32 %v5022, %v5222
        %v5255 = vadd.f32 %v5023, %v5223
        %v5256 = vadd.f32 %v5024, %v5224
        %v5257 = vadd.f32 %v5025, %v5225
        %v5258 = vadd.f32 %v5026, %v5226
        %v5259 = vadd.f32 %v5027, %v5227
        %v5260 = vadd.f32 %v5028, %v5228
        %v5261 = vadd.f32 %v5029, %v5229
        %v5262 = vadd.f32 %v5030, %v5230
        %v5263 = vadd.f32 %v5031, %v5231
        %v5264 = vadd.f32 %v5032, %v5232
        %v5265 = vadd.f32 %v5033, %v5233
        %s5266 = scalar_lea.vmem [#allocation7], 6
        %v5267 = vld [vmem:[%s5266] sm:$0x1]
        %5269 = vset.pattern.permute.xlu0 0
        %5270 = vperm.xlu0 %5269, %v3073
        %v5271 = vpop.permute.xlu0 %5270
        %5274 = vset.pattern.permute.xlu0 0
        %5275 = vperm.xlu0 %5274, %v3076
        %v5276 = vpop.permute.xlu0 %5275
        %5279 = vset.pattern.permute.xlu0 0
        %5280 = vperm.xlu0 %5279, %v3081
        %v5281 = vpop.permute.xlu0 %5280
        %5284 = vset.pattern.permute.xlu0 0
        %5285 = vperm.xlu0 %5284, %v3084
        %v5286 = vpop.permute.xlu0 %5285
        %5289 = vset.pattern.permute.xlu0 0
        %5290 = vperm.xlu0 %5289, %v3089
        %v5291 = vpop.permute.xlu0 %5290
        %5294 = vset.pattern.permute.xlu0 0
        %5295 = vperm.xlu0 %5294, %v3092
        %v5296 = vpop.permute.xlu0 %5295
        %5299 = vset.pattern.permute.xlu0 0
        %5300 = vperm.xlu0 %5299, %v3097
        %v5301 = vpop.permute.xlu0 %5300
        %5304 = vset.pattern.permute.xlu0 0
        %5305 = vperm.xlu0 %5304, %v3100
        %v5306 = vpop.permute.xlu0 %5305
        %5309 = vset.pattern.permute.xlu0 0
        %5310 = vperm.xlu0 %5309, %v3105
        %v5311 = vpop.permute.xlu0 %5310
        %5314 = vset.pattern.permute.xlu0 0
        %5315 = vperm.xlu0 %5314, %v3108
        %v5316 = vpop.permute.xlu0 %5315
        %5319 = vset.pattern.permute.xlu0 0
        %5320 = vperm.xlu0 %5319, %v3113
        %v5321 = vpop.permute.xlu0 %5320
        %5324 = vset.pattern.permute.xlu0 0
        %5325 = vperm.xlu0 %5324, %v3116
        %v5326 = vpop.permute.xlu0 %5325
        %5329 = vset.pattern.permute.xlu0 0
        %5330 = vperm.xlu0 %5329, %v3121
        %v5331 = vpop.permute.xlu0 %5330
        %5334 = vset.pattern.permute.xlu0 0
        %5335 = vperm.xlu0 %5334, %v3124
        %v5336 = vpop.permute.xlu0 %5335
        %5339 = vset.pattern.permute.xlu0 0
        %5340 = vperm.xlu0 %5339, %v3129
        %v5341 = vpop.permute.xlu0 %5340
        %5344 = vset.pattern.permute.xlu0 0
        %5345 = vperm.xlu0 %5344, %v3132
        %v5346 = vpop.permute.xlu0 %5345
        %5349 = vset.pattern.permute.xlu0 0
        %5350 = vperm.xlu0 %5349, %v3137
        %v5351 = vpop.permute.xlu0 %5350
        %5354 = vset.pattern.permute.xlu0 0
        %5355 = vperm.xlu0 %5354, %v3140
        %v5356 = vpop.permute.xlu0 %5355
        %5359 = vset.pattern.permute.xlu0 0
        %5360 = vperm.xlu0 %5359, %v3145
        %v5361 = vpop.permute.xlu0 %5360
        %5364 = vset.pattern.permute.xlu0 0
        %5365 = vperm.xlu0 %5364, %v3148
        %v5366 = vpop.permute.xlu0 %5365
        %5369 = vset.pattern.permute.xlu0 0
        %5370 = vperm.xlu0 %5369, %v3153
        %v5371 = vpop.permute.xlu0 %5370
        %5374 = vset.pattern.permute.xlu0 0
        %5375 = vperm.xlu0 %5374, %v3156
        %v5376 = vpop.permute.xlu0 %5375
        %5379 = vset.pattern.permute.xlu0 0
        %5380 = vperm.xlu0 %5379, %v3161
        %v5381 = vpop.permute.xlu0 %5380
        %5384 = vset.pattern.permute.xlu0 0
        %5385 = vperm.xlu0 %5384, %v3164
        %v5386 = vpop.permute.xlu0 %5385
        %5389 = vset.pattern.permute.xlu0 0
        %5390 = vperm.xlu0 %5389, %v3169
        %v5391 = vpop.permute.xlu0 %5390
        %5394 = vset.pattern.permute.xlu0 0
        %5395 = vperm.xlu0 %5394, %v3172
        %v5396 = vpop.permute.xlu0 %5395
        %5399 = vset.pattern.permute.xlu0 0
        %5400 = vperm.xlu0 %5399, %v3177
        %v5401 = vpop.permute.xlu0 %5400
        %5404 = vset.pattern.permute.xlu0 0
        %5405 = vperm.xlu0 %5404, %v3180
        %v5406 = vpop.permute.xlu0 %5405
        %5409 = vset.pattern.permute.xlu0 0
        %5410 = vperm.xlu0 %5409, %v3185
        %v5411 = vpop.permute.xlu0 %5410
        %5414 = vset.pattern.permute.xlu0 0
        %5415 = vperm.xlu0 %5414, %v3188
        %v5416 = vpop.permute.xlu0 %5415
        %5419 = vset.pattern.permute.xlu0 0
        %5420 = vperm.xlu0 %5419, %v3193
        %v5421 = vpop.permute.xlu0 %5420
        %5424 = vset.pattern.permute.xlu0 0
        %5425 = vperm.xlu0 %5424, %v3196
        %v5426 = vpop.permute.xlu0 %5425
        %v5429 = vlaneseq
        %v5430 = vshrl.u32 %v5429, 7
        %v5431 = vsub.s32 0, %v5430
        %v5432 = vrot.slane %v5267, %v5431
        %v5434 = vmul.f32 %v5271, %v5432
        %v5435 = vmul.f32 %v5276, %v5432
        %v5436 = vmul.f32 %v5281, %v5432
        %v5437 = vmul.f32 %v5286, %v5432
        %v5438 = vmul.f32 %v5291, %v5432
        %v5439 = vmul.f32 %v5296, %v5432
        %v5440 = vmul.f32 %v5301, %v5432
        %v5441 = vmul.f32 %v5306, %v5432
        %v5442 = vmul.f32 %v5311, %v5432
        %v5443 = vmul.f32 %v5316, %v5432
        %v5444 = vmul.f32 %v5321, %v5432
        %v5445 = vmul.f32 %v5326, %v5432
        %v5446 = vmul.f32 %v5331, %v5432
        %v5447 = vmul.f32 %v5336, %v5432
        %v5448 = vmul.f32 %v5341, %v5432
        %v5449 = vmul.f32 %v5346, %v5432
        %v5450 = vmul.f32 %v5351, %v5432
        %v5451 = vmul.f32 %v5356, %v5432
        %v5452 = vmul.f32 %v5361, %v5432
        %v5453 = vmul.f32 %v5366, %v5432
        %v5454 = vmul.f32 %v5371, %v5432
        %v5455 = vmul.f32 %v5376, %v5432
        %v5456 = vmul.f32 %v5381, %v5432
        %v5457 = vmul.f32 %v5386, %v5432
        %v5458 = vmul.f32 %v5391, %v5432
        %v5459 = vmul.f32 %v5396, %v5432
        %v5460 = vmul.f32 %v5401, %v5432
        %v5461 = vmul.f32 %v5406, %v5432
        %v5462 = vmul.f32 %v5411, %v5432
        %v5463 = vmul.f32 %v5416, %v5432
        %v5464 = vmul.f32 %v5421, %v5432
        %v5465 = vmul.f32 %v5426, %v5432
        %v5466 = vadd.f32 %v5234, %v5434
        %v5467 = vadd.f32 %v5235, %v5435
        %v5468 = vadd.f32 %v5236, %v5436
        %v5469 = vadd.f32 %v5237, %v5437
        %v5470 = vadd.f32 %v5238, %v5438
        %v5471 = vadd.f32 %v5239, %v5439
        %v5472 = vadd.f32 %v5240, %v5440
        %v5473 = vadd.f32 %v5241, %v5441
        %v5474 = vadd.f32 %v5242, %v5442
        %v5475 = vadd.f32 %v5243, %v5443
        %v5476 = vadd.f32 %v5244, %v5444
        %v5477 = vadd.f32 %v5245, %v5445
        %v5478 = vadd.f32 %v5246, %v5446
        %v5479 = vadd.f32 %v5247, %v5447
        %v5480 = vadd.f32 %v5248, %v5448
        %v5481 = vadd.f32 %v5249, %v5449
        %v5482 = vadd.f32 %v5250, %v5450
        %v5483 = vadd.f32 %v5251, %v5451
        %v5484 = vadd.f32 %v5252, %v5452
        %v5485 = vadd.f32 %v5253, %v5453
        %v5486 = vadd.f32 %v5254, %v5454
        %v5487 = vadd.f32 %v5255, %v5455
        %v5488 = vadd.f32 %v5256, %v5456
        %v5489 = vadd.f32 %v5257, %v5457
        %v5490 = vadd.f32 %v5258, %v5458
        %v5491 = vadd.f32 %v5259, %v5459
        %v5492 = vadd.f32 %v5260, %v5460
        %v5493 = vadd.f32 %v5261, %v5461
        %v5494 = vadd.f32 %v5262, %v5462
        %v5495 = vadd.f32 %v5263, %v5463
        %v5496 = vadd.f32 %v5264, %v5464
        %v5497 = vadd.f32 %v5265, %v5465
        %s5498 = scalar_lea.vmem [#allocation7], 7
        %v5499 = vld [vmem:[%s5498] sm:$0x1]
        %5501 = vset.pattern.permute.xlu0 0
        %5502 = vperm.xlu0 %5501, %v3427
        %v5503 = vpop.permute.xlu0 %5502
        %5506 = vset.pattern.permute.xlu0 0
        %5507 = vperm.xlu0 %5506, %v3430
        %v5508 = vpop.permute.xlu0 %5507
        %5511 = vset.pattern.permute.xlu0 0
        %5512 = vperm.xlu0 %5511, %v3435
        %v5513 = vpop.permute.xlu0 %5512
        %5516 = vset.pattern.permute.xlu0 0
        %5517 = vperm.xlu0 %5516, %v3438
        %v5518 = vpop.permute.xlu0 %5517
        %5521 = vset.pattern.permute.xlu0 0
        %5522 = vperm.xlu0 %5521, %v3443
        %v5523 = vpop.permute.xlu0 %5522
        %5526 = vset.pattern.permute.xlu0 0
        %5527 = vperm.xlu0 %5526, %v3446
        %v5528 = vpop.permute.xlu0 %5527
        %5531 = vset.pattern.permute.xlu0 0
        %5532 = vperm.xlu0 %5531, %v3451
        %v5533 = vpop.permute.xlu0 %5532
        %5536 = vset.pattern.permute.xlu0 0
        %5537 = vperm.xlu0 %5536, %v3454
        %v5538 = vpop.permute.xlu0 %5537
        %5541 = vset.pattern.permute.xlu0 0
        %5542 = vperm.xlu0 %5541, %v3459
        %v5543 = vpop.permute.xlu0 %5542
        %5546 = vset.pattern.permute.xlu0 0
        %5547 = vperm.xlu0 %5546, %v3462
        %v5548 = vpop.permute.xlu0 %5547
        %5551 = vset.pattern.permute.xlu0 0
        %5552 = vperm.xlu0 %5551, %v3467
        %v5553 = vpop.permute.xlu0 %5552
        %5556 = vset.pattern.permute.xlu0 0
        %5557 = vperm.xlu0 %5556, %v3470
        %v5558 = vpop.permute.xlu0 %5557
        %5561 = vset.pattern.permute.xlu0 0
        %5562 = vperm.xlu0 %5561, %v3475
        %v5563 = vpop.permute.xlu0 %5562
        %5566 = vset.pattern.permute.xlu0 0
        %5567 = vperm.xlu0 %5566, %v3478
        %v5568 = vpop.permute.xlu0 %5567
        %5571 = vset.pattern.permute.xlu0 0
        %5572 = vperm.xlu0 %5571, %v3483
        %v5573 = vpop.permute.xlu0 %5572
        %5576 = vset.pattern.permute.xlu0 0
        %5577 = vperm.xlu0 %5576, %v3486
        %v5578 = vpop.permute.xlu0 %5577
        %5581 = vset.pattern.permute.xlu0 0
        %5582 = vperm.xlu0 %5581, %v3491
        %v5583 = vpop.permute.xlu0 %5582
        %5586 = vset.pattern.permute.xlu0 0
        %5587 = vperm.xlu0 %5586, %v3494
        %v5588 = vpop.permute.xlu0 %5587
        %5591 = vset.pattern.permute.xlu0 0
        %5592 = vperm.xlu0 %5591, %v3499
        %v5593 = vpop.permute.xlu0 %5592
        %5596 = vset.pattern.permute.xlu0 0
        %5597 = vperm.xlu0 %5596, %v3502
        %v5598 = vpop.permute.xlu0 %5597
        %5601 = vset.pattern.permute.xlu0 0
        %5602 = vperm.xlu0 %5601, %v3507
        %v5603 = vpop.permute.xlu0 %5602
        %5606 = vset.pattern.permute.xlu0 0
        %5607 = vperm.xlu0 %5606, %v3510
        %v5608 = vpop.permute.xlu0 %5607
        %5611 = vset.pattern.permute.xlu0 0
        %5612 = vperm.xlu0 %5611, %v3515
        %v5613 = vpop.permute.xlu0 %5612
        %5616 = vset.pattern.permute.xlu0 0
        %5617 = vperm.xlu0 %5616, %v3518
        %v5618 = vpop.permute.xlu0 %5617
        %5621 = vset.pattern.permute.xlu0 0
        %5622 = vperm.xlu0 %5621, %v3523
        %v5623 = vpop.permute.xlu0 %5622
        %5626 = vset.pattern.permute.xlu0 0
        %5627 = vperm.xlu0 %5626, %v3526
        %v5628 = vpop.permute.xlu0 %5627
        %5631 = vset.pattern.permute.xlu0 0
        %5632 = vperm.xlu0 %5631, %v3531
        %v5633 = vpop.permute.xlu0 %5632
        %5636 = vset.pattern.permute.xlu0 0
        %5637 = vperm.xlu0 %5636, %v3534
        %v5638 = vpop.permute.xlu0 %5637
        %5641 = vset.pattern.permute.xlu0 0
        %5642 = vperm.xlu0 %5641, %v3539
        %v5643 = vpop.permute.xlu0 %5642
        %5646 = vset.pattern.permute.xlu0 0
        %5647 = vperm.xlu0 %5646, %v3542
        %v5648 = vpop.permute.xlu0 %5647
        %5651 = vset.pattern.permute.xlu0 0
        %5652 = vperm.xlu0 %5651, %v3547
        %v5653 = vpop.permute.xlu0 %5652
        %5656 = vset.pattern.permute.xlu0 0
        %5657 = vperm.xlu0 %5656, %v3550
        %v5658 = vpop.permute.xlu0 %5657
        %v5661 = vlaneseq
        %v5662 = vshrl.u32 %v5661, 7
        %v5663 = vsub.s32 0, %v5662
        %v5664 = vrot.slane %v5499, %v5663
        %v5666 = vmul.f32 %v5503, %v5664
        %v5667 = vmul.f32 %v5508, %v5664
        %v5668 = vmul.f32 %v5513, %v5664
        %v5669 = vmul.f32 %v5518, %v5664
        %v5670 = vmul.f32 %v5523, %v5664
        %v5671 = vmul.f32 %v5528, %v5664
        %v5672 = vmul.f32 %v5533, %v5664
        %v5673 = vmul.f32 %v5538, %v5664
        %v5674 = vmul.f32 %v5543, %v5664
        %v5675 = vmul.f32 %v5548, %v5664
        %v5676 = vmul.f32 %v5553, %v5664
        %v5677 = vmul.f32 %v5558, %v5664
        %v5678 = vmul.f32 %v5563, %v5664
        %v5679 = vmul.f32 %v5568, %v5664
        %v5680 = vmul.f32 %v5573, %v5664
        %v5681 = vmul.f32 %v5578, %v5664
        %v5682 = vmul.f32 %v5583, %v5664
        %v5683 = vmul.f32 %v5588, %v5664
        %v5684 = vmul.f32 %v5593, %v5664
        %v5685 = vmul.f32 %v5598, %v5664
        %v5686 = vmul.f32 %v5603, %v5664
        %v5687 = vmul.f32 %v5608, %v5664
        %v5688 = vmul.f32 %v5613, %v5664
        %v5689 = vmul.f32 %v5618, %v5664
        %v5690 = vmul.f32 %v5623, %v5664
        %v5691 = vmul.f32 %v5628, %v5664
        %v5692 = vmul.f32 %v5633, %v5664
        %v5693 = vmul.f32 %v5638, %v5664
        %v5694 = vmul.f32 %v5643, %v5664
        %v5695 = vmul.f32 %v5648, %v5664
        %v5696 = vmul.f32 %v5653, %v5664
        %v5697 = vmul.f32 %v5658, %v5664
        %v5698 = vadd.f32 %v5466, %v5666
        %v5699 = vadd.f32 %v5467, %v5667
        %v5700 = vadd.f32 %v5468, %v5668
        %v5701 = vadd.f32 %v5469, %v5669
        %v5702 = vadd.f32 %v5470, %v5670
        %v5703 = vadd.f32 %v5471, %v5671
        %v5704 = vadd.f32 %v5472, %v5672
        %v5705 = vadd.f32 %v5473, %v5673
        %v5706 = vadd.f32 %v5474, %v5674
        %v5707 = vadd.f32 %v5475, %v5675
        %v5708 = vadd.f32 %v5476, %v5676
        %v5709 = vadd.f32 %v5477, %v5677
        %v5710 = vadd.f32 %v5478, %v5678
        %v5711 = vadd.f32 %v5479, %v5679
        %v5712 = vadd.f32 %v5480, %v5680
        %v5713 = vadd.f32 %v5481, %v5681
        %v5714 = vadd.f32 %v5482, %v5682
        %v5715 = vadd.f32 %v5483, %v5683
        %v5716 = vadd.f32 %v5484, %v5684
        %v5717 = vadd.f32 %v5485, %v5685
        %v5718 = vadd.f32 %v5486, %v5686
        %v5719 = vadd.f32 %v5487, %v5687
        %v5720 = vadd.f32 %v5488, %v5688
        %v5721 = vadd.f32 %v5489, %v5689
        %v5722 = vadd.f32 %v5490, %v5690
        %v5723 = vadd.f32 %v5491, %v5691
        %v5724 = vadd.f32 %v5492, %v5692
        %v5725 = vadd.f32 %v5493, %v5693
        %v5726 = vadd.f32 %v5494, %v5694
        %v5727 = vadd.f32 %v5495, %v5695
        %v5728 = vadd.f32 %v5496, %v5696
        %v5729 = vadd.f32 %v5497, %v5697
        %s5730 = scalar_lea.vmem [#allocation7], 8
        %v5731 = vld [vmem:[%s5730] sm:$0x1]
        %5733 = vset.pattern.permute.xlu0 0
        %5734 = vperm.xlu0 %5733, %v3781
        %v5735 = vpop.permute.xlu0 %5734
        %5738 = vset.pattern.permute.xlu0 0
        %5739 = vperm.xlu0 %5738, %v3784
        %v5740 = vpop.permute.xlu0 %5739
        %5743 = vset.pattern.permute.xlu0 0
        %5744 = vperm.xlu0 %5743, %v3789
        %v5745 = vpop.permute.xlu0 %5744
        %5748 = vset.pattern.permute.xlu0 0
        %5749 = vperm.xlu0 %5748, %v3792
        %v5750 = vpop.permute.xlu0 %5749
        %5753 = vset.pattern.permute.xlu0 0
        %5754 = vperm.xlu0 %5753, %v3797
        %v5755 = vpop.permute.xlu0 %5754
        %5758 = vset.pattern.permute.xlu0 0
        %5759 = vperm.xlu0 %5758, %v3800
        %v5760 = vpop.permute.xlu0 %5759
        %5763 = vset.pattern.permute.xlu0 0
        %5764 = vperm.xlu0 %5763, %v3805
        %v5765 = vpop.permute.xlu0 %5764
        %5768 = vset.pattern.permute.xlu0 0
        %5769 = vperm.xlu0 %5768, %v3808
        %v5770 = vpop.permute.xlu0 %5769
        %5773 = vset.pattern.permute.xlu0 0
        %5774 = vperm.xlu0 %5773, %v3813
        %v5775 = vpop.permute.xlu0 %5774
        %5778 = vset.pattern.permute.xlu0 0
        %5779 = vperm.xlu0 %5778, %v3816
        %v5780 = vpop.permute.xlu0 %5779
        %5783 = vset.pattern.permute.xlu0 0
        %5784 = vperm.xlu0 %5783, %v3821
        %v5785 = vpop.permute.xlu0 %5784
        %5788 = vset.pattern.permute.xlu0 0
        %5789 = vperm.xlu0 %5788, %v3824
        %v5790 = vpop.permute.xlu0 %5789
        %5793 = vset.pattern.permute.xlu0 0
        %5794 = vperm.xlu0 %5793, %v3829
        %v5795 = vpop.permute.xlu0 %5794
        %5798 = vset.pattern.permute.xlu0 0
        %5799 = vperm.xlu0 %5798, %v3832
        %v5800 = vpop.permute.xlu0 %5799
        %5803 = vset.pattern.permute.xlu0 0
        %5804 = vperm.xlu0 %5803, %v3837
        %v5805 = vpop.permute.xlu0 %5804
        %5808 = vset.pattern.permute.xlu0 0
        %5809 = vperm.xlu0 %5808, %v3840
        %v5810 = vpop.permute.xlu0 %5809
        %5813 = vset.pattern.permute.xlu0 0
        %5814 = vperm.xlu0 %5813, %v3845
        %v5815 = vpop.permute.xlu0 %5814
        %5818 = vset.pattern.permute.xlu0 0
        %5819 = vperm.xlu0 %5818, %v3848
        %v5820 = vpop.permute.xlu0 %5819
        %5823 = vset.pattern.permute.xlu0 0
        %5824 = vperm.xlu0 %5823, %v3853
        %v5825 = vpop.permute.xlu0 %5824
        %5828 = vset.pattern.permute.xlu0 0
        %5829 = vperm.xlu0 %5828, %v3856
        %v5830 = vpop.permute.xlu0 %5829
        %5833 = vset.pattern.permute.xlu0 0
        %5834 = vperm.xlu0 %5833, %v3861
        %v5835 = vpop.permute.xlu0 %5834
        %5838 = vset.pattern.permute.xlu0 0
        %5839 = vperm.xlu0 %5838, %v3864
        %v5840 = vpop.permute.xlu0 %5839
        %5843 = vset.pattern.permute.xlu0 0
        %5844 = vperm.xlu0 %5843, %v3869
        %v5845 = vpop.permute.xlu0 %5844
        %5848 = vset.pattern.permute.xlu0 0
        %5849 = vperm.xlu0 %5848, %v3872
        %v5850 = vpop.permute.xlu0 %5849
        %5853 = vset.pattern.permute.xlu0 0
        %5854 = vperm.xlu0 %5853, %v3877
        %v5855 = vpop.permute.xlu0 %5854
        %5858 = vset.pattern.permute.xlu0 0
        %5859 = vperm.xlu0 %5858, %v3880
        %v5860 = vpop.permute.xlu0 %5859
        %5863 = vset.pattern.permute.xlu0 0
        %5864 = vperm.xlu0 %5863, %v3885
        %v5865 = vpop.permute.xlu0 %5864
        %5868 = vset.pattern.permute.xlu0 0
        %5869 = vperm.xlu0 %5868, %v3888
        %v5870 = vpop.permute.xlu0 %5869
        %5873 = vset.pattern.permute.xlu0 0
        %5874 = vperm.xlu0 %5873, %v3893
        %v5875 = vpop.permute.xlu0 %5874
        %5878 = vset.pattern.permute.xlu0 0
        %5879 = vperm.xlu0 %5878, %v3896
        %v5880 = vpop.permute.xlu0 %5879
        %5883 = vset.pattern.permute.xlu0 0
        %5884 = vperm.xlu0 %5883, %v3901
        %v5885 = vpop.permute.xlu0 %5884
        %5888 = vset.pattern.permute.xlu0 0
        %5889 = vperm.xlu0 %5888, %v3904
        %v5890 = vpop.permute.xlu0 %5889
        %v5893 = vlaneseq
        %v5894 = vshrl.u32 %v5893, 7
        %v5895 = vsub.s32 0, %v5894
        %v5896 = vrot.slane %v5731, %v5895
        %v5898 = vmul.f32 %v5735, %v5896
        %v5899 = vmul.f32 %v5740, %v5896
        %v5900 = vmul.f32 %v5745, %v5896
        %v5901 = vmul.f32 %v5750, %v5896
        %v5902 = vmul.f32 %v5755, %v5896
        %v5903 = vmul.f32 %v5760, %v5896
        %v5904 = vmul.f32 %v5765, %v5896
        %v5905 = vmul.f32 %v5770, %v5896
        %v5906 = vmul.f32 %v5775, %v5896
        %v5907 = vmul.f32 %v5780, %v5896
        %v5908 = vmul.f32 %v5785, %v5896
        %v5909 = vmul.f32 %v5790, %v5896
        %v5910 = vmul.f32 %v5795, %v5896
        %v5911 = vmul.f32 %v5800, %v5896
        %v5912 = vmul.f32 %v5805, %v5896
        %v5913 = vmul.f32 %v5810, %v5896
        %v5914 = vmul.f32 %v5815, %v5896
        %v5915 = vmul.f32 %v5820, %v5896
        %v5916 = vmul.f32 %v5825, %v5896
        %v5917 = vmul.f32 %v5830, %v5896
        %v5918 = vmul.f32 %v5835, %v5896
        %v5919 = vmul.f32 %v5840, %v5896
        %v5920 = vmul.f32 %v5845, %v5896
        %v5921 = vmul.f32 %v5850, %v5896
        %v5922 = vmul.f32 %v5855, %v5896
        %v5923 = vmul.f32 %v5860, %v5896
        %v5924 = vmul.f32 %v5865, %v5896
        %v5925 = vmul.f32 %v5870, %v5896
        %v5926 = vmul.f32 %v5875, %v5896
        %v5927 = vmul.f32 %v5880, %v5896
        %v5928 = vmul.f32 %v5885, %v5896
        %v5929 = vmul.f32 %v5890, %v5896
        %v5930 = vadd.f32 %v5698, %v5898
        %v5931 = vadd.f32 %v5699, %v5899
        %v5932 = vadd.f32 %v5700, %v5900
        %v5933 = vadd.f32 %v5701, %v5901
        %v5934 = vadd.f32 %v5702, %v5902
        %v5935 = vadd.f32 %v5703, %v5903
        %v5936 = vadd.f32 %v5704, %v5904
        %v5937 = vadd.f32 %v5705, %v5905
        %v5938 = vadd.f32 %v5706, %v5906
        %v5939 = vadd.f32 %v5707, %v5907
        %v5940 = vadd.f32 %v5708, %v5908
        %v5941 = vadd.f32 %v5709, %v5909
        %v5942 = vadd.f32 %v5710, %v5910
        %v5943 = vadd.f32 %v5711, %v5911
        %v5944 = vadd.f32 %v5712, %v5912
        %v5945 = vadd.f32 %v5713, %v5913
        %v5946 = vadd.f32 %v5714, %v5914
        %v5947 = vadd.f32 %v5715, %v5915
        %v5948 = vadd.f32 %v5716, %v5916
        %v5949 = vadd.f32 %v5717, %v5917
        %v5950 = vadd.f32 %v5718, %v5918
        %v5951 = vadd.f32 %v5719, %v5919
        %v5952 = vadd.f32 %v5720, %v5920
        %v5953 = vadd.f32 %v5721, %v5921
        %v5954 = vadd.f32 %v5722, %v5922
        %v5955 = vadd.f32 %v5723, %v5923
        %v5956 = vadd.f32 %v5724, %v5924
        %v5957 = vadd.f32 %v5725, %v5925
        %v5958 = vadd.f32 %v5726, %v5926
        %v5959 = vadd.f32 %v5727, %v5927
        %v5960 = vadd.f32 %v5728, %v5928
        %v5961 = vadd.f32 %v5729, %v5929
        %v5962 = vld [vmem:[#allocation8] sm:$0x1]
        %v5964 = vlaneseq
        %v5965 = vshrl.u32 %v5964, 7
        %v5966 = vsub.s32 0, %v5965
        %v5967 = vrot.slane %v5962, %v5966
        %v5969 = vadd.f32 %v5930, %v5967
        %v5970 = vadd.f32 %v5931, %v5967
        %v5971 = vadd.f32 %v5932, %v5967
        %v5972 = vadd.f32 %v5933, %v5967
        %v5973 = vadd.f32 %v5934, %v5967
        %v5974 = vadd.f32 %v5935, %v5967
        %v5975 = vadd.f32 %v5936, %v5967
        %v5976 = vadd.f32 %v5937, %v5967
        %v5977 = vadd.f32 %v5938, %v5967
        %v5978 = vadd.f32 %v5939, %v5967
        %v5979 = vadd.f32 %v5940, %v5967
        %v5980 = vadd.f32 %v5941, %v5967
        %v5981 = vadd.f32 %v5942, %v5967
        %v5982 = vadd.f32 %v5943, %v5967
        %v5983 = vadd.f32 %v5944, %v5967
        %v5984 = vadd.f32 %v5945, %v5967
        %v5985 = vadd.f32 %v5946, %v5967
        %v5986 = vadd.f32 %v5947, %v5967
        %v5987 = vadd.f32 %v5948, %v5967
        %v5988 = vadd.f32 %v5949, %v5967
        %v5989 = vadd.f32 %v5950, %v5967
        %v5990 = vadd.f32 %v5951, %v5967
        %v5991 = vadd.f32 %v5952, %v5967
        %v5992 = vadd.f32 %v5953, %v5967
        %v5993 = vadd.f32 %v5954, %v5967
        %v5994 = vadd.f32 %v5955, %v5967
        %v5995 = vadd.f32 %v5956, %v5967
        %v5996 = vadd.f32 %v5957, %v5967
        %v5997 = vadd.f32 %v5958, %v5967
        %v5998 = vadd.f32 %v5959, %v5967
        %v5999 = vadd.f32 %v5960, %v5967
        %v6000 = vadd.f32 %v5961, %v5967
        %v6001 = vmax.f32 %v5969, 0.0
        %v6002 = vmax.f32 %v5970, 0.0
        %v6003 = vmax.f32 %v5971, 0.0
        %v6004 = vmax.f32 %v5972, 0.0
        %v6005 = vmax.f32 %v5973, 0.0
        %v6006 = vmax.f32 %v5974, 0.0
        %v6007 = vmax.f32 %v5975, 0.0
        %v6008 = vmax.f32 %v5976, 0.0
        %v6009 = vmax.f32 %v5977, 0.0
        %v6010 = vmax.f32 %v5978, 0.0
        %v6011 = vmax.f32 %v5979, 0.0
        %v6012 = vmax.f32 %v5980, 0.0
        %v6013 = vmax.f32 %v5981, 0.0
        %v6014 = vmax.f32 %v5982, 0.0
        %v6015 = vmax.f32 %v5983, 0.0
        %v6016 = vmax.f32 %v5984, 0.0
        %v6017 = vmax.f32 %v5985, 0.0
        %v6018 = vmax.f32 %v5986, 0.0
        %v6019 = vmax.f32 %v5987, 0.0
        %v6020 = vmax.f32 %v5988, 0.0
        %v6021 = vmax.f32 %v5989, 0.0
        %v6022 = vmax.f32 %v5990, 0.0
        %v6023 = vmax.f32 %v5991, 0.0
        %v6024 = vmax.f32 %v5992, 0.0
        %v6025 = vmax.f32 %v5993, 0.0
        %v6026 = vmax.f32 %v5994, 0.0
        %v6027 = vmax.f32 %v5995, 0.0
        %v6028 = vmax.f32 %v5996, 0.0
        %v6029 = vmax.f32 %v5997, 0.0
        %v6030 = vmax.f32 %v5998, 0.0
        %v6031 = vmax.f32 %v5999, 0.0
        %v6032 = vmax.f32 %v6000, 0.0
        %v6033 = vpack.c.bf16 %v6002, %v6001
        %v6034 = vpack.c.bf16 %v6004, %v6003
        %v6035 = vpack.c.bf16 %v6006, %v6005
        %v6036 = vpack.c.bf16 %v6008, %v6007
        %v6037 = vpack.c.bf16 %v6010, %v6009
        %v6038 = vpack.c.bf16 %v6012, %v6011
        %v6039 = vpack.c.bf16 %v6014, %v6013
        %v6040 = vpack.c.bf16 %v6016, %v6015
        %v6041 = vpack.c.bf16 %v6018, %v6017
        %v6042 = vpack.c.bf16 %v6020, %v6019
        %v6043 = vpack.c.bf16 %v6022, %v6021
        %v6044 = vpack.c.bf16 %v6024, %v6023
        %v6045 = vpack.c.bf16 %v6026, %v6025
        %v6046 = vpack.c.bf16 %v6028, %v6027
        %v6047 = vpack.c.bf16 %v6030, %v6029
        %v6048 = vpack.c.bf16 %v6032, %v6031
        %v6049 = vld [vmem:[#allocation5] sm:$0xff]
        %v6050 = vld [vmem:[#allocation5 + $0x8] sm:$0xff]
        %v6051 = vld [vmem:[#allocation5 + $0x10] sm:$0xff]
        %v6052 = vld [vmem:[#allocation5 + $0x18] sm:$0xff]
        %v6053 = vld [vmem:[#allocation5 + $0x20] sm:$0xff]
        %v6054 = vld [vmem:[#allocation5 + $0x28] sm:$0xff]
        %v6055 = vld [vmem:[#allocation5 + $0x30] sm:$0xff]
        %v6056 = vld [vmem:[#allocation5 + $0x38] sm:$0xff]
        %v6065 = vunpack.c.l.b16 %v6049
        %v6066 = vunpack.c.h.b16 %v6049
        %v6067 = vunpack.c.l.b16 %v6050
        %v6068 = vunpack.c.h.b16 %v6050
        %v6069 = vunpack.c.l.b16 %v6051
        %v6070 = vunpack.c.h.b16 %v6051
        %v6071 = vunpack.c.l.b16 %v6052
        %v6072 = vunpack.c.h.b16 %v6052
        %v6073 = vunpack.c.l.b16 %v6053
        %v6074 = vunpack.c.h.b16 %v6053
        %v6075 = vunpack.c.l.b16 %v6054
        %v6076 = vunpack.c.h.b16 %v6054
        %v6077 = vunpack.c.l.b16 %v6055
        %v6078 = vunpack.c.h.b16 %v6055
        %v6079 = vunpack.c.l.b16 %v6056
        %v6080 = vunpack.c.h.b16 %v6056
        %v6081 = vpack.c.b16 %v6067, %v6065
        %v6082 = vpack.c.b16 %v6068, %v6066
        %v6083 = vpack.c.b16 %v6071, %v6069
        %v6084 = vpack.c.b16 %v6072, %v6070
        %v6085 = vpack.c.b16 %v6075, %v6073
        %v6086 = vpack.c.b16 %v6076, %v6074
        %v6087 = vpack.c.b16 %v6079, %v6077
        %v6088 = vpack.c.b16 %v6080, %v6078
        %6097 = vmatprep.subr.bf16.mxu0 0
        %6098 = vmatpush1.bf16.msra.mxu0 %v6040
        %6099 = vmatprep.subr.bf16.mxu0 0
        %6100 = vmatpush1.bf16.msra.mxu0 %v6039
        %6101 = vmatprep.subr.bf16.mxu0 0
        %6102 = vmatpush1.bf16.msra.mxu0 %v6038
        %6103 = vmatprep.subr.bf16.mxu0 0
        %6104 = vmatpush1.bf16.msra.mxu0 %v6037
        %6105 = vmatprep.subr.bf16.mxu0 0
        %6106 = vmatpush1.bf16.msra.mxu0 %v6036
        %6107 = vmatprep.subr.bf16.mxu0 0
        %6108 = vmatpush1.bf16.msra.mxu0 %v6035
        %6109 = vmatprep.subr.bf16.mxu0 0
        %6110 = vmatpush1.bf16.msra.mxu0 %v6034
        %6111 = vmatprep.subr.bf16.mxu0 0
        %6112 = vmatpush1.bf16.msra.mxu0 %v6033
        %6113 = vmatprep.subr.bf16.mxu0 0
        %6114 = vmatpush2.bf16.msra.mxu0 %v6048
        %6115 = vmatprep.subr.bf16.mxu0 0
        %6116 = vmatpush2.bf16.msra.mxu0 %v6047
        %6117 = vmatprep.subr.bf16.mxu0 0
        %6118 = vmatpush2.bf16.msra.mxu0 %v6046
        %6119 = vmatprep.subr.bf16.mxu0 0
        %6120 = vmatpush2.bf16.msra.mxu0 %v6045
        %6121 = vmatprep.subr.bf16.mxu0 0
        %6122 = vmatpush2.bf16.msra.mxu0 %v6044
        %6123 = vmatprep.subr.bf16.mxu0 0
        %6124 = vmatpush2.bf16.msra.mxu0 %v6043
        %6125 = vmatprep.subr.bf16.mxu0 0
        %6126 = vmatpush2.bf16.msra.mxu0 %v6042
        %6127 = vmatprep.subr.bf16.mxu0 0
        %6128 = vmatpush2.bf16.msra.mxu0 %v6041
        %6129 = vmatprep.mubr.bf16.mxu0 %v6082
        %6130 = vmatmul.mubr.bf16.gmra.mxu0 %v6081
        %v6131 = vpop.f32.mrf.mxu0
        %v6132 = vadd.f32 0.0, %v6131
        %v6133 = vpop.f32.mrf.mxu0
        %v6134 = vpop.f32.mrf.mxu0
        %v6135 = vadd.f32 0.0, %v6134
        %v6136 = vpop.f32.mrf.mxu0
        %6137 = vmatprep.mubr.bf16.mxu0 %v6084
        %6138 = vmatmul.mubr.bf16.gmra.mxu0 %v6083
        %v6139 = vpop.f32.mrf.mxu0
        %v6140 = vadd.f32 0.0, %v6139
        %v6141 = vpop.f32.mrf.mxu0
        %v6142 = vpop.f32.mrf.mxu0
        %v6143 = vadd.f32 0.0, %v6142
        %v6144 = vpop.f32.mrf.mxu0
        %6145 = vmatprep.mubr.bf16.mxu0 %v6086
        %6146 = vmatmul.mubr.bf16.gmra.mxu0 %v6085
        %v6147 = vpop.f32.mrf.mxu0
        %v6148 = vadd.f32 0.0, %v6147
        %v6149 = vpop.f32.mrf.mxu0
        %v6150 = vpop.f32.mrf.mxu0
        %v6151 = vadd.f32 0.0, %v6150
        %v6152 = vpop.f32.mrf.mxu0
        %6153 = vmatprep.mubr.bf16.mxu0 %v6088
        %6154 = vmatmul.mubr.bf16.gmra.mxu0 %v6087
        %v6155 = vpop.f32.mrf.mxu0
        %v6156 = vadd.f32 0.0, %v6155
        %v6157 = vpop.f32.mrf.mxu0
        %v6158 = vpop.f32.mrf.mxu0
        %v6159 = vadd.f32 0.0, %v6158
        %v6160 = vpop.f32.mrf.mxu0
        %6161 = vdwg.mxu0
        %s6162 = scalar_lea.vmem [#allocation5], 64
        %v6163 = vld [vmem:[%s6162] sm:$0xff]
        %v6164 = vld [vmem:[%s6162 + $0x8] sm:$0xff]
        %v6165 = vld [vmem:[%s6162 + $0x10] sm:$0xff]
        %v6166 = vld [vmem:[%s6162 + $0x18] sm:$0xff]
        %v6167 = vld [vmem:[%s6162 + $0x20] sm:$0xff]
        %v6168 = vld [vmem:[%s6162 + $0x28] sm:$0xff]
        %v6169 = vld [vmem:[%s6162 + $0x30] sm:$0xff]
        %v6170 = vld [vmem:[%s6162 + $0x38] sm:$0xff]
        %v6179 = vunpack.c.l.b16 %v6163
        %v6180 = vunpack.c.h.b16 %v6163
        %v6181 = vunpack.c.l.b16 %v6164
        %v6182 = vunpack.c.h.b16 %v6164
        %v6183 = vunpack.c.l.b16 %v6165
        %v6184 = vunpack.c.h.b16 %v6165
        %v6185 = vunpack.c.l.b16 %v6166
        %v6186 = vunpack.c.h.b16 %v6166
        %v6187 = vunpack.c.l.b16 %v6167
        %v6188 = vunpack.c.h.b16 %v6167
        %v6189 = vunpack.c.l.b16 %v6168
        %v6190 = vunpack.c.h.b16 %v6168
        %v6191 = vunpack.c.l.b16 %v6169
        %v6192 = vunpack.c.h.b16 %v6169
        %v6193 = vunpack.c.l.b16 %v6170
        %v6194 = vunpack.c.h.b16 %v6170
        %v6195 = vpack.c.b16 %v6181, %v6179
        %v6196 = vpack.c.b16 %v6182, %v6180
        %v6197 = vpack.c.b16 %v6185, %v6183
        %v6198 = vpack.c.b16 %v6186, %v6184
        %v6199 = vpack.c.b16 %v6189, %v6187
        %v6200 = vpack.c.b16 %v6190, %v6188
        %v6201 = vpack.c.b16 %v6193, %v6191
        %v6202 = vpack.c.b16 %v6194, %v6192
        %6211 = vmatprep.subr.bf16.mxu0 0
        %6212 = vmatpush1.bf16.msra.mxu0 %v6040
        %6213 = vmatprep.subr.bf16.mxu0 0
        %6214 = vmatpush1.bf16.msra.mxu0 %v6039
        %6215 = vmatprep.subr.bf16.mxu0 0
        %6216 = vmatpush1.bf16.msra.mxu0 %v6038
        %6217 = vmatprep.subr.bf16.mxu0 0
        %6218 = vmatpush1.bf16.msra.mxu0 %v6037
        %6219 = vmatprep.subr.bf16.mxu0 0
        %6220 = vmatpush1.bf16.msra.mxu0 %v6036
        %6221 = vmatprep.subr.bf16.mxu0 0
        %6222 = vmatpush1.bf16.msra.mxu0 %v6035
        %6223 = vmatprep.subr.bf16.mxu0 0
        %6224 = vmatpush1.bf16.msra.mxu0 %v6034
        %6225 = vmatprep.subr.bf16.mxu0 0
        %6226 = vmatpush1.bf16.msra.mxu0 %v6033
        %6227 = vmatprep.subr.bf16.mxu0 0
        %6228 = vmatpush2.bf16.msra.mxu0 %v6048
        %6229 = vmatprep.subr.bf16.mxu0 0
        %6230 = vmatpush2.bf16.msra.mxu0 %v6047
        %6231 = vmatprep.subr.bf16.mxu0 0
        %6232 = vmatpush2.bf16.msra.mxu0 %v6046
        %6233 = vmatprep.subr.bf16.mxu0 0
        %6234 = vmatpush2.bf16.msra.mxu0 %v6045
        %6235 = vmatprep.subr.bf16.mxu0 0
        %6236 = vmatpush2.bf16.msra.mxu0 %v6044
        %6237 = vmatprep.subr.bf16.mxu0 0
        %6238 = vmatpush2.bf16.msra.mxu0 %v6043
        %6239 = vmatprep.subr.bf16.mxu0 0
        %6240 = vmatpush2.bf16.msra.mxu0 %v6042
        %6241 = vmatprep.subr.bf16.mxu0 0
        %6242 = vmatpush2.bf16.msra.mxu0 %v6041
        %6243 = vmatprep.mubr.bf16.mxu0 %v6196
        %6244 = vmatmul.mubr.bf16.gmra.mxu0 %v6195
        %v6245 = vpop.f32.mrf.mxu0
        %v6246 = vadd.f32 0.0, %v6245
        %v6247 = vpop.f32.mrf.mxu0
        %v6248 = vpop.f32.mrf.mxu0
        %v6249 = vadd.f32 0.0, %v6248
        %v6250 = vpop.f32.mrf.mxu0
        %6251 = vmatprep.mubr.bf16.mxu0 %v6198
        %6252 = vmatmul.mubr.bf16.gmra.mxu0 %v6197
        %v6253 = vpop.f32.mrf.mxu0
        %v6254 = vadd.f32 0.0, %v6253
        %v6255 = vpop.f32.mrf.mxu0
        %v6256 = vpop.f32.mrf.mxu0
        %v6257 = vadd.f32 0.0, %v6256
        %v6258 = vpop.f32.mrf.mxu0
        %6259 = vmatprep.mubr.bf16.mxu0 %v6200
        %6260 = vmatmul.mubr.bf16.gmra.mxu0 %v6199
        %v6261 = vpop.f32.mrf.mxu0
        %v6262 = vadd.f32 0.0, %v6261
        %v6263 = vpop.f32.mrf.mxu0
        %v6264 = vpop.f32.mrf.mxu0
        %v6265 = vadd.f32 0.0, %v6264
        %v6266 = vpop.f32.mrf.mxu0
        %6267 = vmatprep.mubr.bf16.mxu0 %v6202
        %6268 = vmatmul.mubr.bf16.gmra.mxu0 %v6201
        %v6269 = vpop.f32.mrf.mxu0
        %v6270 = vadd.f32 0.0, %v6269
        %v6271 = vpop.f32.mrf.mxu0
        %v6272 = vpop.f32.mrf.mxu0
        %v6273 = vadd.f32 0.0, %v6272
        %v6274 = vpop.f32.mrf.mxu0
        %6275 = vdwg.mxu0
        %v6276 = vmax.f32 %v6132, %v6246
        %v6277 = vmax.f32 %v6135, %v6249
        %v6278 = vmax.f32 %v6140, %v6254
        %v6279 = vmax.f32 %v6143, %v6257
        %v6280 = vmax.f32 %v6148, %v6262
        %v6281 = vmax.f32 %v6151, %v6265
        %v6282 = vmax.f32 %v6156, %v6270
        %v6283 = vmax.f32 %v6159, %v6273
        %s6284 = scalar_lea.vmem [#allocation5], 128
        %v6285 = vld [vmem:[%s6284] sm:$0xff]
        %v6286 = vld [vmem:[%s6284 + $0x8] sm:$0xff]
        %v6287 = vld [vmem:[%s6284 + $0x10] sm:$0xff]
        %v6288 = vld [vmem:[%s6284 + $0x18] sm:$0xff]
        %v6289 = vld [vmem:[%s6284 + $0x20] sm:$0xff]
        %v6290 = vld [vmem:[%s6284 + $0x28] sm:$0xff]
        %v6291 = vld [vmem:[%s6284 + $0x30] sm:$0xff]
        %v6292 = vld [vmem:[%s6284 + $0x38] sm:$0xff]
        %v6301 = vunpack.c.l.b16 %v6285
        %v6302 = vunpack.c.h.b16 %v6285
        %v6303 = vunpack.c.l.b16 %v6286
        %v6304 = vunpack.c.h.b16 %v6286
        %v6305 = vunpack.c.l.b16 %v6287
        %v6306 = vunpack.c.h.b16 %v6287
        %v6307 = vunpack.c.l.b16 %v6288
        %v6308 = vunpack.c.h.b16 %v6288
        %v6309 = vunpack.c.l.b16 %v6289
        %v6310 = vunpack.c.h.b16 %v6289
        %v6311 = vunpack.c.l.b16 %v6290
        %v6312 = vunpack.c.h.b16 %v6290
        %v6313 = vunpack.c.l.b16 %v6291
        %v6314 = vunpack.c.h.b16 %v6291
        %v6315 = vunpack.c.l.b16 %v6292
        %v6316 = vunpack.c.h.b16 %v6292
        %v6317 = vpack.c.b16 %v6303, %v6301
        %v6318 = vpack.c.b16 %v6304, %v6302
        %v6319 = vpack.c.b16 %v6307, %v6305
        %v6320 = vpack.c.b16 %v6308, %v6306
        %v6321 = vpack.c.b16 %v6311, %v6309
        %v6322 = vpack.c.b16 %v6312, %v6310
        %v6323 = vpack.c.b16 %v6315, %v6313
        %v6324 = vpack.c.b16 %v6316, %v6314
        %6333 = vmatprep.subr.bf16.mxu0 0
        %6334 = vmatpush1.bf16.msra.mxu0 %v6040
        %6335 = vmatprep.subr.bf16.mxu0 0
        %6336 = vmatpush1.bf16.msra.mxu0 %v6039
        %6337 = vmatprep.subr.bf16.mxu0 0
        %6338 = vmatpush1.bf16.msra.mxu0 %v6038
        %6339 = vmatprep.subr.bf16.mxu0 0
        %6340 = vmatpush1.bf16.msra.mxu0 %v6037
        %6341 = vmatprep.subr.bf16.mxu0 0
        %6342 = vmatpush1.bf16.msra.mxu0 %v6036
        %6343 = vmatprep.subr.bf16.mxu0 0
        %6344 = vmatpush1.bf16.msra.mxu0 %v6035
        %6345 = vmatprep.subr.bf16.mxu0 0
        %6346 = vmatpush1.bf16.msra.mxu0 %v6034
        %6347 = vmatprep.subr.bf16.mxu0 0
        %6348 = vmatpush1.bf16.msra.mxu0 %v6033
        %6349 = vmatprep.subr.bf16.mxu0 0
        %6350 = vmatpush2.bf16.msra.mxu0 %v6048
        %6351 = vmatprep.subr.bf16.mxu0 0
        %6352 = vmatpush2.bf16.msra.mxu0 %v6047
        %6353 = vmatprep.subr.bf16.mxu0 0
        %6354 = vmatpush2.bf16.msra.mxu0 %v6046
        %6355 = vmatprep.subr.bf16.mxu0 0
        %6356 = vmatpush2.bf16.msra.mxu0 %v6045
        %6357 = vmatprep.subr.bf16.mxu0 0
        %6358 = vmatpush2.bf16.msra.mxu0 %v6044
        %6359 = vmatprep.subr.bf16.mxu0 0
        %6360 = vmatpush2.bf16.msra.mxu0 %v6043
        %6361 = vmatprep.subr.bf16.mxu0 0
        %6362 = vmatpush2.bf16.msra.mxu0 %v6042
        %6363 = vmatprep.subr.bf16.mxu0 0
        %6364 = vmatpush2.bf16.msra.mxu0 %v6041
        %6365 = vmatprep.mubr.bf16.mxu0 %v6318
        %6366 = vmatmul.mubr.bf16.gmra.mxu0 %v6317
        %v6367 = vpop.f32.mrf.mxu0
        %v6368 = vadd.f32 0.0, %v6367
        %v6369 = vpop.f32.mrf.mxu0
        %v6370 = vpop.f32.mrf.mxu0
        %v6371 = vadd.f32 0.0, %v6370
        %v6372 = vpop.f32.mrf.mxu0
        %6373 = vmatprep.mubr.bf16.mxu0 %v6320
        %6374 = vmatmul.mubr.bf16.gmra.mxu0 %v6319
        %v6375 = vpop.f32.mrf.mxu0
        %v6376 = vadd.f32 0.0, %v6375
        %v6377 = vpop.f32.mrf.mxu0
        %v6378 = vpop.f32.mrf.mxu0
        %v6379 = vadd.f32 0.0, %v6378
        %v6380 = vpop.f32.mrf.mxu0
        %6381 = vmatprep.mubr.bf16.mxu0 %v6322
        %6382 = vmatmul.mubr.bf16.gmra.mxu0 %v6321
        %v6383 = vpop.f32.mrf.mxu0
        %v6384 = vadd.f32 0.0, %v6383
        %v6385 = vpop.f32.mrf.mxu0
        %v6386 = vpop.f32.mrf.mxu0
        %v6387 = vadd.f32 0.0, %v6386
        %v6388 = vpop.f32.mrf.mxu0
        %6389 = vmatprep.mubr.bf16.mxu0 %v6324
        %6390 = vmatmul.mubr.bf16.gmra.mxu0 %v6323
        %v6391 = vpop.f32.mrf.mxu0
        %v6392 = vadd.f32 0.0, %v6391
        %v6393 = vpop.f32.mrf.mxu0
        %v6394 = vpop.f32.mrf.mxu0
        %v6395 = vadd.f32 0.0, %v6394
        %v6396 = vpop.f32.mrf.mxu0
        %6397 = vdwg.mxu0
        %v6398 = vmax.f32 %v6276, %v6368
        %v6399 = vmax.f32 %v6277, %v6371
        %v6400 = vmax.f32 %v6278, %v6376
        %v6401 = vmax.f32 %v6279, %v6379
        %v6402 = vmax.f32 %v6280, %v6384
        %v6403 = vmax.f32 %v6281, %v6387
        %v6404 = vmax.f32 %v6282, %v6392
        %v6405 = vmax.f32 %v6283, %v6395
        %s6406 = scalar_lea.vmem [#allocation5], 192
        %v6407 = vld [vmem:[%s6406] sm:$0xff]
        %v6408 = vld [vmem:[%s6406 + $0x8] sm:$0xff]
        %v6409 = vld [vmem:[%s6406 + $0x10] sm:$0xff]
        %v6410 = vld [vmem:[%s6406 + $0x18] sm:$0xff]
        %v6411 = vld [vmem:[%s6406 + $0x20] sm:$0xff]
        %v6412 = vld [vmem:[%s6406 + $0x28] sm:$0xff]
        %v6413 = vld [vmem:[%s6406 + $0x30] sm:$0xff]
        %v6414 = vld [vmem:[%s6406 + $0x38] sm:$0xff]
        %v6423 = vunpack.c.l.b16 %v6407
        %v6424 = vunpack.c.h.b16 %v6407
        %v6425 = vunpack.c.l.b16 %v6408
        %v6426 = vunpack.c.h.b16 %v6408
        %v6427 = vunpack.c.l.b16 %v6409
        %v6428 = vunpack.c.h.b16 %v6409
        %v6429 = vunpack.c.l.b16 %v6410
        %v6430 = vunpack.c.h.b16 %v6410
        %v6431 = vunpack.c.l.b16 %v6411
        %v6432 = vunpack.c.h.b16 %v6411
        %v6433 = vunpack.c.l.b16 %v6412
        %v6434 = vunpack.c.h.b16 %v6412
        %v6435 = vunpack.c.l.b16 %v6413
        %v6436 = vunpack.c.h.b16 %v6413
        %v6437 = vunpack.c.l.b16 %v6414
        %v6438 = vunpack.c.h.b16 %v6414
        %v6439 = vpack.c.b16 %v6425, %v6423
        %v6440 = vpack.c.b16 %v6426, %v6424
        %v6441 = vpack.c.b16 %v6429, %v6427
        %v6442 = vpack.c.b16 %v6430, %v6428
        %v6443 = vpack.c.b16 %v6433, %v6431
        %v6444 = vpack.c.b16 %v6434, %v6432
        %v6445 = vpack.c.b16 %v6437, %v6435
        %v6446 = vpack.c.b16 %v6438, %v6436
        %6455 = vmatprep.subr.bf16.mxu0 0
        %6456 = vmatpush1.bf16.msra.mxu0 %v6040
        %6457 = vmatprep.subr.bf16.mxu0 0
        %6458 = vmatpush1.bf16.msra.mxu0 %v6039
        %6459 = vmatprep.subr.bf16.mxu0 0
        %6460 = vmatpush1.bf16.msra.mxu0 %v6038
        %6461 = vmatprep.subr.bf16.mxu0 0
        %6462 = vmatpush1.bf16.msra.mxu0 %v6037
        %6463 = vmatprep.subr.bf16.mxu0 0
        %6464 = vmatpush1.bf16.msra.mxu0 %v6036
        %6465 = vmatprep.subr.bf16.mxu0 0
        %6466 = vmatpush1.bf16.msra.mxu0 %v6035
        %6467 = vmatprep.subr.bf16.mxu0 0
        %6468 = vmatpush1.bf16.msra.mxu0 %v6034
        %6469 = vmatprep.subr.bf16.mxu0 0
        %6470 = vmatpush1.bf16.msra.mxu0 %v6033
        %6471 = vmatprep.subr.bf16.mxu0 0
        %6472 = vmatpush2.bf16.msra.mxu0 %v6048
        %6473 = vmatprep.subr.bf16.mxu0 0
        %6474 = vmatpush2.bf16.msra.mxu0 %v6047
        %6475 = vmatprep.subr.bf16.mxu0 0
        %6476 = vmatpush2.bf16.msra.mxu0 %v6046
        %6477 = vmatprep.subr.bf16.mxu0 0
        %6478 = vmatpush2.bf16.msra.mxu0 %v6045
        %6479 = vmatprep.subr.bf16.mxu0 0
        %6480 = vmatpush2.bf16.msra.mxu0 %v6044
        %6481 = vmatprep.subr.bf16.mxu0 0
        %6482 = vmatpush2.bf16.msra.mxu0 %v6043
        %6483 = vmatprep.subr.bf16.mxu0 0
        %6484 = vmatpush2.bf16.msra.mxu0 %v6042
        %6485 = vmatprep.subr.bf16.mxu0 0
        %6486 = vmatpush2.bf16.msra.mxu0 %v6041
        %6487 = vmatprep.mubr.bf16.mxu0 %v6440
        %6488 = vmatmul.mubr.bf16.gmra.mxu0 %v6439
        %v6489 = vpop.f32.mrf.mxu0
        %v6490 = vadd.f32 0.0, %v6489
        %v6491 = vpop.f32.mrf.mxu0
        %v6492 = vpop.f32.mrf.mxu0
        %v6493 = vadd.f32 0.0, %v6492
        %v6494 = vpop.f32.mrf.mxu0
        %6495 = vmatprep.mubr.bf16.mxu0 %v6442
        %6496 = vmatmul.mubr.bf16.gmra.mxu0 %v6441
        %v6497 = vpop.f32.mrf.mxu0
        %v6498 = vadd.f32 0.0, %v6497
        %v6499 = vpop.f32.mrf.mxu0
        %v6500 = vpop.f32.mrf.mxu0
        %v6501 = vadd.f32 0.0, %v6500
        %v6502 = vpop.f32.mrf.mxu0
        %6503 = vmatprep.mubr.bf16.mxu0 %v6444
        %6504 = vmatmul.mubr.bf16.gmra.mxu0 %v6443
        %v6505 = vpop.f32.mrf.mxu0
        %v6506 = vadd.f32 0.0, %v6505
        %v6507 = vpop.f32.mrf.mxu0
        %v6508 = vpop.f32.mrf.mxu0
        %v6509 = vadd.f32 0.0, %v6508
        %v6510 = vpop.f32.mrf.mxu0
        %6511 = vmatprep.mubr.bf16.mxu0 %v6446
        %6512 = vmatmul.mubr.bf16.gmra.mxu0 %v6445
        %v6513 = vpop.f32.mrf.mxu0
        %v6514 = vadd.f32 0.0, %v6513
        %v6515 = vpop.f32.mrf.mxu0
        %v6516 = vpop.f32.mrf.mxu0
        %v6517 = vadd.f32 0.0, %v6516
        %v6518 = vpop.f32.mrf.mxu0
        %6519 = vdwg.mxu0
        %v6520 = vmax.f32 %v6398, %v6490
        %v6521 = vmax.f32 %v6399, %v6493
        %v6522 = vmax.f32 %v6400, %v6498
        %v6523 = vmax.f32 %v6401, %v6501
        %v6524 = vmax.f32 %v6402, %v6506
        %v6525 = vmax.f32 %v6403, %v6509
        %v6526 = vmax.f32 %v6404, %v6514
        %v6527 = vmax.f32 %v6405, %v6517
        %v6528 = vpack.c.bf16 %v6521, %v6520
        %v6529 = vpack.c.bf16 %v6523, %v6522
        %v6530 = vpack.c.bf16 %v6525, %v6524
        %v6531 = vpack.c.bf16 %v6527, %v6526
        %v6532 = vld [vmem:[#allocation10] sm:$0xf]
        %v6533 = vld [vmem:[#allocation10 + $0x4] sm:$0xf]
        %v6534 = vld [vmem:[#allocation10 + $0x8] sm:$0xf]
        %v6535 = vld [vmem:[#allocation10 + $0xc] sm:$0xf]
        %v6536 = vld [vmem:[#allocation10 + $0x10] sm:$0xf]
        %v6537 = vld [vmem:[#allocation10 + $0x14] sm:$0xf]
        %v6538 = vld [vmem:[#allocation10 + $0x18] sm:$0xf]
        %v6539 = vld [vmem:[#allocation10 + $0x1c] sm:$0xf]
        %v6548 = vunpack.c.l.b16 %v6532
        %v6549 = vunpack.c.l.b16 %v6533
        %v6550 = vunpack.c.l.b16 %v6534
        %v6551 = vunpack.c.l.b16 %v6535
        %v6552 = vunpack.c.l.b16 %v6536
        %v6553 = vunpack.c.l.b16 %v6537
        %v6554 = vunpack.c.l.b16 %v6538
        %v6555 = vunpack.c.l.b16 %v6539
        %v6556 = vpack.c.b16 %v6549, %v6548
        %v6557 = vpack.c.b16 %v6551, %v6550
        %v6558 = vpack.c.b16 %v6553, %v6552
        %v6559 = vpack.c.b16 %v6555, %v6554
        %vm6560 = vcmask 523264
        %v6562 = vsel %vm6560, %v6556, 0
        %v6565 = vsel %vm6560, %v6557, 0
        %v6568 = vsel %vm6560, %v6558, 0
        %v6571 = vsel %vm6560, %v6559, 0
        %6573 = vmatprep.subr.bf16.mxu0 0
        %6574 = vmatpush1.bf16.msra.mxu0 0
        %6575 = vmatprep.subr.bf16.mxu0 0
        %6576 = vmatpush1.bf16.msra.mxu0 0
        %6577 = vmatprep.subr.bf16.mxu0 0
        %6578 = vmatpush1.bf16.msra.mxu0 0
        %6579 = vmatprep.subr.bf16.mxu0 0
        %6580 = vmatpush1.bf16.msra.mxu0 0
        %6581 = vmatprep.subr.bf16.mxu0 0
        %6582 = vmatpush1.bf16.msra.mxu0 %v6531
        %6583 = vmatprep.subr.bf16.mxu0 0
        %6584 = vmatpush1.bf16.msra.mxu0 %v6530
        %6585 = vmatprep.subr.bf16.mxu0 0
        %6586 = vmatpush1.bf16.msra.mxu0 %v6529
        %6587 = vmatprep.subr.bf16.mxu0 0
        %6588 = vmatpush1.bf16.msra.mxu0 %v6528
        %6589 = vmatprep.subr.bf16.mxu0 0
        %6590 = vmatpush2.bf16.msra.mxu0 0
        %6591 = vmatprep.subr.bf16.mxu0 0
        %6592 = vmatpush2.bf16.msra.mxu0 0
        %6593 = vmatprep.subr.bf16.mxu0 0
        %6594 = vmatpush2.bf16.msra.mxu0 0
        %6595 = vmatprep.subr.bf16.mxu0 0
        %6596 = vmatpush2.bf16.msra.mxu0 0
        %6597 = vmatprep.subr.bf16.mxu0 0
        %6598 = vmatpush2.bf16.msra.mxu0 0
        %6599 = vmatprep.subr.bf16.mxu0 0
        %6600 = vmatpush2.bf16.msra.mxu0 0
        %6601 = vmatprep.subr.bf16.mxu0 0
        %6602 = vmatpush2.bf16.msra.mxu0 0
        %6603 = vmatprep.subr.bf16.mxu0 0
        %6604 = vmatpush2.bf16.msra.mxu0 0
        %6605 = vmatprep.mubr.bf16.mxu0 0
        %6606 = vmatmul.mubr.bf16.gmra.mxu0 %v6562
        %v6607 = vpop.f32.mrf.mxu0
        %v6608 = vadd.f32 0.0, %v6607
        %v6609 = vpop.f32.mrf.mxu0
        %v6610 = vpop.f32.mrf.mxu0
        %v6611 = vadd.f32 0.0, %v6610
        %v6612 = vpop.f32.mrf.mxu0
        %6613 = vmatprep.mubr.bf16.mxu0 0
        %6614 = vmatmul.mubr.bf16.gmra.mxu0 %v6565
        %v6615 = vpop.f32.mrf.mxu0
        %v6616 = vadd.f32 0.0, %v6615
        %v6617 = vpop.f32.mrf.mxu0
        %v6618 = vpop.f32.mrf.mxu0
        %v6619 = vadd.f32 0.0, %v6618
        %v6620 = vpop.f32.mrf.mxu0
        %6621 = vmatprep.mubr.bf16.mxu0 0
        %6622 = vmatmul.mubr.bf16.gmra.mxu0 %v6568
        %v6623 = vpop.f32.mrf.mxu0
        %v6624 = vadd.f32 0.0, %v6623
        %v6625 = vpop.f32.mrf.mxu0
        %v6626 = vpop.f32.mrf.mxu0
        %v6627 = vadd.f32 0.0, %v6626
        %v6628 = vpop.f32.mrf.mxu0
        %6629 = vmatprep.mubr.bf16.mxu0 0
        %6630 = vmatmul.mubr.bf16.gmra.mxu0 %v6571
        %v6631 = vpop.f32.mrf.mxu0
        %v6632 = vadd.f32 0.0, %v6631
        %v6633 = vpop.f32.mrf.mxu0
        %v6634 = vpop.f32.mrf.mxu0
        %v6635 = vadd.f32 0.0, %v6634
        %v6636 = vpop.f32.mrf.mxu0
        %6637 = vdwg.mxu0
        %s6638 = scalar_lea.vmem [#allocation10], 32
        %v6639 = vld [vmem:[%s6638] sm:$0xf]
        %v6640 = vld [vmem:[%s6638 + $0x4] sm:$0xf]
        %v6641 = vld [vmem:[%s6638 + $0x8] sm:$0xf]
        %v6642 = vld [vmem:[%s6638 + $0xc] sm:$0xf]
        %v6643 = vld [vmem:[%s6638 + $0x10] sm:$0xf]
        %v6644 = vld [vmem:[%s6638 + $0x14] sm:$0xf]
        %v6645 = vld [vmem:[%s6638 + $0x18] sm:$0xf]
        %v6646 = vld [vmem:[%s6638 + $0x1c] sm:$0xf]
        %v6655 = vunpack.c.l.b16 %v6639
        %v6656 = vunpack.c.l.b16 %v6640
        %v6657 = vunpack.c.l.b16 %v6641
        %v6658 = vunpack.c.l.b16 %v6642
        %v6659 = vunpack.c.l.b16 %v6643
        %v6660 = vunpack.c.l.b16 %v6644
        %v6661 = vunpack.c.l.b16 %v6645
        %v6662 = vunpack.c.l.b16 %v6646
        %v6663 = vpack.c.b16 %v6656, %v6655
        %v6664 = vpack.c.b16 %v6658, %v6657
        %v6665 = vpack.c.b16 %v6660, %v6659
        %v6666 = vpack.c.b16 %v6662, %v6661
        %v6668 = vsel %vm6560, %v6663, 0
        %v6671 = vsel %vm6560, %v6664, 0
        %v6674 = vsel %vm6560, %v6665, 0
        %v6677 = vsel %vm6560, %v6666, 0
        %6679 = vmatprep.subr.bf16.mxu0 0
        %6680 = vmatpush1.bf16.msra.mxu0 0
        %6681 = vmatprep.subr.bf16.mxu0 0
        %6682 = vmatpush1.bf16.msra.mxu0 0
        %6683 = vmatprep.subr.bf16.mxu0 0
        %6684 = vmatpush1.bf16.msra.mxu0 0
        %6685 = vmatprep.subr.bf16.mxu0 0
        %6686 = vmatpush1.bf16.msra.mxu0 0
        %6687 = vmatprep.subr.bf16.mxu0 0
        %6688 = vmatpush1.bf16.msra.mxu0 %v6531
        %6689 = vmatprep.subr.bf16.mxu0 0
        %6690 = vmatpush1.bf16.msra.mxu0 %v6530
        %6691 = vmatprep.subr.bf16.mxu0 0
        %6692 = vmatpush1.bf16.msra.mxu0 %v6529
        %6693 = vmatprep.subr.bf16.mxu0 0
        %6694 = vmatpush1.bf16.msra.mxu0 %v6528
        %6695 = vmatprep.subr.bf16.mxu0 0
        %6696 = vmatpush2.bf16.msra.mxu0 0
        %6697 = vmatprep.subr.bf16.mxu0 0
        %6698 = vmatpush2.bf16.msra.mxu0 0
        %6699 = vmatprep.subr.bf16.mxu0 0
        %6700 = vmatpush2.bf16.msra.mxu0 0
        %6701 = vmatprep.subr.bf16.mxu0 0
        %6702 = vmatpush2.bf16.msra.mxu0 0
        %6703 = vmatprep.subr.bf16.mxu0 0
        %6704 = vmatpush2.bf16.msra.mxu0 0
        %6705 = vmatprep.subr.bf16.mxu0 0
        %6706 = vmatpush2.bf16.msra.mxu0 0
        %6707 = vmatprep.subr.bf16.mxu0 0
        %6708 = vmatpush2.bf16.msra.mxu0 0
        %6709 = vmatprep.subr.bf16.mxu0 0
        %6710 = vmatpush2.bf16.msra.mxu0 0
        %6711 = vmatprep.mubr.bf16.mxu0 0
        %6712 = vmatmul.mubr.bf16.gmra.mxu0 %v6668
        %v6713 = vpop.f32.mrf.mxu0
        %v6714 = vadd.f32 0.0, %v6713
        %v6715 = vpop.f32.mrf.mxu0
        %v6716 = vpop.f32.mrf.mxu0
        %v6717 = vadd.f32 0.0, %v6716
        %v6718 = vpop.f32.mrf.mxu0
        %6719 = vmatprep.mubr.bf16.mxu0 0
        %6720 = vmatmul.mubr.bf16.gmra.mxu0 %v6671
        %v6721 = vpop.f32.mrf.mxu0
        %v6722 = vadd.f32 0.0, %v6721
        %v6723 = vpop.f32.mrf.mxu0
        %v6724 = vpop.f32.mrf.mxu0
        %v6725 = vadd.f32 0.0, %v6724
        %v6726 = vpop.f32.mrf.mxu0
        %6727 = vmatprep.mubr.bf16.mxu0 0
        %6728 = vmatmul.mubr.bf16.gmra.mxu0 %v6674
        %v6729 = vpop.f32.mrf.mxu0
        %v6730 = vadd.f32 0.0, %v6729
        %v6731 = vpop.f32.mrf.mxu0
        %v6732 = vpop.f32.mrf.mxu0
        %v6733 = vadd.f32 0.0, %v6732
        %v6734 = vpop.f32.mrf.mxu0
        %6735 = vmatprep.mubr.bf16.mxu0 0
        %6736 = vmatmul.mubr.bf16.gmra.mxu0 %v6677
        %v6737 = vpop.f32.mrf.mxu0
        %v6738 = vadd.f32 0.0, %v6737
        %v6739 = vpop.f32.mrf.mxu0
        %v6740 = vpop.f32.mrf.mxu0
        %v6741 = vadd.f32 0.0, %v6740
        %v6742 = vpop.f32.mrf.mxu0
        %6743 = vdwg.mxu0
        %s6744 = scalar_lea.vmem [#allocation10], 64
        %v6745 = vld [vmem:[%s6744] sm:$0xf]
        %v6746 = vld [vmem:[%s6744 + $0x4] sm:$0xf]
        %v6747 = vld [vmem:[%s6744 + $0x8] sm:$0xf]
        %v6748 = vld [vmem:[%s6744 + $0xc] sm:$0xf]
        %v6749 = vld [vmem:[%s6744 + $0x10] sm:$0xf]
        %v6750 = vld [vmem:[%s6744 + $0x14] sm:$0xf]
        %v6751 = vld [vmem:[%s6744 + $0x18] sm:$0xf]
        %v6752 = vld [vmem:[%s6744 + $0x1c] sm:$0xf]
        %v6761 = vunpack.c.l.b16 %v6745
        %v6762 = vunpack.c.l.b16 %v6746
        %v6763 = vunpack.c.l.b16 %v6747
        %v6764 = vunpack.c.l.b16 %v6748
        %v6765 = vunpack.c.l.b16 %v6749
        %v6766 = vunpack.c.l.b16 %v6750
        %v6767 = vunpack.c.l.b16 %v6751
        %v6768 = vunpack.c.l.b16 %v6752
        %v6769 = vpack.c.b16 %v6762, %v6761
        %v6770 = vpack.c.b16 %v6764, %v6763
        %v6771 = vpack.c.b16 %v6766, %v6765
        %v6772 = vpack.c.b16 %v6768, %v6767
        %v6774 = vsel %vm6560, %v6769, 0
        %v6777 = vsel %vm6560, %v6770, 0
        %v6780 = vsel %vm6560, %v6771, 0
        %v6783 = vsel %vm6560, %v6772, 0
        %6785 = vmatprep.subr.bf16.mxu0 0
        %6786 = vmatpush1.bf16.msra.mxu0 0
        %6787 = vmatprep.subr.bf16.mxu0 0
        %6788 = vmatpush1.bf16.msra.mxu0 0
        %6789 = vmatprep.subr.bf16.mxu0 0
        %6790 = vmatpush1.bf16.msra.mxu0 0
        %6791 = vmatprep.subr.bf16.mxu0 0
        %6792 = vmatpush1.bf16.msra.mxu0 0
        %6793 = vmatprep.subr.bf16.mxu0 0
        %6794 = vmatpush1.bf16.msra.mxu0 %v6531
        %6795 = vmatprep.subr.bf16.mxu0 0
        %6796 = vmatpush1.bf16.msra.mxu0 %v6530
        %6797 = vmatprep.subr.bf16.mxu0 0
        %6798 = vmatpush1.bf16.msra.mxu0 %v6529
        %6799 = vmatprep.subr.bf16.mxu0 0
        %6800 = vmatpush1.bf16.msra.mxu0 %v6528
        %6801 = vmatprep.subr.bf16.mxu0 0
        %6802 = vmatpush2.bf16.msra.mxu0 0
        %6803 = vmatprep.subr.bf16.mxu0 0
        %6804 = vmatpush2.bf16.msra.mxu0 0
        %6805 = vmatprep.subr.bf16.mxu0 0
        %6806 = vmatpush2.bf16.msra.mxu0 0
        %6807 = vmatprep.subr.bf16.mxu0 0
        %6808 = vmatpush2.bf16.msra.mxu0 0
        %6809 = vmatprep.subr.bf16.mxu0 0
        %6810 = vmatpush2.bf16.msra.mxu0 0
        %6811 = vmatprep.subr.bf16.mxu0 0
        %6812 = vmatpush2.bf16.msra.mxu0 0
        %6813 = vmatprep.subr.bf16.mxu0 0
        %6814 = vmatpush2.bf16.msra.mxu0 0
        %6815 = vmatprep.subr.bf16.mxu0 0
        %6816 = vmatpush2.bf16.msra.mxu0 0
        %6817 = vmatprep.mubr.bf16.mxu0 0
        %6818 = vmatmul.mubr.bf16.gmra.mxu0 %v6774
        %v6819 = vpop.f32.mrf.mxu0
        %v6820 = vadd.f32 0.0, %v6819
        %v6821 = vpop.f32.mrf.mxu0
        %v6822 = vpop.f32.mrf.mxu0
        %v6823 = vadd.f32 0.0, %v6822
        %v6824 = vpop.f32.mrf.mxu0
        %6825 = vmatprep.mubr.bf16.mxu0 0
        %6826 = vmatmul.mubr.bf16.gmra.mxu0 %v6777
        %v6827 = vpop.f32.mrf.mxu0
        %v6828 = vadd.f32 0.0, %v6827
        %v6829 = vpop.f32.mrf.mxu0
        %v6830 = vpop.f32.mrf.mxu0
        %v6831 = vadd.f32 0.0, %v6830
        %v6832 = vpop.f32.mrf.mxu0
        %6833 = vmatprep.mubr.bf16.mxu0 0
        %6834 = vmatmul.mubr.bf16.gmra.mxu0 %v6780
        %v6835 = vpop.f32.mrf.mxu0
        %v6836 = vadd.f32 0.0, %v6835
        %v6837 = vpop.f32.mrf.mxu0
        %v6838 = vpop.f32.mrf.mxu0
        %v6839 = vadd.f32 0.0, %v6838
        %v6840 = vpop.f32.mrf.mxu0
        %6841 = vmatprep.mubr.bf16.mxu0 0
        %6842 = vmatmul.mubr.bf16.gmra.mxu0 %v6783
        %v6843 = vpop.f32.mrf.mxu0
        %v6844 = vadd.f32 0.0, %v6843
        %v6845 = vpop.f32.mrf.mxu0
        %v6846 = vpop.f32.mrf.mxu0
        %v6847 = vadd.f32 0.0, %v6846
        %v6848 = vpop.f32.mrf.mxu0
        %6849 = vdwg.mxu0
        %s6850 = scalar_lea.vmem [#allocation10], 96
        %v6851 = vld [vmem:[%s6850] sm:$0xf]
        %v6852 = vld [vmem:[%s6850 + $0x4] sm:$0xf]
        %v6853 = vld [vmem:[%s6850 + $0x8] sm:$0xf]
        %v6854 = vld [vmem:[%s6850 + $0xc] sm:$0xf]
        %v6855 = vld [vmem:[%s6850 + $0x10] sm:$0xf]
        %v6856 = vld [vmem:[%s6850 + $0x14] sm:$0xf]
        %v6857 = vld [vmem:[%s6850 + $0x18] sm:$0xf]
        %v6858 = vld [vmem:[%s6850 + $0x1c] sm:$0xf]
        %v6867 = vunpack.c.l.b16 %v6851
        %v6868 = vunpack.c.l.b16 %v6852
        %v6869 = vunpack.c.l.b16 %v6853
        %v6870 = vunpack.c.l.b16 %v6854
        %v6871 = vunpack.c.l.b16 %v6855
        %v6872 = vunpack.c.l.b16 %v6856
        %v6873 = vunpack.c.l.b16 %v6857
        %v6874 = vunpack.c.l.b16 %v6858
        %v6875 = vpack.c.b16 %v6868, %v6867
        %v6876 = vpack.c.b16 %v6870, %v6869
        %v6877 = vpack.c.b16 %v6872, %v6871
        %v6878 = vpack.c.b16 %v6874, %v6873
        %v6880 = vsel %vm6560, %v6875, 0
        %v6883 = vsel %vm6560, %v6876, 0
        %v6886 = vsel %vm6560, %v6877, 0
        %v6889 = vsel %vm6560, %v6878, 0
        %6891 = vmatprep.subr.bf16.mxu0 0
        %6892 = vmatpush1.bf16.msra.mxu0 0
        %6893 = vmatprep.subr.bf16.mxu0 0
        %6894 = vmatpush1.bf16.msra.mxu0 0
        %6895 = vmatprep.subr.bf16.mxu0 0
        %6896 = vmatpush1.bf16.msra.mxu0 0
        %6897 = vmatprep.subr.bf16.mxu0 0
        %6898 = vmatpush1.bf16.msra.mxu0 0
        %6899 = vmatprep.subr.bf16.mxu0 0
        %6900 = vmatpush1.bf16.msra.mxu0 %v6531
        %6901 = vmatprep.subr.bf16.mxu0 0
        %6902 = vmatpush1.bf16.msra.mxu0 %v6530
        %6903 = vmatprep.subr.bf16.mxu0 0
        %6904 = vmatpush1.bf16.msra.mxu0 %v6529
        %6905 = vmatprep.subr.bf16.mxu0 0
        %6906 = vmatpush1.bf16.msra.mxu0 %v6528
        %6907 = vmatprep.subr.bf16.mxu0 0
        %6908 = vmatpush2.bf16.msra.mxu0 0
        %6909 = vmatprep.subr.bf16.mxu0 0
        %6910 = vmatpush2.bf16.msra.mxu0 0
        %6911 = vmatprep.subr.bf16.mxu0 0
        %6912 = vmatpush2.bf16.msra.mxu0 0
        %6913 = vmatprep.subr.bf16.mxu0 0
        %6914 = vmatpush2.bf16.msra.mxu0 0
        %6915 = vmatprep.subr.bf16.mxu0 0
        %6916 = vmatpush2.bf16.msra.mxu0 0
        %6917 = vmatprep.subr.bf16.mxu0 0
        %6918 = vmatpush2.bf16.msra.mxu0 0
        %6919 = vmatprep.subr.bf16.mxu0 0
        %6920 = vmatpush2.bf16.msra.mxu0 0
        %6921 = vmatprep.subr.bf16.mxu0 0
        %6922 = vmatpush2.bf16.msra.mxu0 0
        %6923 = vmatprep.mubr.bf16.mxu0 0
        %6924 = vmatmul.mubr.bf16.gmra.mxu0 %v6880
        %v6925 = vpop.f32.mrf.mxu0
        %v6926 = vadd.f32 0.0, %v6925
        %v6927 = vpop.f32.mrf.mxu0
        %v6928 = vpop.f32.mrf.mxu0
        %v6929 = vadd.f32 0.0, %v6928
        %v6930 = vpop.f32.mrf.mxu0
        %6931 = vmatprep.mubr.bf16.mxu0 0
        %6932 = vmatmul.mubr.bf16.gmra.mxu0 %v6883
        %v6933 = vpop.f32.mrf.mxu0
        %v6934 = vadd.f32 0.0, %v6933
        %v6935 = vpop.f32.mrf.mxu0
        %v6936 = vpop.f32.mrf.mxu0
        %v6937 = vadd.f32 0.0, %v6936
        %v6938 = vpop.f32.mrf.mxu0
        %6939 = vmatprep.mubr.bf16.mxu0 0
        %6940 = vmatmul.mubr.bf16.gmra.mxu0 %v6886
        %v6941 = vpop.f32.mrf.mxu0
        %v6942 = vadd.f32 0.0, %v6941
        %v6943 = vpop.f32.mrf.mxu0
        %v6944 = vpop.f32.mrf.mxu0
        %v6945 = vadd.f32 0.0, %v6944
        %v6946 = vpop.f32.mrf.mxu0
        %6947 = vmatprep.mubr.bf16.mxu0 0
        %6948 = vmatmul.mubr.bf16.gmra.mxu0 %v6889
        %v6949 = vpop.f32.mrf.mxu0
        %v6950 = vadd.f32 0.0, %v6949
        %v6951 = vpop.f32.mrf.mxu0
        %v6952 = vpop.f32.mrf.mxu0
        %v6953 = vadd.f32 0.0, %v6952
        %v6954 = vpop.f32.mrf.mxu0
        %6955 = vdwg.mxu0
        %s6956 = scalar_lea.vmem [#allocation10], 128
        %v6957 = vld [vmem:[%s6956] sm:$0xf]
        %v6958 = vld [vmem:[%s6956 + $0x4] sm:$0xf]
        %v6959 = vld [vmem:[%s6956 + $0x8] sm:$0xf]
        %v6960 = vld [vmem:[%s6956 + $0xc] sm:$0xf]
        %v6961 = vld [vmem:[%s6956 + $0x10] sm:$0xf]
        %v6962 = vld [vmem:[%s6956 + $0x14] sm:$0xf]
        %v6963 = vld [vmem:[%s6956 + $0x18] sm:$0xf]
        %v6964 = vld [vmem:[%s6956 + $0x1c] sm:$0xf]
        %v6973 = vunpack.c.l.b16 %v6957
        %v6974 = vunpack.c.l.b16 %v6958
        %v6975 = vunpack.c.l.b16 %v6959
        %v6976 = vunpack.c.l.b16 %v6960
        %v6977 = vunpack.c.l.b16 %v6961
        %v6978 = vunpack.c.l.b16 %v6962
        %v6979 = vunpack.c.l.b16 %v6963
        %v6980 = vunpack.c.l.b16 %v6964
        %v6981 = vpack.c.b16 %v6974, %v6973
        %v6982 = vpack.c.b16 %v6976, %v6975
        %v6983 = vpack.c.b16 %v6978, %v6977
        %v6984 = vpack.c.b16 %v6980, %v6979
        %v6986 = vsel %vm6560, %v6981, 0
        %v6989 = vsel %vm6560, %v6982, 0
        %v6992 = vsel %vm6560, %v6983, 0
        %v6995 = vsel %vm6560, %v6984, 0
        %6997 = vmatprep.subr.bf16.mxu0 0
        %6998 = vmatpush1.bf16.msra.mxu0 0
        %6999 = vmatprep.subr.bf16.mxu0 0
        %7000 = vmatpush1.bf16.msra.mxu0 0
        %7001 = vmatprep.subr.bf16.mxu0 0
        %7002 = vmatpush1.bf16.msra.mxu0 0
        %7003 = vmatprep.subr.bf16.mxu0 0
        %7004 = vmatpush1.bf16.msra.mxu0 0
        %7005 = vmatprep.subr.bf16.mxu0 0
        %7006 = vmatpush1.bf16.msra.mxu0 %v6531
        %7007 = vmatprep.subr.bf16.mxu0 0
        %7008 = vmatpush1.bf16.msra.mxu0 %v6530
        %7009 = vmatprep.subr.bf16.mxu0 0
        %7010 = vmatpush1.bf16.msra.mxu0 %v6529
        %7011 = vmatprep.subr.bf16.mxu0 0
        %7012 = vmatpush1.bf16.msra.mxu0 %v6528
        %7013 = vmatprep.subr.bf16.mxu0 0
        %7014 = vmatpush2.bf16.msra.mxu0 0
        %7015 = vmatprep.subr.bf16.mxu0 0
        %7016 = vmatpush2.bf16.msra.mxu0 0
        %7017 = vmatprep.subr.bf16.mxu0 0
        %7018 = vmatpush2.bf16.msra.mxu0 0
        %7019 = vmatprep.subr.bf16.mxu0 0
        %7020 = vmatpush2.bf16.msra.mxu0 0
        %7021 = vmatprep.subr.bf16.mxu0 0
        %7022 = vmatpush2.bf16.msra.mxu0 0
        %7023 = vmatprep.subr.bf16.mxu0 0
        %7024 = vmatpush2.bf16.msra.mxu0 0
        %7025 = vmatprep.subr.bf16.mxu0 0
        %7026 = vmatpush2.bf16.msra.mxu0 0
        %7027 = vmatprep.subr.bf16.mxu0 0
        %7028 = vmatpush2.bf16.msra.mxu0 0
        %7029 = vmatprep.mubr.bf16.mxu0 0
        %7030 = vmatmul.mubr.bf16.gmra.mxu0 %v6986
        %v7031 = vpop.f32.mrf.mxu0
        %v7032 = vadd.f32 0.0, %v7031
        %v7033 = vpop.f32.mrf.mxu0
        %v7034 = vpop.f32.mrf.mxu0
        %v7035 = vadd.f32 0.0, %v7034
        %v7036 = vpop.f32.mrf.mxu0
        %7037 = vmatprep.mubr.bf16.mxu0 0
        %7038 = vmatmul.mubr.bf16.gmra.mxu0 %v6989
        %v7039 = vpop.f32.mrf.mxu0
        %v7040 = vadd.f32 0.0, %v7039
        %v7041 = vpop.f32.mrf.mxu0
        %v7042 = vpop.f32.mrf.mxu0
        %v7043 = vadd.f32 0.0, %v7042
        %v7044 = vpop.f32.mrf.mxu0
        %7045 = vmatprep.mubr.bf16.mxu0 0
        %7046 = vmatmul.mubr.bf16.gmra.mxu0 %v6992
        %v7047 = vpop.f32.mrf.mxu0
        %v7048 = vadd.f32 0.0, %v7047
        %v7049 = vpop.f32.mrf.mxu0
        %v7050 = vpop.f32.mrf.mxu0
        %v7051 = vadd.f32 0.0, %v7050
        %v7052 = vpop.f32.mrf.mxu0
        %7053 = vmatprep.mubr.bf16.mxu0 0
        %7054 = vmatmul.mubr.bf16.gmra.mxu0 %v6995
        %v7055 = vpop.f32.mrf.mxu0
        %v7056 = vadd.f32 0.0, %v7055
        %v7057 = vpop.f32.mrf.mxu0
        %v7058 = vpop.f32.mrf.mxu0
        %v7059 = vadd.f32 0.0, %v7058
        %v7060 = vpop.f32.mrf.mxu0
        %7061 = vdwg.mxu0
        %s7062 = scalar_lea.vmem [#allocation10], 160
        %v7063 = vld [vmem:[%s7062] sm:$0xf]
        %v7064 = vld [vmem:[%s7062 + $0x4] sm:$0xf]
        %v7065 = vld [vmem:[%s7062 + $0x8] sm:$0xf]
        %v7066 = vld [vmem:[%s7062 + $0xc] sm:$0xf]
        %v7067 = vld [vmem:[%s7062 + $0x10] sm:$0xf]
        %v7068 = vld [vmem:[%s7062 + $0x14] sm:$0xf]
        %v7069 = vld [vmem:[%s7062 + $0x18] sm:$0xf]
        %v7070 = vld [vmem:[%s7062 + $0x1c] sm:$0xf]
        %v7079 = vunpack.c.l.b16 %v7063
        %v7080 = vunpack.c.l.b16 %v7064
        %v7081 = vunpack.c.l.b16 %v7065
        %v7082 = vunpack.c.l.b16 %v7066
        %v7083 = vunpack.c.l.b16 %v7067
        %v7084 = vunpack.c.l.b16 %v7068
        %v7085 = vunpack.c.l.b16 %v7069
        %v7086 = vunpack.c.l.b16 %v7070
        %v7087 = vpack.c.b16 %v7080, %v7079
        %v7088 = vpack.c.b16 %v7082, %v7081
        %v7089 = vpack.c.b16 %v7084, %v7083
        %v7090 = vpack.c.b16 %v7086, %v7085
        %v7092 = vsel %vm6560, %v7087, 0
        %v7095 = vsel %vm6560, %v7088, 0
        %v7098 = vsel %vm6560, %v7089, 0
        %v7101 = vsel %vm6560, %v7090, 0
        %7103 = vmatprep.subr.bf16.mxu0 0
        %7104 = vmatpush1.bf16.msra.mxu0 0
        %7105 = vmatprep.subr.bf16.mxu0 0
        %7106 = vmatpush1.bf16.msra.mxu0 0
        %7107 = vmatprep.subr.bf16.mxu0 0
        %7108 = vmatpush1.bf16.msra.mxu0 0
        %7109 = vmatprep.subr.bf16.mxu0 0
        %7110 = vmatpush1.bf16.msra.mxu0 0
        %7111 = vmatprep.subr.bf16.mxu0 0
        %7112 = vmatpush1.bf16.msra.mxu0 %v6531
        %7113 = vmatprep.subr.bf16.mxu0 0
        %7114 = vmatpush1.bf16.msra.mxu0 %v6530
        %7115 = vmatprep.subr.bf16.mxu0 0
        %7116 = vmatpush1.bf16.msra.mxu0 %v6529
        %7117 = vmatprep.subr.bf16.mxu0 0
        %7118 = vmatpush1.bf16.msra.mxu0 %v6528
        %7119 = vmatprep.subr.bf16.mxu0 0
        %7120 = vmatpush2.bf16.msra.mxu0 0
        %7121 = vmatprep.subr.bf16.mxu0 0
        %7122 = vmatpush2.bf16.msra.mxu0 0
        %7123 = vmatprep.subr.bf16.mxu0 0
        %7124 = vmatpush2.bf16.msra.mxu0 0
        %7125 = vmatprep.subr.bf16.mxu0 0
        %7126 = vmatpush2.bf16.msra.mxu0 0
        %7127 = vmatprep.subr.bf16.mxu0 0
        %7128 = vmatpush2.bf16.msra.mxu0 0
        %7129 = vmatprep.subr.bf16.mxu0 0
        %7130 = vmatpush2.bf16.msra.mxu0 0
        %7131 = vmatprep.subr.bf16.mxu0 0
        %7132 = vmatpush2.bf16.msra.mxu0 0
        %7133 = vmatprep.subr.bf16.mxu0 0
        %7134 = vmatpush2.bf16.msra.mxu0 0
        %7135 = vmatprep.mubr.bf16.mxu0 0
        %7136 = vmatmul.mubr.bf16.gmra.mxu0 %v7092
        %v7137 = vpop.f32.mrf.mxu0
        %v7138 = vadd.f32 0.0, %v7137
        %v7139 = vpop.f32.mrf.mxu0
        %v7140 = vpop.f32.mrf.mxu0
        %v7141 = vadd.f32 0.0, %v7140
        %v7142 = vpop.f32.mrf.mxu0
        %7143 = vmatprep.mubr.bf16.mxu0 0
        %7144 = vmatmul.mubr.bf16.gmra.mxu0 %v7095
        %v7145 = vpop.f32.mrf.mxu0
        %v7146 = vadd.f32 0.0, %v7145
        %v7147 = vpop.f32.mrf.mxu0
        %v7148 = vpop.f32.mrf.mxu0
        %v7149 = vadd.f32 0.0, %v7148
        %v7150 = vpop.f32.mrf.mxu0
        %7151 = vmatprep.mubr.bf16.mxu0 0
        %7152 = vmatmul.mubr.bf16.gmra.mxu0 %v7098
        %v7153 = vpop.f32.mrf.mxu0
        %v7154 = vadd.f32 0.0, %v7153
        %v7155 = vpop.f32.mrf.mxu0
        %v7156 = vpop.f32.mrf.mxu0
        %v7157 = vadd.f32 0.0, %v7156
        %v7158 = vpop.f32.mrf.mxu0
        %7159 = vmatprep.mubr.bf16.mxu0 0
        %7160 = vmatmul.mubr.bf16.gmra.mxu0 %v7101
        %v7161 = vpop.f32.mrf.mxu0
        %v7162 = vadd.f32 0.0, %v7161
        %v7163 = vpop.f32.mrf.mxu0
        %v7164 = vpop.f32.mrf.mxu0
        %v7165 = vadd.f32 0.0, %v7164
        %v7166 = vpop.f32.mrf.mxu0
        %7167 = vdwg.mxu0
        %s7168 = scalar_lea.vmem [#allocation10], 192
        %v7169 = vld [vmem:[%s7168] sm:$0xf]
        %v7170 = vld [vmem:[%s7168 + $0x4] sm:$0xf]
        %v7171 = vld [vmem:[%s7168 + $0x8] sm:$0xf]
        %v7172 = vld [vmem:[%s7168 + $0xc] sm:$0xf]
        %v7173 = vld [vmem:[%s7168 + $0x10] sm:$0xf]
        %v7174 = vld [vmem:[%s7168 + $0x14] sm:$0xf]
        %v7175 = vld [vmem:[%s7168 + $0x18] sm:$0xf]
        %v7176 = vld [vmem:[%s7168 + $0x1c] sm:$0xf]
        %v7185 = vunpack.c.l.b16 %v7169
        %v7186 = vunpack.c.l.b16 %v7170
        %v7187 = vunpack.c.l.b16 %v7171
        %v7188 = vunpack.c.l.b16 %v7172
        %v7189 = vunpack.c.l.b16 %v7173
        %v7190 = vunpack.c.l.b16 %v7174
        %v7191 = vunpack.c.l.b16 %v7175
        %v7192 = vunpack.c.l.b16 %v7176
        %v7193 = vpack.c.b16 %v7186, %v7185
        %v7194 = vpack.c.b16 %v7188, %v7187
        %v7195 = vpack.c.b16 %v7190, %v7189
        %v7196 = vpack.c.b16 %v7192, %v7191
        %v7198 = vsel %vm6560, %v7193, 0
        %v7201 = vsel %vm6560, %v7194, 0
        %v7204 = vsel %vm6560, %v7195, 0
        %v7207 = vsel %vm6560, %v7196, 0
        %7209 = vmatprep.subr.bf16.mxu0 0
        %7210 = vmatpush1.bf16.msra.mxu0 0
        %7211 = vmatprep.subr.bf16.mxu0 0
        %7212 = vmatpush1.bf16.msra.mxu0 0
        %7213 = vmatprep.subr.bf16.mxu0 0
        %7214 = vmatpush1.bf16.msra.mxu0 0
        %7215 = vmatprep.subr.bf16.mxu0 0
        %7216 = vmatpush1.bf16.msra.mxu0 0
        %7217 = vmatprep.subr.bf16.mxu0 0
        %7218 = vmatpush1.bf16.msra.mxu0 %v6531
        %7219 = vmatprep.subr.bf16.mxu0 0
        %7220 = vmatpush1.bf16.msra.mxu0 %v6530
        %7221 = vmatprep.subr.bf16.mxu0 0
        %7222 = vmatpush1.bf16.msra.mxu0 %v6529
        %7223 = vmatprep.subr.bf16.mxu0 0
        %7224 = vmatpush1.bf16.msra.mxu0 %v6528
        %7225 = vmatprep.subr.bf16.mxu0 0
        %7226 = vmatpush2.bf16.msra.mxu0 0
        %7227 = vmatprep.subr.bf16.mxu0 0
        %7228 = vmatpush2.bf16.msra.mxu0 0
        %7229 = vmatprep.subr.bf16.mxu0 0
        %7230 = vmatpush2.bf16.msra.mxu0 0
        %7231 = vmatprep.subr.bf16.mxu0 0
        %7232 = vmatpush2.bf16.msra.mxu0 0
        %7233 = vmatprep.subr.bf16.mxu0 0
        %7234 = vmatpush2.bf16.msra.mxu0 0
        %7235 = vmatprep.subr.bf16.mxu0 0
        %7236 = vmatpush2.bf16.msra.mxu0 0
        %7237 = vmatprep.subr.bf16.mxu0 0
        %7238 = vmatpush2.bf16.msra.mxu0 0
        %7239 = vmatprep.subr.bf16.mxu0 0
        %7240 = vmatpush2.bf16.msra.mxu0 0
        %7241 = vmatprep.mubr.bf16.mxu0 0
        %7242 = vmatmul.mubr.bf16.gmra.mxu0 %v7198
        %v7243 = vpop.f32.mrf.mxu0
        %v7244 = vadd.f32 0.0, %v7243
        %v7245 = vpop.f32.mrf.mxu0
        %v7246 = vpop.f32.mrf.mxu0
        %v7247 = vadd.f32 0.0, %v7246
        %v7248 = vpop.f32.mrf.mxu0
        %7249 = vmatprep.mubr.bf16.mxu0 0
        %7250 = vmatmul.mubr.bf16.gmra.mxu0 %v7201
        %v7251 = vpop.f32.mrf.mxu0
        %v7252 = vadd.f32 0.0, %v7251
        %v7253 = vpop.f32.mrf.mxu0
        %v7254 = vpop.f32.mrf.mxu0
        %v7255 = vadd.f32 0.0, %v7254
        %v7256 = vpop.f32.mrf.mxu0
        %7257 = vmatprep.mubr.bf16.mxu0 0
        %7258 = vmatmul.mubr.bf16.gmra.mxu0 %v7204
        %v7259 = vpop.f32.mrf.mxu0
        %v7260 = vadd.f32 0.0, %v7259
        %v7261 = vpop.f32.mrf.mxu0
        %v7262 = vpop.f32.mrf.mxu0
        %v7263 = vadd.f32 0.0, %v7262
        %v7264 = vpop.f32.mrf.mxu0
        %7265 = vmatprep.mubr.bf16.mxu0 0
        %7266 = vmatmul.mubr.bf16.gmra.mxu0 %v7207
        %v7267 = vpop.f32.mrf.mxu0
        %v7268 = vadd.f32 0.0, %v7267
        %v7269 = vpop.f32.mrf.mxu0
        %v7270 = vpop.f32.mrf.mxu0
        %v7271 = vadd.f32 0.0, %v7270
        %v7272 = vpop.f32.mrf.mxu0
        %7273 = vdwg.mxu0
        %s7274 = scalar_lea.vmem [#allocation10], 224
        %v7275 = vld [vmem:[%s7274] sm:$0xf]
        %v7276 = vld [vmem:[%s7274 + $0x4] sm:$0xf]
        %v7277 = vld [vmem:[%s7274 + $0x8] sm:$0xf]
        %v7278 = vld [vmem:[%s7274 + $0xc] sm:$0xf]
        %v7279 = vld [vmem:[%s7274 + $0x10] sm:$0xf]
        %v7280 = vld [vmem:[%s7274 + $0x14] sm:$0xf]
        %v7281 = vld [vmem:[%s7274 + $0x18] sm:$0xf]
        %v7282 = vld [vmem:[%s7274 + $0x1c] sm:$0xf]
        %v7291 = vunpack.c.l.b16 %v7275
        %v7292 = vunpack.c.l.b16 %v7276
        %v7293 = vunpack.c.l.b16 %v7277
        %v7294 = vunpack.c.l.b16 %v7278
        %v7295 = vunpack.c.l.b16 %v7279
        %v7296 = vunpack.c.l.b16 %v7280
        %v7297 = vunpack.c.l.b16 %v7281
        %v7298 = vunpack.c.l.b16 %v7282
        %v7299 = vpack.c.b16 %v7292, %v7291
        %v7300 = vpack.c.b16 %v7294, %v7293
        %v7301 = vpack.c.b16 %v7296, %v7295
        %v7302 = vpack.c.b16 %v7298, %v7297
        %v7304 = vsel %vm6560, %v7299, 0
        %v7307 = vsel %vm6560, %v7300, 0
        %v7310 = vsel %vm6560, %v7301, 0
        %v7313 = vsel %vm6560, %v7302, 0
        %7315 = vmatprep.subr.bf16.mxu0 0
        %7316 = vmatpush1.bf16.msra.mxu0 0
        %7317 = vmatprep.subr.bf16.mxu0 0
        %7318 = vmatpush1.bf16.msra.mxu0 0
        %7319 = vmatprep.subr.bf16.mxu0 0
        %7320 = vmatpush1.bf16.msra.mxu0 0
        %7321 = vmatprep.subr.bf16.mxu0 0
        %7322 = vmatpush1.bf16.msra.mxu0 0
        %7323 = vmatprep.subr.bf16.mxu0 0
        %7324 = vmatpush1.bf16.msra.mxu0 %v6531
        %7325 = vmatprep.subr.bf16.mxu0 0
        %7326 = vmatpush1.bf16.msra.mxu0 %v6530
        %7327 = vmatprep.subr.bf16.mxu0 0
        %7328 = vmatpush1.bf16.msra.mxu0 %v6529
        %7329 = vmatprep.subr.bf16.mxu0 0
        %7330 = vmatpush1.bf16.msra.mxu0 %v6528
        %7331 = vmatprep.subr.bf16.mxu0 0
        %7332 = vmatpush2.bf16.msra.mxu0 0
        %7333 = vmatprep.subr.bf16.mxu0 0
        %7334 = vmatpush2.bf16.msra.mxu0 0
        %7335 = vmatprep.subr.bf16.mxu0 0
        %7336 = vmatpush2.bf16.msra.mxu0 0
        %7337 = vmatprep.subr.bf16.mxu0 0
        %7338 = vmatpush2.bf16.msra.mxu0 0
        %7339 = vmatprep.subr.bf16.mxu0 0
        %7340 = vmatpush2.bf16.msra.mxu0 0
        %7341 = vmatprep.subr.bf16.mxu0 0
        %7342 = vmatpush2.bf16.msra.mxu0 0
        %7343 = vmatprep.subr.bf16.mxu0 0
        %7344 = vmatpush2.bf16.msra.mxu0 0
        %7345 = vmatprep.subr.bf16.mxu0 0
        %7346 = vmatpush2.bf16.msra.mxu0 0
        %7347 = vmatprep.mubr.bf16.mxu0 0
        %7348 = vmatmul.mubr.bf16.gmra.mxu0 %v7304
        %v7349 = vpop.f32.mrf.mxu0
        %v7350 = vadd.f32 0.0, %v7349
        %v7351 = vpop.f32.mrf.mxu0
        %v7352 = vpop.f32.mrf.mxu0
        %v7353 = vadd.f32 0.0, %v7352
        %v7354 = vpop.f32.mrf.mxu0
        %7355 = vmatprep.mubr.bf16.mxu0 0
        %7356 = vmatmul.mubr.bf16.gmra.mxu0 %v7307
        %v7357 = vpop.f32.mrf.mxu0
        %v7358 = vadd.f32 0.0, %v7357
        %v7359 = vpop.f32.mrf.mxu0
        %v7360 = vpop.f32.mrf.mxu0
        %v7361 = vadd.f32 0.0, %v7360
        %v7362 = vpop.f32.mrf.mxu0
        %7363 = vmatprep.mubr.bf16.mxu0 0
        %7364 = vmatmul.mubr.bf16.gmra.mxu0 %v7310
        %v7365 = vpop.f32.mrf.mxu0
        %v7366 = vadd.f32 0.0, %v7365
        %v7367 = vpop.f32.mrf.mxu0
        %v7368 = vpop.f32.mrf.mxu0
        %v7369 = vadd.f32 0.0, %v7368
        %v7370 = vpop.f32.mrf.mxu0
        %7371 = vmatprep.mubr.bf16.mxu0 0
        %7372 = vmatmul.mubr.bf16.gmra.mxu0 %v7313
        %v7373 = vpop.f32.mrf.mxu0
        %v7374 = vadd.f32 0.0, %v7373
        %v7375 = vpop.f32.mrf.mxu0
        %v7376 = vpop.f32.mrf.mxu0
        %v7377 = vadd.f32 0.0, %v7376
        %v7378 = vpop.f32.mrf.mxu0
        %7379 = vdwg.mxu0
        %s7380 = scalar_lea.vmem [#allocation10], 256
        %v7381 = vld [vmem:[%s7380] sm:$0xf]
        %v7382 = vld [vmem:[%s7380 + $0x4] sm:$0xf]
        %v7383 = vld [vmem:[%s7380 + $0x8] sm:$0xf]
        %v7384 = vld [vmem:[%s7380 + $0xc] sm:$0xf]
        %v7385 = vld [vmem:[%s7380 + $0x10] sm:$0xf]
        %v7386 = vld [vmem:[%s7380 + $0x14] sm:$0xf]
        %v7387 = vld [vmem:[%s7380 + $0x18] sm:$0xf]
        %v7388 = vld [vmem:[%s7380 + $0x1c] sm:$0xf]
        %v7397 = vunpack.c.l.b16 %v7381
        %v7398 = vunpack.c.l.b16 %v7382
        %v7399 = vunpack.c.l.b16 %v7383
        %v7400 = vunpack.c.l.b16 %v7384
        %v7401 = vunpack.c.l.b16 %v7385
        %v7402 = vunpack.c.l.b16 %v7386
        %v7403 = vunpack.c.l.b16 %v7387
        %v7404 = vunpack.c.l.b16 %v7388
        %v7405 = vpack.c.b16 %v7398, %v7397
        %v7406 = vpack.c.b16 %v7400, %v7399
        %v7407 = vpack.c.b16 %v7402, %v7401
        %v7408 = vpack.c.b16 %v7404, %v7403
        %v7410 = vsel %vm6560, %v7405, 0
        %v7413 = vsel %vm6560, %v7406, 0
        %v7416 = vsel %vm6560, %v7407, 0
        %v7419 = vsel %vm6560, %v7408, 0
        %7421 = vmatprep.subr.bf16.mxu0 0
        %7422 = vmatpush1.bf16.msra.mxu0 0
        %7423 = vmatprep.subr.bf16.mxu0 0
        %7424 = vmatpush1.bf16.msra.mxu0 0
        %7425 = vmatprep.subr.bf16.mxu0 0
        %7426 = vmatpush1.bf16.msra.mxu0 0
        %7427 = vmatprep.subr.bf16.mxu0 0
        %7428 = vmatpush1.bf16.msra.mxu0 0
        %7429 = vmatprep.subr.bf16.mxu0 0
        %7430 = vmatpush1.bf16.msra.mxu0 %v6531
        %7431 = vmatprep.subr.bf16.mxu0 0
        %7432 = vmatpush1.bf16.msra.mxu0 %v6530
        %7433 = vmatprep.subr.bf16.mxu0 0
        %7434 = vmatpush1.bf16.msra.mxu0 %v6529
        %7435 = vmatprep.subr.bf16.mxu0 0
        %7436 = vmatpush1.bf16.msra.mxu0 %v6528
        %7437 = vmatprep.subr.bf16.mxu0 0
        %7438 = vmatpush2.bf16.msra.mxu0 0
        %7439 = vmatprep.subr.bf16.mxu0 0
        %7440 = vmatpush2.bf16.msra.mxu0 0
        %7441 = vmatprep.subr.bf16.mxu0 0
        %7442 = vmatpush2.bf16.msra.mxu0 0
        %7443 = vmatprep.subr.bf16.mxu0 0
        %7444 = vmatpush2.bf16.msra.mxu0 0
        %7445 = vmatprep.subr.bf16.mxu0 0
        %7446 = vmatpush2.bf16.msra.mxu0 0
        %7447 = vmatprep.subr.bf16.mxu0 0
        %7448 = vmatpush2.bf16.msra.mxu0 0
        %7449 = vmatprep.subr.bf16.mxu0 0
        %7450 = vmatpush2.bf16.msra.mxu0 0
        %7451 = vmatprep.subr.bf16.mxu0 0
        %7452 = vmatpush2.bf16.msra.mxu0 0
        %7453 = vmatprep.mubr.bf16.mxu0 0
        %7454 = vmatmul.mubr.bf16.gmra.mxu0 %v7410
        %v7455 = vpop.f32.mrf.mxu0
        %v7456 = vadd.f32 0.0, %v7455
        %v7457 = vpop.f32.mrf.mxu0
        %v7458 = vpop.f32.mrf.mxu0
        %v7459 = vadd.f32 0.0, %v7458
        %v7460 = vpop.f32.mrf.mxu0
        %7461 = vmatprep.mubr.bf16.mxu0 0
        %7462 = vmatmul.mubr.bf16.gmra.mxu0 %v7413
        %v7463 = vpop.f32.mrf.mxu0
        %v7464 = vadd.f32 0.0, %v7463
        %v7465 = vpop.f32.mrf.mxu0
        %v7466 = vpop.f32.mrf.mxu0
        %v7467 = vadd.f32 0.0, %v7466
        %v7468 = vpop.f32.mrf.mxu0
        %7469 = vmatprep.mubr.bf16.mxu0 0
        %7470 = vmatmul.mubr.bf16.gmra.mxu0 %v7416
        %v7471 = vpop.f32.mrf.mxu0
        %v7472 = vadd.f32 0.0, %v7471
        %v7473 = vpop.f32.mrf.mxu0
        %v7474 = vpop.f32.mrf.mxu0
        %v7475 = vadd.f32 0.0, %v7474
        %v7476 = vpop.f32.mrf.mxu0
        %7477 = vmatprep.mubr.bf16.mxu0 0
        %7478 = vmatmul.mubr.bf16.gmra.mxu0 %v7419
        %v7479 = vpop.f32.mrf.mxu0
        %v7480 = vadd.f32 0.0, %v7479
        %v7481 = vpop.f32.mrf.mxu0
        %v7482 = vpop.f32.mrf.mxu0
        %v7483 = vadd.f32 0.0, %v7482
        %v7484 = vpop.f32.mrf.mxu0
        %7485 = vdwg.mxu0
        %7494 = vrot.lane.b32.xlu0 %v6714, 32
        %v7495 = vpop.permute.xlu0 %7494
        %7496 = vrot.lane.b32.xlu0 %v6717, 32
        %v7497 = vpop.permute.xlu0 %7496
        %7498 = vrot.lane.b32.xlu0 %v6722, 32
        %v7499 = vpop.permute.xlu0 %7498
        %7500 = vrot.lane.b32.xlu0 %v6725, 32
        %v7501 = vpop.permute.xlu0 %7500
        %7502 = vrot.lane.b32.xlu0 %v6730, 32
        %v7503 = vpop.permute.xlu0 %7502
        %7504 = vrot.lane.b32.xlu0 %v6733, 32
        %v7505 = vpop.permute.xlu0 %7504
        %7506 = vrot.lane.b32.xlu0 %v6738, 32
        %v7507 = vpop.permute.xlu0 %7506
        %7508 = vrot.lane.b32.xlu0 %v6741, 32
        %v7509 = vpop.permute.xlu0 %7508
        %7526 = vrot.lane.b32.xlu0 %v6820, 64
        %v7527 = vpop.permute.xlu0 %7526
        %7528 = vrot.lane.b32.xlu0 %v6823, 64
        %v7529 = vpop.permute.xlu0 %7528
        %7530 = vrot.lane.b32.xlu0 %v6828, 64
        %v7531 = vpop.permute.xlu0 %7530
        %7532 = vrot.lane.b32.xlu0 %v6831, 64
        %v7533 = vpop.permute.xlu0 %7532
        %7534 = vrot.lane.b32.xlu0 %v6836, 64
        %v7535 = vpop.permute.xlu0 %7534
        %7536 = vrot.lane.b32.xlu0 %v6839, 64
        %v7537 = vpop.permute.xlu0 %7536
        %7538 = vrot.lane.b32.xlu0 %v6844, 64
        %v7539 = vpop.permute.xlu0 %7538
        %7540 = vrot.lane.b32.xlu0 %v6847, 64
        %v7541 = vpop.permute.xlu0 %7540
        %7558 = vrot.lane.b32.xlu0 %v6926, 96
        %v7559 = vpop.permute.xlu0 %7558
        %7560 = vrot.lane.b32.xlu0 %v6929, 96
        %v7561 = vpop.permute.xlu0 %7560
        %7562 = vrot.lane.b32.xlu0 %v6934, 96
        %v7563 = vpop.permute.xlu0 %7562
        %7564 = vrot.lane.b32.xlu0 %v6937, 96
        %v7565 = vpop.permute.xlu0 %7564
        %7566 = vrot.lane.b32.xlu0 %v6942, 96
        %v7567 = vpop.permute.xlu0 %7566
        %7568 = vrot.lane.b32.xlu0 %v6945, 96
        %v7569 = vpop.permute.xlu0 %7568
        %7570 = vrot.lane.b32.xlu0 %v6950, 96
        %v7571 = vpop.permute.xlu0 %7570
        %7572 = vrot.lane.b32.xlu0 %v6953, 96
        %v7573 = vpop.permute.xlu0 %7572
        %7590 = vrot.lane.b32.xlu0 %v7138, 32
        %v7591 = vpop.permute.xlu0 %7590
        %7592 = vrot.lane.b32.xlu0 %v7141, 32
        %v7593 = vpop.permute.xlu0 %7592
        %7594 = vrot.lane.b32.xlu0 %v7146, 32
        %v7595 = vpop.permute.xlu0 %7594
        %7596 = vrot.lane.b32.xlu0 %v7149, 32
        %v7597 = vpop.permute.xlu0 %7596
        %7598 = vrot.lane.b32.xlu0 %v7154, 32
        %v7599 = vpop.permute.xlu0 %7598
        %7600 = vrot.lane.b32.xlu0 %v7157, 32
        %v7601 = vpop.permute.xlu0 %7600
        %7602 = vrot.lane.b32.xlu0 %v7162, 32
        %v7603 = vpop.permute.xlu0 %7602
        %7604 = vrot.lane.b32.xlu0 %v7165, 32
        %v7605 = vpop.permute.xlu0 %7604
        %7622 = vrot.lane.b32.xlu0 %v7244, 64
        %v7623 = vpop.permute.xlu0 %7622
        %7624 = vrot.lane.b32.xlu0 %v7247, 64
        %v7625 = vpop.permute.xlu0 %7624
        %7626 = vrot.lane.b32.xlu0 %v7252, 64
        %v7627 = vpop.permute.xlu0 %7626
        %7628 = vrot.lane.b32.xlu0 %v7255, 64
        %v7629 = vpop.permute.xlu0 %7628
        %7630 = vrot.lane.b32.xlu0 %v7260, 64
        %v7631 = vpop.permute.xlu0 %7630
        %7632 = vrot.lane.b32.xlu0 %v7263, 64
        %v7633 = vpop.permute.xlu0 %7632
        %7634 = vrot.lane.b32.xlu0 %v7268, 64
        %v7635 = vpop.permute.xlu0 %7634
        %7636 = vrot.lane.b32.xlu0 %v7271, 64
        %v7637 = vpop.permute.xlu0 %7636
        %7654 = vrot.lane.b32.xlu0 %v7350, 96
        %v7655 = vpop.permute.xlu0 %7654
        %7656 = vrot.lane.b32.xlu0 %v7353, 96
        %v7657 = vpop.permute.xlu0 %7656
        %7658 = vrot.lane.b32.xlu0 %v7358, 96
        %v7659 = vpop.permute.xlu0 %7658
        %7660 = vrot.lane.b32.xlu0 %v7361, 96
        %v7661 = vpop.permute.xlu0 %7660
        %7662 = vrot.lane.b32.xlu0 %v7366, 96
        %v7663 = vpop.permute.xlu0 %7662
        %7664 = vrot.lane.b32.xlu0 %v7369, 96
        %v7665 = vpop.permute.xlu0 %7664
        %7666 = vrot.lane.b32.xlu0 %v7374, 96
        %v7667 = vpop.permute.xlu0 %7666
        %7668 = vrot.lane.b32.xlu0 %v7377, 96
        %v7669 = vpop.permute.xlu0 %7668
        %vm7678 = vcmask 261120
        %v7679 = vsel %vm7678, %v6608, %v7495
        %v7680 = vsel %vm7678, %v6611, %v7497
        %v7681 = vsel %vm7678, %v6616, %v7499
        %v7682 = vsel %vm7678, %v6619, %v7501
        %v7683 = vsel %vm7678, %v6624, %v7503
        %v7684 = vsel %vm7678, %v6627, %v7505
        %v7685 = vsel %vm7678, %v6632, %v7507
        %v7686 = vsel %vm7678, %v6635, %v7509
        %v7687 = vsel %vm6560, %v7679, %v7527
        %v7688 = vsel %vm6560, %v7680, %v7529
        %v7689 = vsel %vm6560, %v7681, %v7531
        %v7690 = vsel %vm6560, %v7682, %v7533
        %v7691 = vsel %vm6560, %v7683, %v7535
        %v7692 = vsel %vm6560, %v7684, %v7537
        %v7693 = vsel %vm6560, %v7685, %v7539
        %v7694 = vsel %vm6560, %v7686, %v7541
        %vm7695 = vcmask 785408
        %v7696 = vsel %vm7695, %v7687, %v7559
        %v7697 = vsel %vm7695, %v7688, %v7561
        %v7698 = vsel %vm7695, %v7689, %v7563
        %v7699 = vsel %vm7695, %v7690, %v7565
        %v7700 = vsel %vm7695, %v7691, %v7567
        %v7701 = vsel %vm7695, %v7692, %v7569
        %v7702 = vsel %vm7695, %v7693, %v7571
        %v7703 = vsel %vm7695, %v7694, %v7573
        %v7704 = vsel %vm7678, %v7032, %v7591
        %v7705 = vsel %vm7678, %v7035, %v7593
        %v7706 = vsel %vm7678, %v7040, %v7595
        %v7707 = vsel %vm7678, %v7043, %v7597
        %v7708 = vsel %vm7678, %v7048, %v7599
        %v7709 = vsel %vm7678, %v7051, %v7601
        %v7710 = vsel %vm7678, %v7056, %v7603
        %v7711 = vsel %vm7678, %v7059, %v7605
        %v7712 = vsel %vm6560, %v7704, %v7623
        %v7713 = vsel %vm6560, %v7705, %v7625
        %v7714 = vsel %vm6560, %v7706, %v7627
        %v7715 = vsel %vm6560, %v7707, %v7629
        %v7716 = vsel %vm6560, %v7708, %v7631
        %v7717 = vsel %vm6560, %v7709, %v7633
        %v7718 = vsel %vm6560, %v7710, %v7635
        %v7719 = vsel %vm6560, %v7711, %v7637
        %v7720 = vsel %vm7695, %v7712, %v7655
        %v7721 = vsel %vm7695, %v7713, %v7657
        %v7722 = vsel %vm7695, %v7714, %v7659
        %v7723 = vsel %vm7695, %v7715, %v7661
        %v7724 = vsel %vm7695, %v7716, %v7663
        %v7725 = vsel %vm7695, %v7717, %v7665
        %v7726 = vsel %vm7695, %v7718, %v7667
        %v7727 = vsel %vm7695, %v7719, %v7669
        %v7728 = vpack.c.bf16 %v7697, %v7696
        %v7729 = vpack.c.bf16 %v7721, %v7720
        %v7730 = vpack.c.bf16 %v7459, %v7456
        %v7731 = vpack.c.bf16 %v7699, %v7698
        %v7732 = vpack.c.bf16 %v7723, %v7722
        %v7733 = vpack.c.bf16 %v7467, %v7464
        %v7734 = vpack.c.bf16 %v7701, %v7700
        %v7735 = vpack.c.bf16 %v7725, %v7724
        %v7736 = vpack.c.bf16 %v7475, %v7472
        %v7737 = vpack.c.bf16 %v7703, %v7702
        %v7738 = vpack.c.bf16 %v7727, %v7726
        %v7739 = vpack.c.bf16 %v7483, %v7480
        %v7740 = vld [vmem:[%s7] sm:$0xf]
        %v7741 = vld [vmem:[%s7 + $0x4] sm:$0xf]
        %v7742 = vld [vmem:[%s7 + $0x8] sm:$0xf]
        %v7743 = vld [vmem:[%s7 + $0xc] sm:$0xf]
        %v7744 = vld [vmem:[%s7 + $0x10] sm:$0xf]
        %v7745 = vld [vmem:[%s7 + $0x14] sm:$0xf]
        %v7746 = vld [vmem:[%s7 + $0x18] sm:$0xf]
        %v7747 = vld [vmem:[%s7 + $0x1c] sm:$0xf]
        %v7748 = vld [vmem:[%s7 + $0x20] sm:$0xf]
        %v7749 = vld [vmem:[%s7 + $0x24] sm:$0xf]
        %v7750 = vld [vmem:[%s7 + $0x28] sm:$0xf]
        %v7751 = vld [vmem:[%s7 + $0x2c] sm:$0xf]
        %v7752 = vld [vmem:[%s7 + $0x30] sm:$0xf]
        %v7753 = vld [vmem:[%s7 + $0x34] sm:$0xf]
        %v7754 = vld [vmem:[%s7 + $0x38] sm:$0xf]
        %v7755 = vld [vmem:[%s7 + $0x3c] sm:$0xf]
        %v7756 = vld [vmem:[%s7 + $0x40] sm:$0xf]
        %v7757 = vld [vmem:[%s7 + $0x44] sm:$0xf]
        %v7758 = vld [vmem:[%s7 + $0x48] sm:$0xf]
        %v7759 = vld [vmem:[%s7 + $0x4c] sm:$0xf]
        %v7760 = vld [vmem:[%s7 + $0x50] sm:$0xf]
        %v7761 = vld [vmem:[%s7 + $0x54] sm:$0xf]
        %v7762 = vld [vmem:[%s7 + $0x58] sm:$0xf]
        %v7763 = vld [vmem:[%s7 + $0x5c] sm:$0xf]
        %v7764 = vld [vmem:[%s7 + $0x60] sm:$0xf]
        %v7765 = vld [vmem:[%s7 + $0x64] sm:$0xf]
        %v7766 = vld [vmem:[%s7 + $0x68] sm:$0xf]
        %v7767 = vld [vmem:[%s7 + $0x6c] sm:$0xf]
        %v7768 = vld [vmem:[%s7 + $0x70] sm:$0xf]
        %v7769 = vld [vmem:[%s7 + $0x74] sm:$0xf]
        %v7770 = vld [vmem:[%s7 + $0x78] sm:$0xf]
        %v7771 = vld [vmem:[%s7 + $0x7c] sm:$0xf]
        %v7772 = vld [vmem:[%s7 + $0x80] sm:$0xf]
        %v7773 = vld [vmem:[%s7 + $0x84] sm:$0xf]
        %v7774 = vld [vmem:[%s7 + $0x88] sm:$0xf]
        %v7775 = vld [vmem:[%s7 + $0x8c] sm:$0xf]
        %v7776 = vld [vmem:[#allocation13] sm:$0x1]
        %v7778 = vlaneseq
        %v7779 = vshrl.u32 %v7778, 7
        %v7780 = vsub.s32 0, %v7779
        %v7781 = vrot.slane %v7776, %v7780
        %v7819 = vunpack.c.l.b16 %v7740
        %v7820 = vunpack.c.l.b16 %v7741
        %v7821 = vunpack.c.l.b16 %v7742
        %v7822 = vunpack.c.l.b16 %v7743
        %v7823 = vunpack.c.l.b16 %v7744
        %v7824 = vunpack.c.l.b16 %v7745
        %v7825 = vunpack.c.l.b16 %v7746
        %v7826 = vunpack.c.l.b16 %v7747
        %v7827 = vunpack.c.l.b16 %v7748
        %v7828 = vunpack.c.l.b16 %v7749
        %v7829 = vunpack.c.l.b16 %v7750
        %v7830 = vunpack.c.l.b16 %v7751
        %v7831 = vunpack.c.l.b16 %v7752
        %v7832 = vunpack.c.l.b16 %v7753
        %v7833 = vunpack.c.l.b16 %v7754
        %v7834 = vunpack.c.l.b16 %v7755
        %v7835 = vunpack.c.l.b16 %v7756
        %v7836 = vunpack.c.l.b16 %v7757
        %v7837 = vunpack.c.l.b16 %v7758
        %v7838 = vunpack.c.l.b16 %v7759
        %v7839 = vunpack.c.l.b16 %v7760
        %v7840 = vunpack.c.l.b16 %v7761
        %v7841 = vunpack.c.l.b16 %v7762
        %v7842 = vunpack.c.l.b16 %v7763
        %v7843 = vunpack.c.l.b16 %v7764
        %v7844 = vunpack.c.l.b16 %v7765
        %v7845 = vunpack.c.l.b16 %v7766
        %v7846 = vunpack.c.l.b16 %v7767
        %v7847 = vunpack.c.l.b16 %v7768
        %v7848 = vunpack.c.l.b16 %v7769
        %v7849 = vunpack.c.l.b16 %v7770
        %v7850 = vunpack.c.l.b16 %v7771
        %v7851 = vunpack.c.l.b16 %v7772
        %v7852 = vunpack.c.l.b16 %v7773
        %v7853 = vunpack.c.l.b16 %v7774
        %v7854 = vunpack.c.l.b16 %v7775
        %v7855 = vpack.c.b16 %v7820, %v7819
        %v7856 = vpack.c.b16 %v7822, %v7821
        %v7857 = vpack.c.b16 %v7824, %v7823
        %v7858 = vpack.c.b16 %v7826, %v7825
        %v7859 = vpack.c.b16 %v7828, %v7827
        %v7860 = vpack.c.b16 %v7830, %v7829
        %v7861 = vpack.c.b16 %v7832, %v7831
        %v7862 = vpack.c.b16 %v7834, %v7833
        %v7863 = vpack.c.b16 %v7836, %v7835
        %v7864 = vpack.c.b16 %v7838, %v7837
        %v7865 = vpack.c.b16 %v7840, %v7839
        %v7866 = vpack.c.b16 %v7842, %v7841
        %v7867 = vpack.c.b16 %v7844, %v7843
        %v7868 = vpack.c.b16 %v7846, %v7845
        %v7869 = vpack.c.b16 %v7848, %v7847
        %v7870 = vpack.c.b16 %v7850, %v7849
        %v7871 = vpack.c.b16 %v7852, %v7851
        %v7872 = vpack.c.b16 %v7854, %v7853
        %v7892 = vsel %vm7678, %v7730, 0
        %v7895 = vsel %vm7678, %v7733, 0
        %v7898 = vsel %vm7678, %v7736, 0
        %v7901 = vsel %vm7678, %v7739, 0
        %7903 = vmatprep.subr.bf16.mxu0 0
        %7904 = vmatpush1.bf16.msra.mxu0 %v7862
        %7905 = vmatprep.subr.bf16.mxu0 0
        %7906 = vmatpush1.bf16.msra.mxu0 %v7861
        %7907 = vmatprep.subr.bf16.mxu0 0
        %7908 = vmatpush1.bf16.msra.mxu0 %v7860
        %7909 = vmatprep.subr.bf16.mxu0 0
        %7910 = vmatpush1.bf16.msra.mxu0 %v7859
        %7911 = vmatprep.subr.bf16.mxu0 0
        %7912 = vmatpush1.bf16.msra.mxu0 %v7858
        %7913 = vmatprep.subr.bf16.mxu0 0
        %7914 = vmatpush1.bf16.msra.mxu0 %v7857
        %7915 = vmatprep.subr.bf16.mxu0 0
        %7916 = vmatpush1.bf16.msra.mxu0 %v7856
        %7917 = vmatprep.subr.bf16.mxu0 0
        %7918 = vmatpush1.bf16.msra.mxu0 %v7855
        %7919 = vmatprep.subr.bf16.mxu0 0
        %7920 = vmatpush2.bf16.msra.mxu0 %v7870
        %7921 = vmatprep.subr.bf16.mxu0 0
        %7922 = vmatpush2.bf16.msra.mxu0 %v7869
        %7923 = vmatprep.subr.bf16.mxu0 0
        %7924 = vmatpush2.bf16.msra.mxu0 %v7868
        %7925 = vmatprep.subr.bf16.mxu0 0
        %7926 = vmatpush2.bf16.msra.mxu0 %v7867
        %7927 = vmatprep.subr.bf16.mxu0 0
        %7928 = vmatpush2.bf16.msra.mxu0 %v7866
        %7929 = vmatprep.subr.bf16.mxu0 0
        %7930 = vmatpush2.bf16.msra.mxu0 %v7865
        %7931 = vmatprep.subr.bf16.mxu0 0
        %7932 = vmatpush2.bf16.msra.mxu0 %v7864
        %7933 = vmatprep.subr.bf16.mxu0 0
        %7934 = vmatpush2.bf16.msra.mxu0 %v7863
        %7935 = vmatprep.mubr.bf16.mxu0 %v7729
        %7936 = vmatmul.mubr.bf16.gmra.mxu0 %v7728
        %v7937 = vpop.f32.mrf.mxu0
        %v7938 = vadd.f32 %v7781, %v7937
        %v7939 = vpop.f32.mrf.mxu0
        %v7940 = vpop.f32.mrf.mxu0
        %v7941 = vadd.f32 %v7781, %v7940
        %v7942 = vpop.f32.mrf.mxu0
        %7943 = vmatprep.mubr.bf16.mxu0 %v7732
        %7944 = vmatmul.mubr.bf16.gmra.mxu0 %v7731
        %v7945 = vpop.f32.mrf.mxu0
        %v7946 = vadd.f32 %v7781, %v7945
        %v7947 = vpop.f32.mrf.mxu0
        %v7948 = vpop.f32.mrf.mxu0
        %v7949 = vadd.f32 %v7781, %v7948
        %v7950 = vpop.f32.mrf.mxu0
        %7951 = vmatprep.mubr.bf16.mxu0 %v7735
        %7952 = vmatmul.mubr.bf16.gmra.mxu0 %v7734
        %v7953 = vpop.f32.mrf.mxu0
        %v7954 = vadd.f32 %v7781, %v7953
        %v7955 = vpop.f32.mrf.mxu0
        %v7956 = vpop.f32.mrf.mxu0
        %v7957 = vadd.f32 %v7781, %v7956
        %v7958 = vpop.f32.mrf.mxu0
        %7959 = vmatprep.mubr.bf16.mxu0 %v7738
        %7960 = vmatmul.mubr.bf16.gmra.mxu0 %v7737
        %v7961 = vpop.f32.mrf.mxu0
        %v7962 = vadd.f32 %v7781, %v7961
        %v7963 = vpop.f32.mrf.mxu0
        %v7964 = vpop.f32.mrf.mxu0
        %v7965 = vadd.f32 %v7781, %v7964
        %v7966 = vpop.f32.mrf.mxu0
        %7967 = vdwg.mxu0
        %7968 = vmatprep.subr.bf16.mxu0 0
        %7969 = vmatpush1.bf16.msra.mxu0 0
        %7970 = vmatprep.subr.bf16.mxu0 0
        %7971 = vmatpush1.bf16.msra.mxu0 0
        %7972 = vmatprep.subr.bf16.mxu0 0
        %7973 = vmatpush1.bf16.msra.mxu0 0
        %7974 = vmatprep.subr.bf16.mxu0 0
        %7975 = vmatpush1.bf16.msra.mxu0 0
        %7976 = vmatprep.subr.bf16.mxu0 0
        %7977 = vmatpush1.bf16.msra.mxu0 0
        %7978 = vmatprep.subr.bf16.mxu0 0
        %7979 = vmatpush1.bf16.msra.mxu0 0
        %7980 = vmatprep.subr.bf16.mxu0 0
        %7981 = vmatpush1.bf16.msra.mxu0 %v7872
        %7982 = vmatprep.subr.bf16.mxu0 0
        %7983 = vmatpush1.bf16.msra.mxu0 %v7871
        %7984 = vmatprep.subr.bf16.mxu0 0
        %7985 = vmatpush2.bf16.msra.mxu0 0
        %7986 = vmatprep.subr.bf16.mxu0 0
        %7987 = vmatpush2.bf16.msra.mxu0 0
        %7988 = vmatprep.subr.bf16.mxu0 0
        %7989 = vmatpush2.bf16.msra.mxu0 0
        %7990 = vmatprep.subr.bf16.mxu0 0
        %7991 = vmatpush2.bf16.msra.mxu0 0
        %7992 = vmatprep.subr.bf16.mxu0 0
        %7993 = vmatpush2.bf16.msra.mxu0 0
        %7994 = vmatprep.subr.bf16.mxu0 0
        %7995 = vmatpush2.bf16.msra.mxu0 0
        %7996 = vmatprep.subr.bf16.mxu0 0
        %7997 = vmatpush2.bf16.msra.mxu0 0
        %7998 = vmatprep.subr.bf16.mxu0 0
        %7999 = vmatpush2.bf16.msra.mxu0 0
        %8000 = vmatprep.mubr.bf16.mxu0 0
        %8001 = vmatmul.mubr.bf16.gmra.mxu0 %v7892
        %v8002 = vpop.f32.mrf.mxu0
        %v8003 = vadd.f32 %v7938, %v8002
        %v8004 = vpop.f32.mrf.mxu0
        %v8005 = vpop.f32.mrf.mxu0
        %v8006 = vadd.f32 %v7941, %v8005
        %v8007 = vpop.f32.mrf.mxu0
        %8008 = vmatprep.mubr.bf16.mxu0 0
        %8009 = vmatmul.mubr.bf16.gmra.mxu0 %v7895
        %v8010 = vpop.f32.mrf.mxu0
        %v8011 = vadd.f32 %v7946, %v8010
        %v8012 = vpop.f32.mrf.mxu0
        %v8013 = vpop.f32.mrf.mxu0
        %v8014 = vadd.f32 %v7949, %v8013
        %v8015 = vpop.f32.mrf.mxu0
        %8016 = vmatprep.mubr.bf16.mxu0 0
        %8017 = vmatmul.mubr.bf16.gmra.mxu0 %v7898
        %v8018 = vpop.f32.mrf.mxu0
        %v8019 = vadd.f32 %v7954, %v8018
        %v8020 = vpop.f32.mrf.mxu0
        %v8021 = vpop.f32.mrf.mxu0
        %v8022 = vadd.f32 %v7957, %v8021
        %v8023 = vpop.f32.mrf.mxu0
        %8024 = vmatprep.mubr.bf16.mxu0 0
        %8025 = vmatmul.mubr.bf16.gmra.mxu0 %v7901
        %v8026 = vpop.f32.mrf.mxu0
        %v8027 = vadd.f32 %v7962, %v8026
        %v8028 = vpop.f32.mrf.mxu0
        %v8029 = vpop.f32.mrf.mxu0
        %v8030 = vadd.f32 %v7965, %v8029
        %v8031 = vpop.f32.mrf.mxu0
        %8032 = vdwg.mxu0
        %v8033 = vmax.f32 %v8003, 0.0
        %v8034 = vmax.f32 %v8006, 0.0
        %v8035 = vmax.f32 %v8011, 0.0
        %v8036 = vmax.f32 %v8014, 0.0
        %v8037 = vmax.f32 %v8019, 0.0
        %v8038 = vmax.f32 %v8022, 0.0
        %v8039 = vmax.f32 %v8027, 0.0
        %v8040 = vmax.f32 %v8030, 0.0
        %v8041 = vpack.c.bf16 %v8034, %v8033
        %v8042 = vpack.c.bf16 %v8036, %v8035
        %v8043 = vpack.c.bf16 %v8038, %v8037
        %v8044 = vpack.c.bf16 %v8040, %v8039
        %v8045 = vld [vmem:[#allocation11] sm:$0xf]
        %v8046 = vld [vmem:[#allocation11 + $0x4] sm:$0xf]
        %v8049 = vunpack.c.l.b16 %v8045
        %v8050 = vunpack.c.l.b16 %v8046
        %v8051 = vpack.c.b16 %v8050, %v8049
        %v8053 = vsel %vm6560, %v8051, 0
        %8055 = vmatprep.subr.bf16.mxu0 0
        %8056 = vmatpush1.bf16.msra.mxu0 0
        %8057 = vmatprep.subr.bf16.mxu0 0
        %8058 = vmatpush1.bf16.msra.mxu0 0
        %8059 = vmatprep.subr.bf16.mxu0 0
        %8060 = vmatpush1.bf16.msra.mxu0 0
        %8061 = vmatprep.subr.bf16.mxu0 0
        %8062 = vmatpush1.bf16.msra.mxu0 0
        %8063 = vmatprep.subr.bf16.mxu0 0
        %8064 = vmatpush1.bf16.msra.mxu0 %v8044
        %8065 = vmatprep.subr.bf16.mxu0 0
        %8066 = vmatpush1.bf16.msra.mxu0 %v8043
        %8067 = vmatprep.subr.bf16.mxu0 0
        %8068 = vmatpush1.bf16.msra.mxu0 %v8042
        %8069 = vmatprep.subr.bf16.mxu0 0
        %8070 = vmatpush1.bf16.msra.mxu0 %v8041
        %8071 = vmatprep.subr.bf16.mxu0 0
        %8072 = vmatpush2.bf16.msra.mxu0 0
        %8073 = vmatprep.subr.bf16.mxu0 0
        %8074 = vmatpush2.bf16.msra.mxu0 0
        %8075 = vmatprep.subr.bf16.mxu0 0
        %8076 = vmatpush2.bf16.msra.mxu0 0
        %8077 = vmatprep.subr.bf16.mxu0 0
        %8078 = vmatpush2.bf16.msra.mxu0 0
        %8079 = vmatprep.subr.bf16.mxu0 0
        %8080 = vmatpush2.bf16.msra.mxu0 0
        %8081 = vmatprep.subr.bf16.mxu0 0
        %8082 = vmatpush2.bf16.msra.mxu0 0
        %8083 = vmatprep.subr.bf16.mxu0 0
        %8084 = vmatpush2.bf16.msra.mxu0 0
        %8085 = vmatprep.subr.bf16.mxu0 0
        %8086 = vmatpush2.bf16.msra.mxu0 0
        %8087 = vmatprep.mubr.bf16.mxu0 0
        %8088 = vmatmul.mubr.bf16.gmra.mxu0 %v8053
        %v8089 = vpop.f32.mrf.mxu0
        %v8090 = vadd.f32 0.0, %v8089
        %v8091 = vpop.f32.mrf.mxu0
        %v8092 = vpop.f32.mrf.mxu0
        %v8093 = vadd.f32 0.0, %v8092
        %v8094 = vpop.f32.mrf.mxu0
        %8095 = vdwg.mxu0
        %s8096 = scalar_lea.vmem [#allocation11], 8
        %v8097 = vld [vmem:[%s8096] sm:$0xf]
        %v8098 = vld [vmem:[%s8096 + $0x4] sm:$0xf]
        %v8101 = vunpack.c.l.b16 %v8097
        %v8102 = vunpack.c.l.b16 %v8098
        %v8103 = vpack.c.b16 %v8102, %v8101
        %v8105 = vsel %vm6560, %v8103, 0
        %8107 = vmatprep.subr.bf16.mxu0 0
        %8108 = vmatpush1.bf16.msra.mxu0 0
        %8109 = vmatprep.subr.bf16.mxu0 0
        %8110 = vmatpush1.bf16.msra.mxu0 0
        %8111 = vmatprep.subr.bf16.mxu0 0
        %8112 = vmatpush1.bf16.msra.mxu0 0
        %8113 = vmatprep.subr.bf16.mxu0 0
        %8114 = vmatpush1.bf16.msra.mxu0 0
        %8115 = vmatprep.subr.bf16.mxu0 0
        %8116 = vmatpush1.bf16.msra.mxu0 %v8044
        %8117 = vmatprep.subr.bf16.mxu0 0
        %8118 = vmatpush1.bf16.msra.mxu0 %v8043
        %8119 = vmatprep.subr.bf16.mxu0 0
        %8120 = vmatpush1.bf16.msra.mxu0 %v8042
        %8121 = vmatprep.subr.bf16.mxu0 0
        %8122 = vmatpush1.bf16.msra.mxu0 %v8041
        %8123 = vmatprep.subr.bf16.mxu0 0
        %8124 = vmatpush2.bf16.msra.mxu0 0
        %8125 = vmatprep.subr.bf16.mxu0 0
        %8126 = vmatpush2.bf16.msra.mxu0 0
        %8127 = vmatprep.subr.bf16.mxu0 0
        %8128 = vmatpush2.bf16.msra.mxu0 0
        %8129 = vmatprep.subr.bf16.mxu0 0
        %8130 = vmatpush2.bf16.msra.mxu0 0
        %8131 = vmatprep.subr.bf16.mxu0 0
        %8132 = vmatpush2.bf16.msra.mxu0 0
        %8133 = vmatprep.subr.bf16.mxu0 0
        %8134 = vmatpush2.bf16.msra.mxu0 0
        %8135 = vmatprep.subr.bf16.mxu0 0
        %8136 = vmatpush2.bf16.msra.mxu0 0
        %8137 = vmatprep.subr.bf16.mxu0 0
        %8138 = vmatpush2.bf16.msra.mxu0 0
        %8139 = vmatprep.mubr.bf16.mxu0 0
        %8140 = vmatmul.mubr.bf16.gmra.mxu0 %v8105
        %v8141 = vpop.f32.mrf.mxu0
        %v8142 = vadd.f32 0.0, %v8141
        %v8143 = vpop.f32.mrf.mxu0
        %v8144 = vpop.f32.mrf.mxu0
        %v8145 = vadd.f32 0.0, %v8144
        %v8146 = vpop.f32.mrf.mxu0
        %8147 = vdwg.mxu0
        %v8148 = vmax.f32 %v8090, %v8142
        %v8149 = vmax.f32 %v8093, %v8145
        %s8150 = scalar_lea.vmem [#allocation11], 16
        %v8151 = vld [vmem:[%s8150] sm:$0xf]
        %v8152 = vld [vmem:[%s8150 + $0x4] sm:$0xf]
        %v8155 = vunpack.c.l.b16 %v8151
        %v8156 = vunpack.c.l.b16 %v8152
        %v8157 = vpack.c.b16 %v8156, %v8155
        %v8159 = vsel %vm6560, %v8157, 0
        %8161 = vmatprep.subr.bf16.mxu0 0
        %8162 = vmatpush1.bf16.msra.mxu0 0
        %8163 = vmatprep.subr.bf16.mxu0 0
        %8164 = vmatpush1.bf16.msra.mxu0 0
        %8165 = vmatprep.subr.bf16.mxu0 0
        %8166 = vmatpush1.bf16.msra.mxu0 0
        %8167 = vmatprep.subr.bf16.mxu0 0
        %8168 = vmatpush1.bf16.msra.mxu0 0
        %8169 = vmatprep.subr.bf16.mxu0 0
        %8170 = vmatpush1.bf16.msra.mxu0 %v8044
        %8171 = vmatprep.subr.bf16.mxu0 0
        %8172 = vmatpush1.bf16.msra.mxu0 %v8043
        %8173 = vmatprep.subr.bf16.mxu0 0
        %8174 = vmatpush1.bf16.msra.mxu0 %v8042
        %8175 = vmatprep.subr.bf16.mxu0 0
        %8176 = vmatpush1.bf16.msra.mxu0 %v8041
        %8177 = vmatprep.subr.bf16.mxu0 0
        %8178 = vmatpush2.bf16.msra.mxu0 0
        %8179 = vmatprep.subr.bf16.mxu0 0
        %8180 = vmatpush2.bf16.msra.mxu0 0
        %8181 = vmatprep.subr.bf16.mxu0 0
        %8182 = vmatpush2.bf16.msra.mxu0 0
        %8183 = vmatprep.subr.bf16.mxu0 0
        %8184 = vmatpush2.bf16.msra.mxu0 0
        %8185 = vmatprep.subr.bf16.mxu0 0
        %8186 = vmatpush2.bf16.msra.mxu0 0
        %8187 = vmatprep.subr.bf16.mxu0 0
        %8188 = vmatpush2.bf16.msra.mxu0 0
        %8189 = vmatprep.subr.bf16.mxu0 0
        %8190 = vmatpush2.bf16.msra.mxu0 0
        %8191 = vmatprep.subr.bf16.mxu0 0
        %8192 = vmatpush2.bf16.msra.mxu0 0
        %8193 = vmatprep.mubr.bf16.mxu0 0
        %8194 = vmatmul.mubr.bf16.gmra.mxu0 %v8159
        %v8195 = vpop.f32.mrf.mxu0
        %v8196 = vadd.f32 0.0, %v8195
        %v8197 = vpop.f32.mrf.mxu0
        %v8198 = vpop.f32.mrf.mxu0
        %v8199 = vadd.f32 0.0, %v8198
        %v8200 = vpop.f32.mrf.mxu0
        %8201 = vdwg.mxu0
        %v8202 = vmax.f32 %v8148, %v8196
        %v8203 = vmax.f32 %v8149, %v8199
        %s8204 = scalar_lea.vmem [#allocation11], 24
        %v8205 = vld [vmem:[%s8204] sm:$0xf]
        %v8206 = vld [vmem:[%s8204 + $0x4] sm:$0xf]
        %v8209 = vunpack.c.l.b16 %v8205
        %v8210 = vunpack.c.l.b16 %v8206
        %v8211 = vpack.c.b16 %v8210, %v8209
        %v8213 = vsel %vm6560, %v8211, 0
        %8215 = vmatprep.subr.bf16.mxu0 0
        %8216 = vmatpush1.bf16.msra.mxu0 0
        %8217 = vmatprep.subr.bf16.mxu0 0
        %8218 = vmatpush1.bf16.msra.mxu0 0
        %8219 = vmatprep.subr.bf16.mxu0 0
        %8220 = vmatpush1.bf16.msra.mxu0 0
        %8221 = vmatprep.subr.bf16.mxu0 0
        %8222 = vmatpush1.bf16.msra.mxu0 0
        %8223 = vmatprep.subr.bf16.mxu0 0
        %8224 = vmatpush1.bf16.msra.mxu0 %v8044
        %8225 = vmatprep.subr.bf16.mxu0 0
        %8226 = vmatpush1.bf16.msra.mxu0 %v8043
        %8227 = vmatprep.subr.bf16.mxu0 0
        %8228 = vmatpush1.bf16.msra.mxu0 %v8042
        %8229 = vmatprep.subr.bf16.mxu0 0
        %8230 = vmatpush1.bf16.msra.mxu0 %v8041
        %8231 = vmatprep.subr.bf16.mxu0 0
        %8232 = vmatpush2.bf16.msra.mxu0 0
        %8233 = vmatprep.subr.bf16.mxu0 0
        %8234 = vmatpush2.bf16.msra.mxu0 0
        %8235 = vmatprep.subr.bf16.mxu0 0
        %8236 = vmatpush2.bf16.msra.mxu0 0
        %8237 = vmatprep.subr.bf16.mxu0 0
        %8238 = vmatpush2.bf16.msra.mxu0 0
        %8239 = vmatprep.subr.bf16.mxu0 0
        %8240 = vmatpush2.bf16.msra.mxu0 0
        %8241 = vmatprep.subr.bf16.mxu0 0
        %8242 = vmatpush2.bf16.msra.mxu0 0
        %8243 = vmatprep.subr.bf16.mxu0 0
        %8244 = vmatpush2.bf16.msra.mxu0 0
        %8245 = vmatprep.subr.bf16.mxu0 0
        %8246 = vmatpush2.bf16.msra.mxu0 0
        %8247 = vmatprep.mubr.bf16.mxu0 0
        %8248 = vmatmul.mubr.bf16.gmra.mxu0 %v8213
        %v8249 = vpop.f32.mrf.mxu0
        %v8250 = vadd.f32 0.0, %v8249
        %v8251 = vpop.f32.mrf.mxu0
        %v8252 = vpop.f32.mrf.mxu0
        %v8253 = vadd.f32 0.0, %v8252
        %v8254 = vpop.f32.mrf.mxu0
        %8255 = vdwg.mxu0
        %v8256 = vmax.f32 %v8202, %v8250
        %v8257 = vmax.f32 %v8203, %v8253
        %v8258 = vpack.c.bf16 %v8257, %v8256
        %v8259 = vld [vmem:[#allocation14] sm:$0xf]
        %v8260 = vld [vmem:[#allocation14 + $0x4] sm:$0xf]
        %v8263 = vunpack.c.l.b16 %v8259
        %v8264 = vunpack.c.l.b16 %v8260
        %v8265 = vpack.c.b16 %v8264, %v8263
        %vm8266 = vcmask 130048
        %v8268 = vsel %vm8266, %v8265, 0
        %8270 = vmatprep.subr.bf16.mxu0 0
        %8271 = vmatpush1.bf16.msra.mxu0 0
        %8272 = vmatprep.subr.bf16.mxu0 0
        %8273 = vmatpush1.bf16.msra.mxu0 0
        %8274 = vmatprep.subr.bf16.mxu0 0
        %8275 = vmatpush1.bf16.msra.mxu0 0
        %8276 = vmatprep.subr.bf16.mxu0 0
        %8277 = vmatpush1.bf16.msra.mxu0 0
        %8278 = vmatprep.subr.bf16.mxu0 0
        %8279 = vmatpush1.bf16.msra.mxu0 0
        %8280 = vmatprep.subr.bf16.mxu0 0
        %8281 = vmatpush1.bf16.msra.mxu0 0
        %8282 = vmatprep.subr.bf16.mxu0 0
        %8283 = vmatpush1.bf16.msra.mxu0 0
        %8284 = vmatprep.subr.bf16.mxu0 0
        %8285 = vmatpush1.bf16.msra.mxu0 %v8258
        %8286 = vmatprep.subr.bf16.mxu0 0
        %8287 = vmatpush2.bf16.msra.mxu0 0
        %8288 = vmatprep.subr.bf16.mxu0 0
        %8289 = vmatpush2.bf16.msra.mxu0 0
        %8290 = vmatprep.subr.bf16.mxu0 0
        %8291 = vmatpush2.bf16.msra.mxu0 0
        %8292 = vmatprep.subr.bf16.mxu0 0
        %8293 = vmatpush2.bf16.msra.mxu0 0
        %8294 = vmatprep.subr.bf16.mxu0 0
        %8295 = vmatpush2.bf16.msra.mxu0 0
        %8296 = vmatprep.subr.bf16.mxu0 0
        %8297 = vmatpush2.bf16.msra.mxu0 0
        %8298 = vmatprep.subr.bf16.mxu0 0
        %8299 = vmatpush2.bf16.msra.mxu0 0
        %8300 = vmatprep.subr.bf16.mxu0 0
        %8301 = vmatpush2.bf16.msra.mxu0 0
        %8302 = vmatprep.mubr.bf16.mxu0 0
        %8303 = vmatmul.mubr.bf16.gmra.mxu0 %v8268
        %v8304 = vpop.f32.mrf.mxu0
        %v8305 = vadd.f32 0.0, %v8304
        %v8306 = vpop.f32.mrf.mxu0
        %v8307 = vpop.f32.mrf.mxu0
        %v8308 = vadd.f32 0.0, %v8307
        %v8309 = vpop.f32.mrf.mxu0
        %8310 = vdwg.mxu0
        %s8311 = scalar_lea.vmem [#allocation14], 8
        %v8312 = vld [vmem:[%s8311] sm:$0xf]
        %v8313 = vld [vmem:[%s8311 + $0x4] sm:$0xf]
        %v8316 = vunpack.c.l.b16 %v8312
        %v8317 = vunpack.c.l.b16 %v8313
        %v8318 = vpack.c.b16 %v8317, %v8316
        %v8320 = vsel %vm8266, %v8318, 0
        %8322 = vmatprep.subr.bf16.mxu0 0
        %8323 = vmatpush1.bf16.msra.mxu0 0
        %8324 = vmatprep.subr.bf16.mxu0 0
        %8325 = vmatpush1.bf16.msra.mxu0 0
        %8326 = vmatprep.subr.bf16.mxu0 0
        %8327 = vmatpush1.bf16.msra.mxu0 0
        %8328 = vmatprep.subr.bf16.mxu0 0
        %8329 = vmatpush1.bf16.msra.mxu0 0
        %8330 = vmatprep.subr.bf16.mxu0 0
        %8331 = vmatpush1.bf16.msra.mxu0 0
        %8332 = vmatprep.subr.bf16.mxu0 0
        %8333 = vmatpush1.bf16.msra.mxu0 0
        %8334 = vmatprep.subr.bf16.mxu0 0
        %8335 = vmatpush1.bf16.msra.mxu0 0
        %8336 = vmatprep.subr.bf16.mxu0 0
        %8337 = vmatpush1.bf16.msra.mxu0 %v8258
        %8338 = vmatprep.subr.bf16.mxu0 0
        %8339 = vmatpush2.bf16.msra.mxu0 0
        %8340 = vmatprep.subr.bf16.mxu0 0
        %8341 = vmatpush2.bf16.msra.mxu0 0
        %8342 = vmatprep.subr.bf16.mxu0 0
        %8343 = vmatpush2.bf16.msra.mxu0 0
        %8344 = vmatprep.subr.bf16.mxu0 0
        %8345 = vmatpush2.bf16.msra.mxu0 0
        %8346 = vmatprep.subr.bf16.mxu0 0
        %8347 = vmatpush2.bf16.msra.mxu0 0
        %8348 = vmatprep.subr.bf16.mxu0 0
        %8349 = vmatpush2.bf16.msra.mxu0 0
        %8350 = vmatprep.subr.bf16.mxu0 0
        %8351 = vmatpush2.bf16.msra.mxu0 0
        %8352 = vmatprep.subr.bf16.mxu0 0
        %8353 = vmatpush2.bf16.msra.mxu0 0
        %8354 = vmatprep.mubr.bf16.mxu0 0
        %8355 = vmatmul.mubr.bf16.gmra.mxu0 %v8320
        %v8356 = vpop.f32.mrf.mxu0
        %v8357 = vadd.f32 0.0, %v8356
        %v8358 = vpop.f32.mrf.mxu0
        %v8359 = vpop.f32.mrf.mxu0
        %v8360 = vadd.f32 0.0, %v8359
        %v8361 = vpop.f32.mrf.mxu0
        %8362 = vdwg.mxu0
        %s8363 = scalar_lea.vmem [#allocation14], 16
        %v8364 = vld [vmem:[%s8363] sm:$0xf]
        %v8365 = vld [vmem:[%s8363 + $0x4] sm:$0xf]
        %v8368 = vunpack.c.l.b16 %v8364
        %v8369 = vunpack.c.l.b16 %v8365
        %v8370 = vpack.c.b16 %v8369, %v8368
        %v8372 = vsel %vm8266, %v8370, 0
        %8374 = vmatprep.subr.bf16.mxu0 0
        %8375 = vmatpush1.bf16.msra.mxu0 0
        %8376 = vmatprep.subr.bf16.mxu0 0
        %8377 = vmatpush1.bf16.msra.mxu0 0
        %8378 = vmatprep.subr.bf16.mxu0 0
        %8379 = vmatpush1.bf16.msra.mxu0 0
        %8380 = vmatprep.subr.bf16.mxu0 0
        %8381 = vmatpush1.bf16.msra.mxu0 0
        %8382 = vmatprep.subr.bf16.mxu0 0
        %8383 = vmatpush1.bf16.msra.mxu0 0
        %8384 = vmatprep.subr.bf16.mxu0 0
        %8385 = vmatpush1.bf16.msra.mxu0 0
        %8386 = vmatprep.subr.bf16.mxu0 0
        %8387 = vmatpush1.bf16.msra.mxu0 0
        %8388 = vmatprep.subr.bf16.mxu0 0
        %8389 = vmatpush1.bf16.msra.mxu0 %v8258
        %8390 = vmatprep.subr.bf16.mxu0 0
        %8391 = vmatpush2.bf16.msra.mxu0 0
        %8392 = vmatprep.subr.bf16.mxu0 0
        %8393 = vmatpush2.bf16.msra.mxu0 0
        %8394 = vmatprep.subr.bf16.mxu0 0
        %8395 = vmatpush2.bf16.msra.mxu0 0
        %8396 = vmatprep.subr.bf16.mxu0 0
        %8397 = vmatpush2.bf16.msra.mxu0 0
        %8398 = vmatprep.subr.bf16.mxu0 0
        %8399 = vmatpush2.bf16.msra.mxu0 0
        %8400 = vmatprep.subr.bf16.mxu0 0
        %8401 = vmatpush2.bf16.msra.mxu0 0
        %8402 = vmatprep.subr.bf16.mxu0 0
        %8403 = vmatpush2.bf16.msra.mxu0 0
        %8404 = vmatprep.subr.bf16.mxu0 0
        %8405 = vmatpush2.bf16.msra.mxu0 0
        %8406 = vmatprep.mubr.bf16.mxu0 0
        %8407 = vmatmul.mubr.bf16.gmra.mxu0 %v8372
        %v8408 = vpop.f32.mrf.mxu0
        %v8409 = vadd.f32 0.0, %v8408
        %v8410 = vpop.f32.mrf.mxu0
        %v8411 = vpop.f32.mrf.mxu0
        %v8412 = vadd.f32 0.0, %v8411
        %v8413 = vpop.f32.mrf.mxu0
        %8414 = vdwg.mxu0
        %s8415 = scalar_lea.vmem [#allocation14], 24
        %v8416 = vld [vmem:[%s8415] sm:$0xf]
        %v8417 = vld [vmem:[%s8415 + $0x4] sm:$0xf]
        %v8420 = vunpack.c.l.b16 %v8416
        %v8421 = vunpack.c.l.b16 %v8417
        %v8422 = vpack.c.b16 %v8421, %v8420
        %v8424 = vsel %vm8266, %v8422, 0
        %8426 = vmatprep.subr.bf16.mxu0 0
        %8427 = vmatpush1.bf16.msra.mxu0 0
        %8428 = vmatprep.subr.bf16.mxu0 0
        %8429 = vmatpush1.bf16.msra.mxu0 0
        %8430 = vmatprep.subr.bf16.mxu0 0
        %8431 = vmatpush1.bf16.msra.mxu0 0
        %8432 = vmatprep.subr.bf16.mxu0 0
        %8433 = vmatpush1.bf16.msra.mxu0 0
        %8434 = vmatprep.subr.bf16.mxu0 0
        %8435 = vmatpush1.bf16.msra.mxu0 0
        %8436 = vmatprep.subr.bf16.mxu0 0
        %8437 = vmatpush1.bf16.msra.mxu0 0
        %8438 = vmatprep.subr.bf16.mxu0 0
        %8439 = vmatpush1.bf16.msra.mxu0 0
        %8440 = vmatprep.subr.bf16.mxu0 0
        %8441 = vmatpush1.bf16.msra.mxu0 %v8258
        %8442 = vmatprep.subr.bf16.mxu0 0
        %8443 = vmatpush2.bf16.msra.mxu0 0
        %8444 = vmatprep.subr.bf16.mxu0 0
        %8445 = vmatpush2.bf16.msra.mxu0 0
        %8446 = vmatprep.subr.bf16.mxu0 0
        %8447 = vmatpush2.bf16.msra.mxu0 0
        %8448 = vmatprep.subr.bf16.mxu0 0
        %8449 = vmatpush2.bf16.msra.mxu0 0
        %8450 = vmatprep.subr.bf16.mxu0 0
        %8451 = vmatpush2.bf16.msra.mxu0 0
        %8452 = vmatprep.subr.bf16.mxu0 0
        %8453 = vmatpush2.bf16.msra.mxu0 0
        %8454 = vmatprep.subr.bf16.mxu0 0
        %8455 = vmatpush2.bf16.msra.mxu0 0
        %8456 = vmatprep.subr.bf16.mxu0 0
        %8457 = vmatpush2.bf16.msra.mxu0 0
        %8458 = vmatprep.mubr.bf16.mxu0 0
        %8459 = vmatmul.mubr.bf16.gmra.mxu0 %v8424
        %v8460 = vpop.f32.mrf.mxu0
        %v8461 = vadd.f32 0.0, %v8460
        %v8462 = vpop.f32.mrf.mxu0
        %v8463 = vpop.f32.mrf.mxu0
        %v8464 = vadd.f32 0.0, %v8463
        %v8465 = vpop.f32.mrf.mxu0
        %8466 = vdwg.mxu0
        %s8467 = scalar_lea.vmem [#allocation14], 32
        %v8468 = vld [vmem:[%s8467] sm:$0xf]
        %v8469 = vld [vmem:[%s8467 + $0x4] sm:$0xf]
        %v8472 = vunpack.c.l.b16 %v8468
        %v8473 = vunpack.c.l.b16 %v8469
        %v8474 = vpack.c.b16 %v8473, %v8472
        %v8476 = vsel %vm8266, %v8474, 0
        %8478 = vmatprep.subr.bf16.mxu0 0
        %8479 = vmatpush1.bf16.msra.mxu0 0
        %8480 = vmatprep.subr.bf16.mxu0 0
        %8481 = vmatpush1.bf16.msra.mxu0 0
        %8482 = vmatprep.subr.bf16.mxu0 0
        %8483 = vmatpush1.bf16.msra.mxu0 0
        %8484 = vmatprep.subr.bf16.mxu0 0
        %8485 = vmatpush1.bf16.msra.mxu0 0
        %8486 = vmatprep.subr.bf16.mxu0 0
        %8487 = vmatpush1.bf16.msra.mxu0 0
        %8488 = vmatprep.subr.bf16.mxu0 0
        %8489 = vmatpush1.bf16.msra.mxu0 0
        %8490 = vmatprep.subr.bf16.mxu0 0
        %8491 = vmatpush1.bf16.msra.mxu0 0
        %8492 = vmatprep.subr.bf16.mxu0 0
        %8493 = vmatpush1.bf16.msra.mxu0 %v8258
        %8494 = vmatprep.subr.bf16.mxu0 0
        %8495 = vmatpush2.bf16.msra.mxu0 0
        %8496 = vmatprep.subr.bf16.mxu0 0
        %8497 = vmatpush2.bf16.msra.mxu0 0
        %8498 = vmatprep.subr.bf16.mxu0 0
        %8499 = vmatpush2.bf16.msra.mxu0 0
        %8500 = vmatprep.subr.bf16.mxu0 0
        %8501 = vmatpush2.bf16.msra.mxu0 0
        %8502 = vmatprep.subr.bf16.mxu0 0
        %8503 = vmatpush2.bf16.msra.mxu0 0
        %8504 = vmatprep.subr.bf16.mxu0 0
        %8505 = vmatpush2.bf16.msra.mxu0 0
        %8506 = vmatprep.subr.bf16.mxu0 0
        %8507 = vmatpush2.bf16.msra.mxu0 0
        %8508 = vmatprep.subr.bf16.mxu0 0
        %8509 = vmatpush2.bf16.msra.mxu0 0
        %8510 = vmatprep.mubr.bf16.mxu0 0
        %8511 = vmatmul.mubr.bf16.gmra.mxu0 %v8476
        %v8512 = vpop.f32.mrf.mxu0
        %v8513 = vadd.f32 0.0, %v8512
        %v8514 = vpop.f32.mrf.mxu0
        %v8515 = vpop.f32.mrf.mxu0
        %v8516 = vadd.f32 0.0, %v8515
        %v8517 = vpop.f32.mrf.mxu0
        %8518 = vdwg.mxu0
        %s8519 = scalar_lea.vmem [#allocation14], 40
        %v8520 = vld [vmem:[%s8519] sm:$0xf]
        %v8521 = vld [vmem:[%s8519 + $0x4] sm:$0xf]
        %v8524 = vunpack.c.l.b16 %v8520
        %v8525 = vunpack.c.l.b16 %v8521
        %v8526 = vpack.c.b16 %v8525, %v8524
        %v8528 = vsel %vm8266, %v8526, 0
        %8530 = vmatprep.subr.bf16.mxu0 0
        %8531 = vmatpush1.bf16.msra.mxu0 0
        %8532 = vmatprep.subr.bf16.mxu0 0
        %8533 = vmatpush1.bf16.msra.mxu0 0
        %8534 = vmatprep.subr.bf16.mxu0 0
        %8535 = vmatpush1.bf16.msra.mxu0 0
        %8536 = vmatprep.subr.bf16.mxu0 0
        %8537 = vmatpush1.bf16.msra.mxu0 0
        %8538 = vmatprep.subr.bf16.mxu0 0
        %8539 = vmatpush1.bf16.msra.mxu0 0
        %8540 = vmatprep.subr.bf16.mxu0 0
        %8541 = vmatpush1.bf16.msra.mxu0 0
        %8542 = vmatprep.subr.bf16.mxu0 0
        %8543 = vmatpush1.bf16.msra.mxu0 0
        %8544 = vmatprep.subr.bf16.mxu0 0
        %8545 = vmatpush1.bf16.msra.mxu0 %v8258
        %8546 = vmatprep.subr.bf16.mxu0 0
        %8547 = vmatpush2.bf16.msra.mxu0 0
        %8548 = vmatprep.subr.bf16.mxu0 0
        %8549 = vmatpush2.bf16.msra.mxu0 0
        %8550 = vmatprep.subr.bf16.mxu0 0
        %8551 = vmatpush2.bf16.msra.mxu0 0
        %8552 = vmatprep.subr.bf16.mxu0 0
        %8553 = vmatpush2.bf16.msra.mxu0 0
        %8554 = vmatprep.subr.bf16.mxu0 0
        %8555 = vmatpush2.bf16.msra.mxu0 0
        %8556 = vmatprep.subr.bf16.mxu0 0
        %8557 = vmatpush2.bf16.msra.mxu0 0
        %8558 = vmatprep.subr.bf16.mxu0 0
        %8559 = vmatpush2.bf16.msra.mxu0 0
        %8560 = vmatprep.subr.bf16.mxu0 0
        %8561 = vmatpush2.bf16.msra.mxu0 0
        %8562 = vmatprep.mubr.bf16.mxu0 0
        %8563 = vmatmul.mubr.bf16.gmra.mxu0 %v8528
        %v8564 = vpop.f32.mrf.mxu0
        %v8565 = vadd.f32 0.0, %v8564
        %v8566 = vpop.f32.mrf.mxu0
        %v8567 = vpop.f32.mrf.mxu0
        %v8568 = vadd.f32 0.0, %v8567
        %v8569 = vpop.f32.mrf.mxu0
        %8570 = vdwg.mxu0
        %s8571 = scalar_lea.vmem [#allocation14], 48
        %v8572 = vld [vmem:[%s8571] sm:$0xf]
        %v8573 = vld [vmem:[%s8571 + $0x4] sm:$0xf]
        %v8576 = vunpack.c.l.b16 %v8572
        %v8577 = vunpack.c.l.b16 %v8573
        %v8578 = vpack.c.b16 %v8577, %v8576
        %v8580 = vsel %vm8266, %v8578, 0
        %8582 = vmatprep.subr.bf16.mxu0 0
        %8583 = vmatpush1.bf16.msra.mxu0 0
        %8584 = vmatprep.subr.bf16.mxu0 0
        %8585 = vmatpush1.bf16.msra.mxu0 0
        %8586 = vmatprep.subr.bf16.mxu0 0
        %8587 = vmatpush1.bf16.msra.mxu0 0
        %8588 = vmatprep.subr.bf16.mxu0 0
        %8589 = vmatpush1.bf16.msra.mxu0 0
        %8590 = vmatprep.subr.bf16.mxu0 0
        %8591 = vmatpush1.bf16.msra.mxu0 0
        %8592 = vmatprep.subr.bf16.mxu0 0
        %8593 = vmatpush1.bf16.msra.mxu0 0
        %8594 = vmatprep.subr.bf16.mxu0 0
        %8595 = vmatpush1.bf16.msra.mxu0 0
        %8596 = vmatprep.subr.bf16.mxu0 0
        %8597 = vmatpush1.bf16.msra.mxu0 %v8258
        %8598 = vmatprep.subr.bf16.mxu0 0
        %8599 = vmatpush2.bf16.msra.mxu0 0
        %8600 = vmatprep.subr.bf16.mxu0 0
        %8601 = vmatpush2.bf16.msra.mxu0 0
        %8602 = vmatprep.subr.bf16.mxu0 0
        %8603 = vmatpush2.bf16.msra.mxu0 0
        %8604 = vmatprep.subr.bf16.mxu0 0
        %8605 = vmatpush2.bf16.msra.mxu0 0
        %8606 = vmatprep.subr.bf16.mxu0 0
        %8607 = vmatpush2.bf16.msra.mxu0 0
        %8608 = vmatprep.subr.bf16.mxu0 0
        %8609 = vmatpush2.bf16.msra.mxu0 0
        %8610 = vmatprep.subr.bf16.mxu0 0
        %8611 = vmatpush2.bf16.msra.mxu0 0
        %8612 = vmatprep.subr.bf16.mxu0 0
        %8613 = vmatpush2.bf16.msra.mxu0 0
        %8614 = vmatprep.mubr.bf16.mxu0 0
        %8615 = vmatmul.mubr.bf16.gmra.mxu0 %v8580
        %v8616 = vpop.f32.mrf.mxu0
        %v8617 = vadd.f32 0.0, %v8616
        %v8618 = vpop.f32.mrf.mxu0
        %v8619 = vpop.f32.mrf.mxu0
        %v8620 = vadd.f32 0.0, %v8619
        %v8621 = vpop.f32.mrf.mxu0
        %8622 = vdwg.mxu0
        %s8623 = scalar_lea.vmem [#allocation14], 56
        %v8624 = vld [vmem:[%s8623] sm:$0xf]
        %v8625 = vld [vmem:[%s8623 + $0x4] sm:$0xf]
        %v8628 = vunpack.c.l.b16 %v8624
        %v8629 = vunpack.c.l.b16 %v8625
        %v8630 = vpack.c.b16 %v8629, %v8628
        %v8632 = vsel %vm8266, %v8630, 0
        %8634 = vmatprep.subr.bf16.mxu0 0
        %8635 = vmatpush1.bf16.msra.mxu0 0
        %8636 = vmatprep.subr.bf16.mxu0 0
        %8637 = vmatpush1.bf16.msra.mxu0 0
        %8638 = vmatprep.subr.bf16.mxu0 0
        %8639 = vmatpush1.bf16.msra.mxu0 0
        %8640 = vmatprep.subr.bf16.mxu0 0
        %8641 = vmatpush1.bf16.msra.mxu0 0
        %8642 = vmatprep.subr.bf16.mxu0 0
        %8643 = vmatpush1.bf16.msra.mxu0 0
        %8644 = vmatprep.subr.bf16.mxu0 0
        %8645 = vmatpush1.bf16.msra.mxu0 0
        %8646 = vmatprep.subr.bf16.mxu0 0
        %8647 = vmatpush1.bf16.msra.mxu0 0
        %8648 = vmatprep.subr.bf16.mxu0 0
        %8649 = vmatpush1.bf16.msra.mxu0 %v8258
        %8650 = vmatprep.subr.bf16.mxu0 0
        %8651 = vmatpush2.bf16.msra.mxu0 0
        %8652 = vmatprep.subr.bf16.mxu0 0
        %8653 = vmatpush2.bf16.msra.mxu0 0
        %8654 = vmatprep.subr.bf16.mxu0 0
        %8655 = vmatpush2.bf16.msra.mxu0 0
        %8656 = vmatprep.subr.bf16.mxu0 0
        %8657 = vmatpush2.bf16.msra.mxu0 0
        %8658 = vmatprep.subr.bf16.mxu0 0
        %8659 = vmatpush2.bf16.msra.mxu0 0
        %8660 = vmatprep.subr.bf16.mxu0 0
        %8661 = vmatpush2.bf16.msra.mxu0 0
        %8662 = vmatprep.subr.bf16.mxu0 0
        %8663 = vmatpush2.bf16.msra.mxu0 0
        %8664 = vmatprep.subr.bf16.mxu0 0
        %8665 = vmatpush2.bf16.msra.mxu0 0
        %8666 = vmatprep.mubr.bf16.mxu0 0
        %8667 = vmatmul.mubr.bf16.gmra.mxu0 %v8632
        %v8668 = vpop.f32.mrf.mxu0
        %v8669 = vadd.f32 0.0, %v8668
        %v8670 = vpop.f32.mrf.mxu0
        %v8671 = vpop.f32.mrf.mxu0
        %v8672 = vadd.f32 0.0, %v8671
        %v8673 = vpop.f32.mrf.mxu0
        %8674 = vdwg.mxu0
        %s8675 = scalar_lea.vmem [#allocation14], 64
        %v8676 = vld [vmem:[%s8675] sm:$0xf]
        %v8677 = vld [vmem:[%s8675 + $0x4] sm:$0xf]
        %v8680 = vunpack.c.l.b16 %v8676
        %v8681 = vunpack.c.l.b16 %v8677
        %v8682 = vpack.c.b16 %v8681, %v8680
        %v8684 = vsel %vm8266, %v8682, 0
        %8686 = vmatprep.subr.bf16.mxu0 0
        %8687 = vmatpush1.bf16.msra.mxu0 0
        %8688 = vmatprep.subr.bf16.mxu0 0
        %8689 = vmatpush1.bf16.msra.mxu0 0
        %8690 = vmatprep.subr.bf16.mxu0 0
        %8691 = vmatpush1.bf16.msra.mxu0 0
        %8692 = vmatprep.subr.bf16.mxu0 0
        %8693 = vmatpush1.bf16.msra.mxu0 0
        %8694 = vmatprep.subr.bf16.mxu0 0
        %8695 = vmatpush1.bf16.msra.mxu0 0
        %8696 = vmatprep.subr.bf16.mxu0 0
        %8697 = vmatpush1.bf16.msra.mxu0 0
        %8698 = vmatprep.subr.bf16.mxu0 0
        %8699 = vmatpush1.bf16.msra.mxu0 0
        %8700 = vmatprep.subr.bf16.mxu0 0
        %8701 = vmatpush1.bf16.msra.mxu0 %v8258
        %8702 = vmatprep.subr.bf16.mxu0 0
        %8703 = vmatpush2.bf16.msra.mxu0 0
        %8704 = vmatprep.subr.bf16.mxu0 0
        %8705 = vmatpush2.bf16.msra.mxu0 0
        %8706 = vmatprep.subr.bf16.mxu0 0
        %8707 = vmatpush2.bf16.msra.mxu0 0
        %8708 = vmatprep.subr.bf16.mxu0 0
        %8709 = vmatpush2.bf16.msra.mxu0 0
        %8710 = vmatprep.subr.bf16.mxu0 0
        %8711 = vmatpush2.bf16.msra.mxu0 0
        %8712 = vmatprep.subr.bf16.mxu0 0
        %8713 = vmatpush2.bf16.msra.mxu0 0
        %8714 = vmatprep.subr.bf16.mxu0 0
        %8715 = vmatpush2.bf16.msra.mxu0 0
        %8716 = vmatprep.subr.bf16.mxu0 0
        %8717 = vmatpush2.bf16.msra.mxu0 0
        %8718 = vmatprep.mubr.bf16.mxu0 0
        %8719 = vmatmul.mubr.bf16.gmra.mxu0 %v8684
        %v8720 = vpop.f32.mrf.mxu0
        %v8721 = vadd.f32 0.0, %v8720
        %v8722 = vpop.f32.mrf.mxu0
        %v8723 = vpop.f32.mrf.mxu0
        %v8724 = vadd.f32 0.0, %v8723
        %v8725 = vpop.f32.mrf.mxu0
        %8726 = vdwg.mxu0
        %8729 = vrot.lane.b32.xlu0 %v8357, 64
        %v8730 = vpop.permute.xlu0 %8729
        %8731 = vrot.lane.b32.xlu0 %v8360, 64
        %v8732 = vpop.permute.xlu0 %8731
        %8737 = vrot.lane.b32.xlu0 %v8461, 64
        %v8738 = vpop.permute.xlu0 %8737
        %8739 = vrot.lane.b32.xlu0 %v8464, 64
        %v8740 = vpop.permute.xlu0 %8739
        %8745 = vrot.lane.b32.xlu0 %v8565, 64
        %v8746 = vpop.permute.xlu0 %8745
        %8747 = vrot.lane.b32.xlu0 %v8568, 64
        %v8748 = vpop.permute.xlu0 %8747
        %8753 = vrot.lane.b32.xlu0 %v8669, 64
        %v8754 = vpop.permute.xlu0 %8753
        %8755 = vrot.lane.b32.xlu0 %v8672, 64
        %v8756 = vpop.permute.xlu0 %8755
        %v8759 = vsel %vm6560, %v8305, %v8730
        %v8760 = vsel %vm6560, %v8308, %v8732
        %v8761 = vsel %vm6560, %v8409, %v8738
        %v8762 = vsel %vm6560, %v8412, %v8740
        %v8763 = vsel %vm6560, %v8513, %v8746
        %v8764 = vsel %vm6560, %v8516, %v8748
        %v8765 = vsel %vm6560, %v8617, %v8754
        %v8766 = vsel %vm6560, %v8620, %v8756
        %v8767 = vpack.c.bf16 %v8760, %v8759
        %v8768 = vpack.c.bf16 %v8762, %v8761
        %v8769 = vpack.c.bf16 %v8764, %v8763
        %v8770 = vpack.c.bf16 %v8766, %v8765
        %v8771 = vpack.c.bf16 %v8724, %v8721
        %v8772 = vld [vmem:[#allocation17] sm:$0xf]
        %v8773 = vld [vmem:[#allocation17 + $0x4] sm:$0xf]
        %v8774 = vld [vmem:[#allocation17 + $0x8] sm:$0xf]
        %v8775 = vld [vmem:[#allocation17 + $0xc] sm:$0xf]
        %v8776 = vld [vmem:[#allocation17 + $0x10] sm:$0xf]
        %v8777 = vld [vmem:[#allocation17 + $0x14] sm:$0xf]
        %v8778 = vld [vmem:[#allocation17 + $0x18] sm:$0xf]
        %v8779 = vld [vmem:[#allocation17 + $0x1c] sm:$0xf]
        %v8780 = vld [vmem:[#allocation17 + $0x20] sm:$0xf]
        %v8781 = vld [vmem:[#allocation17 + $0x24] sm:$0xf]
        %v8782 = vld [vmem:[#allocation17 + $0x28] sm:$0xf]
        %v8783 = vld [vmem:[#allocation17 + $0x2c] sm:$0xf]
        %v8784 = vld [vmem:[#allocation17 + $0x30] sm:$0xf]
        %v8785 = vld [vmem:[#allocation17 + $0x34] sm:$0xf]
        %v8786 = vld [vmem:[#allocation17 + $0x38] sm:$0xf]
        %v8787 = vld [vmem:[#allocation17 + $0x3c] sm:$0xf]
        %v8788 = vld [vmem:[#allocation17 + $0x40] sm:$0xf]
        %v8789 = vld [vmem:[#allocation17 + $0x44] sm:$0xf]
        %v8790 = vld [vmem:[#allocation17 + $0x48] sm:$0xf]
        %v8791 = vld [vmem:[#allocation17 + $0x4c] sm:$0xf]
        %v8792 = vld [vmem:[#allocation17 + $0x50] sm:$0xf]
        %v8793 = vld [vmem:[#allocation17 + $0x54] sm:$0xf]
        %v8794 = vld [vmem:[#allocation17 + $0x58] sm:$0xf]
        %v8795 = vld [vmem:[#allocation17 + $0x5c] sm:$0xf]
        %v8796 = vld [vmem:[#allocation17 + $0x60] sm:$0xf]
        %v8797 = vld [vmem:[#allocation17 + $0x64] sm:$0xf]
        %v8798 = vld [vmem:[#allocation17 + $0x68] sm:$0xf]
        %v8799 = vld [vmem:[#allocation17 + $0x6c] sm:$0xf]
        %v8800 = vld [vmem:[#allocation17 + $0x70] sm:$0xf]
        %v8801 = vld [vmem:[#allocation17 + $0x74] sm:$0xf]
        %v8802 = vld [vmem:[#allocation17 + $0x78] sm:$0xf]
        %v8803 = vld [vmem:[#allocation17 + $0x7c] sm:$0xf]
        %v8804 = vld [vmem:[#allocation17 + $0x80] sm:$0xf]
        %v8805 = vld [vmem:[#allocation17 + $0x84] sm:$0xf]
        %v8806 = vld [vmem:[#allocation17 + $0x88] sm:$0xf]
        %v8807 = vld [vmem:[#allocation17 + $0x8c] sm:$0xf]
        %v8808 = vld [vmem:[#allocation17 + $0x90] sm:$0xf]
        %v8809 = vld [vmem:[#allocation17 + $0x94] sm:$0xf]
        %v8810 = vld [vmem:[#allocation17 + $0x98] sm:$0xf]
        %v8811 = vld [vmem:[#allocation17 + $0x9c] sm:$0xf]
        %v8812 = vld [vmem:[#allocation17 + $0xa0] sm:$0xf]
        %v8813 = vld [vmem:[#allocation17 + $0xa4] sm:$0xf]
        %v8814 = vld [vmem:[#allocation17 + $0xa8] sm:$0xf]
        %v8815 = vld [vmem:[#allocation17 + $0xac] sm:$0xf]
        %v8816 = vld [vmem:[#allocation17 + $0xb0] sm:$0xf]
        %v8817 = vld [vmem:[#allocation17 + $0xb4] sm:$0xf]
        %v8818 = vld [vmem:[#allocation17 + $0xb8] sm:$0xf]
        %v8819 = vld [vmem:[#allocation17 + $0xbc] sm:$0xf]
        %v8820 = vld [vmem:[#allocation17 + $0xc0] sm:$0xf]
        %v8821 = vld [vmem:[#allocation17 + $0xc4] sm:$0xf]
        %v8822 = vld [vmem:[#allocation17 + $0xc8] sm:$0xf]
        %v8823 = vld [vmem:[#allocation17 + $0xcc] sm:$0xf]
        %v8824 = vld [vmem:[#allocation17 + $0xd0] sm:$0xf]
        %v8825 = vld [vmem:[#allocation17 + $0xd4] sm:$0xf]
        %v8826 = vld [vmem:[#allocation17 + $0xd8] sm:$0xf]
        %v8827 = vld [vmem:[#allocation17 + $0xdc] sm:$0xf]
        %v8828 = vld [vmem:[#allocation17 + $0xe0] sm:$0xf]
        %v8829 = vld [vmem:[#allocation17 + $0xe4] sm:$0xf]
        %v8830 = vld [vmem:[#allocation17 + $0xe8] sm:$0xf]
        %v8831 = vld [vmem:[#allocation17 + $0xec] sm:$0xf]
        %v8832 = vld [vmem:[#allocation17 + $0xf0] sm:$0xf]
        %v8833 = vld [vmem:[#allocation17 + $0xf4] sm:$0xf]
        %v8834 = vld [vmem:[#allocation17 + $0xf8] sm:$0xf]
        %v8835 = vld [vmem:[#allocation17 + $0xfc] sm:$0xf]
        %v8836 = vld [vmem:[#allocation17 + $0x100] sm:$0xf]
        %v8837 = vld [vmem:[#allocation17 + $0x104] sm:$0xf]
        %v8838 = vld [vmem:[#allocation17 + $0x108] sm:$0xf]
        %v8839 = vld [vmem:[#allocation17 + $0x10c] sm:$0xf]
        %v8840 = vld [vmem:[#allocation17 + $0x110] sm:$0xf]
        %v8841 = vld [vmem:[#allocation17 + $0x114] sm:$0xf]
        %v8842 = vld [vmem:[#allocation17 + $0x118] sm:$0xf]
        %v8843 = vld [vmem:[#allocation17 + $0x11c] sm:$0xf]
        %v8844 = vld [vmem:[#allocation19] sm:$0x1]
        %v8846 = vlaneseq
        %v8847 = vshrl.u32 %v8846, 7
        %v8848 = vsub.s32 0, %v8847
        %v8849 = vrot.slane %v8844, %v8848
        %v8923 = vunpack.c.l.b16 %v8772
        %v8924 = vunpack.c.l.b16 %v8773
        %v8925 = vunpack.c.l.b16 %v8774
        %v8926 = vunpack.c.l.b16 %v8775
        %v8927 = vunpack.c.l.b16 %v8776
        %v8928 = vunpack.c.l.b16 %v8777
        %v8929 = vunpack.c.l.b16 %v8778
        %v8930 = vunpack.c.l.b16 %v8779
        %v8931 = vunpack.c.l.b16 %v8780
        %v8932 = vunpack.c.l.b16 %v8781
        %v8933 = vunpack.c.l.b16 %v8782
        %v8934 = vunpack.c.l.b16 %v8783
        %v8935 = vunpack.c.l.b16 %v8784
        %v8936 = vunpack.c.l.b16 %v8785
        %v8937 = vunpack.c.l.b16 %v8786
        %v8938 = vunpack.c.l.b16 %v8787
        %v8939 = vunpack.c.l.b16 %v8788
        %v8940 = vunpack.c.l.b16 %v8789
        %v8941 = vunpack.c.l.b16 %v8790
        %v8942 = vunpack.c.l.b16 %v8791
        %v8943 = vunpack.c.l.b16 %v8792
        %v8944 = vunpack.c.l.b16 %v8793
        %v8945 = vunpack.c.l.b16 %v8794
        %v8946 = vunpack.c.l.b16 %v8795
        %v8947 = vunpack.c.l.b16 %v8796
        %v8948 = vunpack.c.l.b16 %v8797
        %v8949 = vunpack.c.l.b16 %v8798
        %v8950 = vunpack.c.l.b16 %v8799
        %v8951 = vunpack.c.l.b16 %v8800
        %v8952 = vunpack.c.l.b16 %v8801
        %v8953 = vunpack.c.l.b16 %v8802
        %v8954 = vunpack.c.l.b16 %v8803
        %v8955 = vunpack.c.l.b16 %v8804
        %v8956 = vunpack.c.l.b16 %v8805
        %v8957 = vunpack.c.l.b16 %v8806
        %v8958 = vunpack.c.l.b16 %v8807
        %v8959 = vunpack.c.l.b16 %v8808
        %v8960 = vunpack.c.l.b16 %v8809
        %v8961 = vunpack.c.l.b16 %v8810
        %v8962 = vunpack.c.l.b16 %v8811
        %v8963 = vunpack.c.l.b16 %v8812
        %v8964 = vunpack.c.l.b16 %v8813
        %v8965 = vunpack.c.l.b16 %v8814
        %v8966 = vunpack.c.l.b16 %v8815
        %v8967 = vunpack.c.l.b16 %v8816
        %v8968 = vunpack.c.l.b16 %v8817
        %v8969 = vunpack.c.l.b16 %v8818
        %v8970 = vunpack.c.l.b16 %v8819
        %v8971 = vunpack.c.l.b16 %v8820
        %v8972 = vunpack.c.l.b16 %v8821
        %v8973 = vunpack.c.l.b16 %v8822
        %v8974 = vunpack.c.l.b16 %v8823
        %v8975 = vunpack.c.l.b16 %v8824
        %v8976 = vunpack.c.l.b16 %v8825
        %v8977 = vunpack.c.l.b16 %v8826
        %v8978 = vunpack.c.l.b16 %v8827
        %v8979 = vunpack.c.l.b16 %v8828
        %v8980 = vunpack.c.l.b16 %v8829
        %v8981 = vunpack.c.l.b16 %v8830
        %v8982 = vunpack.c.l.b16 %v8831
        %v8983 = vunpack.c.l.b16 %v8832
        %v8984 = vunpack.c.l.b16 %v8833
        %v8985 = vunpack.c.l.b16 %v8834
        %v8986 = vunpack.c.l.b16 %v8835
        %v8987 = vunpack.c.l.b16 %v8836
        %v8988 = vunpack.c.l.b16 %v8837
        %v8989 = vunpack.c.l.b16 %v8838
        %v8990 = vunpack.c.l.b16 %v8839
        %v8991 = vunpack.c.l.b16 %v8840
        %v8992 = vunpack.c.l.b16 %v8841
        %v8993 = vunpack.c.l.b16 %v8842
        %v8994 = vunpack.c.l.b16 %v8843
        %v8995 = vpack.c.b16 %v8924, %v8923
        %v8996 = vpack.c.b16 %v8926, %v8925
        %v8997 = vpack.c.b16 %v8928, %v8927
        %v8998 = vpack.c.b16 %v8930, %v8929
        %v8999 = vpack.c.b16 %v8932, %v8931
        %v9000 = vpack.c.b16 %v8934, %v8933
        %v9001 = vpack.c.b16 %v8936, %v8935
        %v9002 = vpack.c.b16 %v8938, %v8937
        %v9003 = vpack.c.b16 %v8940, %v8939
        %v9004 = vpack.c.b16 %v8942, %v8941
        %v9005 = vpack.c.b16 %v8944, %v8943
        %v9006 = vpack.c.b16 %v8946, %v8945
        %v9007 = vpack.c.b16 %v8948, %v8947
        %v9008 = vpack.c.b16 %v8950, %v8949
        %v9009 = vpack.c.b16 %v8952, %v8951
        %v9010 = vpack.c.b16 %v8954, %v8953
        %v9011 = vpack.c.b16 %v8956, %v8955
        %v9012 = vpack.c.b16 %v8958, %v8957
        %v9013 = vpack.c.b16 %v8960, %v8959
        %v9014 = vpack.c.b16 %v8962, %v8961
        %v9015 = vpack.c.b16 %v8964, %v8963
        %v9016 = vpack.c.b16 %v8966, %v8965
        %v9017 = vpack.c.b16 %v8968, %v8967
        %v9018 = vpack.c.b16 %v8970, %v8969
        %v9019 = vpack.c.b16 %v8972, %v8971
        %v9020 = vpack.c.b16 %v8974, %v8973
        %v9021 = vpack.c.b16 %v8976, %v8975
        %v9022 = vpack.c.b16 %v8978, %v8977
        %v9023 = vpack.c.b16 %v8980, %v8979
        %v9024 = vpack.c.b16 %v8982, %v8981
        %v9025 = vpack.c.b16 %v8984, %v8983
        %v9026 = vpack.c.b16 %v8986, %v8985
        %v9027 = vpack.c.b16 %v8988, %v8987
        %v9028 = vpack.c.b16 %v8990, %v8989
        %v9029 = vpack.c.b16 %v8992, %v8991
        %v9030 = vpack.c.b16 %v8994, %v8993
        %v9068 = vsel %vm6560, %v8771, 0
        %9070 = vmatprep.subr.bf16.mxu0 0
        %9071 = vmatpush1.bf16.msra.mxu0 %v9002
        %9072 = vmatprep.subr.bf16.mxu0 0
        %9073 = vmatpush1.bf16.msra.mxu0 %v9001
        %9074 = vmatprep.subr.bf16.mxu0 0
        %9075 = vmatpush1.bf16.msra.mxu0 %v9000
        %9076 = vmatprep.subr.bf16.mxu0 0
        %9077 = vmatpush1.bf16.msra.mxu0 %v8999
        %9078 = vmatprep.subr.bf16.mxu0 0
        %9079 = vmatpush1.bf16.msra.mxu0 %v8998
        %9080 = vmatprep.subr.bf16.mxu0 0
        %9081 = vmatpush1.bf16.msra.mxu0 %v8997
        %9082 = vmatprep.subr.bf16.mxu0 0
        %9083 = vmatpush1.bf16.msra.mxu0 %v8996
        %9084 = vmatprep.subr.bf16.mxu0 0
        %9085 = vmatpush1.bf16.msra.mxu0 %v8995
        %9086 = vmatprep.subr.bf16.mxu0 0
        %9087 = vmatpush2.bf16.msra.mxu0 %v9010
        %9088 = vmatprep.subr.bf16.mxu0 0
        %9089 = vmatpush2.bf16.msra.mxu0 %v9009
        %9090 = vmatprep.subr.bf16.mxu0 0
        %9091 = vmatpush2.bf16.msra.mxu0 %v9008
        %9092 = vmatprep.subr.bf16.mxu0 0
        %9093 = vmatpush2.bf16.msra.mxu0 %v9007
        %9094 = vmatprep.subr.bf16.mxu0 0
        %9095 = vmatpush2.bf16.msra.mxu0 %v9006
        %9096 = vmatprep.subr.bf16.mxu0 0
        %9097 = vmatpush2.bf16.msra.mxu0 %v9005
        %9098 = vmatprep.subr.bf16.mxu0 0
        %9099 = vmatpush2.bf16.msra.mxu0 %v9004
        %9100 = vmatprep.subr.bf16.mxu0 0
        %9101 = vmatpush2.bf16.msra.mxu0 %v9003
        %9102 = vmatprep.mubr.bf16.mxu0 %v8768
        %9103 = vmatmul.mubr.bf16.gmra.mxu0 %v8767
        %v9104 = vpop.f32.mrf.mxu0
        %v9105 = vadd.f32 %v8849, %v9104
        %v9106 = vpop.f32.mrf.mxu0
        %v9107 = vpop.f32.mrf.mxu0
        %v9108 = vadd.f32 %v8849, %v9107
        %v9109 = vpop.f32.mrf.mxu0
        %9110 = vdwg.mxu0
        %9111 = vmatprep.subr.bf16.mxu0 0
        %9112 = vmatpush1.bf16.msra.mxu0 %v9018
        %9113 = vmatprep.subr.bf16.mxu0 0
        %9114 = vmatpush1.bf16.msra.mxu0 %v9017
        %9115 = vmatprep.subr.bf16.mxu0 0
        %9116 = vmatpush1.bf16.msra.mxu0 %v9016
        %9117 = vmatprep.subr.bf16.mxu0 0
        %9118 = vmatpush1.bf16.msra.mxu0 %v9015
        %9119 = vmatprep.subr.bf16.mxu0 0
        %9120 = vmatpush1.bf16.msra.mxu0 %v9014
        %9121 = vmatprep.subr.bf16.mxu0 0
        %9122 = vmatpush1.bf16.msra.mxu0 %v9013
        %9123 = vmatprep.subr.bf16.mxu0 0
        %9124 = vmatpush1.bf16.msra.mxu0 %v9012
        %9125 = vmatprep.subr.bf16.mxu0 0
        %9126 = vmatpush1.bf16.msra.mxu0 %v9011
        %9127 = vmatprep.subr.bf16.mxu0 0
        %9128 = vmatpush2.bf16.msra.mxu0 %v9026
        %9129 = vmatprep.subr.bf16.mxu0 0
        %9130 = vmatpush2.bf16.msra.mxu0 %v9025
        %9131 = vmatprep.subr.bf16.mxu0 0
        %9132 = vmatpush2.bf16.msra.mxu0 %v9024
        %9133 = vmatprep.subr.bf16.mxu0 0
        %9134 = vmatpush2.bf16.msra.mxu0 %v9023
        %9135 = vmatprep.subr.bf16.mxu0 0
        %9136 = vmatpush2.bf16.msra.mxu0 %v9022
        %9137 = vmatprep.subr.bf16.mxu0 0
        %9138 = vmatpush2.bf16.msra.mxu0 %v9021
        %9139 = vmatprep.subr.bf16.mxu0 0
        %9140 = vmatpush2.bf16.msra.mxu0 %v9020
        %9141 = vmatprep.subr.bf16.mxu0 0
        %9142 = vmatpush2.bf16.msra.mxu0 %v9019
        %9143 = vmatprep.mubr.bf16.mxu0 %v8770
        %9144 = vmatmul.mubr.bf16.gmra.mxu0 %v8769
        %v9145 = vpop.f32.mrf.mxu0
        %v9146 = vadd.f32 %v9105, %v9145
        %v9147 = vpop.f32.mrf.mxu0
        %v9148 = vpop.f32.mrf.mxu0
        %v9149 = vadd.f32 %v9108, %v9148
        %v9150 = vpop.f32.mrf.mxu0
        %9151 = vdwg.mxu0
        %9152 = vmatprep.subr.bf16.mxu0 0
        %9153 = vmatpush1.bf16.msra.mxu0 0
        %9154 = vmatprep.subr.bf16.mxu0 0
        %9155 = vmatpush1.bf16.msra.mxu0 0
        %9156 = vmatprep.subr.bf16.mxu0 0
        %9157 = vmatpush1.bf16.msra.mxu0 0
        %9158 = vmatprep.subr.bf16.mxu0 0
        %9159 = vmatpush1.bf16.msra.mxu0 0
        %9160 = vmatprep.subr.bf16.mxu0 0
        %9161 = vmatpush1.bf16.msra.mxu0 %v9030
        %9162 = vmatprep.subr.bf16.mxu0 0
        %9163 = vmatpush1.bf16.msra.mxu0 %v9029
        %9164 = vmatprep.subr.bf16.mxu0 0
        %9165 = vmatpush1.bf16.msra.mxu0 %v9028
        %9166 = vmatprep.subr.bf16.mxu0 0
        %9167 = vmatpush1.bf16.msra.mxu0 %v9027
        %9168 = vmatprep.subr.bf16.mxu0 0
        %9169 = vmatpush2.bf16.msra.mxu0 0
        %9170 = vmatprep.subr.bf16.mxu0 0
        %9171 = vmatpush2.bf16.msra.mxu0 0
        %9172 = vmatprep.subr.bf16.mxu0 0
        %9173 = vmatpush2.bf16.msra.mxu0 0
        %9174 = vmatprep.subr.bf16.mxu0 0
        %9175 = vmatpush2.bf16.msra.mxu0 0
        %9176 = vmatprep.subr.bf16.mxu0 0
        %9177 = vmatpush2.bf16.msra.mxu0 0
        %9178 = vmatprep.subr.bf16.mxu0 0
        %9179 = vmatpush2.bf16.msra.mxu0 0
        %9180 = vmatprep.subr.bf16.mxu0 0
        %9181 = vmatpush2.bf16.msra.mxu0 0
        %9182 = vmatprep.subr.bf16.mxu0 0
        %9183 = vmatpush2.bf16.msra.mxu0 0
        %9184 = vmatprep.mubr.bf16.mxu0 0
        %9185 = vmatmul.mubr.bf16.gmra.mxu0 %v9068
        %v9186 = vpop.f32.mrf.mxu0
        %v9187 = vadd.f32 %v9146, %v9186
        %v9188 = vpop.f32.mrf.mxu0
        %v9189 = vpop.f32.mrf.mxu0
        %v9190 = vadd.f32 %v9149, %v9189
        %v9191 = vpop.f32.mrf.mxu0
        %9192 = vdwg.mxu0
        %v9193 = vmax.f32 %v9187, 0.0
        %v9194 = vmax.f32 %v9190, 0.0
        %v9195 = vpack.c.bf16 %v9194, %v9193
        %v9196 = vld [vmem:[#allocation16] sm:$0x3]
        %v9198 = vsel %vm8266, %v9196, 0
        %9200 = vmatprep.subr.bf16.mxu0 0
        %9201 = vmatpush1.bf16.msra.mxu0 0
        %9202 = vmatprep.subr.bf16.mxu0 0
        %9203 = vmatpush1.bf16.msra.mxu0 0
        %9204 = vmatprep.subr.bf16.mxu0 0
        %9205 = vmatpush1.bf16.msra.mxu0 0
        %9206 = vmatprep.subr.bf16.mxu0 0
        %9207 = vmatpush1.bf16.msra.mxu0 0
        %9208 = vmatprep.subr.bf16.mxu0 0
        %9209 = vmatpush1.bf16.msra.mxu0 0
        %9210 = vmatprep.subr.bf16.mxu0 0
        %9211 = vmatpush1.bf16.msra.mxu0 0
        %9212 = vmatprep.subr.bf16.mxu0 0
        %9213 = vmatpush1.bf16.msra.mxu0 0
        %9214 = vmatprep.subr.bf16.mxu0 0
        %9215 = vmatpush1.bf16.msra.mxu0 %v9195
        %9216 = vmatprep.subr.bf16.mxu0 0
        %9217 = vmatpush2.bf16.msra.mxu0 0
        %9218 = vmatprep.subr.bf16.mxu0 0
        %9219 = vmatpush2.bf16.msra.mxu0 0
        %9220 = vmatprep.subr.bf16.mxu0 0
        %9221 = vmatpush2.bf16.msra.mxu0 0
        %9222 = vmatprep.subr.bf16.mxu0 0
        %9223 = vmatpush2.bf16.msra.mxu0 0
        %9224 = vmatprep.subr.bf16.mxu0 0
        %9225 = vmatpush2.bf16.msra.mxu0 0
        %9226 = vmatprep.subr.bf16.mxu0 0
        %9227 = vmatpush2.bf16.msra.mxu0 0
        %9228 = vmatprep.subr.bf16.mxu0 0
        %9229 = vmatpush2.bf16.msra.mxu0 0
        %9230 = vmatprep.subr.bf16.mxu0 0
        %9231 = vmatpush2.bf16.msra.mxu0 0
        %9232 = vmatprep.mubr.bf16.mxu0 0
        %9233 = vmatmul.mubr.bf16.gmra.mxu0 %v9198
        %v9234 = vpop.f32.mrf.mxu0
        %v9235 = vadd.f32 0.0, %v9234
        %v9236 = vpop.f32.mrf.mxu0
        %v9237 = vpop.f32.mrf.mxu0
        %v9238 = vpop.f32.mrf.mxu0
        %9239 = vdwg.mxu0
        %s9240 = scalar_lea.vmem [#allocation16], 2
        %v9241 = vld [vmem:[%s9240] sm:$0x3]
        %v9243 = vsel %vm8266, %v9241, 0
        %9245 = vmatprep.subr.bf16.mxu0 0
        %9246 = vmatpush1.bf16.msra.mxu0 0
        %9247 = vmatprep.subr.bf16.mxu0 0
        %9248 = vmatpush1.bf16.msra.mxu0 0
        %9249 = vmatprep.subr.bf16.mxu0 0
        %9250 = vmatpush1.bf16.msra.mxu0 0
        %9251 = vmatprep.subr.bf16.mxu0 0
        %9252 = vmatpush1.bf16.msra.mxu0 0
        %9253 = vmatprep.subr.bf16.mxu0 0
        %9254 = vmatpush1.bf16.msra.mxu0 0
        %9255 = vmatprep.subr.bf16.mxu0 0
        %9256 = vmatpush1.bf16.msra.mxu0 0
        %9257 = vmatprep.subr.bf16.mxu0 0
        %9258 = vmatpush1.bf16.msra.mxu0 0
        %9259 = vmatprep.subr.bf16.mxu0 0
        %9260 = vmatpush1.bf16.msra.mxu0 %v9195
        %9261 = vmatprep.subr.bf16.mxu0 0
        %9262 = vmatpush2.bf16.msra.mxu0 0
        %9263 = vmatprep.subr.bf16.mxu0 0
        %9264 = vmatpush2.bf16.msra.mxu0 0
        %9265 = vmatprep.subr.bf16.mxu0 0
        %9266 = vmatpush2.bf16.msra.mxu0 0
        %9267 = vmatprep.subr.bf16.mxu0 0
        %9268 = vmatpush2.bf16.msra.mxu0 0
        %9269 = vmatprep.subr.bf16.mxu0 0
        %9270 = vmatpush2.bf16.msra.mxu0 0
        %9271 = vmatprep.subr.bf16.mxu0 0
        %9272 = vmatpush2.bf16.msra.mxu0 0
        %9273 = vmatprep.subr.bf16.mxu0 0
        %9274 = vmatpush2.bf16.msra.mxu0 0
        %9275 = vmatprep.subr.bf16.mxu0 0
        %9276 = vmatpush2.bf16.msra.mxu0 0
        %9277 = vmatprep.mubr.bf16.mxu0 0
        %9278 = vmatmul.mubr.bf16.gmra.mxu0 %v9243
        %v9279 = vpop.f32.mrf.mxu0
        %v9280 = vadd.f32 0.0, %v9279
        %v9281 = vpop.f32.mrf.mxu0
        %v9282 = vpop.f32.mrf.mxu0
        %v9283 = vpop.f32.mrf.mxu0
        %9284 = vdwg.mxu0
        %v9285 = vmax.f32 %v9235, %v9280
        %s9286 = scalar_lea.vmem [#allocation16], 4
        %v9287 = vld [vmem:[%s9286] sm:$0x3]
        %v9289 = vsel %vm8266, %v9287, 0
        %9291 = vmatprep.subr.bf16.mxu0 0
        %9292 = vmatpush1.bf16.msra.mxu0 0
        %9293 = vmatprep.subr.bf16.mxu0 0
        %9294 = vmatpush1.bf16.msra.mxu0 0
        %9295 = vmatprep.subr.bf16.mxu0 0
        %9296 = vmatpush1.bf16.msra.mxu0 0
        %9297 = vmatprep.subr.bf16.mxu0 0
        %9298 = vmatpush1.bf16.msra.mxu0 0
        %9299 = vmatprep.subr.bf16.mxu0 0
        %9300 = vmatpush1.bf16.msra.mxu0 0
        %9301 = vmatprep.subr.bf16.mxu0 0
        %9302 = vmatpush1.bf16.msra.mxu0 0
        %9303 = vmatprep.subr.bf16.mxu0 0
        %9304 = vmatpush1.bf16.msra.mxu0 0
        %9305 = vmatprep.subr.bf16.mxu0 0
        %9306 = vmatpush1.bf16.msra.mxu0 %v9195
        %9307 = vmatprep.subr.bf16.mxu0 0
        %9308 = vmatpush2.bf16.msra.mxu0 0
        %9309 = vmatprep.subr.bf16.mxu0 0
        %9310 = vmatpush2.bf16.msra.mxu0 0
        %9311 = vmatprep.subr.bf16.mxu0 0
        %9312 = vmatpush2.bf16.msra.mxu0 0
        %9313 = vmatprep.subr.bf16.mxu0 0
        %9314 = vmatpush2.bf16.msra.mxu0 0
        %9315 = vmatprep.subr.bf16.mxu0 0
        %9316 = vmatpush2.bf16.msra.mxu0 0
        %9317 = vmatprep.subr.bf16.mxu0 0
        %9318 = vmatpush2.bf16.msra.mxu0 0
        %9319 = vmatprep.subr.bf16.mxu0 0
        %9320 = vmatpush2.bf16.msra.mxu0 0
        %9321 = vmatprep.subr.bf16.mxu0 0
        %9322 = vmatpush2.bf16.msra.mxu0 0
        %9323 = vmatprep.mubr.bf16.mxu0 0
        %9324 = vmatmul.mubr.bf16.gmra.mxu0 %v9289
        %v9325 = vpop.f32.mrf.mxu0
        %v9326 = vadd.f32 0.0, %v9325
        %v9327 = vpop.f32.mrf.mxu0
        %v9328 = vpop.f32.mrf.mxu0
        %v9329 = vpop.f32.mrf.mxu0
        %9330 = vdwg.mxu0
        %v9331 = vmax.f32 %v9285, %v9326
        %s9332 = scalar_lea.vmem [#allocation16], 6
        %v9333 = vld [vmem:[%s9332] sm:$0x3]
        %v9335 = vsel %vm8266, %v9333, 0
        %9337 = vmatprep.subr.bf16.mxu0 0
        %9338 = vmatpush1.bf16.msra.mxu0 0
        %9339 = vmatprep.subr.bf16.mxu0 0
        %9340 = vmatpush1.bf16.msra.mxu0 0
        %9341 = vmatprep.subr.bf16.mxu0 0
        %9342 = vmatpush1.bf16.msra.mxu0 0
        %9343 = vmatprep.subr.bf16.mxu0 0
        %9344 = vmatpush1.bf16.msra.mxu0 0
        %9345 = vmatprep.subr.bf16.mxu0 0
        %9346 = vmatpush1.bf16.msra.mxu0 0
        %9347 = vmatprep.subr.bf16.mxu0 0
        %9348 = vmatpush1.bf16.msra.mxu0 0
        %9349 = vmatprep.subr.bf16.mxu0 0
        %9350 = vmatpush1.bf16.msra.mxu0 0
        %9351 = vmatprep.subr.bf16.mxu0 0
        %9352 = vmatpush1.bf16.msra.mxu0 %v9195
        %9353 = vmatprep.subr.bf16.mxu0 0
        %9354 = vmatpush2.bf16.msra.mxu0 0
        %9355 = vmatprep.subr.bf16.mxu0 0
        %9356 = vmatpush2.bf16.msra.mxu0 0
        %9357 = vmatprep.subr.bf16.mxu0 0
        %9358 = vmatpush2.bf16.msra.mxu0 0
        %9359 = vmatprep.subr.bf16.mxu0 0
        %9360 = vmatpush2.bf16.msra.mxu0 0
        %9361 = vmatprep.subr.bf16.mxu0 0
        %9362 = vmatpush2.bf16.msra.mxu0 0
        %9363 = vmatprep.subr.bf16.mxu0 0
        %9364 = vmatpush2.bf16.msra.mxu0 0
        %9365 = vmatprep.subr.bf16.mxu0 0
        %9366 = vmatpush2.bf16.msra.mxu0 0
        %9367 = vmatprep.subr.bf16.mxu0 0
        %9368 = vmatpush2.bf16.msra.mxu0 0
        %9369 = vmatprep.mubr.bf16.mxu0 0
        %9370 = vmatmul.mubr.bf16.gmra.mxu0 %v9335
        %v9371 = vpop.f32.mrf.mxu0
        %v9372 = vadd.f32 0.0, %v9371
        %v9373 = vpop.f32.mrf.mxu0
        %v9374 = vpop.f32.mrf.mxu0
        %v9375 = vpop.f32.mrf.mxu0
        %9376 = vdwg.mxu0
        %v9377 = vmax.f32 %v9331, %v9372
        %vm9378 = vcmask 1043456
        %v9379 = vsel %vm9378, %v9377, 0.0
        %v9380 = vrot.slane %v9379, 4
        %v9381 = vadd.f32 %v9379, %v9380
        %v9382 = vrot.slane %v9381, 2
        %v9383 = vadd.f32 %v9381, %v9382
        %v9384 = vrot.slane %v9383, 1
        %v9385 = vadd.f32 %v9383, %v9384
        %v9386 = vrcp.pop 4.0
        %v9387 = vmul.f32 %v9385, %v9386
        %v9388 = vld [vmem:[#allocation20] sm:$0xff]
        %v9389 = vld [vmem:[#allocation20 + $0x8] sm:$0xff]
        %v9390 = vld [vmem:[#allocation20 + $0x10] sm:$0xff]
        %v9391 = vld [vmem:[#allocation20 + $0x18] sm:$0xff]
        %v9392 = vld [vmem:[#allocation20 + $0x20] sm:$0xff]
        %v9393 = vld [vmem:[#allocation20 + $0x28] sm:$0xff]
        %v9394 = vld [vmem:[#allocation20 + $0x30] sm:$0xff]
        %v9395 = vld [vmem:[#allocation20 + $0x38] sm:$0xff]
        %v9396 = vld [vmem:[#allocation20 + $0x40] sm:$0xff]
        %v9397 = vld [vmem:[#allocation20 + $0x48] sm:$0xff]
        %v9398 = vld [vmem:[#allocation20 + $0x50] sm:$0xff]
        %v9399 = vld [vmem:[#allocation20 + $0x58] sm:$0xff]
        %v9400 = vld [vmem:[#allocation20 + $0x60] sm:$0xff]
        %v9401 = vld [vmem:[#allocation20 + $0x68] sm:$0xff]
        %v9402 = vld [vmem:[#allocation20 + $0x70] sm:$0xff]
        %v9403 = vld [vmem:[#allocation20 + $0x78] sm:$0xff]
        %v9404 = vld [vmem:[#allocation22] sm:$0x1]
        %9405 = vmatprep.subr.mxu0 0.0
        %9406 = vmatpush1.msra.mxu0 %v9403
        %9407 = vmatprep.subr.mxu0 0.0
        %9408 = vmatpush1.msra.mxu0 %v9402
        %9409 = vmatprep.subr.mxu0 0.0
        %9410 = vmatpush1.msra.mxu0 %v9401
        %9411 = vmatprep.subr.mxu0 0.0
        %9412 = vmatpush1.msra.mxu0 %v9400
        %9413 = vmatprep.subr.mxu0 0.0
        %9414 = vmatpush1.msra.mxu0 %v9399
        %9415 = vmatprep.subr.mxu0 0.0
        %9416 = vmatpush1.msra.mxu0 %v9398
        %9417 = vmatprep.subr.mxu0 0.0
        %9418 = vmatpush1.msra.mxu0 %v9397
        %9419 = vmatprep.subr.mxu0 0.0
        %9420 = vmatpush1.msra.mxu0 %v9396
        %9421 = vmatprep.subr.mxu0 0.0
        %9422 = vmatpush1.msra.mxu0 %v9395
        %9423 = vmatprep.subr.mxu0 0.0
        %9424 = vmatpush1.msra.mxu0 %v9394
        %9425 = vmatprep.subr.mxu0 0.0
        %9426 = vmatpush1.msra.mxu0 %v9393
        %9427 = vmatprep.subr.mxu0 0.0
        %9428 = vmatpush1.msra.mxu0 %v9392
        %9429 = vmatprep.subr.mxu0 0.0
        %9430 = vmatpush1.msra.mxu0 %v9391
        %9431 = vmatprep.subr.mxu0 0.0
        %9432 = vmatpush1.msra.mxu0 %v9390
        %9433 = vmatprep.subr.mxu0 0.0
        %9434 = vmatpush1.msra.mxu0 %v9389
        %9435 = vmatprep.subr.mxu0 0.0
        %9436 = vmatpush1.msra.mxu0 %v9388
        %9437 = vmatprep.subr.mxu0 0.0
        %9438 = vmatpush2.msra.mxu0 0.0
        %9439 = vmatprep.subr.mxu0 0.0
        %9440 = vmatpush2.msra.mxu0 0.0
        %9441 = vmatprep.subr.mxu0 0.0
        %9442 = vmatpush2.msra.mxu0 0.0
        %9443 = vmatprep.subr.mxu0 0.0
        %9444 = vmatpush2.msra.mxu0 0.0
        %9445 = vmatprep.subr.mxu0 0.0
        %9446 = vmatpush2.msra.mxu0 0.0
        %9447 = vmatprep.subr.mxu0 0.0
        %9448 = vmatpush2.msra.mxu0 0.0
        %9449 = vmatprep.subr.mxu0 0.0
        %9450 = vmatpush2.msra.mxu0 0.0
        %9451 = vmatprep.subr.mxu0 0.0
        %9452 = vmatpush2.msra.mxu0 0.0
        %9453 = vmatprep.subr.mxu0 0.0
        %9454 = vmatpush2.msra.mxu0 0.0
        %9455 = vmatprep.subr.mxu0 0.0
        %9456 = vmatpush2.msra.mxu0 0.0
        %9457 = vmatprep.subr.mxu0 0.0
        %9458 = vmatpush2.msra.mxu0 0.0
        %9459 = vmatprep.subr.mxu0 0.0
        %9460 = vmatpush2.msra.mxu0 0.0
        %9461 = vmatprep.subr.mxu0 0.0
        %9462 = vmatpush2.msra.mxu0 0.0
        %9463 = vmatprep.subr.mxu0 0.0
        %9464 = vmatpush2.msra.mxu0 0.0
        %9465 = vmatprep.subr.mxu0 0.0
        %9466 = vmatpush2.msra.mxu0 0.0
        %9467 = vmatprep.subr.mxu0 0.0
        %9468 = vmatpush2.msra.mxu0 0.0
        %9469 = vmatprep.mubr.f32.mxu0 0.0
        %9470 = vmatmul.mubr.f32.gmra.mxu0 %v9387
        %v9471 = vpop.f32.mrf.mxu0
        %v9472 = vadd.f32 %v9404, %v9471
        %v9473 = vpop.f32.mrf.mxu0
        %9474 = vdwg.mxu0
        %9475 = vst [vmem:[%s667] sm:$0x1] %v9472
        %s9476 = sand.u32 %s364, 1
        %s9477 = scalar_lea.sflag [#allocation4], %s9476
        %s9478 = sand.u32 %s364, 1
        %s9479 = scalar_lea.vmem [#allocation23], %s9478
        // Predicated region
        $region133: #{forward.1} parent=79 // pred_check
          %p9480 = pneg %p374
        $region134: #{forward.1} parent=79 // pred_check_branch
          %9482 = sbr.rel (%p9480) target = $region136
        $region135: #{forward.1} parent=79 // pred_region
          %s9484 = ssub.s32 16, 16
          %9485 = vsyncadd %s9477, %s9484
          %s9486 = smul.addr %s36, 16
          %s9487 = scalar_lea.hbm %s15, %s9486
          %s9489 = sshll.u32 %s9479, 4
          %s9490 = int_to_ptr.vmem [resolvable:$true] %s9489
          %9492 = dma.vmem_to_hbm [thread:$0]  %s9490, 16, %s9487, %s9477
        $region136: #{forward.1} parent=79 // pred_fallthru
          _
      $region80: #{forward.1} parent=5 // pred_fallthru
        _
      %p9493 = scmp.le.s32.totalorder 2, %s31
      // Predicated region
      $region137: #{forward.1} parent=5 // pred_check
        %p9494 = pneg %p9493
      $region138: #{forward.1} parent=5 // pred_check_branch
        %9496 = sbr.rel (%p9494) target = $region140
      $region139: #{forward.1} parent=5 // pred_region
        %s9497 = ssub.s32 %s31, 2
        // Predicated region
        $region141: #{forward.1} parent=139 // pred_check
          %p9498 = pneg %p380
        $region142: #{forward.1} parent=139 // pred_check_branch
          %9500 = sbr.rel (%p9498) target = $region144
        $region143: #{forward.1} parent=139 // pred_region
          %s9501 = sand.u32 %s365, 1
          %s9502 = scalar_lea.sflag [#allocation4], %s9501
          %s9503 = sand.u32 %s365, 1
          %s9504 = scalar_lea.vmem [#allocation23], %s9503
          %9505 = dma.done %s9502, 16
        $region144: #{forward.1} parent=139 // pred_fallthru
          _
      $region140: #{forward.1} parent=5 // pred_fallthru
        _
    $region6: #{forward.1} parent=1 // loop_footer
      %s35 = sadd.s32 1, %s31
    $region7: #{forward.1} parent=1 // loop_footer_branch
      %30 = sbr.rel target = $region3
    $region8: #{forward.1} parent=1 // loop_exit
      _
    %9506 = vsyncpa [#allocation3], 1
    %s9507 = scalar_lea.sflag [#allocation3], 1
    %9508 = vsyncpa %s9507, 1
    %9509 = vsyncpa [#allocation6], 1
    %9510 = vsyncpa [#allocation9], 1
    %9511 = vsyncpa [#allocation12], 1
    %9512 = vsyncpa [#allocation15], 1
    %9513 = vsyncpa [#allocation18], 1
    %9514 = vsyncpa [#allocation21], 1
    %9515 = vsyncpa [#allocation4], 1
    %s9516 = scalar_lea.sflag [#allocation4], 1
    %9517 = vsyncpa %s9516, 1

</llo_original>
